<compile_context>
chip_gen: v5e
topology: v5e:2x2
jax: 0.10.0
libtpu: 0.0.40
codegen_flags: <defaults>
</compile_context>

<pallas_src>
import jax
import jax.numpy as jnp
from jax.experimental import pallas as pl
from jax.experimental.pallas import tpu as pltpu

LANE = 128
NEG_INF = -1e30


# ---------------------------------------------------------------------------
# Fused kernel: grid = (phase, row_tile), phase in {0: transform, 1: agg1, 2: agg2}
# ---------------------------------------------------------------------------
def fused_gcn_kernel(x_ref, a_ref, w1_ref, b1_ref, w2_ref, b2_ref,
                     out_ref, p1_ref, p2_ref):
    phase = pl.program_id(0)
    tile = pl.program_id(1)
    tm = out_ref.shape[0]
    row0 = pl.multiple_of(tile * tm, tm)     # tm is a multiple of 128

    @pl.when(phase == 0)
    def _transform():
        # P1 rows = X_i @ W1   (row-local; P1 stays in VMEM scratch)
        p1_ref[pl.ds(row0, tm), :] = jnp.dot(
            x_ref[...], w1_ref[...], preferred_element_type=jnp.float32
        ).astype(p1_ref.dtype)

    @pl.when(phase == 1)
    def _aggregate_relu_transform():
        # P2 rows = relu(A_rows @ P1 + b1) @ W2
        a_rows = a_ref[pl.ds(row0, tm), :]
        h = jnp.dot(a_rows, p1_ref[...], preferred_element_type=jnp.float32)
        h = jnp.maximum(h + b1_ref[...], 0.0)
        # TODO(synk): F.dropout(x, training=self.training) is identity in eval
        # mode; training-mode dropout would use pltpu.prng_seed/prng_random_bits.
        p2_ref[pl.ds(row0, tm), :] = jnp.dot(
            h.astype(w2_ref.dtype), w2_ref[...],
            preferred_element_type=jnp.float32,
        ).astype(p2_ref.dtype)

    @pl.when(phase == 2)
    def _aggregate_log_softmax():
        # out rows = log_softmax(A_rows @ P2 + b2)
        a_rows = a_ref[pl.ds(row0, tm), :]
        z = jnp.dot(a_rows, p2_ref[...], preferred_element_type=jnp.float32)
        z = z + b2_ref[...]                  # padded class columns carry -1e30
        m = jnp.max(z, axis=1, keepdims=True)
        shifted = z - m
        lse = jnp.log(jnp.sum(jnp.exp(shifted), axis=1, keepdims=True))
        out_ref[...] = shifted - lse


# ---------------------------------------------------------------------------
# pallas_call wrapper
# ---------------------------------------------------------------------------
def _vmem_limit_bytes(n_pad, f_pad, h_pad, c_pad, tm, a_buffer_count=None):
    """Conservative scoped-VMEM request based on the actual resident footprint."""
    a_bufs = 2 if a_buffer_count is None else a_buffer_count
    a = a_bufs * n_pad * n_pad * 2                      # resident A_hat (bf16)
    x_tile = 2 * tm * f_pad * 2                         # double-buffered X tile
    out_tile = 2 * tm * c_pad * 4                       # double-buffered out tile
    scratch = n_pad * h_pad * 2 + n_pad * c_pad * 2     # P1 + P2 scratch
    weights = 2 * (f_pad * h_pad * 2 + h_pad * c_pad * 2 + h_pad * 4 + c_pad * 4)
    need = a + x_tile + out_tile + scratch + weights
    return max(int(need * 1.3) + (4 << 20), 32 << 20)


def gcn_forward(a_bf, x_bf, w1_bf, b1_f32, w2_bf, b2_f32, *,
                num_nodes, num_classes, tm=512, a_buffer_count=None):
    """Fused 2-layer GCN forward.

    Inputs are pre-padded: a_bf (n_pad, n_pad) bf16, x_bf (n_pad, f_pad) bf16,
    w1_bf (f_pad, h_pad) bf16, b1_f32 (1, h_pad) f32, w2_bf (h_pad, c_pad) bf16,
    b2_f32 (1, c_pad) f32 with -1e30 in padded class columns.
    Returns (num_nodes, num_classes) f32 log-probs.

    a_buffer_count=1 single-buffers the resident A block (use at real Cora scale
    on v7x, where 2 x ~18 MiB would crowd the 64 MiB VMEM).
    """
    n_pad = a_bf.shape[0]
    f_pad = x_bf.shape[1]
    h_pad = w1_bf.shape[1]
    c_pad = w2_bf.shape[1]
    assert tm % 128 == 0 and n_pad % tm == 0
    n_tiles = n_pad // tm

    a_spec_kwargs = {}
    if a_buffer_count is not None:
        a_spec_kwargs["pipeline_mode"] = pl.Buffered(a_buffer_count)

    grid_spec = pltpu.PrefetchScalarGridSpec(
        num_scalar_prefetch=0,
        grid=(3, n_tiles),                                 # (phase, row tile)
        in_specs=[
            # X row tile: only needed in phase 0; pin to block 0 otherwise so it
            # is not re-streamed from HBM during the aggregation phases.
            pl.BlockSpec((tm, f_pad),
                         lambda ph, i: (jnp.where(ph == 0, i, 0), 0)),
            # A_hat fully VMEM-resident (constant index -> fetched from HBM once).
            pl.BlockSpec((n_pad, n_pad), lambda ph, i: (0, 0), **a_spec_kwargs),
            pl.BlockSpec((f_pad, h_pad), lambda ph, i: (0, 0)),   # W1 resident
            pl.BlockSpec((1, h_pad), lambda ph, i: (0, 0)),       # b1 (f32)
            pl.BlockSpec((h_pad, c_pad), lambda ph, i: (0, 0)),   # W2 resident
            pl.BlockSpec((1, c_pad), lambda ph, i: (0, 0)),       # b2 (f32, -1e30 pad)
        ],
        # Output rows are only produced in phase 2; pin to block 0 before that
        # so no junk writebacks happen during phases 0/1.
        out_specs=pl.BlockSpec((tm, c_pad),
                               lambda ph, i: (jnp.where(ph == 2, i, 0), 0)),
        scratch_shapes=[
            pltpu.VMEM((n_pad, h_pad), jnp.bfloat16),   # P1 = X @ W1
            pltpu.VMEM((n_pad, c_pad), jnp.bfloat16),   # P2 = relu(A@P1+b1) @ W2
        ],
    )

    out = pl.pallas_call(
        fused_gcn_kernel,
        out_shape=jax.ShapeDtypeStruct((n_pad, c_pad), jnp.float32),
        grid_spec=grid_spec,
        compiler_params=pltpu.CompilerParams(
            # Row axis must be "arbitrary": phases 1/2 read P1/P2 scratch rows
            # written by ALL row tiles, and scratch is per-TensorCore.
            dimension_semantics=("arbitrary", "arbitrary"),
            vmem_limit_bytes=_vmem_limit_bytes(
                n_pad, f_pad, h_pad, c_pad, tm, a_buffer_count),
        ),
    )(x_bf, a_bf, w1_bf, b1_f32, w2_bf, b2_f32)
    return out[:num_nodes, :num_classes]


# ---------------------------------------------------------------------------
# Graph / parameter construction (plain-JAX glue, hoisted out of the forward)
# ---------------------------------------------------------------------------
def _round_up(x, m):
    return (x + m - 1) // m * m


def _pad2d(x, rows, cols):
    r, c = x.shape
    return jnp.pad(x, ((0, rows - r), (0, cols - c)))


def build_normalized_adjacency(edge_index, num_nodes, n_pad):
    """Dense D^-1/2 (A + I) D^-1/2, normalized in f32, returned padded in bf16."""
    # TODO(synk): symmetrization differs from PyG GCNConv for strictly-directed
    # edge_index; a sparse/gathered aggregation (CSR + scalar prefetch) is the
    # long-term lever for graphs much larger than Cora.
    src, dst = edge_index[0], edge_index[1]
    adj = jnp.zeros((num_nodes, num_nodes), jnp.float32)
    adj = adj.at[src, dst].set(1.0)
    adj = jnp.maximum(adj, adj.T)                       # symmetrize
    adj = adj + jnp.eye(num_nodes, dtype=jnp.float32)   # self loops
    deg = jnp.sum(adj, axis=1)
    d_inv_sqrt = jnp.where(deg > 0, jax.lax.rsqrt(deg), 0.0)
    a_hat = adj * d_inv_sqrt[:, None] * d_inv_sqrt[None, :]
    return _pad2d(a_hat, n_pad, n_pad).astype(jnp.bfloat16)


def pad_features(x, n_pad, f_pad):
    return _pad2d(x.astype(jnp.float32), n_pad, f_pad).astype(jnp.bfloat16)


def pad_gcn_params(w1, b1, w2, b2, f_pad, h_pad, c_pad):
    n_classes = w2.shape[1]
    w1_bf = _pad2d(w1.astype(jnp.float32), f_pad, h_pad).astype(jnp.bfloat16)
    w2_bf = _pad2d(w2.astype(jnp.float32), h_pad, c_pad).astype(jnp.bfloat16)
    b1_f32 = _pad2d(b1.reshape(1, -1).astype(jnp.float32), 1, h_pad)
    # Padded class columns get a -1e30 bias so log_softmax over c_pad lanes
    # matches log_softmax over the real n_classes.
    b2_f32 = jnp.full((1, c_pad), NEG_INF, jnp.float32)
    b2_f32 = b2_f32.at[:, :n_classes].set(b2.reshape(1, -1).astype(jnp.float32))
    return w1_bf, b1_f32, w2_bf, b2_f32


def glorot(key, shape):
    fan_in, fan_out = shape
    limit = jnp.sqrt(6.0 / (fan_in + fan_out))
    return jax.random.uniform(key, shape, jnp.float32, -limit, limit)


def gcn_reference(a_bf, x_bf, w1_bf, b1_f32, w2_bf, b2_f32, num_nodes, num_classes):
    """Pure-JAX reference mirroring the kernel's bf16-input / f32-accum math."""
    p1 = jnp.dot(x_bf, w1_bf, preferred_element_type=jnp.float32).astype(jnp.bfloat16)
    h = jnp.maximum(jnp.dot(a_bf, p1, preferred_element_type=jnp.float32) + b1_f32, 0.0)
    p2 = jnp.dot(h.astype(jnp.bfloat16), w2_bf,
                 preferred_element_type=jnp.float32).astype(jnp.bfloat16)
    z = jnp.dot(a_bf, p2, preferred_element_type=jnp.float32) + b2_f32
    return jax.nn.log_softmax(z, axis=1)[:num_nodes, :num_classes]


if __name__ == "__main__":
    # Synthetic Cora-like graph. (Real Cora: N=2708, F=1433, C=7 -> n_pad=3072,
    # TM=512 -> 6 row tiles; resident bf16 A_hat is ~18 MiB and the computed
    # vmem_limit covers it; pass a_buffer_count=1 on v7x.)
    N_NODES = 1000
    F_IN = 96
    HIDDEN = 16
    N_CLASSES = 7
    N_EDGES = 4000
    TM = 512          # review: 384-512 amortizes the ~0.35 us per-step overhead

    key = jax.random.PRNGKey(0)
    k_x, k_e, k_w1, k_w2 = jax.random.split(key, 4)

    x = jax.random.normal(k_x, (N_NODES, F_IN), jnp.float32)
    edge_index = jax.random.randint(k_e, (2, N_EDGES), 0, N_NODES, jnp.int32)
    w1 = glorot(k_w1, (F_IN, HIDDEN))
    b1 = jnp.zeros((HIDDEN,), jnp.float32)
    w2 = glorot(k_w2, (HIDDEN, N_CLASSES))
    b2 = jnp.zeros((N_CLASSES,), jnp.float32)

    n_pad = _round_up(N_NODES, TM)
    f_pad = _round_up(F_IN, LANE)
    h_pad = _round_up(HIDDEN, LANE)
    c_pad = _round_up(N_CLASSES, LANE)

    # Graph / features / params built pre-padded in bf16, hoisted out of the
    # forward path (no per-call N^2 pad+cast HBM pass).
    a_bf = build_normalized_adjacency(edge_index, N_NODES, n_pad)
    x_bf = pad_features(x, n_pad, f_pad)
    w1_bf, b1_f32, w2_bf, b2_f32 = pad_gcn_params(w1, b1, w2, b2, f_pad, h_pad, c_pad)

    out = gcn_forward(a_bf, x_bf, w1_bf, b1_f32, w2_bf, b2_f32,
                      num_nodes=N_NODES, num_classes=N_CLASSES, tm=TM)
    out = jax.block_until_ready(out)

    # Checks: shape, valid log-probs, and agreement with a bf16-matched reference.
    assert out.shape == (N_NODES, N_CLASSES)
    assert bool(jnp.all(jnp.isfinite(out)))
    row_sums = jnp.sum(jnp.exp(out), axis=1)
    assert bool(jnp.all(jnp.abs(row_sums - 1.0) < 1e-3))
    ref = gcn_reference(a_bf, x_bf, w1_bf, b1_f32, w2_bf, b2_f32,
                        N_NODES, N_CLASSES)
    assert bool(jnp.allclose(out, ref, atol=2e-2, rtol=2e-2))

    print("KERNEL_OK")
</pallas_src>

<mosaic_0001>
module attributes {stable_mosaic.version = 11 : i64} {
  func.func @fused_gcn_kernel(%arg0: i32, %arg1: i32, %arg2: memref<512x128xbf16, #tpu.memory_space<vmem>>, %arg3: memref<1024x1024xbf16, #tpu.memory_space<vmem>>, %arg4: memref<128x128xbf16, #tpu.memory_space<vmem>>, %arg5: memref<1x128xf32, #tpu.memory_space<vmem>>, %arg6: memref<128x128xbf16, #tpu.memory_space<vmem>>, %arg7: memref<1x128xf32, #tpu.memory_space<vmem>>, %arg8: memref<512x128xf32, #tpu.memory_space<vmem>>, %arg9: memref<1024x128xbf16, #tpu.memory_space<vmem>>, %arg10: memref<1024x128xbf16, #tpu.memory_space<vmem>>) attributes {dimension_semantics = [#tpu.dimension_semantics<arbitrary>, #tpu.dimension_semantics<arbitrary>], iteration_bounds = array<i64: 3, 2>, scalar_prefetch = 0 : i64, scratch_operands = 2 : i64, tpu.core_type = #tpu.core_type<tc>, window_params = [{transform_indices = @transform_0, window_bounds = array<i64: 512, 128>}, {pipeline_mode = #tpu.pipeline_mode<synchronous>, transform_indices = @transform_1, window_bounds = array<i64: 1024, 1024>}, {pipeline_mode = #tpu.pipeline_mode<synchronous>, transform_indices = @transform_2, window_bounds = array<i64: 128, 128>}, {pipeline_mode = #tpu.pipeline_mode<synchronous>, transform_indices = @transform_3, window_bounds = array<i64: 1, 128>}, {pipeline_mode = #tpu.pipeline_mode<synchronous>, transform_indices = @transform_4, window_bounds = array<i64: 128, 128>}, {pipeline_mode = #tpu.pipeline_mode<synchronous>, transform_indices = @transform_5, window_bounds = array<i64: 1, 128>}, {transform_indices = @transform_6, window_bounds = array<i64: 512, 128>}]} {
    %c512_i32 = arith.constant 512 : i32
    %0 = arith.muli %arg1, %c512_i32 : i32
    %1 = tpu.assume_multiple %0, 512 : i32
    %c0_i32 = arith.constant 0 : i32
    %2 = arith.cmpi eq, %arg0, %c0_i32 : i32
    %3 = arith.extui %2 : i1 to i32
    %c0_i32_0 = arith.constant 0 : i32
    %4 = arith.cmpi ne, %3, %c0_i32_0 : i32
    scf.if %4 {
      %c0 = arith.constant 0 : index
      %c0_3 = arith.constant 0 : index
      %11 = vector.load %arg2[%c0, %c0_3] : memref<512x128xbf16, #tpu.memory_space<vmem>>, vector<512x128xbf16>
      %c0_4 = arith.constant 0 : index
      %c0_5 = arith.constant 0 : index
      %12 = vector.load %arg4[%c0_4, %c0_5] : memref<128x128xbf16, #tpu.memory_space<vmem>>, vector<128x128xbf16>
      %cst = arith.constant dense<0.000000e+00> : vector<512x128xf32>
      %13 = tpu.matmul %11, %12, %cst {dimension_numbers = #tpu.dot_dimension_numbers<[1], [0], [0], [1], [0, 0, 1, 1], [], []>} : vector<512x128xbf16>, vector<128x128xbf16>, vector<512x128xf32> -> vector<512x128xf32>
      %14 = arith.truncf %13 : vector<512x128xf32> to vector<512x128xbf16>
      %15 = arith.index_cast %1 : i32 to index
      %c0_6 = arith.constant 0 : index
      %16 = vector.load %arg9[%15, %c0_6] : memref<1024x128xbf16, #tpu.memory_space<vmem>>, vector<512x128xbf16>
      tpu.vector_store %arg9[%15, %c0_6], %14 {strides = array<i32>} : memref<1024x128xbf16, #tpu.memory_space<vmem>>, vector<512x128xbf16>,
    } else {
    }
    %c1_i32 = arith.constant 1 : i32
    %5 = arith.cmpi eq, %arg0, %c1_i32 : i32
    %6 = arith.extui %5 : i1 to i32
    %c0_i32_1 = arith.constant 0 : i32
    %7 = arith.cmpi ne, %6, %c0_i32_1 : i32
    scf.if %7 {
      %11 = arith.index_cast %1 : i32 to index
      %c0 = arith.constant 0 : index
      %12 = vector.load %arg3[%11, %c0] : memref<1024x1024xbf16, #tpu.memory_space<vmem>>, vector<512x1024xbf16>
      %c0_3 = arith.constant 0 : index
      %c0_4 = arith.constant 0 : index
      %13 = vector.load %arg9[%c0_3, %c0_4] : memref<1024x128xbf16, #tpu.memory_space<vmem>>, vector<1024x128xbf16>
      %cst = arith.constant dense<0.000000e+00> : vector<512x128xf32>
      %14 = tpu.matmul %12, %13, %cst {dimension_numbers = #tpu.dot_dimension_numbers<[1], [0], [0], [1], [0, 0, 1, 1], [], []>} : vector<512x1024xbf16>, vector<1024x128xbf16>, vector<512x128xf32> -> vector<512x128xf32>
      %c0_5 = arith.constant 0 : index
      %c0_6 = arith.constant 0 : index
      %15 = vector.load %arg5[%c0_5, %c0_6] : memref<1x128xf32, #tpu.memory_space<vmem>>, vector<1x128xf32>
      %16 = vector.broadcast %15 : vector<1x128xf32> to vector<512x128xf32>
      %17 = arith.addf %14, %16 : vector<512x128xf32>
      %cst_7 = arith.constant 0.000000e+00 : f32
      %18 = vector.broadcast %cst_7 : f32 to vector<512x128xf32>
      %19 = arith.maximumf %17, %18 : vector<512x128xf32>
      %20 = arith.truncf %19 : vector<512x128xf32> to vector<512x128xbf16>
      %c0_8 = arith.constant 0 : index
      %c0_9 = arith.constant 0 : index
      %21 = vector.load %arg6[%c0_8, %c0_9] : memref<128x128xbf16, #tpu.memory_space<vmem>>, vector<128x128xbf16>
      %cst_10 = arith.constant dense<0.000000e+00> : vector<512x128xf32>
      %22 = tpu.matmul %20, %21, %cst_10 {dimension_numbers = #tpu.dot_dimension_numbers<[1], [0], [0], [1], [0, 0, 1, 1], [], []>} : vector<512x128xbf16>, vector<128x128xbf16>, vector<512x128xf32> -> vector<512x128xf32>
      %23 = arith.truncf %22 : vector<512x128xf32> to vector<512x128xbf16>
      %24 = arith.index_cast %1 : i32 to index
      %c0_11 = arith.constant 0 : index
      %25 = vector.load %arg10[%24, %c0_11] : memref<1024x128xbf16, #tpu.memory_space<vmem>>, vector<512x128xbf16>
      tpu.vector_store %arg10[%24, %c0_11], %23 {strides = array<i32>} : memref<1024x128xbf16, #tpu.memory_space<vmem>>, vector<512x128xbf16>,
    } else {
    }
    %c2_i32 = arith.constant 2 : i32
    %8 = arith.cmpi eq, %arg0, %c2_i32 : i32
    %9 = arith.extui %8 : i1 to i32
    %c0_i32_2 = arith.constant 0 : i32
    %10 = arith.cmpi ne, %9, %c0_i32_2 : i32
    scf.if %10 {
      %11 = arith.index_cast %1 : i32 to index
      %c0 = arith.constant 0 : index
      %12 = vector.load %arg3[%11, %c0] : memref<1024x1024xbf16, #tpu.memory_space<vmem>>, vector<512x1024xbf16>
      %c0_3 = arith.constant 0 : index
      %c0_4 = arith.constant 0 : index
      %13 = vector.load %arg10[%c0_3, %c0_4] : memref<1024x128xbf16, #tpu.memory_space<vmem>>, vector<1024x128xbf16>
      %cst = arith.constant dense<0.000000e+00> : vector<512x128xf32>
      %14 = tpu.matmul %12, %13, %cst {dimension_numbers = #tpu.dot_dimension_numbers<[1], [0], [0], [1], [0, 0, 1, 1], [], []>} : vector<512x1024xbf16>, vector<1024x128xbf16>, vector<512x128xf32> -> vector<512x128xf32>
      %c0_5 = arith.constant 0 : index
      %c0_6 = arith.constant 0 : index
      %15 = vector.load %arg7[%c0_5, %c0_6] : memref<1x128xf32, #tpu.memory_space<vmem>>, vector<1x128xf32>
      %16 = vector.broadcast %15 : vector<1x128xf32> to vector<512x128xf32>
      %17 = arith.addf %14, %16 : vector<512x128xf32>
      %cst_7 = arith.constant dense<0xFF800000> : vector<512xf32>
      %18 = vector.multi_reduction <maximumf>, %17, %cst_7 [1] : vector<512x128xf32> to vector<512xf32>
      %19 = vector.shape_cast %18 : vector<512xf32> to vector<512x1xf32>
      %20 = vector.broadcast %19 : vector<512x1xf32> to vector<512x128xf32>
      %21 = arith.subf %17, %20 : vector<512x128xf32>
      %22 = math.exp %21 : vector<512x128xf32>
      %cst_8 = arith.constant dense<0.000000e+00> : vector<512xf32>
      %23 = vector.multi_reduction <add>, %22, %cst_8 [1] : vector<512x128xf32> to vector<512xf32>
      %24 = vector.shape_cast %23 : vector<512xf32> to vector<512x1xf32>
      %25 = math.log %24 : vector<512x1xf32>
      %26 = vector.broadcast %25 : vector<512x1xf32> to vector<512x128xf32>
      %27 = arith.subf %21, %26 : vector<512x128xf32>
      %c0_9 = arith.constant 0 : index
      %c0_10 = arith.constant 0 : index
      %28 = vector.load %arg8[%c0_9, %c0_10] : memref<512x128xf32, #tpu.memory_space<vmem>>, vector<512x128xf32>
      tpu.vector_store %arg8[%c0_9, %c0_10], %27 {strides = array<i32>} : memref<512x128xf32, #tpu.memory_space<vmem>>, vector<512x128xf32>,
    } else {
    }
    return
  }
  func.func @transform_0(%arg0: i32, %arg1: i32) -> (i32, i32) {
    %c0_i32 = arith.constant 0 : i32
    %0 = arith.cmpi eq, %arg0, %c0_i32 : i32
    %c0_i32_0 = arith.constant 0 : i32
    %1 = arith.select %0, %arg1, %c0_i32_0 : i32
    %c0_i32_1 = arith.constant 0 : i32
    %c0_i32_2 = arith.constant 0 : i32
    return %1, %c0_i32_1 : i32, i32
  }
  func.func @transform_1(%arg0: i32, %arg1: i32) -> (i32, i32) {
    %c0_i32 = arith.constant 0 : i32
    %c0_i32_0 = arith.constant 0 : i32
    %c0_i32_1 = arith.constant 0 : i32
    return %c0_i32, %c0_i32_0 : i32, i32
  }
  func.func @transform_2(%arg0: i32, %arg1: i32) -> (i32, i32) {
    %c0_i32 = arith.constant 0 : i32
    %c0_i32_0 = arith.constant 0 : i32
    %c0_i32_1 = arith.constant 0 : i32
    return %c0_i32, %c0_i32_0 : i32, i32
  }
  func.func @transform_3(%arg0: i32, %arg1: i32) -> (i32, i32) {
    %c0_i32 = arith.constant 0 : i32
    %c0_i32_0 = arith.constant 0 : i32
    %c0_i32_1 = arith.constant 0 : i32
    return %c0_i32, %c0_i32_0 : i32, i32
  }
  func.func @transform_4(%arg0: i32, %arg1: i32) -> (i32, i32) {
    %c0_i32 = arith.constant 0 : i32
    %c0_i32_0 = arith.constant 0 : i32
    %c0_i32_1 = arith.constant 0 : i32
    return %c0_i32, %c0_i32_0 : i32, i32
  }
  func.func @transform_5(%arg0: i32, %arg1: i32) -> (i32, i32) {
    %c0_i32 = arith.constant 0 : i32
    %c0_i32_0 = arith.constant 0 : i32
    %c0_i32_1 = arith.constant 0 : i32
    return %c0_i32, %c0_i32_0 : i32, i32
  }
  func.func @transform_6(%arg0: i32, %arg1: i32) -> (i32, i32) {
    %c2_i32 = arith.constant 2 : i32
    %0 = arith.cmpi eq, %arg0, %c2_i32 : i32
    %c0_i32 = arith.constant 0 : i32
    %1 = arith.select %0, %arg1, %c0_i32 : i32
    %c0_i32_0 = arith.constant 0 : i32
    %c0_i32_1 = arith.constant 0 : i32
    return %1, %c0_i32_0 : i32, i32
  }
}

</mosaic_0001>

<llo_original>
// kernel: tpu_custom_call.1
$region0: #{tpu_custom_call.1}
  #allocation0 [shape = 'u32[]', space=smem, size = 0x4, offset = 0x4, fixed_abs, tag = 'smem constant byte address 0x4 - core index']
  #allocation1 [shape = 'u32[72,128]{1,0:T(1,128)}', space=vmem, size = 0x9000, scoped, tag = 'internal scratch']
  #allocation2 [shape = 'bf16[1024,128]{1,0:T(8,128)(2,1)}', space=vmem, size = 0x40000, scoped, tag = 'scratch operand']
  #allocation3 [shape = 'bf16[1024,128]{1,0:T(8,128)(2,1)}', space=vmem, size = 0x40000, scoped, tag = 'scratch operand']
  %s0 = inlined_call_operand.hbm [shape: bf16[1024,128], index: 0, kind: input, shape index: {}]
  %s1 = inlined_call_operand.hbm [shape: bf16[1024,1024], index: 1, kind: input, shape index: {}]
  %s2 = inlined_call_operand.hbm [shape: bf16[128,128], index: 2, kind: input, shape index: {}]
  %s3 = inlined_call_operand.hbm [shape: f32[1,128], index: 3, kind: input, shape index: {}]
  %s4 = inlined_call_operand.hbm [shape: bf16[128,128], index: 4, kind: input, shape index: {}]
  %s5 = inlined_call_operand.hbm [shape: f32[1,128], index: 5, kind: input, shape index: {}]
  %s6 = inlined_call_operand.hbm [shape: f32[1024,128], index: 6, kind: output, shape index: {}]
  %s7 = sld [smem:[#allocation0]]
  $region93: #{tpu_custom_call.1} parent=0
    _
  %s9 = ssub.s32 1, %s7
  %s10 = scalar_select 0, %s9, %s7
  $region1: #{tpu_custom_call.1} parent=0
    #allocation4 [shape = 'u8[262144]{0}', space=vmem, size = 0x40000, scoped, tag = 'input window, operand 0']
    #allocation5 [shape = 's32[2]{0}', space=sflag, size = 0x8, scoped, tag = 'scoped memory for tpu_custom_call.1']
    #allocation6 [shape = 's32[2]{0}', space=sflag, size = 0x8, scoped, tag = 'scoped memory for tpu_custom_call.1']
    #allocation7 [shape = 'u8[2097152]{0}', space=vmem, size = 0x200000, scoped, tag = 'input window, operand 1, single buffered']
    #allocation8 [shape = 's32[1]{0}', space=sflag, size = 0x4, scoped, tag = 'scoped memory for tpu_custom_call.1']
    #allocation9 [shape = 'u8[32768]{0}', space=vmem, size = 0x8000, scoped, tag = 'input window, operand 2, single buffered']
    #allocation10 [shape = 'u8[512]{0}', space=vmem, size = 0x400, scoped, tag = 'input window, operand 3, single buffered']
    #allocation11 [shape = 's32[1]{0}', space=sflag, size = 0x4, scoped, tag = 'scoped memory for tpu_custom_call.1']
    #allocation12 [shape = 'u8[32768]{0}', space=vmem, size = 0x8000, scoped, tag = 'input window, operand 4, single buffered']
    #allocation13 [shape = 'u8[512]{0}', space=vmem, size = 0x400, scoped, tag = 'input window, operand 5, single buffered']
    #allocation14 [shape = 's32[1]{0}', space=sflag, size = 0x4, scoped, tag = 'scoped memory for tpu_custom_call.1']
    #allocation15 [shape = 'u8[524288]{0}', space=vmem, size = 0x80000, scoped, tag = 'output window, operand 0']
    %11 = vsyncpa [#allocation5], 0
    %s12 = scalar_lea.sflag [#allocation5], 1
    %13 = vsyncpa %s12, 0
    %14 = vsyncpa [#allocation8], 0
    %15 = vsyncpa [#allocation11], 0
    %16 = vsyncpa [#allocation14], 0
    %17 = vsyncpa [#allocation6], 0
    %s18 = scalar_lea.sflag [#allocation6], 1
    %19 = vsyncpa %s18, 0
    loop: start=0, step=1, limit=8
    $region2: #{tpu_custom_call.1} parent=1 // loop_pre_header
      _
    $region3: #{tpu_custom_call.1} parent=1 // loop_header
      %s21 = sphi 0, %s25
      %p22 = scmp.ge.s32.totalorder %s21, 8
      %s28 = sphi 0, %s40
      %s29 = sphi 0, %s36
      %s30 = sphi 0, %s28
      %s31 = sphi 0, %s29
      %s32 = sphi 0, %s30
      %s33 = sphi 0, %s31
      %s47 = sphi 0, %s49
      %s50 = sphi 0, %s47
      %s51 = sphi 0, %s50
      %s67 = sphi 0, %s51
      %s71 = sphi 0, %s71
      %s73 = sphi 0, %s71
      %s74 = sphi 0, %s73
      %s88 = sphi 0, %s74
      %s92 = sphi 0, %s92
      %s94 = sphi 0, %s92
      %s95 = sphi 0, %s94
      %s109 = sphi 0, %s95
      %s113 = sphi 0, %s113
      %s115 = sphi 0, %s113
      %s116 = sphi 0, %s115
      %s130 = sphi 0, %s116
      %s134 = sphi 0, %s134
      %s136 = sphi 0, %s134
      %s137 = sphi 0, %s136
      %s151 = sphi 0, %s137
      %s155 = sphi 0, %s155
      %s157 = sphi 0, %s155
      %s158 = sphi 0, %s157
      %s172 = sphi 0, %s158
      %s182 = sphi 0, %s184
      %s185 = sphi 0, %s182
      %s186 = sphi 0, %s185
      %s202 = sphi 0, %s186
    $region4: #{tpu_custom_call.1} parent=1 // loop_header_branch
      %24 = sbr.rel (%p22) target = $region8
    $region5: #{tpu_custom_call.1} parent=1 // loop_body
      %s26 = ssub.s32 %s21, 1
      %s27 = ssub.s32 %s21, 2
      %s34 = sadd.s32 1, %s29
      %p35 = scmp.ge.s32.totalorder %s34, 2
      %s36 = scalar_select %p35, 0, %s34
      %s37 = sadd.s32 1, %s28
      %s38 = scalar_select %p35, %s37, %s28
      %p39 = scmp.ge.s32.totalorder %s38, 3
      %s40 = scalar_select %p39, 0, %s38
      %p41 = scmp.eq.s32.totalorder %s28, 0
      %s42 = scalar_select %p41, %s29, 0
      %p43 = scmp.eq.s32.totalorder %s40, 0
      %s44 = scalar_select %p43, %s36, 0
      %s45 = ssub.s32 %s42, %s44
      %p46 = scmp.eq.s32.totalorder %s45, 0
      %s48 = sadd.s32 %s47, 1
      %s49 = scalar_select %p46, %s47, %s48
      %p52 = pneg %p46
      %p53 = scmp.eq.s32.totalorder %s21, 5
      %p54 = por %p52, %p53
      %p55 = scmp.ne.s32.totalorder %s47, %s50
      %p56 = scmp.eq.s32.totalorder %s21, 0
      %p57 = por %p55, %p56
      %p58 = scmp.ne.s32.totalorder %s47, %s50
      %p59 = scmp.eq.s32.totalorder %s26, 5
      %p60 = por %p58, %p59
      %p61 = scmp.ne.s32.totalorder %s50, %s51
      %p62 = scmp.eq.s32.totalorder %s26, 0
      %p63 = por %p61, %p62
      %p64 = scmp.ne.s32.totalorder %s50, %s51
      %p65 = scmp.eq.s32.totalorder %s27, 5
      %p66 = por %p64, %p65
      %p68 = scmp.ne.s32.totalorder %s51, %s67
      %p69 = scmp.eq.s32.totalorder %s27, 0
      %p70 = por %p68, %p69
      %s72 = sadd.s32 %s71, 1
      %p75 = scmp.eq.s32.totalorder %s21, 5
      %p76 = scmp.ne.s32.totalorder %s71, %s73
      %p77 = scmp.eq.s32.totalorder %s21, 0
      %p78 = por %p76, %p77
      %p79 = scmp.ne.s32.totalorder %s71, %s73
      %p80 = scmp.eq.s32.totalorder %s26, 5
      %p81 = por %p79, %p80
      %p82 = scmp.ne.s32.totalorder %s73, %s74
      %p83 = scmp.eq.s32.totalorder %s26, 0
      %p84 = por %p82, %p83
      %p85 = scmp.ne.s32.totalorder %s73, %s74
      %p86 = scmp.eq.s32.totalorder %s27, 5
      %p87 = por %p85, %p86
      %p89 = scmp.ne.s32.totalorder %s74, %s88
      %p90 = scmp.eq.s32.totalorder %s27, 0
      %p91 = por %p89, %p90
      %s93 = sadd.s32 %s92, 1
      %p96 = scmp.eq.s32.totalorder %s21, 5
      %p97 = scmp.ne.s32.totalorder %s92, %s94
      %p98 = scmp.eq.s32.totalorder %s21, 0
      %p99 = por %p97, %p98
      %p100 = scmp.ne.s32.totalorder %s92, %s94
      %p101 = scmp.eq.s32.totalorder %s26, 5
      %p102 = por %p100, %p101
      %p103 = scmp.ne.s32.totalorder %s94, %s95
      %p104 = scmp.eq.s32.totalorder %s26, 0
      %p105 = por %p103, %p104
      %p106 = scmp.ne.s32.totalorder %s94, %s95
      %p107 = scmp.eq.s32.totalorder %s27, 5
      %p108 = por %p106, %p107
      %p110 = scmp.ne.s32.totalorder %s95, %s109
      %p111 = scmp.eq.s32.totalorder %s27, 0
      %p112 = por %p110, %p111
      %s114 = sadd.s32 %s113, 1
      %p117 = scmp.eq.s32.totalorder %s21, 5
      %p118 = scmp.ne.s32.totalorder %s113, %s115
      %p119 = scmp.eq.s32.totalorder %s21, 0
      %p120 = por %p118, %p119
      %p121 = scmp.ne.s32.totalorder %s113, %s115
      %p122 = scmp.eq.s32.totalorder %s26, 5
      %p123 = por %p121, %p122
      %p124 = scmp.ne.s32.totalorder %s115, %s116
      %p125 = scmp.eq.s32.totalorder %s26, 0
      %p126 = por %p124, %p125
      %p127 = scmp.ne.s32.totalorder %s115, %s116
      %p128 = scmp.eq.s32.totalorder %s27, 5
      %p129 = por %p127, %p128
      %p131 = scmp.ne.s32.totalorder %s116, %s130
      %p132 = scmp.eq.s32.totalorder %s27, 0
      %p133 = por %p131, %p132
      %s135 = sadd.s32 %s134, 1
      %p138 = scmp.eq.s32.totalorder %s21, 5
      %p139 = scmp.ne.s32.totalorder %s134, %s136
      %p140 = scmp.eq.s32.totalorder %s21, 0
      %p141 = por %p139, %p140
      %p142 = scmp.ne.s32.totalorder %s134, %s136
      %p143 = scmp.eq.s32.totalorder %s26, 5
      %p144 = por %p142, %p143
      %p145 = scmp.ne.s32.totalorder %s136, %s137
      %p146 = scmp.eq.s32.totalorder %s26, 0
      %p147 = por %p145, %p146
      %p148 = scmp.ne.s32.totalorder %s136, %s137
      %p149 = scmp.eq.s32.totalorder %s27, 5
      %p150 = por %p148, %p149
      %p152 = scmp.ne.s32.totalorder %s137, %s151
      %p153 = scmp.eq.s32.totalorder %s27, 0
      %p154 = por %p152, %p153
      %s156 = sadd.s32 %s155, 1
      %p159 = scmp.eq.s32.totalorder %s21, 5
      %p160 = scmp.ne.s32.totalorder %s155, %s157
      %p161 = scmp.eq.s32.totalorder %s21, 0
      %p162 = por %p160, %p161
      %p163 = scmp.ne.s32.totalorder %s155, %s157
      %p164 = scmp.eq.s32.totalorder %s26, 5
      %p165 = por %p163, %p164
      %p166 = scmp.ne.s32.totalorder %s157, %s158
      %p167 = scmp.eq.s32.totalorder %s26, 0
      %p168 = por %p166, %p167
      %p169 = scmp.ne.s32.totalorder %s157, %s158
      %p170 = scmp.eq.s32.totalorder %s27, 5
      %p171 = por %p169, %p170
      %p173 = scmp.ne.s32.totalorder %s158, %s172
      %p174 = scmp.eq.s32.totalorder %s27, 0
      %p175 = por %p173, %p174
      %p176 = scmp.eq.s32.totalorder %s28, 2
      %s177 = scalar_select %p176, %s29, 0
      %p178 = scmp.eq.s32.totalorder %s40, 2
      %s179 = scalar_select %p178, %s36, 0
      %s180 = ssub.s32 %s177, %s179
      %p181 = scmp.eq.s32.totalorder %s180, 0
      %s183 = sadd.s32 %s182, 1
      %s184 = scalar_select %p181, %s182, %s183
      %p187 = pneg %p181
      %p188 = scmp.eq.s32.totalorder %s21, 5
      %p189 = por %p187, %p188
      %p190 = scmp.ne.s32.totalorder %s182, %s185
      %p191 = scmp.eq.s32.totalorder %s21, 0
      %p192 = por %p190, %p191
      %p193 = scmp.ne.s32.totalorder %s182, %s185
      %p194 = scmp.eq.s32.totalorder %s26, 5
      %p195 = por %p193, %p194
      %p196 = scmp.ne.s32.totalorder %s185, %s186
      %p197 = scmp.eq.s32.totalorder %s26, 0
      %p198 = por %p196, %p197
      %p199 = scmp.ne.s32.totalorder %s185, %s186
      %p200 = scmp.eq.s32.totalorder %s27, 5
      %p201 = por %p199, %p200
      %p203 = scmp.ne.s32.totalorder %s186, %s202
      %p204 = scmp.eq.s32.totalorder %s27, 0
      %p205 = por %p203, %p204
      %p206 = scmp.le.s32.totalorder 1, %s21
      %p207 = scmp.lt.s32.totalorder %s21, 7
      %p208 = pnand %p206, %p207
      %p209 = pneg %p208
      // Predicated region
      $region9: #{tpu_custom_call.1} parent=5 // pred_check
        _
      $region10: #{tpu_custom_call.1} parent=5 // pred_check_branch
        %211 = sbr.rel (%p208) target = $region12
      $region11: #{tpu_custom_call.1} parent=5 // pred_region
        %s212 = ssub.s32 %s21, 1
        // Predicated region
        $region13: #{tpu_custom_call.1} parent=11 // pred_check
          %p213 = pneg %p84
        $region14: #{tpu_custom_call.1} parent=11 // pred_check_branch
          %215 = sbr.rel (%p213) target = $region16
        $region15: #{tpu_custom_call.1} parent=11 // pred_region
          %217 = vsyncadd [#allocation8], 0
          %s218 = sshll.u32 %s1, 4
          %s219 = int_to_ptr.hbm [resolvable:$true] %s218
          %s220 = sshll.u32 [#allocation7], 4
          %s221 = int_to_ptr.vmem [resolvable:$true] %s220
          %226 = dma.hbm_to_vmem [thread:$0]  %s219, 65536, %s221, [#allocation8], 512, 512, 32
        $region16: #{tpu_custom_call.1} parent=11 // pred_fallthru
          _
        // Predicated region
        $region17: #{tpu_custom_call.1} parent=11 // pred_check
          %p227 = pneg %p105
        $region18: #{tpu_custom_call.1} parent=11 // pred_check_branch
          %229 = sbr.rel (%p227) target = $region20
        $region19: #{tpu_custom_call.1} parent=11 // pred_region
          %231 = vsyncadd [#allocation8], 0
          %s232 = sshll.u32 %s2, 4
          %s233 = int_to_ptr.hbm [resolvable:$true] %s232
          %s234 = sshll.u32 [#allocation9], 4
          %s235 = int_to_ptr.vmem [resolvable:$true] %s234
          %240 = dma.hbm_to_vmem [thread:$0]  %s233, 1024, %s235, [#allocation8], 64, 64, 4
        $region20: #{tpu_custom_call.1} parent=11 // pred_fallthru
          _
        // Predicated region
        $region21: #{tpu_custom_call.1} parent=11 // pred_check
          %p241 = pneg %p126
        $region22: #{tpu_custom_call.1} parent=11 // pred_check_branch
          %243 = sbr.rel (%p241) target = $region24
        $region23: #{tpu_custom_call.1} parent=11 // pred_region
          %245 = vsyncadd [#allocation11], 0
          %s247 = sshll.u32 %s3, 4
          %s248 = int_to_ptr.hbm [resolvable:$true] %s247
          %s249 = sshll.u32 [#allocation10], 4
          %s250 = int_to_ptr.vmem [resolvable:$true] %s249
          %252 = dma.hbm_to_vmem [thread:$0]  %s248, 16, %s250, [#allocation11]
        $region24: #{tpu_custom_call.1} parent=11 // pred_fallthru
          _
        // Predicated region
        $region25: #{tpu_custom_call.1} parent=11 // pred_check
          %p253 = pneg %p147
        $region26: #{tpu_custom_call.1} parent=11 // pred_check_branch
          %255 = sbr.rel (%p253) target = $region28
        $region27: #{tpu_custom_call.1} parent=11 // pred_region
          %257 = vsyncadd [#allocation11], 0
          %s258 = sshll.u32 %s4, 4
          %s259 = int_to_ptr.hbm [resolvable:$true] %s258
          %s260 = sshll.u32 [#allocation12], 4
          %s261 = int_to_ptr.vmem [resolvable:$true] %s260
          %266 = dma.hbm_to_vmem [thread:$0]  %s259, 1024, %s261, [#allocation11], 64, 64, 4
        $region28: #{tpu_custom_call.1} parent=11 // pred_fallthru
          _
        // Predicated region
        $region29: #{tpu_custom_call.1} parent=11 // pred_check
          %p267 = pneg %p168
        $region30: #{tpu_custom_call.1} parent=11 // pred_check_branch
          %269 = sbr.rel (%p267) target = $region32
        $region31: #{tpu_custom_call.1} parent=11 // pred_region
          %271 = vsyncadd [#allocation14], 0
          %s273 = sshll.u32 %s5, 4
          %s274 = int_to_ptr.hbm [resolvable:$true] %s273
          %s275 = sshll.u32 [#allocation13], 4
          %s276 = int_to_ptr.vmem [resolvable:$true] %s275
          %278 = dma.hbm_to_vmem [thread:$0]  %s274, 16, %s276, [#allocation14]
        $region32: #{tpu_custom_call.1} parent=11 // pred_fallthru
          _
      $region12: #{tpu_custom_call.1} parent=5 // pred_fallthru
        _
      %p279 = scmp.lt.s32.totalorder %s21, 6
      // Predicated region
      $region33: #{tpu_custom_call.1} parent=5 // pred_check
        %p280 = pneg %p279
      $region34: #{tpu_custom_call.1} parent=5 // pred_check_branch
        %282 = sbr.rel (%p280) target = $region36
      $region35: #{tpu_custom_call.1} parent=5 // pred_region
        // Predicated region
        $region37: #{tpu_custom_call.1} parent=35 // pred_check
          %p283 = pneg %p57
        $region38: #{tpu_custom_call.1} parent=35 // pred_check_branch
          %285 = sbr.rel (%p283) target = $region40
        $region39: #{tpu_custom_call.1} parent=35 // pred_region
          %s286 = sand.u32 %s47, 1
          %s287 = scalar_lea.sflag [#allocation5], %s286
          %s288 = sand.u32 %s47, 1
          %s289 = smul.addr %s288, 256
          %s290 = scalar_lea.vmem [#allocation4], %s289
          %p291 = scmp.eq.s32.totalorder %s28, 0
          %s292 = scalar_select %p291, %s29, 0
          %s293 = smul.u32 64, %s292
          %295 = vsyncadd %s287, 0
          %s296 = smul.addr %s293, 4
          %s297 = scalar_lea.hbm %s0, %s296
          %s298 = sshll.u32 %s297, 4
          %s299 = int_to_ptr.hbm [resolvable:$true] %s298
          %s300 = sshll.u32 %s290, 4
          %s301 = int_to_ptr.vmem [resolvable:$true] %s300
          %306 = dma.hbm_to_vmem [thread:$0]  %s299, 4096, %s301, %s287, 64, 64, 4
        $region40: #{tpu_custom_call.1} parent=35 // pred_fallthru
          _
      $region36: #{tpu_custom_call.1} parent=5 // pred_fallthru
        _
      %p307 = scmp.le.s32.totalorder 1, %s21
      %p308 = scmp.lt.s32.totalorder %s21, 7
      %p309 = pnand %p307, %p308
      %p310 = pneg %p309
      // Predicated region
      $region41: #{tpu_custom_call.1} parent=5 // pred_check
        _
      $region42: #{tpu_custom_call.1} parent=5 // pred_check_branch
        %312 = sbr.rel (%p309) target = $region44
      $region43: #{tpu_custom_call.1} parent=5 // pred_region
        %s313 = ssub.s32 %s21, 1
        %s314 = sand.u32 %s50, 1
        %s315 = scalar_lea.sflag [#allocation5], %s314
        %s316 = sand.u32 %s50, 1
        %s317 = smul.addr %s316, 256
        %s318 = scalar_lea.vmem [#allocation4], %s317
        // Predicated region
        $region45: #{tpu_custom_call.1} parent=43 // pred_check
          %p319 = pneg %p63
        $region46: #{tpu_custom_call.1} parent=43 // pred_check_branch
          %321 = sbr.rel (%p319) target = $region48
        $region47: #{tpu_custom_call.1} parent=43 // pred_region
          %323 = dma.done %s315, 4096
        $region48: #{tpu_custom_call.1} parent=43 // pred_fallthru
          _
        // Predicated region
        $region49: #{tpu_custom_call.1} parent=43 // pred_check
          %p324 = pneg %p84
        $region50: #{tpu_custom_call.1} parent=43 // pred_check_branch
          %326 = sbr.rel (%p324) target = $region52
        $region51: #{tpu_custom_call.1} parent=43 // pred_region
          %328 = dma.done [#allocation8], 65536
        $region52: #{tpu_custom_call.1} parent=43 // pred_fallthru
          _
        // Predicated region
        $region53: #{tpu_custom_call.1} parent=43 // pred_check
          %p329 = pneg %p105
        $region54: #{tpu_custom_call.1} parent=43 // pred_check_branch
          %331 = sbr.rel (%p329) target = $region56
        $region55: #{tpu_custom_call.1} parent=43 // pred_region
          %333 = dma.done [#allocation8], 1024
        $region56: #{tpu_custom_call.1} parent=43 // pred_fallthru
          _
        // Predicated region
        $region57: #{tpu_custom_call.1} parent=43 // pred_check
          %p334 = pneg %p126
        $region58: #{tpu_custom_call.1} parent=43 // pred_check_branch
          %336 = sbr.rel (%p334) target = $region60
        $region59: #{tpu_custom_call.1} parent=43 // pred_region
          %338 = dma.done [#allocation11], 16
        $region60: #{tpu_custom_call.1} parent=43 // pred_fallthru
          _
        // Predicated region
        $region61: #{tpu_custom_call.1} parent=43 // pred_check
          %p339 = pneg %p147
        $region62: #{tpu_custom_call.1} parent=43 // pred_check_branch
          %341 = sbr.rel (%p339) target = $region64
        $region63: #{tpu_custom_call.1} parent=43 // pred_region
          %343 = dma.done [#allocation11], 1024
        $region64: #{tpu_custom_call.1} parent=43 // pred_fallthru
          _
        // Predicated region
        $region65: #{tpu_custom_call.1} parent=43 // pred_check
          %p344 = pneg %p168
        $region66: #{tpu_custom_call.1} parent=43 // pred_check_branch
          %346 = sbr.rel (%p344) target = $region68
        $region67: #{tpu_custom_call.1} parent=43 // pred_region
          %348 = dma.done [#allocation14], 16
        $region68: #{tpu_custom_call.1} parent=43 // pred_fallthru
          _
        %s349 = sand.u32 %s50, 1
        %s350 = scalar_lea.sflag [#allocation5], %s349
        %s351 = sand.u32 %s50, 1
        %s352 = smul.addr %s351, 256
        %s353 = scalar_lea.vmem [#allocation4], %s352
        %p354 = pneg %p63
        %p355 = pneg %p60
        %p356 = pneg %p84
        %p357 = pneg %p81
        %p358 = pneg %p105
        %p359 = pneg %p102
        %p360 = pneg %p126
        %p361 = pneg %p123
        %p362 = pneg %p147
        %p363 = pneg %p144
        %p364 = pneg %p168
        %p365 = pneg %p165
        %p366 = pneg %p198
        %p367 = pneg %p195
        %s368 = sand.u32 %s185, 1
        %s369 = scalar_lea.sflag [#allocation6], %s368
        %s370 = sand.u32 %s185, 1
        %s371 = smul.addr %s370, 512
        %s372 = scalar_lea.vmem [#allocation15], %s371
        %p373 = scmp.eq.s32.totalorder %s30, 0
        %s374 = scalar_select %p373, %s31, 0
        %s375 = smul.u32 64, %s374
        %p376 = scmp.eq.s32.totalorder %s30, 2
        %s377 = scalar_select %p376, %s31, 0
        %s378 = smul.u32 64, %s377
        %s379 = smul.u32 %s31, 512
        %p380 = scmp.eq.s32.totalorder %s30, 0
        // Predicated region
        $region69: #{tpu_custom_call.1} parent=43 // pred_check
          %p381 = pneg %p380
        $region70: #{tpu_custom_call.1} parent=43 // pred_check_branch
          %383 = sbr.rel (%p381) target = $region72
        $region71: #{tpu_custom_call.1} parent=43 // pred_region
          %v384 = vld [vmem:[%s318] sm:$0xf]
          %v385 = vld [vmem:[%s318 + $0x4] sm:$0xf]
          %v386 = vld [vmem:[%s318 + $0x8] sm:$0xf]
          %v387 = vld [vmem:[%s318 + $0xc] sm:$0xf]
          %v388 = vld [vmem:[%s318 + $0x10] sm:$0xf]
          %v389 = vld [vmem:[%s318 + $0x14] sm:$0xf]
          %v390 = vld [vmem:[%s318 + $0x18] sm:$0xf]
          %v391 = vld [vmem:[%s318 + $0x1c] sm:$0xf]
          %v392 = vld [vmem:[%s318 + $0x20] sm:$0xf]
          %v393 = vld [vmem:[%s318 + $0x24] sm:$0xf]
          %v394 = vld [vmem:[%s318 + $0x28] sm:$0xf]
          %v395 = vld [vmem:[%s318 + $0x2c] sm:$0xf]
          %v396 = vld [vmem:[%s318 + $0x30] sm:$0xf]
          %v397 = vld [vmem:[%s318 + $0x34] sm:$0xf]
          %v398 = vld [vmem:[%s318 + $0x38] sm:$0xf]
          %v399 = vld [vmem:[%s318 + $0x3c] sm:$0xf]
          %v400 = vld [vmem:[%s318 + $0x40] sm:$0xf]
          %v401 = vld [vmem:[%s318 + $0x44] sm:$0xf]
          %v402 = vld [vmem:[%s318 + $0x48] sm:$0xf]
          %v403 = vld [vmem:[%s318 + $0x4c] sm:$0xf]
          %v404 = vld [vmem:[%s318 + $0x50] sm:$0xf]
          %v405 = vld [vmem:[%s318 + $0x54] sm:$0xf]
          %v406 = vld [vmem:[%s318 + $0x58] sm:$0xf]
          %v407 = vld [vmem:[%s318 + $0x5c] sm:$0xf]
          %v408 = vld [vmem:[%s318 + $0x60] sm:$0xf]
          %v409 = vld [vmem:[%s318 + $0x64] sm:$0xf]
          %v410 = vld [vmem:[%s318 + $0x68] sm:$0xf]
          %v411 = vld [vmem:[%s318 + $0x6c] sm:$0xf]
          %v412 = vld [vmem:[%s318 + $0x70] sm:$0xf]
          %v413 = vld [vmem:[%s318 + $0x74] sm:$0xf]
          %v414 = vld [vmem:[%s318 + $0x78] sm:$0xf]
          %v415 = vld [vmem:[%s318 + $0x7c] sm:$0xf]
          %v416 = vld [vmem:[%s318 + $0x80] sm:$0xf]
          %v417 = vld [vmem:[%s318 + $0x84] sm:$0xf]
          %v418 = vld [vmem:[%s318 + $0x88] sm:$0xf]
          %v419 = vld [vmem:[%s318 + $0x8c] sm:$0xf]
          %v420 = vld [vmem:[%s318 + $0x90] sm:$0xf]
          %v421 = vld [vmem:[%s318 + $0x94] sm:$0xf]
          %v422 = vld [vmem:[%s318 + $0x98] sm:$0xf]
          %v423 = vld [vmem:[%s318 + $0x9c] sm:$0xf]
          %v424 = vld [vmem:[%s318 + $0xa0] sm:$0xf]
          %v425 = vld [vmem:[%s318 + $0xa4] sm:$0xf]
          %v426 = vld [vmem:[%s318 + $0xa8] sm:$0xf]
          %v427 = vld [vmem:[%s318 + $0xac] sm:$0xf]
          %v428 = vld [vmem:[%s318 + $0xb0] sm:$0xf]
          %v429 = vld [vmem:[%s318 + $0xb4] sm:$0xf]
          %v430 = vld [vmem:[%s318 + $0xb8] sm:$0xf]
          %v431 = vld [vmem:[%s318 + $0xbc] sm:$0xf]
          %v432 = vld [vmem:[%s318 + $0xc0] sm:$0xf]
          %v433 = vld [vmem:[%s318 + $0xc4] sm:$0xf]
          %v434 = vld [vmem:[%s318 + $0xc8] sm:$0xf]
          %v435 = vld [vmem:[%s318 + $0xcc] sm:$0xf]
          %v436 = vld [vmem:[%s318 + $0xd0] sm:$0xf]
          %v437 = vld [vmem:[%s318 + $0xd4] sm:$0xf]
          %v438 = vld [vmem:[%s318 + $0xd8] sm:$0xf]
          %v439 = vld [vmem:[%s318 + $0xdc] sm:$0xf]
          %v440 = vld [vmem:[%s318 + $0xe0] sm:$0xf]
          %v441 = vld [vmem:[%s318 + $0xe4] sm:$0xf]
          %v442 = vld [vmem:[%s318 + $0xe8] sm:$0xf]
          %v443 = vld [vmem:[%s318 + $0xec] sm:$0xf]
          %v444 = vld [vmem:[%s318 + $0xf0] sm:$0xf]
          %v445 = vld [vmem:[%s318 + $0xf4] sm:$0xf]
          %v446 = vld [vmem:[%s318 + $0xf8] sm:$0xf]
          %v447 = vld [vmem:[%s318 + $0xfc] sm:$0xf]
          %v448 = vld [vmem:[#allocation9] sm:$0xf]
          %v449 = vld [vmem:[#allocation9 + $0x4] sm:$0xf]
          %v450 = vld [vmem:[#allocation9 + $0x8] sm:$0xf]
          %v451 = vld [vmem:[#allocation9 + $0xc] sm:$0xf]
          %v452 = vld [vmem:[#allocation9 + $0x10] sm:$0xf]
          %v453 = vld [vmem:[#allocation9 + $0x14] sm:$0xf]
          %v454 = vld [vmem:[#allocation9 + $0x18] sm:$0xf]
          %v455 = vld [vmem:[#allocation9 + $0x1c] sm:$0xf]
          %v456 = vld [vmem:[#allocation9 + $0x20] sm:$0xf]
          %v457 = vld [vmem:[#allocation9 + $0x24] sm:$0xf]
          %v458 = vld [vmem:[#allocation9 + $0x28] sm:$0xf]
          %v459 = vld [vmem:[#allocation9 + $0x2c] sm:$0xf]
          %v460 = vld [vmem:[#allocation9 + $0x30] sm:$0xf]
          %v461 = vld [vmem:[#allocation9 + $0x34] sm:$0xf]
          %v462 = vld [vmem:[#allocation9 + $0x38] sm:$0xf]
          %v463 = vld [vmem:[#allocation9 + $0x3c] sm:$0xf]
          %v528 = vunpack.c.l.b16 %v384
          %v529 = vunpack.c.l.b16 %v385
          %v530 = vunpack.c.l.b16 %v386
          %v531 = vunpack.c.l.b16 %v387
          %v532 = vunpack.c.l.b16 %v388
          %v533 = vunpack.c.l.b16 %v389
          %v534 = vunpack.c.l.b16 %v390
          %v535 = vunpack.c.l.b16 %v391
          %v536 = vunpack.c.l.b16 %v392
          %v537 = vunpack.c.l.b16 %v393
          %v538 = vunpack.c.l.b16 %v394
          %v539 = vunpack.c.l.b16 %v395
          %v540 = vunpack.c.l.b16 %v396
          %v541 = vunpack.c.l.b16 %v397
          %v542 = vunpack.c.l.b16 %v398
          %v543 = vunpack.c.l.b16 %v399
          %v544 = vunpack.c.l.b16 %v400
          %v545 = vunpack.c.l.b16 %v401
          %v546 = vunpack.c.l.b16 %v402
          %v547 = vunpack.c.l.b16 %v403
          %v548 = vunpack.c.l.b16 %v404
          %v549 = vunpack.c.l.b16 %v405
          %v550 = vunpack.c.l.b16 %v406
          %v551 = vunpack.c.l.b16 %v407
          %v552 = vunpack.c.l.b16 %v408
          %v553 = vunpack.c.l.b16 %v409
          %v554 = vunpack.c.l.b16 %v410
          %v555 = vunpack.c.l.b16 %v411
          %v556 = vunpack.c.l.b16 %v412
          %v557 = vunpack.c.l.b16 %v413
          %v558 = vunpack.c.l.b16 %v414
          %v559 = vunpack.c.l.b16 %v415
          %v560 = vunpack.c.l.b16 %v416
          %v561 = vunpack.c.l.b16 %v417
          %v562 = vunpack.c.l.b16 %v418
          %v563 = vunpack.c.l.b16 %v419
          %v564 = vunpack.c.l.b16 %v420
          %v565 = vunpack.c.l.b16 %v421
          %v566 = vunpack.c.l.b16 %v422
          %v567 = vunpack.c.l.b16 %v423
          %v568 = vunpack.c.l.b16 %v424
          %v569 = vunpack.c.l.b16 %v425
          %v570 = vunpack.c.l.b16 %v426
          %v571 = vunpack.c.l.b16 %v427
          %v572 = vunpack.c.l.b16 %v428
          %v573 = vunpack.c.l.b16 %v429
          %v574 = vunpack.c.l.b16 %v430
          %v575 = vunpack.c.l.b16 %v431
          %v576 = vunpack.c.l.b16 %v432
          %v577 = vunpack.c.l.b16 %v433
          %v578 = vunpack.c.l.b16 %v434
          %v579 = vunpack.c.l.b16 %v435
          %v580 = vunpack.c.l.b16 %v436
          %v581 = vunpack.c.l.b16 %v437
          %v582 = vunpack.c.l.b16 %v438
          %v583 = vunpack.c.l.b16 %v439
          %v584 = vunpack.c.l.b16 %v440
          %v585 = vunpack.c.l.b16 %v441
          %v586 = vunpack.c.l.b16 %v442
          %v587 = vunpack.c.l.b16 %v443
          %v588 = vunpack.c.l.b16 %v444
          %v589 = vunpack.c.l.b16 %v445
          %v590 = vunpack.c.l.b16 %v446
          %v591 = vunpack.c.l.b16 %v447
          %v592 = vpack.c.b16 %v529, %v528
          %v593 = vpack.c.b16 %v531, %v530
          %v594 = vpack.c.b16 %v533, %v532
          %v595 = vpack.c.b16 %v535, %v534
          %v596 = vpack.c.b16 %v537, %v536
          %v597 = vpack.c.b16 %v539, %v538
          %v598 = vpack.c.b16 %v541, %v540
          %v599 = vpack.c.b16 %v543, %v542
          %v600 = vpack.c.b16 %v545, %v544
          %v601 = vpack.c.b16 %v547, %v546
          %v602 = vpack.c.b16 %v549, %v548
          %v603 = vpack.c.b16 %v551, %v550
          %v604 = vpack.c.b16 %v553, %v552
          %v605 = vpack.c.b16 %v555, %v554
          %v606 = vpack.c.b16 %v557, %v556
          %v607 = vpack.c.b16 %v559, %v558
          %v608 = vpack.c.b16 %v561, %v560
          %v609 = vpack.c.b16 %v563, %v562
          %v610 = vpack.c.b16 %v565, %v564
          %v611 = vpack.c.b16 %v567, %v566
          %v612 = vpack.c.b16 %v569, %v568
          %v613 = vpack.c.b16 %v571, %v570
          %v614 = vpack.c.b16 %v573, %v572
          %v615 = vpack.c.b16 %v575, %v574
          %v616 = vpack.c.b16 %v577, %v576
          %v617 = vpack.c.b16 %v579, %v578
          %v618 = vpack.c.b16 %v581, %v580
          %v619 = vpack.c.b16 %v583, %v582
          %v620 = vpack.c.b16 %v585, %v584
          %v621 = vpack.c.b16 %v587, %v586
          %v622 = vpack.c.b16 %v589, %v588
          %v623 = vpack.c.b16 %v591, %v590
          %v672 = vunpack.c.l.b16 %v448
          %v673 = vunpack.c.l.b16 %v449
          %v674 = vunpack.c.l.b16 %v450
          %v675 = vunpack.c.l.b16 %v451
          %v676 = vunpack.c.l.b16 %v452
          %v677 = vunpack.c.l.b16 %v453
          %v678 = vunpack.c.l.b16 %v454
          %v679 = vunpack.c.l.b16 %v455
          %v680 = vunpack.c.l.b16 %v456
          %v681 = vunpack.c.l.b16 %v457
          %v682 = vunpack.c.l.b16 %v458
          %v683 = vunpack.c.l.b16 %v459
          %v684 = vunpack.c.l.b16 %v460
          %v685 = vunpack.c.l.b16 %v461
          %v686 = vunpack.c.l.b16 %v462
          %v687 = vunpack.c.l.b16 %v463
          %v688 = vpack.c.b16 %v673, %v672
          %v689 = vpack.c.b16 %v675, %v674
          %v690 = vpack.c.b16 %v677, %v676
          %v691 = vpack.c.b16 %v679, %v678
          %v692 = vpack.c.b16 %v681, %v680
          %v693 = vpack.c.b16 %v683, %v682
          %v694 = vpack.c.b16 %v685, %v684
          %v695 = vpack.c.b16 %v687, %v686
          %704 = vmatpush.bf16.msra.mxu0 %v695
          %705 = vmatpush.bf16.msra.mxu0 %v694
          %706 = vmatpush.bf16.msra.mxu0 %v693
          %707 = vmatpush.bf16.msra.mxu0 %v692
          %708 = vmatpush.bf16.msra.mxu0 %v691
          %709 = vmatpush.bf16.msra.mxu0 %v690
          %710 = vmatpush.bf16.msra.mxu0 %v689
          %711 = vmatpush.bf16.msra.mxu0 %v688
          %712 = vmatmul.bf16.gmra.mxu0 %v592
          %v713 = vpop.f32.mrf.mxu0
          %v714 = vadd.f32 0.0, %v713
          %v715 = vpop.f32.mrf.mxu0
          %v716 = vadd.f32 0.0, %v715
          %717 = vmatmul.bf16.gmra.mxu0 %v593
          %v718 = vpop.f32.mrf.mxu0
          %v719 = vadd.f32 0.0, %v718
          %v720 = vpop.f32.mrf.mxu0
          %v721 = vadd.f32 0.0, %v720
          %722 = vmatmul.bf16.gmra.mxu0 %v594
          %v723 = vpop.f32.mrf.mxu0
          %v724 = vadd.f32 0.0, %v723
          %v725 = vpop.f32.mrf.mxu0
          %v726 = vadd.f32 0.0, %v725
          %727 = vmatmul.bf16.gmra.mxu0 %v595
          %v728 = vpop.f32.mrf.mxu0
          %v729 = vadd.f32 0.0, %v728
          %v730 = vpop.f32.mrf.mxu0
          %v731 = vadd.f32 0.0, %v730
          %732 = vmatmul.bf16.gmra.mxu0 %v596
          %v733 = vpop.f32.mrf.mxu0
          %v734 = vadd.f32 0.0, %v733
          %v735 = vpop.f32.mrf.mxu0
          %v736 = vadd.f32 0.0, %v735
          %737 = vmatmul.bf16.gmra.mxu0 %v597
          %v738 = vpop.f32.mrf.mxu0
          %v739 = vadd.f32 0.0, %v738
          %v740 = vpop.f32.mrf.mxu0
          %v741 = vadd.f32 0.0, %v740
          %742 = vmatmul.bf16.gmra.mxu0 %v598
          %v743 = vpop.f32.mrf.mxu0
          %v744 = vadd.f32 0.0, %v743
          %v745 = vpop.f32.mrf.mxu0
          %v746 = vadd.f32 0.0, %v745
          %747 = vmatmul.bf16.gmra.mxu0 %v599
          %v748 = vpop.f32.mrf.mxu0
          %v749 = vadd.f32 0.0, %v748
          %v750 = vpop.f32.mrf.mxu0
          %v751 = vadd.f32 0.0, %v750
          %752 = vmatmul.bf16.gmra.mxu0 %v600
          %v753 = vpop.f32.mrf.mxu0
          %v754 = vadd.f32 0.0, %v753
          %v755 = vpop.f32.mrf.mxu0
          %v756 = vadd.f32 0.0, %v755
          %757 = vmatmul.bf16.gmra.mxu0 %v601
          %v758 = vpop.f32.mrf.mxu0
          %v759 = vadd.f32 0.0, %v758
          %v760 = vpop.f32.mrf.mxu0
          %v761 = vadd.f32 0.0, %v760
          %762 = vmatmul.bf16.gmra.mxu0 %v602
          %v763 = vpop.f32.mrf.mxu0
          %v764 = vadd.f32 0.0, %v763
          %v765 = vpop.f32.mrf.mxu0
          %v766 = vadd.f32 0.0, %v765
          %767 = vmatmul.bf16.gmra.mxu0 %v603
          %v768 = vpop.f32.mrf.mxu0
          %v769 = vadd.f32 0.0, %v768
          %v770 = vpop.f32.mrf.mxu0
          %v771 = vadd.f32 0.0, %v770
          %772 = vmatmul.bf16.gmra.mxu0 %v604
          %v773 = vpop.f32.mrf.mxu0
          %v774 = vadd.f32 0.0, %v773
          %v775 = vpop.f32.mrf.mxu0
          %v776 = vadd.f32 0.0, %v775
          %777 = vmatmul.bf16.gmra.mxu0 %v605
          %v778 = vpop.f32.mrf.mxu0
          %v779 = vadd.f32 0.0, %v778
          %v780 = vpop.f32.mrf.mxu0
          %v781 = vadd.f32 0.0, %v780
          %782 = vmatmul.bf16.gmra.mxu0 %v606
          %v783 = vpop.f32.mrf.mxu0
          %v784 = vadd.f32 0.0, %v783
          %v785 = vpop.f32.mrf.mxu0
          %v786 = vadd.f32 0.0, %v785
          %787 = vmatmul.bf16.gmra.mxu0 %v607
          %v788 = vpop.f32.mrf.mxu0
          %v789 = vadd.f32 0.0, %v788
          %v790 = vpop.f32.mrf.mxu0
          %v791 = vadd.f32 0.0, %v790
          %792 = vmatmul.bf16.gmra.mxu0 %v608
          %v793 = vpop.f32.mrf.mxu0
          %v794 = vadd.f32 0.0, %v793
          %v795 = vpop.f32.mrf.mxu0
          %v796 = vadd.f32 0.0, %v795
          %797 = vmatmul.bf16.gmra.mxu0 %v609
          %v798 = vpop.f32.mrf.mxu0
          %v799 = vadd.f32 0.0, %v798
          %v800 = vpop.f32.mrf.mxu0
          %v801 = vadd.f32 0.0, %v800
          %802 = vmatmul.bf16.gmra.mxu0 %v610
          %v803 = vpop.f32.mrf.mxu0
          %v804 = vadd.f32 0.0, %v803
          %v805 = vpop.f32.mrf.mxu0
          %v806 = vadd.f32 0.0, %v805
          %807 = vmatmul.bf16.gmra.mxu0 %v611
          %v808 = vpop.f32.mrf.mxu0
          %v809 = vadd.f32 0.0, %v808
          %v810 = vpop.f32.mrf.mxu0
          %v811 = vadd.f32 0.0, %v810
          %812 = vmatmul.bf16.gmra.mxu0 %v612
          %v813 = vpop.f32.mrf.mxu0
          %v814 = vadd.f32 0.0, %v813
          %v815 = vpop.f32.mrf.mxu0
          %v816 = vadd.f32 0.0, %v815
          %817 = vmatmul.bf16.gmra.mxu0 %v613
          %v818 = vpop.f32.mrf.mxu0
          %v819 = vadd.f32 0.0, %v818
          %v820 = vpop.f32.mrf.mxu0
          %v821 = vadd.f32 0.0, %v820
          %822 = vmatmul.bf16.gmra.mxu0 %v614
          %v823 = vpop.f32.mrf.mxu0
          %v824 = vadd.f32 0.0, %v823
          %v825 = vpop.f32.mrf.mxu0
          %v826 = vadd.f32 0.0, %v825
          %827 = vmatmul.bf16.gmra.mxu0 %v615
          %v828 = vpop.f32.mrf.mxu0
          %v829 = vadd.f32 0.0, %v828
          %v830 = vpop.f32.mrf.mxu0
          %v831 = vadd.f32 0.0, %v830
          %832 = vmatmul.bf16.gmra.mxu0 %v616
          %v833 = vpop.f32.mrf.mxu0
          %v834 = vadd.f32 0.0, %v833
          %v835 = vpop.f32.mrf.mxu0
          %v836 = vadd.f32 0.0, %v835
          %837 = vmatmul.bf16.gmra.mxu0 %v617
          %v838 = vpop.f32.mrf.mxu0
          %v839 = vadd.f32 0.0, %v838
          %v840 = vpop.f32.mrf.mxu0
          %v841 = vadd.f32 0.0, %v840
          %842 = vmatmul.bf16.gmra.mxu0 %v618
          %v843 = vpop.f32.mrf.mxu0
          %v844 = vadd.f32 0.0, %v843
          %v845 = vpop.f32.mrf.mxu0
          %v846 = vadd.f32 0.0, %v845
          %847 = vmatmul.bf16.gmra.mxu0 %v619
          %v848 = vpop.f32.mrf.mxu0
          %v849 = vadd.f32 0.0, %v848
          %v850 = vpop.f32.mrf.mxu0
          %v851 = vadd.f32 0.0, %v850
          %852 = vmatmul.bf16.gmra.mxu0 %v620
          %v853 = vpop.f32.mrf.mxu0
          %v854 = vadd.f32 0.0, %v853
          %v855 = vpop.f32.mrf.mxu0
          %v856 = vadd.f32 0.0, %v855
          %857 = vmatmul.bf16.gmra.mxu0 %v621
          %v858 = vpop.f32.mrf.mxu0
          %v859 = vadd.f32 0.0, %v858
          %v860 = vpop.f32.mrf.mxu0
          %v861 = vadd.f32 0.0, %v860
          %862 = vmatmul.bf16.gmra.mxu0 %v622
          %v863 = vpop.f32.mrf.mxu0
          %v864 = vadd.f32 0.0, %v863
          %v865 = vpop.f32.mrf.mxu0
          %v866 = vadd.f32 0.0, %v865
          %867 = vmatmul.bf16.gmra.mxu0 %v623
          %v868 = vpop.f32.mrf.mxu0
          %v869 = vadd.f32 0.0, %v868
          %v870 = vpop.f32.mrf.mxu0
          %v871 = vadd.f32 0.0, %v870
          %872 = vdwg.mxu0
          %v873 = vpack.c.bf16 %v714, %v714
          %v874 = vpack.c.bf16 %v716, %v716
          %v875 = vpack.c.bf16 %v719, %v719
          %v876 = vpack.c.bf16 %v721, %v721
          %v877 = vpack.c.bf16 %v724, %v724
          %v878 = vpack.c.bf16 %v726, %v726
          %v879 = vpack.c.bf16 %v729, %v729
          %v880 = vpack.c.bf16 %v731, %v731
          %v881 = vpack.c.bf16 %v734, %v734
          %v882 = vpack.c.bf16 %v736, %v736
          %v883 = vpack.c.bf16 %v739, %v739
          %v884 = vpack.c.bf16 %v741, %v741
          %v885 = vpack.c.bf16 %v744, %v744
          %v886 = vpack.c.bf16 %v746, %v746
          %v887 = vpack.c.bf16 %v749, %v749
          %v888 = vpack.c.bf16 %v751, %v751
          %v889 = vpack.c.bf16 %v754, %v754
          %v890 = vpack.c.bf16 %v756, %v756
          %v891 = vpack.c.bf16 %v759, %v759
          %v892 = vpack.c.bf16 %v761, %v761
          %v893 = vpack.c.bf16 %v764, %v764
          %v894 = vpack.c.bf16 %v766, %v766
          %v895 = vpack.c.bf16 %v769, %v769
          %v896 = vpack.c.bf16 %v771, %v771
          %v897 = vpack.c.bf16 %v774, %v774
          %v898 = vpack.c.bf16 %v776, %v776
          %v899 = vpack.c.bf16 %v779, %v779
          %v900 = vpack.c.bf16 %v781, %v781
          %v901 = vpack.c.bf16 %v784, %v784
          %v902 = vpack.c.bf16 %v786, %v786
          %v903 = vpack.c.bf16 %v789, %v789
          %v904 = vpack.c.bf16 %v791, %v791
          %v905 = vpack.c.bf16 %v794, %v794
          %v906 = vpack.c.bf16 %v796, %v796
          %v907 = vpack.c.bf16 %v799, %v799
          %v908 = vpack.c.bf16 %v801, %v801
          %v909 = vpack.c.bf16 %v804, %v804
          %v910 = vpack.c.bf16 %v806, %v806
          %v911 = vpack.c.bf16 %v809, %v809
          %v912 = vpack.c.bf16 %v811, %v811
          %v913 = vpack.c.bf16 %v814, %v814
          %v914 = vpack.c.bf16 %v816, %v816
          %v915 = vpack.c.bf16 %v819, %v819
          %v916 = vpack.c.bf16 %v821, %v821
          %v917 = vpack.c.bf16 %v824, %v824
          %v918 = vpack.c.bf16 %v826, %v826
          %v919 = vpack.c.bf16 %v829, %v829
          %v920 = vpack.c.bf16 %v831, %v831
          %v921 = vpack.c.bf16 %v834, %v834
          %v922 = vpack.c.bf16 %v836, %v836
          %v923 = vpack.c.bf16 %v839, %v839
          %v924 = vpack.c.bf16 %v841, %v841
          %v925 = vpack.c.bf16 %v844, %v844
          %v926 = vpack.c.bf16 %v846, %v846
          %v927 = vpack.c.bf16 %v849, %v849
          %v928 = vpack.c.bf16 %v851, %v851
          %v929 = vpack.c.bf16 %v854, %v854
          %v930 = vpack.c.bf16 %v856, %v856
          %v931 = vpack.c.bf16 %v859, %v859
          %v932 = vpack.c.bf16 %v861, %v861
          %v933 = vpack.c.bf16 %v864, %v864
          %v934 = vpack.c.bf16 %v866, %v866
          %v935 = vpack.c.bf16 %v869, %v869
          %v936 = vpack.c.bf16 %v871, %v871
          %s937 = sshra.s32 %s379, 3
          %s938 = sand.u32 %s379, 7
          %s939 = smul.addr %s937, 4
          %s940 = scalar_lea.vmem [#allocation2], %s939
          %941 = vst [vmem:[%s940] sm:$0xf] %v873
          %942 = vst [vmem:[%s940 + $0x4] sm:$0xf] %v874
          %943 = vst [vmem:[%s940 + $0x8] sm:$0xf] %v875
          %944 = vst [vmem:[%s940 + $0xc] sm:$0xf] %v876
          %945 = vst [vmem:[%s940 + $0x10] sm:$0xf] %v877
          %946 = vst [vmem:[%s940 + $0x14] sm:$0xf] %v878
          %947 = vst [vmem:[%s940 + $0x18] sm:$0xf] %v879
          %948 = vst [vmem:[%s940 + $0x1c] sm:$0xf] %v880
          %949 = vst [vmem:[%s940 + $0x20] sm:$0xf] %v881
          %950 = vst [vmem:[%s940 + $0x24] sm:$0xf] %v882
          %951 = vst [vmem:[%s940 + $0x28] sm:$0xf] %v883
          %952 = vst [vmem:[%s940 + $0x2c] sm:$0xf] %v884
          %953 = vst [vmem:[%s940 + $0x30] sm:$0xf] %v885
          %954 = vst [vmem:[%s940 + $0x34] sm:$0xf] %v886
          %955 = vst [vmem:[%s940 + $0x38] sm:$0xf] %v887
          %956 = vst [vmem:[%s940 + $0x3c] sm:$0xf] %v888
          %957 = vst [vmem:[%s940 + $0x40] sm:$0xf] %v889
          %958 = vst [vmem:[%s940 + $0x44] sm:$0xf] %v890
          %959 = vst [vmem:[%s940 + $0x48] sm:$0xf] %v891
          %960 = vst [vmem:[%s940 + $0x4c] sm:$0xf] %v892
          %961 = vst [vmem:[%s940 + $0x50] sm:$0xf] %v893
          %962 = vst [vmem:[%s940 + $0x54] sm:$0xf] %v894
          %963 = vst [vmem:[%s940 + $0x58] sm:$0xf] %v895
          %964 = vst [vmem:[%s940 + $0x5c] sm:$0xf] %v896
          %965 = vst [vmem:[%s940 + $0x60] sm:$0xf] %v897
          %966 = vst [vmem:[%s940 + $0x64] sm:$0xf] %v898
          %967 = vst [vmem:[%s940 + $0x68] sm:$0xf] %v899
          %968 = vst [vmem:[%s940 + $0x6c] sm:$0xf] %v900
          %969 = vst [vmem:[%s940 + $0x70] sm:$0xf] %v901
          %970 = vst [vmem:[%s940 + $0x74] sm:$0xf] %v902
          %971 = vst [vmem:[%s940 + $0x78] sm:$0xf] %v903
          %972 = vst [vmem:[%s940 + $0x7c] sm:$0xf] %v904
          %973 = vst [vmem:[%s940 + $0x80] sm:$0xf] %v905
          %974 = vst [vmem:[%s940 + $0x84] sm:$0xf] %v906
          %975 = vst [vmem:[%s940 + $0x88] sm:$0xf] %v907
          %976 = vst [vmem:[%s940 + $0x8c] sm:$0xf] %v908
          %977 = vst [vmem:[%s940 + $0x90] sm:$0xf] %v909
          %978 = vst [vmem:[%s940 + $0x94] sm:$0xf] %v910
          %979 = vst [vmem:[%s940 + $0x98] sm:$0xf] %v911
          %980 = vst [vmem:[%s940 + $0x9c] sm:$0xf] %v912
          %981 = vst [vmem:[%s940 + $0xa0] sm:$0xf] %v913
          %982 = vst [vmem:[%s940 + $0xa4] sm:$0xf] %v914
          %983 = vst [vmem:[%s940 + $0xa8] sm:$0xf] %v915
          %984 = vst [vmem:[%s940 + $0xac] sm:$0xf] %v916
          %985 = vst [vmem:[%s940 + $0xb0] sm:$0xf] %v917
          %986 = vst [vmem:[%s940 + $0xb4] sm:$0xf] %v918
          %987 = vst [vmem:[%s940 + $0xb8] sm:$0xf] %v919
          %988 = vst [vmem:[%s940 + $0xbc] sm:$0xf] %v920
          %989 = vst [vmem:[%s940 + $0xc0] sm:$0xf] %v921
          %990 = vst [vmem:[%s940 + $0xc4] sm:$0xf] %v922
          %991 = vst [vmem:[%s940 + $0xc8] sm:$0xf] %v923
          %992 = vst [vmem:[%s940 + $0xcc] sm:$0xf] %v924
          %993 = vst [vmem:[%s940 + $0xd0] sm:$0xf] %v925
          %994 = vst [vmem:[%s940 + $0xd4] sm:$0xf] %v926
          %995 = vst [vmem:[%s940 + $0xd8] sm:$0xf] %v927
          %996 = vst [vmem:[%s940 + $0xdc] sm:$0xf] %v928
          %997 = vst [vmem:[%s940 + $0xe0] sm:$0xf] %v929
          %998 = vst [vmem:[%s940 + $0xe4] sm:$0xf] %v930
          %999 = vst [vmem:[%s940 + $0xe8] sm:$0xf] %v931
          %1000 = vst [vmem:[%s940 + $0xec] sm:$0xf] %v932
          %1001 = vst [vmem:[%s940 + $0xf0] sm:$0xf] %v933
          %1002 = vst [vmem:[%s940 + $0xf4] sm:$0xf] %v934
          %1003 = vst [vmem:[%s940 + $0xf8] sm:$0xf] %v935
          %1004 = vst [vmem:[%s940 + $0xfc] sm:$0xf] %v936
        $region72: #{tpu_custom_call.1} parent=43 // pred_fallthru
          _
        %p1005 = scmp.eq.s32.totalorder %s30, 1
        // Predicated region
        $region73: #{tpu_custom_call.1} parent=43 // pred_check
          %p1006 = pneg %p1005
        $region74: #{tpu_custom_call.1} parent=43 // pred_check_branch
          %1008 = sbr.rel (%p1006) target = $region76
        $region75: #{tpu_custom_call.1} parent=43 // pred_region
          %s1009 = sshra.s32 %s379, 3
          %s1010 = sand.u32 %s379, 7
          %s1011 = smul.u32 %s1009, 8
          %s1012 = smul.addr %s1011, 4
          %s1013 = scalar_lea.vmem [#allocation7], %s1012
          %v1014 = vld [vmem:[%s1013] sm:$0xff]
          %v1015 = vld [vmem:[%s1013 + $0x8] sm:$0xff]
          %v1016 = vld [vmem:[%s1013 + $0x10] sm:$0xff]
          %v1017 = vld [vmem:[%s1013 + $0x18] sm:$0xff]
          %v1018 = vld [vmem:[%s1013 + $0x20] sm:$0xff]
          %v1019 = vld [vmem:[%s1013 + $0x28] sm:$0xff]
          %v1020 = vld [vmem:[%s1013 + $0x30] sm:$0xff]
          %v1021 = vld [vmem:[%s1013 + $0x38] sm:$0xff]
          %v1022 = vld [vmem:[%s1013 + $0x40] sm:$0xff]
          %v1023 = vld [vmem:[%s1013 + $0x48] sm:$0xff]
          %v1024 = vld [vmem:[%s1013 + $0x50] sm:$0xff]
          %v1025 = vld [vmem:[%s1013 + $0x58] sm:$0xff]
          %v1026 = vld [vmem:[%s1013 + $0x60] sm:$0xff]
          %v1027 = vld [vmem:[%s1013 + $0x68] sm:$0xff]
          %v1028 = vld [vmem:[%s1013 + $0x70] sm:$0xff]
          %v1029 = vld [vmem:[%s1013 + $0x78] sm:$0xff]
          %v1030 = vld [vmem:[%s1013 + $0x80] sm:$0xff]
          %v1031 = vld [vmem:[%s1013 + $0x88] sm:$0xff]
          %v1032 = vld [vmem:[%s1013 + $0x90] sm:$0xff]
          %v1033 = vld [vmem:[%s1013 + $0x98] sm:$0xff]
          %v1034 = vld [vmem:[%s1013 + $0xa0] sm:$0xff]
          %v1035 = vld [vmem:[%s1013 + $0xa8] sm:$0xff]
          %v1036 = vld [vmem:[%s1013 + $0xb0] sm:$0xff]
          %v1037 = vld [vmem:[%s1013 + $0xb8] sm:$0xff]
          %v1038 = vld [vmem:[%s1013 + $0xc0] sm:$0xff]
          %v1039 = vld [vmem:[%s1013 + $0xc8] sm:$0xff]
          %v1040 = vld [vmem:[%s1013 + $0xd0] sm:$0xff]
          %v1041 = vld [vmem:[%s1013 + $0xd8] sm:$0xff]
          %v1042 = vld [vmem:[%s1013 + $0xe0] sm:$0xff]
          %v1043 = vld [vmem:[%s1013 + $0xe8] sm:$0xff]
          %v1044 = vld [vmem:[%s1013 + $0xf0] sm:$0xff]
          %v1045 = vld [vmem:[%s1013 + $0xf8] sm:$0xff]
          %v1046 = vld [vmem:[%s1013 + $0x100] sm:$0xff]
          %v1047 = vld [vmem:[%s1013 + $0x108] sm:$0xff]
          %v1048 = vld [vmem:[%s1013 + $0x110] sm:$0xff]
          %v1049 = vld [vmem:[%s1013 + $0x118] sm:$0xff]
          %v1050 = vld [vmem:[%s1013 + $0x120] sm:$0xff]
          %v1051 = vld [vmem:[%s1013 + $0x128] sm:$0xff]
          %v1052 = vld [vmem:[%s1013 + $0x130] sm:$0xff]
          %v1053 = vld [vmem:[%s1013 + $0x138] sm:$0xff]
          %v1054 = vld [vmem:[%s1013 + $0x140] sm:$0xff]
          %v1055 = vld [vmem:[%s1013 + $0x148] sm:$0xff]
          %v1056 = vld [vmem:[%s1013 + $0x150] sm:$0xff]
          %v1057 = vld [vmem:[%s1013 + $0x158] sm:$0xff]
          %v1058 = vld [vmem:[%s1013 + $0x160] sm:$0xff]
          %v1059 = vld [vmem:[%s1013 + $0x168] sm:$0xff]
          %v1060 = vld [vmem:[%s1013 + $0x170] sm:$0xff]
          %v1061 = vld [vmem:[%s1013 + $0x178] sm:$0xff]
          %v1062 = vld [vmem:[%s1013 + $0x180] sm:$0xff]
          %v1063 = vld [vmem:[%s1013 + $0x188] sm:$0xff]
          %v1064 = vld [vmem:[%s1013 + $0x190] sm:$0xff]
          %v1065 = vld [vmem:[%s1013 + $0x198] sm:$0xff]
          %v1066 = vld [vmem:[%s1013 + $0x1a0] sm:$0xff]
          %v1067 = vld [vmem:[%s1013 + $0x1a8] sm:$0xff]
          %v1068 = vld [vmem:[%s1013 + $0x1b0] sm:$0xff]
          %v1069 = vld [vmem:[%s1013 + $0x1b8] sm:$0xff]
          %v1070 = vld [vmem:[%s1013 + $0x1c0] sm:$0xff]
          %v1071 = vld [vmem:[%s1013 + $0x1c8] sm:$0xff]
          %v1072 = vld [vmem:[%s1013 + $0x1d0] sm:$0xff]
          %v1073 = vld [vmem:[%s1013 + $0x1d8] sm:$0xff]
          %v1074 = vld [vmem:[%s1013 + $0x1e0] sm:$0xff]
          %v1075 = vld [vmem:[%s1013 + $0x1e8] sm:$0xff]
          %v1076 = vld [vmem:[%s1013 + $0x1f0] sm:$0xff]
          %v1077 = vld [vmem:[%s1013 + $0x1f8] sm:$0xff]
          %v1078 = vld [vmem:[%s1013 + $0x200] sm:$0xff]
          %v1079 = vld [vmem:[%s1013 + $0x208] sm:$0xff]
          %v1080 = vld [vmem:[%s1013 + $0x210] sm:$0xff]
          %v1081 = vld [vmem:[%s1013 + $0x218] sm:$0xff]
          %v1082 = vld [vmem:[%s1013 + $0x220] sm:$0xff]
          %v1083 = vld [vmem:[%s1013 + $0x228] sm:$0xff]
          %v1084 = vld [vmem:[%s1013 + $0x230] sm:$0xff]
          %v1085 = vld [vmem:[%s1013 + $0x238] sm:$0xff]
          %v1086 = vld [vmem:[%s1013 + $0x240] sm:$0xff]
          %v1087 = vld [vmem:[%s1013 + $0x248] sm:$0xff]
          %v1088 = vld [vmem:[%s1013 + $0x250] sm:$0xff]
          %v1089 = vld [vmem:[%s1013 + $0x258] sm:$0xff]
          %v1090 = vld [vmem:[%s1013 + $0x260] sm:$0xff]
          %v1091 = vld [vmem:[%s1013 + $0x268] sm:$0xff]
          %v1092 = vld [vmem:[%s1013 + $0x270] sm:$0xff]
          %v1093 = vld [vmem:[%s1013 + $0x278] sm:$0xff]
          %v1094 = vld [vmem:[%s1013 + $0x280] sm:$0xff]
          %v1095 = vld [vmem:[%s1013 + $0x288] sm:$0xff]
          %v1096 = vld [vmem:[%s1013 + $0x290] sm:$0xff]
          %v1097 = vld [vmem:[%s1013 + $0x298] sm:$0xff]
          %v1098 = vld [vmem:[%s1013 + $0x2a0] sm:$0xff]
          %v1099 = vld [vmem:[%s1013 + $0x2a8] sm:$0xff]
          %v1100 = vld [vmem:[%s1013 + $0x2b0] sm:$0xff]
          %v1101 = vld [vmem:[%s1013 + $0x2b8] sm:$0xff]
          %v1102 = vld [vmem:[%s1013 + $0x2c0] sm:$0xff]
          %v1103 = vld [vmem:[%s1013 + $0x2c8] sm:$0xff]
          %v1104 = vld [vmem:[%s1013 + $0x2d0] sm:$0xff]
          %v1105 = vld [vmem:[%s1013 + $0x2d8] sm:$0xff]
          %v1106 = vld [vmem:[%s1013 + $0x2e0] sm:$0xff]
          %v1107 = vld [vmem:[%s1013 + $0x2e8] sm:$0xff]
          %v1108 = vld [vmem:[%s1013 + $0x2f0] sm:$0xff]
          %v1109 = vld [vmem:[%s1013 + $0x2f8] sm:$0xff]
          %v1110 = vld [vmem:[%s1013 + $0x300] sm:$0xff]
          %v1111 = vld [vmem:[%s1013 + $0x308] sm:$0xff]
          %v1112 = vld [vmem:[%s1013 + $0x310] sm:$0xff]
          %v1113 = vld [vmem:[%s1013 + $0x318] sm:$0xff]
          %v1114 = vld [vmem:[%s1013 + $0x320] sm:$0xff]
          %v1115 = vld [vmem:[%s1013 + $0x328] sm:$0xff]
          %v1116 = vld [vmem:[%s1013 + $0x330] sm:$0xff]
          %v1117 = vld [vmem:[%s1013 + $0x338] sm:$0xff]
          %v1118 = vld [vmem:[%s1013 + $0x340] sm:$0xff]
          %v1119 = vld [vmem:[%s1013 + $0x348] sm:$0xff]
          %v1120 = vld [vmem:[%s1013 + $0x350] sm:$0xff]
          %v1121 = vld [vmem:[%s1013 + $0x358] sm:$0xff]
          %v1122 = vld [vmem:[%s1013 + $0x360] sm:$0xff]
          %v1123 = vld [vmem:[%s1013 + $0x368] sm:$0xff]
          %v1124 = vld [vmem:[%s1013 + $0x370] sm:$0xff]
          %v1125 = vld [vmem:[%s1013 + $0x378] sm:$0xff]
          %v1126 = vld [vmem:[%s1013 + $0x380] sm:$0xff]
          %v1127 = vld [vmem:[%s1013 + $0x388] sm:$0xff]
          %v1128 = vld [vmem:[%s1013 + $0x390] sm:$0xff]
          %v1129 = vld [vmem:[%s1013 + $0x398] sm:$0xff]
          %v1130 = vld [vmem:[%s1013 + $0x3a0] sm:$0xff]
          %v1131 = vld [vmem:[%s1013 + $0x3a8] sm:$0xff]
          %v1132 = vld [vmem:[%s1013 + $0x3b0] sm:$0xff]
          %v1133 = vld [vmem:[%s1013 + $0x3b8] sm:$0xff]
          %v1134 = vld [vmem:[%s1013 + $0x3c0] sm:$0xff]
          %v1135 = vld [vmem:[%s1013 + $0x3c8] sm:$0xff]
          %v1136 = vld [vmem:[%s1013 + $0x3d0] sm:$0xff]
          %v1137 = vld [vmem:[%s1013 + $0x3d8] sm:$0xff]
          %v1138 = vld [vmem:[%s1013 + $0x3e0] sm:$0xff]
          %v1139 = vld [vmem:[%s1013 + $0x3e8] sm:$0xff]
          %v1140 = vld [vmem:[%s1013 + $0x3f0] sm:$0xff]
          %v1141 = vld [vmem:[%s1013 + $0x3f8] sm:$0xff]
          %v1142 = vld [vmem:[%s1013 + $0x400] sm:$0xff]
          %v1143 = vld [vmem:[%s1013 + $0x408] sm:$0xff]
          %v1144 = vld [vmem:[%s1013 + $0x410] sm:$0xff]
          %v1145 = vld [vmem:[%s1013 + $0x418] sm:$0xff]
          %v1146 = vld [vmem:[%s1013 + $0x420] sm:$0xff]
          %v1147 = vld [vmem:[%s1013 + $0x428] sm:$0xff]
          %v1148 = vld [vmem:[%s1013 + $0x430] sm:$0xff]
          %v1149 = vld [vmem:[%s1013 + $0x438] sm:$0xff]
          %v1150 = vld [vmem:[%s1013 + $0x440] sm:$0xff]
          %v1151 = vld [vmem:[%s1013 + $0x448] sm:$0xff]
          %v1152 = vld [vmem:[%s1013 + $0x450] sm:$0xff]
          %v1153 = vld [vmem:[%s1013 + $0x458] sm:$0xff]
          %v1154 = vld [vmem:[%s1013 + $0x460] sm:$0xff]
          %v1155 = vld [vmem:[%s1013 + $0x468] sm:$0xff]
          %v1156 = vld [vmem:[%s1013 + $0x470] sm:$0xff]
          %v1157 = vld [vmem:[%s1013 + $0x478] sm:$0xff]
          %v1158 = vld [vmem:[%s1013 + $0x480] sm:$0xff]
          %v1159 = vld [vmem:[%s1013 + $0x488] sm:$0xff]
          %v1160 = vld [vmem:[%s1013 + $0x490] sm:$0xff]
          %v1161 = vld [vmem:[%s1013 + $0x498] sm:$0xff]
          %v1162 = vld [vmem:[%s1013 + $0x4a0] sm:$0xff]
          %v1163 = vld [vmem:[%s1013 + $0x4a8] sm:$0xff]
          %v1164 = vld [vmem:[%s1013 + $0x4b0] sm:$0xff]
          %v1165 = vld [vmem:[%s1013 + $0x4b8] sm:$0xff]
          %v1166 = vld [vmem:[%s1013 + $0x4c0] sm:$0xff]
          %v1167 = vld [vmem:[%s1013 + $0x4c8] sm:$0xff]
          %v1168 = vld [vmem:[%s1013 + $0x4d0] sm:$0xff]
          %v1169 = vld [vmem:[%s1013 + $0x4d8] sm:$0xff]
          %v1170 = vld [vmem:[%s1013 + $0x4e0] sm:$0xff]
          %v1171 = vld [vmem:[%s1013 + $0x4e8] sm:$0xff]
          %v1172 = vld [vmem:[%s1013 + $0x4f0] sm:$0xff]
          %v1173 = vld [vmem:[%s1013 + $0x4f8] sm:$0xff]
          %v1174 = vld [vmem:[%s1013 + $0x500] sm:$0xff]
          %v1175 = vld [vmem:[%s1013 + $0x508] sm:$0xff]
          %v1176 = vld [vmem:[%s1013 + $0x510] sm:$0xff]
          %v1177 = vld [vmem:[%s1013 + $0x518] sm:$0xff]
          %v1178 = vld [vmem:[%s1013 + $0x520] sm:$0xff]
          %v1179 = vld [vmem:[%s1013 + $0x528] sm:$0xff]
          %v1180 = vld [vmem:[%s1013 + $0x530] sm:$0xff]
          %v1181 = vld [vmem:[%s1013 + $0x538] sm:$0xff]
          %v1182 = vld [vmem:[%s1013 + $0x540] sm:$0xff]
          %v1183 = vld [vmem:[%s1013 + $0x548] sm:$0xff]
          %v1184 = vld [vmem:[%s1013 + $0x550] sm:$0xff]
          %v1185 = vld [vmem:[%s1013 + $0x558] sm:$0xff]
          %v1186 = vld [vmem:[%s1013 + $0x560] sm:$0xff]
          %v1187 = vld [vmem:[%s1013 + $0x568] sm:$0xff]
          %v1188 = vld [vmem:[%s1013 + $0x570] sm:$0xff]
          %v1189 = vld [vmem:[%s1013 + $0x578] sm:$0xff]
          %v1190 = vld [vmem:[%s1013 + $0x580] sm:$0xff]
          %v1191 = vld [vmem:[%s1013 + $0x588] sm:$0xff]
          %v1192 = vld [vmem:[%s1013 + $0x590] sm:$0xff]
          %v1193 = vld [vmem:[%s1013 + $0x598] sm:$0xff]
          %v1194 = vld [vmem:[%s1013 + $0x5a0] sm:$0xff]
          %v1195 = vld [vmem:[%s1013 + $0x5a8] sm:$0xff]
          %v1196 = vld [vmem:[%s1013 + $0x5b0] sm:$0xff]
          %v1197 = vld [vmem:[%s1013 + $0x5b8] sm:$0xff]
          %v1198 = vld [vmem:[%s1013 + $0x5c0] sm:$0xff]
          %v1199 = vld [vmem:[%s1013 + $0x5c8] sm:$0xff]
          %v1200 = vld [vmem:[%s1013 + $0x5d0] sm:$0xff]
          %v1201 = vld [vmem:[%s1013 + $0x5d8] sm:$0xff]
          %v1202 = vld [vmem:[%s1013 + $0x5e0] sm:$0xff]
          %v1203 = vld [vmem:[%s1013 + $0x5e8] sm:$0xff]
          %v1204 = vld [vmem:[%s1013 + $0x5f0] sm:$0xff]
          %v1205 = vld [vmem:[%s1013 + $0x5f8] sm:$0xff]
          %v1206 = vld [vmem:[%s1013 + $0x600] sm:$0xff]
          %v1207 = vld [vmem:[%s1013 + $0x608] sm:$0xff]
          %v1208 = vld [vmem:[%s1013 + $0x610] sm:$0xff]
          %v1209 = vld [vmem:[%s1013 + $0x618] sm:$0xff]
          %v1210 = vld [vmem:[%s1013 + $0x620] sm:$0xff]
          %v1211 = vld [vmem:[%s1013 + $0x628] sm:$0xff]
          %v1212 = vld [vmem:[%s1013 + $0x630] sm:$0xff]
          %v1213 = vld [vmem:[%s1013 + $0x638] sm:$0xff]
          %v1214 = vld [vmem:[%s1013 + $0x640] sm:$0xff]
          %v1215 = vld [vmem:[%s1013 + $0x648] sm:$0xff]
          %v1216 = vld [vmem:[%s1013 + $0x650] sm:$0xff]
          %v1217 = vld [vmem:[%s1013 + $0x658] sm:$0xff]
          %v1218 = vld [vmem:[%s1013 + $0x660] sm:$0xff]
          %v1219 = vld [vmem:[%s1013 + $0x668] sm:$0xff]
          %v1220 = vld [vmem:[%s1013 + $0x670] sm:$0xff]
          %v1221 = vld [vmem:[%s1013 + $0x678] sm:$0xff]
          %v1222 = vld [vmem:[%s1013 + $0x680] sm:$0xff]
          %v1223 = vld [vmem:[%s1013 + $0x688] sm:$0xff]
          %v1224 = vld [vmem:[%s1013 + $0x690] sm:$0xff]
          %v1225 = vld [vmem:[%s1013 + $0x698] sm:$0xff]
          %v1226 = vld [vmem:[%s1013 + $0x6a0] sm:$0xff]
          %v1227 = vld [vmem:[%s1013 + $0x6a8] sm:$0xff]
          %v1228 = vld [vmem:[%s1013 + $0x6b0] sm:$0xff]
          %v1229 = vld [vmem:[%s1013 + $0x6b8] sm:$0xff]
          %v1230 = vld [vmem:[%s1013 + $0x6c0] sm:$0xff]
          %v1231 = vld [vmem:[%s1013 + $0x6c8] sm:$0xff]
          %v1232 = vld [vmem:[%s1013 + $0x6d0] sm:$0xff]
          %v1233 = vld [vmem:[%s1013 + $0x6d8] sm:$0xff]
          %v1234 = vld [vmem:[%s1013 + $0x6e0] sm:$0xff]
          %v1235 = vld [vmem:[%s1013 + $0x6e8] sm:$0xff]
          %v1236 = vld [vmem:[%s1013 + $0x6f0] sm:$0xff]
          %v1237 = vld [vmem:[%s1013 + $0x6f8] sm:$0xff]
          %v1238 = vld [vmem:[%s1013 + $0x700] sm:$0xff]
          %v1239 = vld [vmem:[%s1013 + $0x708] sm:$0xff]
          %v1240 = vld [vmem:[%s1013 + $0x710] sm:$0xff]
          %v1241 = vld [vmem:[%s1013 + $0x718] sm:$0xff]
          %v1242 = vld [vmem:[%s1013 + $0x720] sm:$0xff]
          %v1243 = vld [vmem:[%s1013 + $0x728] sm:$0xff]
          %v1244 = vld [vmem:[%s1013 + $0x730] sm:$0xff]
          %v1245 = vld [vmem:[%s1013 + $0x738] sm:$0xff]
          %v1246 = vld [vmem:[%s1013 + $0x740] sm:$0xff]
          %v1247 = vld [vmem:[%s1013 + $0x748] sm:$0xff]
          %v1248 = vld [vmem:[%s1013 + $0x750] sm:$0xff]
          %v1249 = vld [vmem:[%s1013 + $0x758] sm:$0xff]
          %v1250 = vld [vmem:[%s1013 + $0x760] sm:$0xff]
          %v1251 = vld [vmem:[%s1013 + $0x768] sm:$0xff]
          %v1252 = vld [vmem:[%s1013 + $0x770] sm:$0xff]
          %v1253 = vld [vmem:[%s1013 + $0x778] sm:$0xff]
          %v1254 = vld [vmem:[%s1013 + $0x780] sm:$0xff]
          %v1255 = vld [vmem:[%s1013 + $0x788] sm:$0xff]
          %v1256 = vld [vmem:[%s1013 + $0x790] sm:$0xff]
          %v1257 = vld [vmem:[%s1013 + $0x798] sm:$0xff]
          %v1258 = vld [vmem:[%s1013 + $0x7a0] sm:$0xff]
          %v1259 = vld [vmem:[%s1013 + $0x7a8] sm:$0xff]
          %v1260 = vld [vmem:[%s1013 + $0x7b0] sm:$0xff]
          %v1261 = vld [vmem:[%s1013 + $0x7b8] sm:$0xff]
          %v1262 = vld [vmem:[%s1013 + $0x7c0] sm:$0xff]
          %v1263 = vld [vmem:[%s1013 + $0x7c8] sm:$0xff]
          %v1264 = vld [vmem:[%s1013 + $0x7d0] sm:$0xff]
          %v1265 = vld [vmem:[%s1013 + $0x7d8] sm:$0xff]
          %v1266 = vld [vmem:[%s1013 + $0x7e0] sm:$0xff]
          %v1267 = vld [vmem:[%s1013 + $0x7e8] sm:$0xff]
          %v1268 = vld [vmem:[%s1013 + $0x7f0] sm:$0xff]
          %v1269 = vld [vmem:[%s1013 + $0x7f8] sm:$0xff]
          %v1270 = vld [vmem:[#allocation2] sm:$0xf]
          %v1271 = vld [vmem:[#allocation2 + $0x4] sm:$0xf]
          %v1272 = vld [vmem:[#allocation2 + $0x8] sm:$0xf]
          %v1273 = vld [vmem:[#allocation2 + $0xc] sm:$0xf]
          %v1274 = vld [vmem:[#allocation2 + $0x10] sm:$0xf]
          %v1275 = vld [vmem:[#allocation2 + $0x14] sm:$0xf]
          %v1276 = vld [vmem:[#allocation2 + $0x18] sm:$0xf]
          %v1277 = vld [vmem:[#allocation2 + $0x1c] sm:$0xf]
          %v1278 = vld [vmem:[#allocation2 + $0x20] sm:$0xf]
          %v1279 = vld [vmem:[#allocation2 + $0x24] sm:$0xf]
          %v1280 = vld [vmem:[#allocation2 + $0x28] sm:$0xf]
          %v1281 = vld [vmem:[#allocation2 + $0x2c] sm:$0xf]
          %v1282 = vld [vmem:[#allocation2 + $0x30] sm:$0xf]
          %v1283 = vld [vmem:[#allocation2 + $0x34] sm:$0xf]
          %v1284 = vld [vmem:[#allocation2 + $0x38] sm:$0xf]
          %v1285 = vld [vmem:[#allocation2 + $0x3c] sm:$0xf]
          %v1286 = vld [vmem:[#allocation2 + $0x40] sm:$0xf]
          %v1287 = vld [vmem:[#allocation2 + $0x44] sm:$0xf]
          %v1288 = vld [vmem:[#allocation2 + $0x48] sm:$0xf]
          %v1289 = vld [vmem:[#allocation2 + $0x4c] sm:$0xf]
          %v1290 = vld [vmem:[#allocation2 + $0x50] sm:$0xf]
          %v1291 = vld [vmem:[#allocation2 + $0x54] sm:$0xf]
          %v1292 = vld [vmem:[#allocation2 + $0x58] sm:$0xf]
          %v1293 = vld [vmem:[#allocation2 + $0x5c] sm:$0xf]
          %v1294 = vld [vmem:[#allocation2 + $0x60] sm:$0xf]
          %v1295 = vld [vmem:[#allocation2 + $0x64] sm:$0xf]
          %v1296 = vld [vmem:[#allocation2 + $0x68] sm:$0xf]
          %v1297 = vld [vmem:[#allocation2 + $0x6c] sm:$0xf]
          %v1298 = vld [vmem:[#allocation2 + $0x70] sm:$0xf]
          %v1299 = vld [vmem:[#allocation2 + $0x74] sm:$0xf]
          %v1300 = vld [vmem:[#allocation2 + $0x78] sm:$0xf]
          %v1301 = vld [vmem:[#allocation2 + $0x7c] sm:$0xf]
          %v1302 = vld [vmem:[#allocation2 + $0x80] sm:$0xf]
          %v1303 = vld [vmem:[#allocation2 + $0x84] sm:$0xf]
          %v1304 = vld [vmem:[#allocation2 + $0x88] sm:$0xf]
          %v1305 = vld [vmem:[#allocation2 + $0x8c] sm:$0xf]
          %v1306 = vld [vmem:[#allocation2 + $0x90] sm:$0xf]
          %v1307 = vld [vmem:[#allocation2 + $0x94] sm:$0xf]
          %v1308 = vld [vmem:[#allocation2 + $0x98] sm:$0xf]
          %v1309 = vld [vmem:[#allocation2 + $0x9c] sm:$0xf]
          %v1310 = vld [vmem:[#allocation2 + $0xa0] sm:$0xf]
          %v1311 = vld [vmem:[#allocation2 + $0xa4] sm:$0xf]
          %v1312 = vld [vmem:[#allocation2 + $0xa8] sm:$0xf]
          %v1313 = vld [vmem:[#allocation2 + $0xac] sm:$0xf]
          %v1314 = vld [vmem:[#allocation2 + $0xb0] sm:$0xf]
          %v1315 = vld [vmem:[#allocation2 + $0xb4] sm:$0xf]
          %v1316 = vld [vmem:[#allocation2 + $0xb8] sm:$0xf]
          %v1317 = vld [vmem:[#allocation2 + $0xbc] sm:$0xf]
          %v1318 = vld [vmem:[#allocation2 + $0xc0] sm:$0xf]
          %v1319 = vld [vmem:[#allocation2 + $0xc4] sm:$0xf]
          %v1320 = vld [vmem:[#allocation2 + $0xc8] sm:$0xf]
          %v1321 = vld [vmem:[#allocation2 + $0xcc] sm:$0xf]
          %v1322 = vld [vmem:[#allocation2 + $0xd0] sm:$0xf]
          %v1323 = vld [vmem:[#allocation2 + $0xd4] sm:$0xf]
          %v1324 = vld [vmem:[#allocation2 + $0xd8] sm:$0xf]
          %v1325 = vld [vmem:[#allocation2 + $0xdc] sm:$0xf]
          %v1326 = vld [vmem:[#allocation2 + $0xe0] sm:$0xf]
          %v1327 = vld [vmem:[#allocation2 + $0xe4] sm:$0xf]
          %v1328 = vld [vmem:[#allocation2 + $0xe8] sm:$0xf]
          %v1329 = vld [vmem:[#allocation2 + $0xec] sm:$0xf]
          %v1330 = vld [vmem:[#allocation2 + $0xf0] sm:$0xf]
          %v1331 = vld [vmem:[#allocation2 + $0xf4] sm:$0xf]
          %v1332 = vld [vmem:[#allocation2 + $0xf8] sm:$0xf]
          %v1333 = vld [vmem:[#allocation2 + $0xfc] sm:$0xf]
          %v1334 = vld [vmem:[#allocation2 + $0x100] sm:$0xf]
          %v1335 = vld [vmem:[#allocation2 + $0x104] sm:$0xf]
          %v1336 = vld [vmem:[#allocation2 + $0x108] sm:$0xf]
          %v1337 = vld [vmem:[#allocation2 + $0x10c] sm:$0xf]
          %v1338 = vld [vmem:[#allocation2 + $0x110] sm:$0xf]
          %v1339 = vld [vmem:[#allocation2 + $0x114] sm:$0xf]
          %v1340 = vld [vmem:[#allocation2 + $0x118] sm:$0xf]
          %v1341 = vld [vmem:[#allocation2 + $0x11c] sm:$0xf]
          %v1342 = vld [vmem:[#allocation2 + $0x120] sm:$0xf]
          %v1343 = vld [vmem:[#allocation2 + $0x124] sm:$0xf]
          %v1344 = vld [vmem:[#allocation2 + $0x128] sm:$0xf]
          %v1345 = vld [vmem:[#allocation2 + $0x12c] sm:$0xf]
          %v1346 = vld [vmem:[#allocation2 + $0x130] sm:$0xf]
          %v1347 = vld [vmem:[#allocation2 + $0x134] sm:$0xf]
          %v1348 = vld [vmem:[#allocation2 + $0x138] sm:$0xf]
          %v1349 = vld [vmem:[#allocation2 + $0x13c] sm:$0xf]
          %v1350 = vld [vmem:[#allocation2 + $0x140] sm:$0xf]
          %v1351 = vld [vmem:[#allocation2 + $0x144] sm:$0xf]
          %v1352 = vld [vmem:[#allocation2 + $0x148] sm:$0xf]
          %v1353 = vld [vmem:[#allocation2 + $0x14c] sm:$0xf]
          %v1354 = vld [vmem:[#allocation2 + $0x150] sm:$0xf]
          %v1355 = vld [vmem:[#allocation2 + $0x154] sm:$0xf]
          %v1356 = vld [vmem:[#allocation2 + $0x158] sm:$0xf]
          %v1357 = vld [vmem:[#allocation2 + $0x15c] sm:$0xf]
          %v1358 = vld [vmem:[#allocation2 + $0x160] sm:$0xf]
          %v1359 = vld [vmem:[#allocation2 + $0x164] sm:$0xf]
          %v1360 = vld [vmem:[#allocation2 + $0x168] sm:$0xf]
          %v1361 = vld [vmem:[#allocation2 + $0x16c] sm:$0xf]
          %v1362 = vld [vmem:[#allocation2 + $0x170] sm:$0xf]
          %v1363 = vld [vmem:[#allocation2 + $0x174] sm:$0xf]
          %v1364 = vld [vmem:[#allocation2 + $0x178] sm:$0xf]
          %v1365 = vld [vmem:[#allocation2 + $0x17c] sm:$0xf]
          %v1366 = vld [vmem:[#allocation2 + $0x180] sm:$0xf]
          %v1367 = vld [vmem:[#allocation2 + $0x184] sm:$0xf]
          %v1368 = vld [vmem:[#allocation2 + $0x188] sm:$0xf]
          %v1369 = vld [vmem:[#allocation2 + $0x18c] sm:$0xf]
          %v1370 = vld [vmem:[#allocation2 + $0x190] sm:$0xf]
          %v1371 = vld [vmem:[#allocation2 + $0x194] sm:$0xf]
          %v1372 = vld [vmem:[#allocation2 + $0x198] sm:$0xf]
          %v1373 = vld [vmem:[#allocation2 + $0x19c] sm:$0xf]
          %v1374 = vld [vmem:[#allocation2 + $0x1a0] sm:$0xf]
          %v1375 = vld [vmem:[#allocation2 + $0x1a4] sm:$0xf]
          %v1376 = vld [vmem:[#allocation2 + $0x1a8] sm:$0xf]
          %v1377 = vld [vmem:[#allocation2 + $0x1ac] sm:$0xf]
          %v1378 = vld [vmem:[#allocation2 + $0x1b0] sm:$0xf]
          %v1379 = vld [vmem:[#allocation2 + $0x1b4] sm:$0xf]
          %v1380 = vld [vmem:[#allocation2 + $0x1b8] sm:$0xf]
          %v1381 = vld [vmem:[#allocation2 + $0x1bc] sm:$0xf]
          %v1382 = vld [vmem:[#allocation2 + $0x1c0] sm:$0xf]
          %v1383 = vld [vmem:[#allocation2 + $0x1c4] sm:$0xf]
          %v1384 = vld [vmem:[#allocation2 + $0x1c8] sm:$0xf]
          %v1385 = vld [vmem:[#allocation2 + $0x1cc] sm:$0xf]
          %v1386 = vld [vmem:[#allocation2 + $0x1d0] sm:$0xf]
          %v1387 = vld [vmem:[#allocation2 + $0x1d4] sm:$0xf]
          %v1388 = vld [vmem:[#allocation2 + $0x1d8] sm:$0xf]
          %v1389 = vld [vmem:[#allocation2 + $0x1dc] sm:$0xf]
          %v1390 = vld [vmem:[#allocation2 + $0x1e0] sm:$0xf]
          %v1391 = vld [vmem:[#allocation2 + $0x1e4] sm:$0xf]
          %v1392 = vld [vmem:[#allocation2 + $0x1e8] sm:$0xf]
          %v1393 = vld [vmem:[#allocation2 + $0x1ec] sm:$0xf]
          %v1394 = vld [vmem:[#allocation2 + $0x1f0] sm:$0xf]
          %v1395 = vld [vmem:[#allocation2 + $0x1f4] sm:$0xf]
          %v1396 = vld [vmem:[#allocation2 + $0x1f8] sm:$0xf]
          %v1397 = vld [vmem:[#allocation2 + $0x1fc] sm:$0xf]
          %v1398 = vld [vmem:[#allocation10] sm:$0x1]
          %v1400 = vperm.slane %v1398, 0
          %v1658 = vunpack.c.l.b16 %v1014
          %v1659 = vunpack.c.h.b16 %v1014
          %v1660 = vunpack.c.l.b16 %v1015
          %v1661 = vunpack.c.h.b16 %v1015
          %v1662 = vunpack.c.l.b16 %v1016
          %v1663 = vunpack.c.h.b16 %v1016
          %v1664 = vunpack.c.l.b16 %v1017
          %v1665 = vunpack.c.h.b16 %v1017
          %v1666 = vunpack.c.l.b16 %v1018
          %v1667 = vunpack.c.h.b16 %v1018
          %v1668 = vunpack.c.l.b16 %v1019
          %v1669 = vunpack.c.h.b16 %v1019
          %v1670 = vunpack.c.l.b16 %v1020
          %v1671 = vunpack.c.h.b16 %v1020
          %v1672 = vunpack.c.l.b16 %v1021
          %v1673 = vunpack.c.h.b16 %v1021
          %v1674 = vunpack.c.l.b16 %v1022
          %v1675 = vunpack.c.h.b16 %v1022
          %v1676 = vunpack.c.l.b16 %v1023
          %v1677 = vunpack.c.h.b16 %v1023
          %v1678 = vunpack.c.l.b16 %v1024
          %v1679 = vunpack.c.h.b16 %v1024
          %v1680 = vunpack.c.l.b16 %v1025
          %v1681 = vunpack.c.h.b16 %v1025
          %v1682 = vunpack.c.l.b16 %v1026
          %v1683 = vunpack.c.h.b16 %v1026
          %v1684 = vunpack.c.l.b16 %v1027
          %v1685 = vunpack.c.h.b16 %v1027
          %v1686 = vunpack.c.l.b16 %v1028
          %v1687 = vunpack.c.h.b16 %v1028
          %v1688 = vunpack.c.l.b16 %v1029
          %v1689 = vunpack.c.h.b16 %v1029
          %v1690 = vunpack.c.l.b16 %v1030
          %v1691 = vunpack.c.h.b16 %v1030
          %v1692 = vunpack.c.l.b16 %v1031
          %v1693 = vunpack.c.h.b16 %v1031
          %v1694 = vunpack.c.l.b16 %v1032
          %v1695 = vunpack.c.h.b16 %v1032
          %v1696 = vunpack.c.l.b16 %v1033
          %v1697 = vunpack.c.h.b16 %v1033
          %v1698 = vunpack.c.l.b16 %v1034
          %v1699 = vunpack.c.h.b16 %v1034
          %v1700 = vunpack.c.l.b16 %v1035
          %v1701 = vunpack.c.h.b16 %v1035
          %v1702 = vunpack.c.l.b16 %v1036
          %v1703 = vunpack.c.h.b16 %v1036
          %v1704 = vunpack.c.l.b16 %v1037
          %v1705 = vunpack.c.h.b16 %v1037
          %v1706 = vunpack.c.l.b16 %v1038
          %v1707 = vunpack.c.h.b16 %v1038
          %v1708 = vunpack.c.l.b16 %v1039
          %v1709 = vunpack.c.h.b16 %v1039
          %v1710 = vunpack.c.l.b16 %v1040
          %v1711 = vunpack.c.h.b16 %v1040
          %v1712 = vunpack.c.l.b16 %v1041
          %v1713 = vunpack.c.h.b16 %v1041
          %v1714 = vunpack.c.l.b16 %v1042
          %v1715 = vunpack.c.h.b16 %v1042
          %v1716 = vunpack.c.l.b16 %v1043
          %v1717 = vunpack.c.h.b16 %v1043
          %v1718 = vunpack.c.l.b16 %v1044
          %v1719 = vunpack.c.h.b16 %v1044
          %v1720 = vunpack.c.l.b16 %v1045
          %v1721 = vunpack.c.h.b16 %v1045
          %v1722 = vunpack.c.l.b16 %v1046
          %v1723 = vunpack.c.h.b16 %v1046
          %v1724 = vunpack.c.l.b16 %v1047
          %v1725 = vunpack.c.h.b16 %v1047
          %v1726 = vunpack.c.l.b16 %v1048
          %v1727 = vunpack.c.h.b16 %v1048
          %v1728 = vunpack.c.l.b16 %v1049
          %v1729 = vunpack.c.h.b16 %v1049
          %v1730 = vunpack.c.l.b16 %v1050
          %v1731 = vunpack.c.h.b16 %v1050
          %v1732 = vunpack.c.l.b16 %v1051
          %v1733 = vunpack.c.h.b16 %v1051
          %v1734 = vunpack.c.l.b16 %v1052
          %v1735 = vunpack.c.h.b16 %v1052
          %v1736 = vunpack.c.l.b16 %v1053
          %v1737 = vunpack.c.h.b16 %v1053
          %v1738 = vunpack.c.l.b16 %v1054
          %v1739 = vunpack.c.h.b16 %v1054
          %v1740 = vunpack.c.l.b16 %v1055
          %v1741 = vunpack.c.h.b16 %v1055
          %v1742 = vunpack.c.l.b16 %v1056
          %v1743 = vunpack.c.h.b16 %v1056
          %v1744 = vunpack.c.l.b16 %v1057
          %v1745 = vunpack.c.h.b16 %v1057
          %v1746 = vunpack.c.l.b16 %v1058
          %v1747 = vunpack.c.h.b16 %v1058
          %v1748 = vunpack.c.l.b16 %v1059
          %v1749 = vunpack.c.h.b16 %v1059
          %v1750 = vunpack.c.l.b16 %v1060
          %v1751 = vunpack.c.h.b16 %v1060
          %v1752 = vunpack.c.l.b16 %v1061
          %v1753 = vunpack.c.h.b16 %v1061
          %v1754 = vunpack.c.l.b16 %v1062
          %v1755 = vunpack.c.h.b16 %v1062
          %v1756 = vunpack.c.l.b16 %v1063
          %v1757 = vunpack.c.h.b16 %v1063
          %v1758 = vunpack.c.l.b16 %v1064
          %v1759 = vunpack.c.h.b16 %v1064
          %v1760 = vunpack.c.l.b16 %v1065
          %v1761 = vunpack.c.h.b16 %v1065
          %v1762 = vunpack.c.l.b16 %v1066
          %v1763 = vunpack.c.h.b16 %v1066
          %v1764 = vunpack.c.l.b16 %v1067
          %v1765 = vunpack.c.h.b16 %v1067
          %v1766 = vunpack.c.l.b16 %v1068
          %v1767 = vunpack.c.h.b16 %v1068
          %v1768 = vunpack.c.l.b16 %v1069
          %v1769 = vunpack.c.h.b16 %v1069
          %v1770 = vunpack.c.l.b16 %v1070
          %v1771 = vunpack.c.h.b16 %v1070
          %v1772 = vunpack.c.l.b16 %v1071
          %v1773 = vunpack.c.h.b16 %v1071
          %v1774 = vunpack.c.l.b16 %v1072
          %v1775 = vunpack.c.h.b16 %v1072
          %v1776 = vunpack.c.l.b16 %v1073
          %v1777 = vunpack.c.h.b16 %v1073
          %v1778 = vunpack.c.l.b16 %v1074
          %v1779 = vunpack.c.h.b16 %v1074
          %v1780 = vunpack.c.l.b16 %v1075
          %v1781 = vunpack.c.h.b16 %v1075
          %v1782 = vunpack.c.l.b16 %v1076
          %v1783 = vunpack.c.h.b16 %v1076
          %v1784 = vunpack.c.l.b16 %v1077
          %v1785 = vunpack.c.h.b16 %v1077
          %v1786 = vunpack.c.l.b16 %v1078
          %v1787 = vunpack.c.h.b16 %v1078
          %v1788 = vunpack.c.l.b16 %v1079
          %v1789 = vunpack.c.h.b16 %v1079
          %v1790 = vunpack.c.l.b16 %v1080
          %v1791 = vunpack.c.h.b16 %v1080
          %v1792 = vunpack.c.l.b16 %v1081
          %v1793 = vunpack.c.h.b16 %v1081
          %v1794 = vunpack.c.l.b16 %v1082
          %v1795 = vunpack.c.h.b16 %v1082
          %v1796 = vunpack.c.l.b16 %v1083
          %v1797 = vunpack.c.h.b16 %v1083
          %v1798 = vunpack.c.l.b16 %v1084
          %v1799 = vunpack.c.h.b16 %v1084
          %v1800 = vunpack.c.l.b16 %v1085
          %v1801 = vunpack.c.h.b16 %v1085
          %v1802 = vunpack.c.l.b16 %v1086
          %v1803 = vunpack.c.h.b16 %v1086
          %v1804 = vunpack.c.l.b16 %v1087
          %v1805 = vunpack.c.h.b16 %v1087
          %v1806 = vunpack.c.l.b16 %v1088
          %v1807 = vunpack.c.h.b16 %v1088
          %v1808 = vunpack.c.l.b16 %v1089
          %v1809 = vunpack.c.h.b16 %v1089
          %v1810 = vunpack.c.l.b16 %v1090
          %v1811 = vunpack.c.h.b16 %v1090
          %v1812 = vunpack.c.l.b16 %v1091
          %v1813 = vunpack.c.h.b16 %v1091
          %v1814 = vunpack.c.l.b16 %v1092
          %v1815 = vunpack.c.h.b16 %v1092
          %v1816 = vunpack.c.l.b16 %v1093
          %v1817 = vunpack.c.h.b16 %v1093
          %v1818 = vunpack.c.l.b16 %v1094
          %v1819 = vunpack.c.h.b16 %v1094
          %v1820 = vunpack.c.l.b16 %v1095
          %v1821 = vunpack.c.h.b16 %v1095
          %v1822 = vunpack.c.l.b16 %v1096
          %v1823 = vunpack.c.h.b16 %v1096
          %v1824 = vunpack.c.l.b16 %v1097
          %v1825 = vunpack.c.h.b16 %v1097
          %v1826 = vunpack.c.l.b16 %v1098
          %v1827 = vunpack.c.h.b16 %v1098
          %v1828 = vunpack.c.l.b16 %v1099
          %v1829 = vunpack.c.h.b16 %v1099
          %v1830 = vunpack.c.l.b16 %v1100
          %v1831 = vunpack.c.h.b16 %v1100
          %v1832 = vunpack.c.l.b16 %v1101
          %v1833 = vunpack.c.h.b16 %v1101
          %v1834 = vunpack.c.l.b16 %v1102
          %v1835 = vunpack.c.h.b16 %v1102
          %v1836 = vunpack.c.l.b16 %v1103
          %v1837 = vunpack.c.h.b16 %v1103
          %v1838 = vunpack.c.l.b16 %v1104
          %v1839 = vunpack.c.h.b16 %v1104
          %v1840 = vunpack.c.l.b16 %v1105
          %v1841 = vunpack.c.h.b16 %v1105
          %v1842 = vunpack.c.l.b16 %v1106
          %v1843 = vunpack.c.h.b16 %v1106
          %v1844 = vunpack.c.l.b16 %v1107
          %v1845 = vunpack.c.h.b16 %v1107
          %v1846 = vunpack.c.l.b16 %v1108
          %v1847 = vunpack.c.h.b16 %v1108
          %v1848 = vunpack.c.l.b16 %v1109
          %v1849 = vunpack.c.h.b16 %v1109
          %v1850 = vunpack.c.l.b16 %v1110
          %v1851 = vunpack.c.h.b16 %v1110
          %v1852 = vunpack.c.l.b16 %v1111
          %v1853 = vunpack.c.h.b16 %v1111
          %v1854 = vunpack.c.l.b16 %v1112
          %v1855 = vunpack.c.h.b16 %v1112
          %v1856 = vunpack.c.l.b16 %v1113
          %v1857 = vunpack.c.h.b16 %v1113
          %v1858 = vunpack.c.l.b16 %v1114
          %v1859 = vunpack.c.h.b16 %v1114
          %v1860 = vunpack.c.l.b16 %v1115
          %v1861 = vunpack.c.h.b16 %v1115
          %v1862 = vunpack.c.l.b16 %v1116
          %v1863 = vunpack.c.h.b16 %v1116
          %v1864 = vunpack.c.l.b16 %v1117
          %v1865 = vunpack.c.h.b16 %v1117
          %v1866 = vunpack.c.l.b16 %v1118
          %v1867 = vunpack.c.h.b16 %v1118
          %v1868 = vunpack.c.l.b16 %v1119
          %v1869 = vunpack.c.h.b16 %v1119
          %v1870 = vunpack.c.l.b16 %v1120
          %v1871 = vunpack.c.h.b16 %v1120
          %v1872 = vunpack.c.l.b16 %v1121
          %v1873 = vunpack.c.h.b16 %v1121
          %v1874 = vunpack.c.l.b16 %v1122
          %v1875 = vunpack.c.h.b16 %v1122
          %v1876 = vunpack.c.l.b16 %v1123
          %v1877 = vunpack.c.h.b16 %v1123
          %v1878 = vunpack.c.l.b16 %v1124
          %v1879 = vunpack.c.h.b16 %v1124
          %v1880 = vunpack.c.l.b16 %v1125
          %v1881 = vunpack.c.h.b16 %v1125
          %v1882 = vunpack.c.l.b16 %v1126
          %v1883 = vunpack.c.h.b16 %v1126
          %v1884 = vunpack.c.l.b16 %v1127
          %v1885 = vunpack.c.h.b16 %v1127
          %v1886 = vunpack.c.l.b16 %v1128
          %v1887 = vunpack.c.h.b16 %v1128
          %v1888 = vunpack.c.l.b16 %v1129
          %v1889 = vunpack.c.h.b16 %v1129
          %v1890 = vunpack.c.l.b16 %v1130
          %v1891 = vunpack.c.h.b16 %v1130
          %v1892 = vunpack.c.l.b16 %v1131
          %v1893 = vunpack.c.h.b16 %v1131
          %v1894 = vunpack.c.l.b16 %v1132
          %v1895 = vunpack.c.h.b16 %v1132
          %v1896 = vunpack.c.l.b16 %v1133
          %v1897 = vunpack.c.h.b16 %v1133
          %v1898 = vunpack.c.l.b16 %v1134
          %v1899 = vunpack.c.h.b16 %v1134
          %v1900 = vunpack.c.l.b16 %v1135
          %v1901 = vunpack.c.h.b16 %v1135
          %v1902 = vunpack.c.l.b16 %v1136
          %v1903 = vunpack.c.h.b16 %v1136
          %v1904 = vunpack.c.l.b16 %v1137
          %v1905 = vunpack.c.h.b16 %v1137
          %v1906 = vunpack.c.l.b16 %v1138
          %v1907 = vunpack.c.h.b16 %v1138
          %v1908 = vunpack.c.l.b16 %v1139
          %v1909 = vunpack.c.h.b16 %v1139
          %v1910 = vunpack.c.l.b16 %v1140
          %v1911 = vunpack.c.h.b16 %v1140
          %v1912 = vunpack.c.l.b16 %v1141
          %v1913 = vunpack.c.h.b16 %v1141
          %v1914 = vunpack.c.l.b16 %v1142
          %v1915 = vunpack.c.h.b16 %v1142
          %v1916 = vunpack.c.l.b16 %v1143
          %v1917 = vunpack.c.h.b16 %v1143
          %v1918 = vunpack.c.l.b16 %v1144
          %v1919 = vunpack.c.h.b16 %v1144
          %v1920 = vunpack.c.l.b16 %v1145
          %v1921 = vunpack.c.h.b16 %v1145
          %v1922 = vunpack.c.l.b16 %v1146
          %v1923 = vunpack.c.h.b16 %v1146
          %v1924 = vunpack.c.l.b16 %v1147
          %v1925 = vunpack.c.h.b16 %v1147
          %v1926 = vunpack.c.l.b16 %v1148
          %v1927 = vunpack.c.h.b16 %v1148
          %v1928 = vunpack.c.l.b16 %v1149
          %v1929 = vunpack.c.h.b16 %v1149
          %v1930 = vunpack.c.l.b16 %v1150
          %v1931 = vunpack.c.h.b16 %v1150
          %v1932 = vunpack.c.l.b16 %v1151
          %v1933 = vunpack.c.h.b16 %v1151
          %v1934 = vunpack.c.l.b16 %v1152
          %v1935 = vunpack.c.h.b16 %v1152
          %v1936 = vunpack.c.l.b16 %v1153
          %v1937 = vunpack.c.h.b16 %v1153
          %v1938 = vunpack.c.l.b16 %v1154
          %v1939 = vunpack.c.h.b16 %v1154
          %v1940 = vunpack.c.l.b16 %v1155
          %v1941 = vunpack.c.h.b16 %v1155
          %v1942 = vunpack.c.l.b16 %v1156
          %v1943 = vunpack.c.h.b16 %v1156
          %v1944 = vunpack.c.l.b16 %v1157
          %v1945 = vunpack.c.h.b16 %v1157
          %v1946 = vunpack.c.l.b16 %v1158
          %v1947 = vunpack.c.h.b16 %v1158
          %v1948 = vunpack.c.l.b16 %v1159
          %v1949 = vunpack.c.h.b16 %v1159
          %v1950 = vunpack.c.l.b16 %v1160
          %v1951 = vunpack.c.h.b16 %v1160
          %v1952 = vunpack.c.l.b16 %v1161
          %v1953 = vunpack.c.h.b16 %v1161
          %v1954 = vunpack.c.l.b16 %v1162
          %v1955 = vunpack.c.h.b16 %v1162
          %v1956 = vunpack.c.l.b16 %v1163
          %v1957 = vunpack.c.h.b16 %v1163
          %v1958 = vunpack.c.l.b16 %v1164
          %v1959 = vunpack.c.h.b16 %v1164
          %v1960 = vunpack.c.l.b16 %v1165
          %v1961 = vunpack.c.h.b16 %v1165
          %v1962 = vunpack.c.l.b16 %v1166
          %v1963 = vunpack.c.h.b16 %v1166
          %v1964 = vunpack.c.l.b16 %v1167
          %v1965 = vunpack.c.h.b16 %v1167
          %v1966 = vunpack.c.l.b16 %v1168
          %v1967 = vunpack.c.h.b16 %v1168
          %v1968 = vunpack.c.l.b16 %v1169
          %v1969 = vunpack.c.h.b16 %v1169
          %v1970 = vunpack.c.l.b16 %v1170
          %v1971 = vunpack.c.h.b16 %v1170
          %v1972 = vunpack.c.l.b16 %v1171
          %v1973 = vunpack.c.h.b16 %v1171
          %v1974 = vunpack.c.l.b16 %v1172
          %v1975 = vunpack.c.h.b16 %v1172
          %v1976 = vunpack.c.l.b16 %v1173
          %v1977 = vunpack.c.h.b16 %v1173
          %v1978 = vunpack.c.l.b16 %v1174
          %v1979 = vunpack.c.h.b16 %v1174
          %v1980 = vunpack.c.l.b16 %v1175
          %v1981 = vunpack.c.h.b16 %v1175
          %v1982 = vunpack.c.l.b16 %v1176
          %v1983 = vunpack.c.h.b16 %v1176
          %v1984 = vunpack.c.l.b16 %v1177
          %v1985 = vunpack.c.h.b16 %v1177
          %v1986 = vunpack.c.l.b16 %v1178
          %v1987 = vunpack.c.h.b16 %v1178
          %v1988 = vunpack.c.l.b16 %v1179
          %v1989 = vunpack.c.h.b16 %v1179
          %v1990 = vunpack.c.l.b16 %v1180
          %v1991 = vunpack.c.h.b16 %v1180
          %v1992 = vunpack.c.l.b16 %v1181
          %v1993 = vunpack.c.h.b16 %v1181
          %v1994 = vunpack.c.l.b16 %v1182
          %v1995 = vunpack.c.h.b16 %v1182
          %v1996 = vunpack.c.l.b16 %v1183
          %v1997 = vunpack.c.h.b16 %v1183
          %v1998 = vunpack.c.l.b16 %v1184
          %v1999 = vunpack.c.h.b16 %v1184
          %v2000 = vunpack.c.l.b16 %v1185
          %v2001 = vunpack.c.h.b16 %v1185
          %v2002 = vunpack.c.l.b16 %v1186
          %v2003 = vunpack.c.h.b16 %v1186
          %v2004 = vunpack.c.l.b16 %v1187
          %v2005 = vunpack.c.h.b16 %v1187
          %v2006 = vunpack.c.l.b16 %v1188
          %v2007 = vunpack.c.h.b16 %v1188
          %v2008 = vunpack.c.l.b16 %v1189
          %v2009 = vunpack.c.h.b16 %v1189
          %v2010 = vunpack.c.l.b16 %v1190
          %v2011 = vunpack.c.h.b16 %v1190
          %v2012 = vunpack.c.l.b16 %v1191
          %v2013 = vunpack.c.h.b16 %v1191
          %v2014 = vunpack.c.l.b16 %v1192
          %v2015 = vunpack.c.h.b16 %v1192
          %v2016 = vunpack.c.l.b16 %v1193
          %v2017 = vunpack.c.h.b16 %v1193
          %v2018 = vunpack.c.l.b16 %v1194
          %v2019 = vunpack.c.h.b16 %v1194
          %v2020 = vunpack.c.l.b16 %v1195
          %v2021 = vunpack.c.h.b16 %v1195
          %v2022 = vunpack.c.l.b16 %v1196
          %v2023 = vunpack.c.h.b16 %v1196
          %v2024 = vunpack.c.l.b16 %v1197
          %v2025 = vunpack.c.h.b16 %v1197
          %v2026 = vunpack.c.l.b16 %v1198
          %v2027 = vunpack.c.h.b16 %v1198
          %v2028 = vunpack.c.l.b16 %v1199
          %v2029 = vunpack.c.h.b16 %v1199
          %v2030 = vunpack.c.l.b16 %v1200
          %v2031 = vunpack.c.h.b16 %v1200
          %v2032 = vunpack.c.l.b16 %v1201
          %v2033 = vunpack.c.h.b16 %v1201
          %v2034 = vunpack.c.l.b16 %v1202
          %v2035 = vunpack.c.h.b16 %v1202
          %v2036 = vunpack.c.l.b16 %v1203
          %v2037 = vunpack.c.h.b16 %v1203
          %v2038 = vunpack.c.l.b16 %v1204
          %v2039 = vunpack.c.h.b16 %v1204
          %v2040 = vunpack.c.l.b16 %v1205
          %v2041 = vunpack.c.h.b16 %v1205
          %v2042 = vunpack.c.l.b16 %v1206
          %v2043 = vunpack.c.h.b16 %v1206
          %v2044 = vunpack.c.l.b16 %v1207
          %v2045 = vunpack.c.h.b16 %v1207
          %v2046 = vunpack.c.l.b16 %v1208
          %v2047 = vunpack.c.h.b16 %v1208
          %v2048 = vunpack.c.l.b16 %v1209
          %v2049 = vunpack.c.h.b16 %v1209
          %v2050 = vunpack.c.l.b16 %v1210
          %v2051 = vunpack.c.h.b16 %v1210
          %v2052 = vunpack.c.l.b16 %v1211
          %v2053 = vunpack.c.h.b16 %v1211
          %v2054 = vunpack.c.l.b16 %v1212
          %v2055 = vunpack.c.h.b16 %v1212
          %v2056 = vunpack.c.l.b16 %v1213
          %v2057 = vunpack.c.h.b16 %v1213
          %v2058 = vunpack.c.l.b16 %v1214
          %v2059 = vunpack.c.h.b16 %v1214
          %v2060 = vunpack.c.l.b16 %v1215
          %v2061 = vunpack.c.h.b16 %v1215
          %v2062 = vunpack.c.l.b16 %v1216
          %v2063 = vunpack.c.h.b16 %v1216
          %v2064 = vunpack.c.l.b16 %v1217
          %v2065 = vunpack.c.h.b16 %v1217
          %v2066 = vunpack.c.l.b16 %v1218
          %v2067 = vunpack.c.h.b16 %v1218
          %v2068 = vunpack.c.l.b16 %v1219
          %v2069 = vunpack.c.h.b16 %v1219
          %v2070 = vunpack.c.l.b16 %v1220
          %v2071 = vunpack.c.h.b16 %v1220
          %v2072 = vunpack.c.l.b16 %v1221
          %v2073 = vunpack.c.h.b16 %v1221
          %v2074 = vunpack.c.l.b16 %v1222
          %v2075 = vunpack.c.h.b16 %v1222
          %v2076 = vunpack.c.l.b16 %v1223
          %v2077 = vunpack.c.h.b16 %v1223
          %v2078 = vunpack.c.l.b16 %v1224
          %v2079 = vunpack.c.h.b16 %v1224
          %v2080 = vunpack.c.l.b16 %v1225
          %v2081 = vunpack.c.h.b16 %v1225
          %v2082 = vunpack.c.l.b16 %v1226
          %v2083 = vunpack.c.h.b16 %v1226
          %v2084 = vunpack.c.l.b16 %v1227
          %v2085 = vunpack.c.h.b16 %v1227
          %v2086 = vunpack.c.l.b16 %v1228
          %v2087 = vunpack.c.h.b16 %v1228
          %v2088 = vunpack.c.l.b16 %v1229
          %v2089 = vunpack.c.h.b16 %v1229
          %v2090 = vunpack.c.l.b16 %v1230
          %v2091 = vunpack.c.h.b16 %v1230
          %v2092 = vunpack.c.l.b16 %v1231
          %v2093 = vunpack.c.h.b16 %v1231
          %v2094 = vunpack.c.l.b16 %v1232
          %v2095 = vunpack.c.h.b16 %v1232
          %v2096 = vunpack.c.l.b16 %v1233
          %v2097 = vunpack.c.h.b16 %v1233
          %v2098 = vunpack.c.l.b16 %v1234
          %v2099 = vunpack.c.h.b16 %v1234
          %v2100 = vunpack.c.l.b16 %v1235
          %v2101 = vunpack.c.h.b16 %v1235
          %v2102 = vunpack.c.l.b16 %v1236
          %v2103 = vunpack.c.h.b16 %v1236
          %v2104 = vunpack.c.l.b16 %v1237
          %v2105 = vunpack.c.h.b16 %v1237
          %v2106 = vunpack.c.l.b16 %v1238
          %v2107 = vunpack.c.h.b16 %v1238
          %v2108 = vunpack.c.l.b16 %v1239
          %v2109 = vunpack.c.h.b16 %v1239
          %v2110 = vunpack.c.l.b16 %v1240
          %v2111 = vunpack.c.h.b16 %v1240
          %v2112 = vunpack.c.l.b16 %v1241
          %v2113 = vunpack.c.h.b16 %v1241
          %v2114 = vunpack.c.l.b16 %v1242
          %v2115 = vunpack.c.h.b16 %v1242
          %v2116 = vunpack.c.l.b16 %v1243
          %v2117 = vunpack.c.h.b16 %v1243
          %v2118 = vunpack.c.l.b16 %v1244
          %v2119 = vunpack.c.h.b16 %v1244
          %v2120 = vunpack.c.l.b16 %v1245
          %v2121 = vunpack.c.h.b16 %v1245
          %v2122 = vunpack.c.l.b16 %v1246
          %v2123 = vunpack.c.h.b16 %v1246
          %v2124 = vunpack.c.l.b16 %v1247
          %v2125 = vunpack.c.h.b16 %v1247
          %v2126 = vunpack.c.l.b16 %v1248
          %v2127 = vunpack.c.h.b16 %v1248
          %v2128 = vunpack.c.l.b16 %v1249
          %v2129 = vunpack.c.h.b16 %v1249
          %v2130 = vunpack.c.l.b16 %v1250
          %v2131 = vunpack.c.h.b16 %v1250
          %v2132 = vunpack.c.l.b16 %v1251
          %v2133 = vunpack.c.h.b16 %v1251
          %v2134 = vunpack.c.l.b16 %v1252
          %v2135 = vunpack.c.h.b16 %v1252
          %v2136 = vunpack.c.l.b16 %v1253
          %v2137 = vunpack.c.h.b16 %v1253
          %v2138 = vunpack.c.l.b16 %v1254
          %v2139 = vunpack.c.h.b16 %v1254
          %v2140 = vunpack.c.l.b16 %v1255
          %v2141 = vunpack.c.h.b16 %v1255
          %v2142 = vunpack.c.l.b16 %v1256
          %v2143 = vunpack.c.h.b16 %v1256
          %v2144 = vunpack.c.l.b16 %v1257
          %v2145 = vunpack.c.h.b16 %v1257
          %v2146 = vunpack.c.l.b16 %v1258
          %v2147 = vunpack.c.h.b16 %v1258
          %v2148 = vunpack.c.l.b16 %v1259
          %v2149 = vunpack.c.h.b16 %v1259
          %v2150 = vunpack.c.l.b16 %v1260
          %v2151 = vunpack.c.h.b16 %v1260
          %v2152 = vunpack.c.l.b16 %v1261
          %v2153 = vunpack.c.h.b16 %v1261
          %v2154 = vunpack.c.l.b16 %v1262
          %v2155 = vunpack.c.h.b16 %v1262
          %v2156 = vunpack.c.l.b16 %v1263
          %v2157 = vunpack.c.h.b16 %v1263
          %v2158 = vunpack.c.l.b16 %v1264
          %v2159 = vunpack.c.h.b16 %v1264
          %v2160 = vunpack.c.l.b16 %v1265
          %v2161 = vunpack.c.h.b16 %v1265
          %v2162 = vunpack.c.l.b16 %v1266
          %v2163 = vunpack.c.h.b16 %v1266
          %v2164 = vunpack.c.l.b16 %v1267
          %v2165 = vunpack.c.h.b16 %v1267
          %v2166 = vunpack.c.l.b16 %v1268
          %v2167 = vunpack.c.h.b16 %v1268
          %v2168 = vunpack.c.l.b16 %v1269
          %v2169 = vunpack.c.h.b16 %v1269
          %v2170 = vpack.c.b16 %v1666, %v1658
          %v2171 = vpack.c.b16 %v1667, %v1659
          %v2172 = vpack.c.b16 %v1668, %v1660
          %v2173 = vpack.c.b16 %v1669, %v1661
          %v2174 = vpack.c.b16 %v1670, %v1662
          %v2175 = vpack.c.b16 %v1671, %v1663
          %v2176 = vpack.c.b16 %v1672, %v1664
          %v2177 = vpack.c.b16 %v1673, %v1665
          %v2178 = vpack.c.b16 %v1682, %v1674
          %v2179 = vpack.c.b16 %v1683, %v1675
          %v2180 = vpack.c.b16 %v1684, %v1676
          %v2181 = vpack.c.b16 %v1685, %v1677
          %v2182 = vpack.c.b16 %v1686, %v1678
          %v2183 = vpack.c.b16 %v1687, %v1679
          %v2184 = vpack.c.b16 %v1688, %v1680
          %v2185 = vpack.c.b16 %v1689, %v1681
          %v2186 = vpack.c.b16 %v1698, %v1690
          %v2187 = vpack.c.b16 %v1699, %v1691
          %v2188 = vpack.c.b16 %v1700, %v1692
          %v2189 = vpack.c.b16 %v1701, %v1693
          %v2190 = vpack.c.b16 %v1702, %v1694
          %v2191 = vpack.c.b16 %v1703, %v1695
          %v2192 = vpack.c.b16 %v1704, %v1696
          %v2193 = vpack.c.b16 %v1705, %v1697
          %v2194 = vpack.c.b16 %v1714, %v1706
          %v2195 = vpack.c.b16 %v1715, %v1707
          %v2196 = vpack.c.b16 %v1716, %v1708
          %v2197 = vpack.c.b16 %v1717, %v1709
          %v2198 = vpack.c.b16 %v1718, %v1710
          %v2199 = vpack.c.b16 %v1719, %v1711
          %v2200 = vpack.c.b16 %v1720, %v1712
          %v2201 = vpack.c.b16 %v1721, %v1713
          %v2202 = vpack.c.b16 %v1730, %v1722
          %v2203 = vpack.c.b16 %v1731, %v1723
          %v2204 = vpack.c.b16 %v1732, %v1724
          %v2205 = vpack.c.b16 %v1733, %v1725
          %v2206 = vpack.c.b16 %v1734, %v1726
          %v2207 = vpack.c.b16 %v1735, %v1727
          %v2208 = vpack.c.b16 %v1736, %v1728
          %v2209 = vpack.c.b16 %v1737, %v1729
          %v2210 = vpack.c.b16 %v1746, %v1738
          %v2211 = vpack.c.b16 %v1747, %v1739
          %v2212 = vpack.c.b16 %v1748, %v1740
          %v2213 = vpack.c.b16 %v1749, %v1741
          %v2214 = vpack.c.b16 %v1750, %v1742
          %v2215 = vpack.c.b16 %v1751, %v1743
          %v2216 = vpack.c.b16 %v1752, %v1744
          %v2217 = vpack.c.b16 %v1753, %v1745
          %v2218 = vpack.c.b16 %v1762, %v1754
          %v2219 = vpack.c.b16 %v1763, %v1755
          %v2220 = vpack.c.b16 %v1764, %v1756
          %v2221 = vpack.c.b16 %v1765, %v1757
          %v2222 = vpack.c.b16 %v1766, %v1758
          %v2223 = vpack.c.b16 %v1767, %v1759
          %v2224 = vpack.c.b16 %v1768, %v1760
          %v2225 = vpack.c.b16 %v1769, %v1761
          %v2226 = vpack.c.b16 %v1778, %v1770
          %v2227 = vpack.c.b16 %v1779, %v1771
          %v2228 = vpack.c.b16 %v1780, %v1772
          %v2229 = vpack.c.b16 %v1781, %v1773
          %v2230 = vpack.c.b16 %v1782, %v1774
          %v2231 = vpack.c.b16 %v1783, %v1775
          %v2232 = vpack.c.b16 %v1784, %v1776
          %v2233 = vpack.c.b16 %v1785, %v1777
          %v2234 = vpack.c.b16 %v1794, %v1786
          %v2235 = vpack.c.b16 %v1795, %v1787
          %v2236 = vpack.c.b16 %v1796, %v1788
          %v2237 = vpack.c.b16 %v1797, %v1789
          %v2238 = vpack.c.b16 %v1798, %v1790
          %v2239 = vpack.c.b16 %v1799, %v1791
          %v2240 = vpack.c.b16 %v1800, %v1792
          %v2241 = vpack.c.b16 %v1801, %v1793
          %v2242 = vpack.c.b16 %v1810, %v1802
          %v2243 = vpack.c.b16 %v1811, %v1803
          %v2244 = vpack.c.b16 %v1812, %v1804
          %v2245 = vpack.c.b16 %v1813, %v1805
          %v2246 = vpack.c.b16 %v1814, %v1806
          %v2247 = vpack.c.b16 %v1815, %v1807
          %v2248 = vpack.c.b16 %v1816, %v1808
          %v2249 = vpack.c.b16 %v1817, %v1809
          %v2250 = vpack.c.b16 %v1826, %v1818
          %v2251 = vpack.c.b16 %v1827, %v1819
          %v2252 = vpack.c.b16 %v1828, %v1820
          %v2253 = vpack.c.b16 %v1829, %v1821
          %v2254 = vpack.c.b16 %v1830, %v1822
          %v2255 = vpack.c.b16 %v1831, %v1823
          %v2256 = vpack.c.b16 %v1832, %v1824
          %v2257 = vpack.c.b16 %v1833, %v1825
          %v2258 = vpack.c.b16 %v1842, %v1834
          %v2259 = vpack.c.b16 %v1843, %v1835
          %v2260 = vpack.c.b16 %v1844, %v1836
          %v2261 = vpack.c.b16 %v1845, %v1837
          %v2262 = vpack.c.b16 %v1846, %v1838
          %v2263 = vpack.c.b16 %v1847, %v1839
          %v2264 = vpack.c.b16 %v1848, %v1840
          %v2265 = vpack.c.b16 %v1849, %v1841
          %v2266 = vpack.c.b16 %v1858, %v1850
          %v2267 = vpack.c.b16 %v1859, %v1851
          %v2268 = vpack.c.b16 %v1860, %v1852
          %v2269 = vpack.c.b16 %v1861, %v1853
          %v2270 = vpack.c.b16 %v1862, %v1854
          %v2271 = vpack.c.b16 %v1863, %v1855
          %v2272 = vpack.c.b16 %v1864, %v1856
          %v2273 = vpack.c.b16 %v1865, %v1857
          %v2274 = vpack.c.b16 %v1874, %v1866
          %v2275 = vpack.c.b16 %v1875, %v1867
          %v2276 = vpack.c.b16 %v1876, %v1868
          %v2277 = vpack.c.b16 %v1877, %v1869
          %v2278 = vpack.c.b16 %v1878, %v1870
          %v2279 = vpack.c.b16 %v1879, %v1871
          %v2280 = vpack.c.b16 %v1880, %v1872
          %v2281 = vpack.c.b16 %v1881, %v1873
          %v2282 = vpack.c.b16 %v1890, %v1882
          %v2283 = vpack.c.b16 %v1891, %v1883
          %v2284 = vpack.c.b16 %v1892, %v1884
          %v2285 = vpack.c.b16 %v1893, %v1885
          %v2286 = vpack.c.b16 %v1894, %v1886
          %v2287 = vpack.c.b16 %v1895, %v1887
          %v2288 = vpack.c.b16 %v1896, %v1888
          %v2289 = vpack.c.b16 %v1897, %v1889
          %v2290 = vpack.c.b16 %v1906, %v1898
          %v2291 = vpack.c.b16 %v1907, %v1899
          %v2292 = vpack.c.b16 %v1908, %v1900
          %v2293 = vpack.c.b16 %v1909, %v1901
          %v2294 = vpack.c.b16 %v1910, %v1902
          %v2295 = vpack.c.b16 %v1911, %v1903
          %v2296 = vpack.c.b16 %v1912, %v1904
          %v2297 = vpack.c.b16 %v1913, %v1905
          %v2298 = vpack.c.b16 %v1922, %v1914
          %v2299 = vpack.c.b16 %v1923, %v1915
          %v2300 = vpack.c.b16 %v1924, %v1916
          %v2301 = vpack.c.b16 %v1925, %v1917
          %v2302 = vpack.c.b16 %v1926, %v1918
          %v2303 = vpack.c.b16 %v1927, %v1919
          %v2304 = vpack.c.b16 %v1928, %v1920
          %v2305 = vpack.c.b16 %v1929, %v1921
          %v2306 = vpack.c.b16 %v1938, %v1930
          %v2307 = vpack.c.b16 %v1939, %v1931
          %v2308 = vpack.c.b16 %v1940, %v1932
          %v2309 = vpack.c.b16 %v1941, %v1933
          %v2310 = vpack.c.b16 %v1942, %v1934
          %v2311 = vpack.c.b16 %v1943, %v1935
          %v2312 = vpack.c.b16 %v1944, %v1936
          %v2313 = vpack.c.b16 %v1945, %v1937
          %v2314 = vpack.c.b16 %v1954, %v1946
          %v2315 = vpack.c.b16 %v1955, %v1947
          %v2316 = vpack.c.b16 %v1956, %v1948
          %v2317 = vpack.c.b16 %v1957, %v1949
          %v2318 = vpack.c.b16 %v1958, %v1950
          %v2319 = vpack.c.b16 %v1959, %v1951
          %v2320 = vpack.c.b16 %v1960, %v1952
          %v2321 = vpack.c.b16 %v1961, %v1953
          %v2322 = vpack.c.b16 %v1970, %v1962
          %v2323 = vpack.c.b16 %v1971, %v1963
          %v2324 = vpack.c.b16 %v1972, %v1964
          %v2325 = vpack.c.b16 %v1973, %v1965
          %v2326 = vpack.c.b16 %v1974, %v1966
          %v2327 = vpack.c.b16 %v1975, %v1967
          %v2328 = vpack.c.b16 %v1976, %v1968
          %v2329 = vpack.c.b16 %v1977, %v1969
          %v2330 = vpack.c.b16 %v1986, %v1978
          %v2331 = vpack.c.b16 %v1987, %v1979
          %v2332 = vpack.c.b16 %v1988, %v1980
          %v2333 = vpack.c.b16 %v1989, %v1981
          %v2334 = vpack.c.b16 %v1990, %v1982
          %v2335 = vpack.c.b16 %v1991, %v1983
          %v2336 = vpack.c.b16 %v1992, %v1984
          %v2337 = vpack.c.b16 %v1993, %v1985
          %v2338 = vpack.c.b16 %v2002, %v1994
          %v2339 = vpack.c.b16 %v2003, %v1995
          %v2340 = vpack.c.b16 %v2004, %v1996
          %v2341 = vpack.c.b16 %v2005, %v1997
          %v2342 = vpack.c.b16 %v2006, %v1998
          %v2343 = vpack.c.b16 %v2007, %v1999
          %v2344 = vpack.c.b16 %v2008, %v2000
          %v2345 = vpack.c.b16 %v2009, %v2001
          %v2346 = vpack.c.b16 %v2018, %v2010
          %v2347 = vpack.c.b16 %v2019, %v2011
          %v2348 = vpack.c.b16 %v2020, %v2012
          %v2349 = vpack.c.b16 %v2021, %v2013
          %v2350 = vpack.c.b16 %v2022, %v2014
          %v2351 = vpack.c.b16 %v2023, %v2015
          %v2352 = vpack.c.b16 %v2024, %v2016
          %v2353 = vpack.c.b16 %v2025, %v2017
          %v2354 = vpack.c.b16 %v2034, %v2026
          %v2355 = vpack.c.b16 %v2035, %v2027
          %v2356 = vpack.c.b16 %v2036, %v2028
          %v2357 = vpack.c.b16 %v2037, %v2029
          %v2358 = vpack.c.b16 %v2038, %v2030
          %v2359 = vpack.c.b16 %v2039, %v2031
          %v2360 = vpack.c.b16 %v2040, %v2032
          %v2361 = vpack.c.b16 %v2041, %v2033
          %v2362 = vpack.c.b16 %v2050, %v2042
          %v2363 = vpack.c.b16 %v2051, %v2043
          %v2364 = vpack.c.b16 %v2052, %v2044
          %v2365 = vpack.c.b16 %v2053, %v2045
          %v2366 = vpack.c.b16 %v2054, %v2046
          %v2367 = vpack.c.b16 %v2055, %v2047
          %v2368 = vpack.c.b16 %v2056, %v2048
          %v2369 = vpack.c.b16 %v2057, %v2049
          %v2370 = vpack.c.b16 %v2066, %v2058
          %v2371 = vpack.c.b16 %v2067, %v2059
          %v2372 = vpack.c.b16 %v2068, %v2060
          %v2373 = vpack.c.b16 %v2069, %v2061
          %v2374 = vpack.c.b16 %v2070, %v2062
          %v2375 = vpack.c.b16 %v2071, %v2063
          %v2376 = vpack.c.b16 %v2072, %v2064
          %v2377 = vpack.c.b16 %v2073, %v2065
          %v2378 = vpack.c.b16 %v2082, %v2074
          %v2379 = vpack.c.b16 %v2083, %v2075
          %v2380 = vpack.c.b16 %v2084, %v2076
          %v2381 = vpack.c.b16 %v2085, %v2077
          %v2382 = vpack.c.b16 %v2086, %v2078
          %v2383 = vpack.c.b16 %v2087, %v2079
          %v2384 = vpack.c.b16 %v2088, %v2080
          %v2385 = vpack.c.b16 %v2089, %v2081
          %v2386 = vpack.c.b16 %v2098, %v2090
          %v2387 = vpack.c.b16 %v2099, %v2091
          %v2388 = vpack.c.b16 %v2100, %v2092
          %v2389 = vpack.c.b16 %v2101, %v2093
          %v2390 = vpack.c.b16 %v2102, %v2094
          %v2391 = vpack.c.b16 %v2103, %v2095
          %v2392 = vpack.c.b16 %v2104, %v2096
          %v2393 = vpack.c.b16 %v2105, %v2097
          %v2394 = vpack.c.b16 %v2114, %v2106
          %v2395 = vpack.c.b16 %v2115, %v2107
          %v2396 = vpack.c.b16 %v2116, %v2108
          %v2397 = vpack.c.b16 %v2117, %v2109
          %v2398 = vpack.c.b16 %v2118, %v2110
          %v2399 = vpack.c.b16 %v2119, %v2111
          %v2400 = vpack.c.b16 %v2120, %v2112
          %v2401 = vpack.c.b16 %v2121, %v2113
          %v2402 = vpack.c.b16 %v2130, %v2122
          %v2403 = vpack.c.b16 %v2131, %v2123
          %v2404 = vpack.c.b16 %v2132, %v2124
          %v2405 = vpack.c.b16 %v2133, %v2125
          %v2406 = vpack.c.b16 %v2134, %v2126
          %v2407 = vpack.c.b16 %v2135, %v2127
          %v2408 = vpack.c.b16 %v2136, %v2128
          %v2409 = vpack.c.b16 %v2137, %v2129
          %v2410 = vpack.c.b16 %v2146, %v2138
          %v2411 = vpack.c.b16 %v2147, %v2139
          %v2412 = vpack.c.b16 %v2148, %v2140
          %v2413 = vpack.c.b16 %v2149, %v2141
          %v2414 = vpack.c.b16 %v2150, %v2142
          %v2415 = vpack.c.b16 %v2151, %v2143
          %v2416 = vpack.c.b16 %v2152, %v2144
          %v2417 = vpack.c.b16 %v2153, %v2145
          %v2418 = vpack.c.b16 %v2162, %v2154
          %v2419 = vpack.c.b16 %v2163, %v2155
          %v2420 = vpack.c.b16 %v2164, %v2156
          %v2421 = vpack.c.b16 %v2165, %v2157
          %v2422 = vpack.c.b16 %v2166, %v2158
          %v2423 = vpack.c.b16 %v2167, %v2159
          %v2424 = vpack.c.b16 %v2168, %v2160
          %v2425 = vpack.c.b16 %v2169, %v2161
          %v2810 = vunpack.c.l.b16 %v1270
          %v2811 = vunpack.c.l.b16 %v1271
          %v2812 = vunpack.c.l.b16 %v1272
          %v2813 = vunpack.c.l.b16 %v1273
          %v2814 = vunpack.c.l.b16 %v1274
          %v2815 = vunpack.c.l.b16 %v1275
          %v2816 = vunpack.c.l.b16 %v1276
          %v2817 = vunpack.c.l.b16 %v1277
          %v2818 = vunpack.c.l.b16 %v1278
          %v2819 = vunpack.c.l.b16 %v1279
          %v2820 = vunpack.c.l.b16 %v1280
          %v2821 = vunpack.c.l.b16 %v1281
          %v2822 = vunpack.c.l.b16 %v1282
          %v2823 = vunpack.c.l.b16 %v1283
          %v2824 = vunpack.c.l.b16 %v1284
          %v2825 = vunpack.c.l.b16 %v1285
          %v2826 = vunpack.c.l.b16 %v1286
          %v2827 = vunpack.c.l.b16 %v1287
          %v2828 = vunpack.c.l.b16 %v1288
          %v2829 = vunpack.c.l.b16 %v1289
          %v2830 = vunpack.c.l.b16 %v1290
          %v2831 = vunpack.c.l.b16 %v1291
          %v2832 = vunpack.c.l.b16 %v1292
          %v2833 = vunpack.c.l.b16 %v1293
          %v2834 = vunpack.c.l.b16 %v1294
          %v2835 = vunpack.c.l.b16 %v1295
          %v2836 = vunpack.c.l.b16 %v1296
          %v2837 = vunpack.c.l.b16 %v1297
          %v2838 = vunpack.c.l.b16 %v1298
          %v2839 = vunpack.c.l.b16 %v1299
          %v2840 = vunpack.c.l.b16 %v1300
          %v2841 = vunpack.c.l.b16 %v1301
          %v2842 = vunpack.c.l.b16 %v1302
          %v2843 = vunpack.c.l.b16 %v1303
          %v2844 = vunpack.c.l.b16 %v1304
          %v2845 = vunpack.c.l.b16 %v1305
          %v2846 = vunpack.c.l.b16 %v1306
          %v2847 = vunpack.c.l.b16 %v1307
          %v2848 = vunpack.c.l.b16 %v1308
          %v2849 = vunpack.c.l.b16 %v1309
          %v2850 = vunpack.c.l.b16 %v1310
          %v2851 = vunpack.c.l.b16 %v1311
          %v2852 = vunpack.c.l.b16 %v1312
          %v2853 = vunpack.c.l.b16 %v1313
          %v2854 = vunpack.c.l.b16 %v1314
          %v2855 = vunpack.c.l.b16 %v1315
          %v2856 = vunpack.c.l.b16 %v1316
          %v2857 = vunpack.c.l.b16 %v1317
          %v2858 = vunpack.c.l.b16 %v1318
          %v2859 = vunpack.c.l.b16 %v1319
          %v2860 = vunpack.c.l.b16 %v1320
          %v2861 = vunpack.c.l.b16 %v1321
          %v2862 = vunpack.c.l.b16 %v1322
          %v2863 = vunpack.c.l.b16 %v1323
          %v2864 = vunpack.c.l.b16 %v1324
          %v2865 = vunpack.c.l.b16 %v1325
          %v2866 = vunpack.c.l.b16 %v1326
          %v2867 = vunpack.c.l.b16 %v1327
          %v2868 = vunpack.c.l.b16 %v1328
          %v2869 = vunpack.c.l.b16 %v1329
          %v2870 = vunpack.c.l.b16 %v1330
          %v2871 = vunpack.c.l.b16 %v1331
          %v2872 = vunpack.c.l.b16 %v1332
          %v2873 = vunpack.c.l.b16 %v1333
          %v2874 = vunpack.c.l.b16 %v1334
          %v2875 = vunpack.c.l.b16 %v1335
          %v2876 = vunpack.c.l.b16 %v1336
          %v2877 = vunpack.c.l.b16 %v1337
          %v2878 = vunpack.c.l.b16 %v1338
          %v2879 = vunpack.c.l.b16 %v1339
          %v2880 = vunpack.c.l.b16 %v1340
          %v2881 = vunpack.c.l.b16 %v1341
          %v2882 = vunpack.c.l.b16 %v1342
          %v2883 = vunpack.c.l.b16 %v1343
          %v2884 = vunpack.c.l.b16 %v1344
          %v2885 = vunpack.c.l.b16 %v1345
          %v2886 = vunpack.c.l.b16 %v1346
          %v2887 = vunpack.c.l.b16 %v1347
          %v2888 = vunpack.c.l.b16 %v1348
          %v2889 = vunpack.c.l.b16 %v1349
          %v2890 = vunpack.c.l.b16 %v1350
          %v2891 = vunpack.c.l.b16 %v1351
          %v2892 = vunpack.c.l.b16 %v1352
          %v2893 = vunpack.c.l.b16 %v1353
          %v2894 = vunpack.c.l.b16 %v1354
          %v2895 = vunpack.c.l.b16 %v1355
          %v2896 = vunpack.c.l.b16 %v1356
          %v2897 = vunpack.c.l.b16 %v1357
          %v2898 = vunpack.c.l.b16 %v1358
          %v2899 = vunpack.c.l.b16 %v1359
          %v2900 = vunpack.c.l.b16 %v1360
          %v2901 = vunpack.c.l.b16 %v1361
          %v2902 = vunpack.c.l.b16 %v1362
          %v2903 = vunpack.c.l.b16 %v1363
          %v2904 = vunpack.c.l.b16 %v1364
          %v2905 = vunpack.c.l.b16 %v1365
          %v2906 = vunpack.c.l.b16 %v1366
          %v2907 = vunpack.c.l.b16 %v1367
          %v2908 = vunpack.c.l.b16 %v1368
          %v2909 = vunpack.c.l.b16 %v1369
          %v2910 = vunpack.c.l.b16 %v1370
          %v2911 = vunpack.c.l.b16 %v1371
          %v2912 = vunpack.c.l.b16 %v1372
          %v2913 = vunpack.c.l.b16 %v1373
          %v2914 = vunpack.c.l.b16 %v1374
          %v2915 = vunpack.c.l.b16 %v1375
          %v2916 = vunpack.c.l.b16 %v1376
          %v2917 = vunpack.c.l.b16 %v1377
          %v2918 = vunpack.c.l.b16 %v1378
          %v2919 = vunpack.c.l.b16 %v1379
          %v2920 = vunpack.c.l.b16 %v1380
          %v2921 = vunpack.c.l.b16 %v1381
          %v2922 = vunpack.c.l.b16 %v1382
          %v2923 = vunpack.c.l.b16 %v1383
          %v2924 = vunpack.c.l.b16 %v1384
          %v2925 = vunpack.c.l.b16 %v1385
          %v2926 = vunpack.c.l.b16 %v1386
          %v2927 = vunpack.c.l.b16 %v1387
          %v2928 = vunpack.c.l.b16 %v1388
          %v2929 = vunpack.c.l.b16 %v1389
          %v2930 = vunpack.c.l.b16 %v1390
          %v2931 = vunpack.c.l.b16 %v1391
          %v2932 = vunpack.c.l.b16 %v1392
          %v2933 = vunpack.c.l.b16 %v1393
          %v2934 = vunpack.c.l.b16 %v1394
          %v2935 = vunpack.c.l.b16 %v1395
          %v2936 = vunpack.c.l.b16 %v1396
          %v2937 = vunpack.c.l.b16 %v1397
          %v2938 = vpack.c.b16 %v2811, %v2810
          %v2939 = vpack.c.b16 %v2813, %v2812
          %v2940 = vpack.c.b16 %v2815, %v2814
          %v2941 = vpack.c.b16 %v2817, %v2816
          %v2942 = vpack.c.b16 %v2819, %v2818
          %v2943 = vpack.c.b16 %v2821, %v2820
          %v2944 = vpack.c.b16 %v2823, %v2822
          %v2945 = vpack.c.b16 %v2825, %v2824
          %v2946 = vpack.c.b16 %v2827, %v2826
          %v2947 = vpack.c.b16 %v2829, %v2828
          %v2948 = vpack.c.b16 %v2831, %v2830
          %v2949 = vpack.c.b16 %v2833, %v2832
          %v2950 = vpack.c.b16 %v2835, %v2834
          %v2951 = vpack.c.b16 %v2837, %v2836
          %v2952 = vpack.c.b16 %v2839, %v2838
          %v2953 = vpack.c.b16 %v2841, %v2840
          %v2954 = vpack.c.b16 %v2843, %v2842
          %v2955 = vpack.c.b16 %v2845, %v2844
          %v2956 = vpack.c.b16 %v2847, %v2846
          %v2957 = vpack.c.b16 %v2849, %v2848
          %v2958 = vpack.c.b16 %v2851, %v2850
          %v2959 = vpack.c.b16 %v2853, %v2852
          %v2960 = vpack.c.b16 %v2855, %v2854
          %v2961 = vpack.c.b16 %v2857, %v2856
          %v2962 = vpack.c.b16 %v2859, %v2858
          %v2963 = vpack.c.b16 %v2861, %v2860
          %v2964 = vpack.c.b16 %v2863, %v2862
          %v2965 = vpack.c.b16 %v2865, %v2864
          %v2966 = vpack.c.b16 %v2867, %v2866
          %v2967 = vpack.c.b16 %v2869, %v2868
          %v2968 = vpack.c.b16 %v2871, %v2870
          %v2969 = vpack.c.b16 %v2873, %v2872
          %v2970 = vpack.c.b16 %v2875, %v2874
          %v2971 = vpack.c.b16 %v2877, %v2876
          %v2972 = vpack.c.b16 %v2879, %v2878
          %v2973 = vpack.c.b16 %v2881, %v2880
          %v2974 = vpack.c.b16 %v2883, %v2882
          %v2975 = vpack.c.b16 %v2885, %v2884
          %v2976 = vpack.c.b16 %v2887, %v2886
          %v2977 = vpack.c.b16 %v2889, %v2888
          %v2978 = vpack.c.b16 %v2891, %v2890
          %v2979 = vpack.c.b16 %v2893, %v2892
          %v2980 = vpack.c.b16 %v2895, %v2894
          %v2981 = vpack.c.b16 %v2897, %v2896
          %v2982 = vpack.c.b16 %v2899, %v2898
          %v2983 = vpack.c.b16 %v2901, %v2900
          %v2984 = vpack.c.b16 %v2903, %v2902
          %v2985 = vpack.c.b16 %v2905, %v2904
          %v2986 = vpack.c.b16 %v2907, %v2906
          %v2987 = vpack.c.b16 %v2909, %v2908
          %v2988 = vpack.c.b16 %v2911, %v2910
          %v2989 = vpack.c.b16 %v2913, %v2912
          %v2990 = vpack.c.b16 %v2915, %v2914
          %v2991 = vpack.c.b16 %v2917, %v2916
          %v2992 = vpack.c.b16 %v2919, %v2918
          %v2993 = vpack.c.b16 %v2921, %v2920
          %v2994 = vpack.c.b16 %v2923, %v2922
          %v2995 = vpack.c.b16 %v2925, %v2924
          %v2996 = vpack.c.b16 %v2927, %v2926
          %v2997 = vpack.c.b16 %v2929, %v2928
          %v2998 = vpack.c.b16 %v2931, %v2930
          %v2999 = vpack.c.b16 %v2933, %v2932
          %v3000 = vpack.c.b16 %v2935, %v2934
          %v3001 = vpack.c.b16 %v2937, %v2936
          %3066 = vmatpush.bf16.msra.mxu0 %v2945
          %3067 = vmatpush.bf16.msra.mxu0 %v2944
          %3068 = vmatpush.bf16.msra.mxu0 %v2943
          %3069 = vmatpush.bf16.msra.mxu0 %v2942
          %3070 = vmatpush.bf16.msra.mxu0 %v2941
          %3071 = vmatpush.bf16.msra.mxu0 %v2940
          %3072 = vmatpush.bf16.msra.mxu0 %v2939
          %3073 = vmatpush.bf16.msra.mxu0 %v2938
          %3074 = vmatmul.bf16.gmra.mxu0 %v2170
          %v3075 = vpop.f32.mrf.mxu0
          %v3076 = vadd.f32 %v1400, %v3075
          %v3077 = vpop.f32.mrf.mxu0
          %v3078 = vadd.f32 %v1400, %v3077
          %3079 = vmatmul.bf16.gmra.mxu0 %v2178
          %v3080 = vpop.f32.mrf.mxu0
          %v3081 = vadd.f32 %v1400, %v3080
          %v3082 = vpop.f32.mrf.mxu0
          %v3083 = vadd.f32 %v1400, %v3082
          %3084 = vmatmul.bf16.gmra.mxu0 %v2186
          %v3085 = vpop.f32.mrf.mxu0
          %v3086 = vadd.f32 %v1400, %v3085
          %v3087 = vpop.f32.mrf.mxu0
          %v3088 = vadd.f32 %v1400, %v3087
          %3089 = vmatmul.bf16.gmra.mxu0 %v2194
          %v3090 = vpop.f32.mrf.mxu0
          %v3091 = vadd.f32 %v1400, %v3090
          %v3092 = vpop.f32.mrf.mxu0
          %v3093 = vadd.f32 %v1400, %v3092
          %3094 = vmatmul.bf16.gmra.mxu0 %v2202
          %v3095 = vpop.f32.mrf.mxu0
          %v3096 = vadd.f32 %v1400, %v3095
          %v3097 = vpop.f32.mrf.mxu0
          %v3098 = vadd.f32 %v1400, %v3097
          %3099 = vmatmul.bf16.gmra.mxu0 %v2210
          %v3100 = vpop.f32.mrf.mxu0
          %v3101 = vadd.f32 %v1400, %v3100
          %v3102 = vpop.f32.mrf.mxu0
          %v3103 = vadd.f32 %v1400, %v3102
          %3104 = vmatmul.bf16.gmra.mxu0 %v2218
          %v3105 = vpop.f32.mrf.mxu0
          %v3106 = vadd.f32 %v1400, %v3105
          %v3107 = vpop.f32.mrf.mxu0
          %v3108 = vadd.f32 %v1400, %v3107
          %3109 = vmatmul.bf16.gmra.mxu0 %v2226
          %v3110 = vpop.f32.mrf.mxu0
          %v3111 = vadd.f32 %v1400, %v3110
          %v3112 = vpop.f32.mrf.mxu0
          %v3113 = vadd.f32 %v1400, %v3112
          %3114 = vmatmul.bf16.gmra.mxu0 %v2234
          %v3115 = vpop.f32.mrf.mxu0
          %v3116 = vadd.f32 %v1400, %v3115
          %v3117 = vpop.f32.mrf.mxu0
          %v3118 = vadd.f32 %v1400, %v3117
          %3119 = vmatmul.bf16.gmra.mxu0 %v2242
          %v3120 = vpop.f32.mrf.mxu0
          %v3121 = vadd.f32 %v1400, %v3120
          %v3122 = vpop.f32.mrf.mxu0
          %v3123 = vadd.f32 %v1400, %v3122
          %3124 = vmatmul.bf16.gmra.mxu0 %v2250
          %v3125 = vpop.f32.mrf.mxu0
          %v3126 = vadd.f32 %v1400, %v3125
          %v3127 = vpop.f32.mrf.mxu0
          %v3128 = vadd.f32 %v1400, %v3127
          %3129 = vmatmul.bf16.gmra.mxu0 %v2258
          %v3130 = vpop.f32.mrf.mxu0
          %v3131 = vadd.f32 %v1400, %v3130
          %v3132 = vpop.f32.mrf.mxu0
          %v3133 = vadd.f32 %v1400, %v3132
          %3134 = vmatmul.bf16.gmra.mxu0 %v2266
          %v3135 = vpop.f32.mrf.mxu0
          %v3136 = vadd.f32 %v1400, %v3135
          %v3137 = vpop.f32.mrf.mxu0
          %v3138 = vadd.f32 %v1400, %v3137
          %3139 = vmatmul.bf16.gmra.mxu0 %v2274
          %v3140 = vpop.f32.mrf.mxu0
          %v3141 = vadd.f32 %v1400, %v3140
          %v3142 = vpop.f32.mrf.mxu0
          %v3143 = vadd.f32 %v1400, %v3142
          %3144 = vmatmul.bf16.gmra.mxu0 %v2282
          %v3145 = vpop.f32.mrf.mxu0
          %v3146 = vadd.f32 %v1400, %v3145
          %v3147 = vpop.f32.mrf.mxu0
          %v3148 = vadd.f32 %v1400, %v3147
          %3149 = vmatmul.bf16.gmra.mxu0 %v2290
          %v3150 = vpop.f32.mrf.mxu0
          %v3151 = vadd.f32 %v1400, %v3150
          %v3152 = vpop.f32.mrf.mxu0
          %v3153 = vadd.f32 %v1400, %v3152
          %3154 = vmatmul.bf16.gmra.mxu0 %v2298
          %v3155 = vpop.f32.mrf.mxu0
          %v3156 = vadd.f32 %v1400, %v3155
          %v3157 = vpop.f32.mrf.mxu0
          %v3158 = vadd.f32 %v1400, %v3157
          %3159 = vmatmul.bf16.gmra.mxu0 %v2306
          %v3160 = vpop.f32.mrf.mxu0
          %v3161 = vadd.f32 %v1400, %v3160
          %v3162 = vpop.f32.mrf.mxu0
          %v3163 = vadd.f32 %v1400, %v3162
          %3164 = vmatmul.bf16.gmra.mxu0 %v2314
          %v3165 = vpop.f32.mrf.mxu0
          %v3166 = vadd.f32 %v1400, %v3165
          %v3167 = vpop.f32.mrf.mxu0
          %v3168 = vadd.f32 %v1400, %v3167
          %3169 = vmatmul.bf16.gmra.mxu0 %v2322
          %v3170 = vpop.f32.mrf.mxu0
          %v3171 = vadd.f32 %v1400, %v3170
          %v3172 = vpop.f32.mrf.mxu0
          %v3173 = vadd.f32 %v1400, %v3172
          %3174 = vmatmul.bf16.gmra.mxu0 %v2330
          %v3175 = vpop.f32.mrf.mxu0
          %v3176 = vadd.f32 %v1400, %v3175
          %v3177 = vpop.f32.mrf.mxu0
          %v3178 = vadd.f32 %v1400, %v3177
          %3179 = vmatmul.bf16.gmra.mxu0 %v2338
          %v3180 = vpop.f32.mrf.mxu0
          %v3181 = vadd.f32 %v1400, %v3180
          %v3182 = vpop.f32.mrf.mxu0
          %v3183 = vadd.f32 %v1400, %v3182
          %3184 = vmatmul.bf16.gmra.mxu0 %v2346
          %v3185 = vpop.f32.mrf.mxu0
          %v3186 = vadd.f32 %v1400, %v3185
          %v3187 = vpop.f32.mrf.mxu0
          %v3188 = vadd.f32 %v1400, %v3187
          %3189 = vmatmul.bf16.gmra.mxu0 %v2354
          %v3190 = vpop.f32.mrf.mxu0
          %v3191 = vadd.f32 %v1400, %v3190
          %v3192 = vpop.f32.mrf.mxu0
          %v3193 = vadd.f32 %v1400, %v3192
          %3194 = vmatmul.bf16.gmra.mxu0 %v2362
          %v3195 = vpop.f32.mrf.mxu0
          %v3196 = vadd.f32 %v1400, %v3195
          %v3197 = vpop.f32.mrf.mxu0
          %v3198 = vadd.f32 %v1400, %v3197
          %3199 = vmatmul.bf16.gmra.mxu0 %v2370
          %v3200 = vpop.f32.mrf.mxu0
          %v3201 = vadd.f32 %v1400, %v3200
          %v3202 = vpop.f32.mrf.mxu0
          %v3203 = vadd.f32 %v1400, %v3202
          %3204 = vmatmul.bf16.gmra.mxu0 %v2378
          %v3205 = vpop.f32.mrf.mxu0
          %v3206 = vadd.f32 %v1400, %v3205
          %v3207 = vpop.f32.mrf.mxu0
          %v3208 = vadd.f32 %v1400, %v3207
          %3209 = vmatmul.bf16.gmra.mxu0 %v2386
          %v3210 = vpop.f32.mrf.mxu0
          %v3211 = vadd.f32 %v1400, %v3210
          %v3212 = vpop.f32.mrf.mxu0
          %v3213 = vadd.f32 %v1400, %v3212
          %3214 = vmatmul.bf16.gmra.mxu0 %v2394
          %v3215 = vpop.f32.mrf.mxu0
          %v3216 = vadd.f32 %v1400, %v3215
          %v3217 = vpop.f32.mrf.mxu0
          %v3218 = vadd.f32 %v1400, %v3217
          %3219 = vmatmul.bf16.gmra.mxu0 %v2402
          %v3220 = vpop.f32.mrf.mxu0
          %v3221 = vadd.f32 %v1400, %v3220
          %v3222 = vpop.f32.mrf.mxu0
          %v3223 = vadd.f32 %v1400, %v3222
          %3224 = vmatmul.bf16.gmra.mxu0 %v2410
          %v3225 = vpop.f32.mrf.mxu0
          %v3226 = vadd.f32 %v1400, %v3225
          %v3227 = vpop.f32.mrf.mxu0
          %v3228 = vadd.f32 %v1400, %v3227
          %3229 = vmatmul.bf16.gmra.mxu0 %v2418
          %v3230 = vpop.f32.mrf.mxu0
          %v3231 = vadd.f32 %v1400, %v3230
          %v3232 = vpop.f32.mrf.mxu0
          %v3233 = vadd.f32 %v1400, %v3232
          %3234 = vdwg.mxu0
          %3235 = vmatpush.bf16.msra.mxu0 %v2953
          %3236 = vmatpush.bf16.msra.mxu0 %v2952
          %3237 = vmatpush.bf16.msra.mxu0 %v2951
          %3238 = vmatpush.bf16.msra.mxu0 %v2950
          %3239 = vmatpush.bf16.msra.mxu0 %v2949
          %3240 = vmatpush.bf16.msra.mxu0 %v2948
          %3241 = vmatpush.bf16.msra.mxu0 %v2947
          %3242 = vmatpush.bf16.msra.mxu0 %v2946
          %3243 = vmatmul.bf16.gmra.mxu0 %v2171
          %v3244 = vpop.f32.mrf.mxu0
          %v3245 = vadd.f32 %v3076, %v3244
          %v3246 = vpop.f32.mrf.mxu0
          %v3247 = vadd.f32 %v3078, %v3246
          %3248 = vmatmul.bf16.gmra.mxu0 %v2179
          %v3249 = vpop.f32.mrf.mxu0
          %v3250 = vadd.f32 %v3081, %v3249
          %v3251 = vpop.f32.mrf.mxu0
          %v3252 = vadd.f32 %v3083, %v3251
          %3253 = vmatmul.bf16.gmra.mxu0 %v2187
          %v3254 = vpop.f32.mrf.mxu0
          %v3255 = vadd.f32 %v3086, %v3254
          %v3256 = vpop.f32.mrf.mxu0
          %v3257 = vadd.f32 %v3088, %v3256
          %3258 = vmatmul.bf16.gmra.mxu0 %v2195
          %v3259 = vpop.f32.mrf.mxu0
          %v3260 = vadd.f32 %v3091, %v3259
          %v3261 = vpop.f32.mrf.mxu0
          %v3262 = vadd.f32 %v3093, %v3261
          %3263 = vmatmul.bf16.gmra.mxu0 %v2203
          %v3264 = vpop.f32.mrf.mxu0
          %v3265 = vadd.f32 %v3096, %v3264
          %v3266 = vpop.f32.mrf.mxu0
          %v3267 = vadd.f32 %v3098, %v3266
          %3268 = vmatmul.bf16.gmra.mxu0 %v2211
          %v3269 = vpop.f32.mrf.mxu0
          %v3270 = vadd.f32 %v3101, %v3269
          %v3271 = vpop.f32.mrf.mxu0
          %v3272 = vadd.f32 %v3103, %v3271
          %3273 = vmatmul.bf16.gmra.mxu0 %v2219
          %v3274 = vpop.f32.mrf.mxu0
          %v3275 = vadd.f32 %v3106, %v3274
          %v3276 = vpop.f32.mrf.mxu0
          %v3277 = vadd.f32 %v3108, %v3276
          %3278 = vmatmul.bf16.gmra.mxu0 %v2227
          %v3279 = vpop.f32.mrf.mxu0
          %v3280 = vadd.f32 %v3111, %v3279
          %v3281 = vpop.f32.mrf.mxu0
          %v3282 = vadd.f32 %v3113, %v3281
          %3283 = vmatmul.bf16.gmra.mxu0 %v2235
          %v3284 = vpop.f32.mrf.mxu0
          %v3285 = vadd.f32 %v3116, %v3284
          %v3286 = vpop.f32.mrf.mxu0
          %v3287 = vadd.f32 %v3118, %v3286
          %3288 = vmatmul.bf16.gmra.mxu0 %v2243
          %v3289 = vpop.f32.mrf.mxu0
          %v3290 = vadd.f32 %v3121, %v3289
          %v3291 = vpop.f32.mrf.mxu0
          %v3292 = vadd.f32 %v3123, %v3291
          %3293 = vmatmul.bf16.gmra.mxu0 %v2251
          %v3294 = vpop.f32.mrf.mxu0
          %v3295 = vadd.f32 %v3126, %v3294
          %v3296 = vpop.f32.mrf.mxu0
          %v3297 = vadd.f32 %v3128, %v3296
          %3298 = vmatmul.bf16.gmra.mxu0 %v2259
          %v3299 = vpop.f32.mrf.mxu0
          %v3300 = vadd.f32 %v3131, %v3299
          %v3301 = vpop.f32.mrf.mxu0
          %v3302 = vadd.f32 %v3133, %v3301
          %3303 = vmatmul.bf16.gmra.mxu0 %v2267
          %v3304 = vpop.f32.mrf.mxu0
          %v3305 = vadd.f32 %v3136, %v3304
          %v3306 = vpop.f32.mrf.mxu0
          %v3307 = vadd.f32 %v3138, %v3306
          %3308 = vmatmul.bf16.gmra.mxu0 %v2275
          %v3309 = vpop.f32.mrf.mxu0
          %v3310 = vadd.f32 %v3141, %v3309
          %v3311 = vpop.f32.mrf.mxu0
          %v3312 = vadd.f32 %v3143, %v3311
          %3313 = vmatmul.bf16.gmra.mxu0 %v2283
          %v3314 = vpop.f32.mrf.mxu0
          %v3315 = vadd.f32 %v3146, %v3314
          %v3316 = vpop.f32.mrf.mxu0
          %v3317 = vadd.f32 %v3148, %v3316
          %3318 = vmatmul.bf16.gmra.mxu0 %v2291
          %v3319 = vpop.f32.mrf.mxu0
          %v3320 = vadd.f32 %v3151, %v3319
          %v3321 = vpop.f32.mrf.mxu0
          %v3322 = vadd.f32 %v3153, %v3321
          %3323 = vmatmul.bf16.gmra.mxu0 %v2299
          %v3324 = vpop.f32.mrf.mxu0
          %v3325 = vadd.f32 %v3156, %v3324
          %v3326 = vpop.f32.mrf.mxu0
          %v3327 = vadd.f32 %v3158, %v3326
          %3328 = vmatmul.bf16.gmra.mxu0 %v2307
          %v3329 = vpop.f32.mrf.mxu0
          %v3330 = vadd.f32 %v3161, %v3329
          %v3331 = vpop.f32.mrf.mxu0
          %v3332 = vadd.f32 %v3163, %v3331
          %3333 = vmatmul.bf16.gmra.mxu0 %v2315
          %v3334 = vpop.f32.mrf.mxu0
          %v3335 = vadd.f32 %v3166, %v3334
          %v3336 = vpop.f32.mrf.mxu0
          %v3337 = vadd.f32 %v3168, %v3336
          %3338 = vmatmul.bf16.gmra.mxu0 %v2323
          %v3339 = vpop.f32.mrf.mxu0
          %v3340 = vadd.f32 %v3171, %v3339
          %v3341 = vpop.f32.mrf.mxu0
          %v3342 = vadd.f32 %v3173, %v3341
          %3343 = vmatmul.bf16.gmra.mxu0 %v2331
          %v3344 = vpop.f32.mrf.mxu0
          %v3345 = vadd.f32 %v3176, %v3344
          %v3346 = vpop.f32.mrf.mxu0
          %v3347 = vadd.f32 %v3178, %v3346
          %3348 = vmatmul.bf16.gmra.mxu0 %v2339
          %v3349 = vpop.f32.mrf.mxu0
          %v3350 = vadd.f32 %v3181, %v3349
          %v3351 = vpop.f32.mrf.mxu0
          %v3352 = vadd.f32 %v3183, %v3351
          %3353 = vmatmul.bf16.gmra.mxu0 %v2347
          %v3354 = vpop.f32.mrf.mxu0
          %v3355 = vadd.f32 %v3186, %v3354
          %v3356 = vpop.f32.mrf.mxu0
          %v3357 = vadd.f32 %v3188, %v3356
          %3358 = vmatmul.bf16.gmra.mxu0 %v2355
          %v3359 = vpop.f32.mrf.mxu0
          %v3360 = vadd.f32 %v3191, %v3359
          %v3361 = vpop.f32.mrf.mxu0
          %v3362 = vadd.f32 %v3193, %v3361
          %3363 = vmatmul.bf16.gmra.mxu0 %v2363
          %v3364 = vpop.f32.mrf.mxu0
          %v3365 = vadd.f32 %v3196, %v3364
          %v3366 = vpop.f32.mrf.mxu0
          %v3367 = vadd.f32 %v3198, %v3366
          %3368 = vmatmul.bf16.gmra.mxu0 %v2371
          %v3369 = vpop.f32.mrf.mxu0
          %v3370 = vadd.f32 %v3201, %v3369
          %v3371 = vpop.f32.mrf.mxu0
          %v3372 = vadd.f32 %v3203, %v3371
          %3373 = vmatmul.bf16.gmra.mxu0 %v2379
          %v3374 = vpop.f32.mrf.mxu0
          %v3375 = vadd.f32 %v3206, %v3374
          %v3376 = vpop.f32.mrf.mxu0
          %v3377 = vadd.f32 %v3208, %v3376
          %3378 = vmatmul.bf16.gmra.mxu0 %v2387
          %v3379 = vpop.f32.mrf.mxu0
          %v3380 = vadd.f32 %v3211, %v3379
          %v3381 = vpop.f32.mrf.mxu0
          %v3382 = vadd.f32 %v3213, %v3381
          %3383 = vmatmul.bf16.gmra.mxu0 %v2395
          %v3384 = vpop.f32.mrf.mxu0
          %v3385 = vadd.f32 %v3216, %v3384
          %v3386 = vpop.f32.mrf.mxu0
          %v3387 = vadd.f32 %v3218, %v3386
          %3388 = vmatmul.bf16.gmra.mxu0 %v2403
          %v3389 = vpop.f32.mrf.mxu0
          %v3390 = vadd.f32 %v3221, %v3389
          %v3391 = vpop.f32.mrf.mxu0
          %v3392 = vadd.f32 %v3223, %v3391
          %3393 = vmatmul.bf16.gmra.mxu0 %v2411
          %v3394 = vpop.f32.mrf.mxu0
          %v3395 = vadd.f32 %v3226, %v3394
          %v3396 = vpop.f32.mrf.mxu0
          %v3397 = vadd.f32 %v3228, %v3396
          %3398 = vmatmul.bf16.gmra.mxu0 %v2419
          %v3399 = vpop.f32.mrf.mxu0
          %v3400 = vadd.f32 %v3231, %v3399
          %v3401 = vpop.f32.mrf.mxu0
          %v3402 = vadd.f32 %v3233, %v3401
          %3403 = vdwg.mxu0
          %3404 = vmatpush.bf16.msra.mxu0 %v2961
          %3405 = vmatpush.bf16.msra.mxu0 %v2960
          %3406 = vmatpush.bf16.msra.mxu0 %v2959
          %3407 = vmatpush.bf16.msra.mxu0 %v2958
          %3408 = vmatpush.bf16.msra.mxu0 %v2957
          %3409 = vmatpush.bf16.msra.mxu0 %v2956
          %3410 = vmatpush.bf16.msra.mxu0 %v2955
          %3411 = vmatpush.bf16.msra.mxu0 %v2954
          %3412 = vmatmul.bf16.gmra.mxu0 %v2172
          %v3413 = vpop.f32.mrf.mxu0
          %v3414 = vadd.f32 %v3245, %v3413
          %v3415 = vpop.f32.mrf.mxu0
          %v3416 = vadd.f32 %v3247, %v3415
          %3417 = vmatmul.bf16.gmra.mxu0 %v2180
          %v3418 = vpop.f32.mrf.mxu0
          %v3419 = vadd.f32 %v3250, %v3418
          %v3420 = vpop.f32.mrf.mxu0
          %v3421 = vadd.f32 %v3252, %v3420
          %3422 = vmatmul.bf16.gmra.mxu0 %v2188
          %v3423 = vpop.f32.mrf.mxu0
          %v3424 = vadd.f32 %v3255, %v3423
          %v3425 = vpop.f32.mrf.mxu0
          %v3426 = vadd.f32 %v3257, %v3425
          %3427 = vmatmul.bf16.gmra.mxu0 %v2196
          %v3428 = vpop.f32.mrf.mxu0
          %v3429 = vadd.f32 %v3260, %v3428
          %v3430 = vpop.f32.mrf.mxu0
          %v3431 = vadd.f32 %v3262, %v3430
          %3432 = vmatmul.bf16.gmra.mxu0 %v2204
          %v3433 = vpop.f32.mrf.mxu0
          %v3434 = vadd.f32 %v3265, %v3433
          %v3435 = vpop.f32.mrf.mxu0
          %v3436 = vadd.f32 %v3267, %v3435
          %3437 = vmatmul.bf16.gmra.mxu0 %v2212
          %v3438 = vpop.f32.mrf.mxu0
          %v3439 = vadd.f32 %v3270, %v3438
          %v3440 = vpop.f32.mrf.mxu0
          %v3441 = vadd.f32 %v3272, %v3440
          %3442 = vmatmul.bf16.gmra.mxu0 %v2220
          %v3443 = vpop.f32.mrf.mxu0
          %v3444 = vadd.f32 %v3275, %v3443
          %v3445 = vpop.f32.mrf.mxu0
          %v3446 = vadd.f32 %v3277, %v3445
          %3447 = vmatmul.bf16.gmra.mxu0 %v2228
          %v3448 = vpop.f32.mrf.mxu0
          %v3449 = vadd.f32 %v3280, %v3448
          %v3450 = vpop.f32.mrf.mxu0
          %v3451 = vadd.f32 %v3282, %v3450
          %3452 = vmatmul.bf16.gmra.mxu0 %v2236
          %v3453 = vpop.f32.mrf.mxu0
          %v3454 = vadd.f32 %v3285, %v3453
          %v3455 = vpop.f32.mrf.mxu0
          %v3456 = vadd.f32 %v3287, %v3455
          %3457 = vmatmul.bf16.gmra.mxu0 %v2244
          %v3458 = vpop.f32.mrf.mxu0
          %v3459 = vadd.f32 %v3290, %v3458
          %v3460 = vpop.f32.mrf.mxu0
          %v3461 = vadd.f32 %v3292, %v3460
          %3462 = vmatmul.bf16.gmra.mxu0 %v2252
          %v3463 = vpop.f32.mrf.mxu0
          %v3464 = vadd.f32 %v3295, %v3463
          %v3465 = vpop.f32.mrf.mxu0
          %v3466 = vadd.f32 %v3297, %v3465
          %3467 = vmatmul.bf16.gmra.mxu0 %v2260
          %v3468 = vpop.f32.mrf.mxu0
          %v3469 = vadd.f32 %v3300, %v3468
          %v3470 = vpop.f32.mrf.mxu0
          %v3471 = vadd.f32 %v3302, %v3470
          %3472 = vmatmul.bf16.gmra.mxu0 %v2268
          %v3473 = vpop.f32.mrf.mxu0
          %v3474 = vadd.f32 %v3305, %v3473
          %v3475 = vpop.f32.mrf.mxu0
          %v3476 = vadd.f32 %v3307, %v3475
          %3477 = vmatmul.bf16.gmra.mxu0 %v2276
          %v3478 = vpop.f32.mrf.mxu0
          %v3479 = vadd.f32 %v3310, %v3478
          %v3480 = vpop.f32.mrf.mxu0
          %v3481 = vadd.f32 %v3312, %v3480
          %3482 = vmatmul.bf16.gmra.mxu0 %v2284
          %v3483 = vpop.f32.mrf.mxu0
          %v3484 = vadd.f32 %v3315, %v3483
          %v3485 = vpop.f32.mrf.mxu0
          %v3486 = vadd.f32 %v3317, %v3485
          %3487 = vmatmul.bf16.gmra.mxu0 %v2292
          %v3488 = vpop.f32.mrf.mxu0
          %v3489 = vadd.f32 %v3320, %v3488
          %v3490 = vpop.f32.mrf.mxu0
          %v3491 = vadd.f32 %v3322, %v3490
          %3492 = vmatmul.bf16.gmra.mxu0 %v2300
          %v3493 = vpop.f32.mrf.mxu0
          %v3494 = vadd.f32 %v3325, %v3493
          %v3495 = vpop.f32.mrf.mxu0
          %v3496 = vadd.f32 %v3327, %v3495
          %3497 = vmatmul.bf16.gmra.mxu0 %v2308
          %v3498 = vpop.f32.mrf.mxu0
          %v3499 = vadd.f32 %v3330, %v3498
          %v3500 = vpop.f32.mrf.mxu0
          %v3501 = vadd.f32 %v3332, %v3500
          %3502 = vmatmul.bf16.gmra.mxu0 %v2316
          %v3503 = vpop.f32.mrf.mxu0
          %v3504 = vadd.f32 %v3335, %v3503
          %v3505 = vpop.f32.mrf.mxu0
          %v3506 = vadd.f32 %v3337, %v3505
          %3507 = vmatmul.bf16.gmra.mxu0 %v2324
          %v3508 = vpop.f32.mrf.mxu0
          %v3509 = vadd.f32 %v3340, %v3508
          %v3510 = vpop.f32.mrf.mxu0
          %v3511 = vadd.f32 %v3342, %v3510
          %3512 = vmatmul.bf16.gmra.mxu0 %v2332
          %v3513 = vpop.f32.mrf.mxu0
          %v3514 = vadd.f32 %v3345, %v3513
          %v3515 = vpop.f32.mrf.mxu0
          %v3516 = vadd.f32 %v3347, %v3515
          %3517 = vmatmul.bf16.gmra.mxu0 %v2340
          %v3518 = vpop.f32.mrf.mxu0
          %v3519 = vadd.f32 %v3350, %v3518
          %v3520 = vpop.f32.mrf.mxu0
          %v3521 = vadd.f32 %v3352, %v3520
          %3522 = vmatmul.bf16.gmra.mxu0 %v2348
          %v3523 = vpop.f32.mrf.mxu0
          %v3524 = vadd.f32 %v3355, %v3523
          %v3525 = vpop.f32.mrf.mxu0
          %v3526 = vadd.f32 %v3357, %v3525
          %3527 = vmatmul.bf16.gmra.mxu0 %v2356
          %v3528 = vpop.f32.mrf.mxu0
          %v3529 = vadd.f32 %v3360, %v3528
          %v3530 = vpop.f32.mrf.mxu0
          %v3531 = vadd.f32 %v3362, %v3530
          %3532 = vmatmul.bf16.gmra.mxu0 %v2364
          %v3533 = vpop.f32.mrf.mxu0
          %v3534 = vadd.f32 %v3365, %v3533
          %v3535 = vpop.f32.mrf.mxu0
          %v3536 = vadd.f32 %v3367, %v3535
          %3537 = vmatmul.bf16.gmra.mxu0 %v2372
          %v3538 = vpop.f32.mrf.mxu0
          %v3539 = vadd.f32 %v3370, %v3538
          %v3540 = vpop.f32.mrf.mxu0
          %v3541 = vadd.f32 %v3372, %v3540
          %3542 = vmatmul.bf16.gmra.mxu0 %v2380
          %v3543 = vpop.f32.mrf.mxu0
          %v3544 = vadd.f32 %v3375, %v3543
          %v3545 = vpop.f32.mrf.mxu0
          %v3546 = vadd.f32 %v3377, %v3545
          %3547 = vmatmul.bf16.gmra.mxu0 %v2388
          %v3548 = vpop.f32.mrf.mxu0
          %v3549 = vadd.f32 %v3380, %v3548
          %v3550 = vpop.f32.mrf.mxu0
          %v3551 = vadd.f32 %v3382, %v3550
          %3552 = vmatmul.bf16.gmra.mxu0 %v2396
          %v3553 = vpop.f32.mrf.mxu0
          %v3554 = vadd.f32 %v3385, %v3553
          %v3555 = vpop.f32.mrf.mxu0
          %v3556 = vadd.f32 %v3387, %v3555
          %3557 = vmatmul.bf16.gmra.mxu0 %v2404
          %v3558 = vpop.f32.mrf.mxu0
          %v3559 = vadd.f32 %v3390, %v3558
          %v3560 = vpop.f32.mrf.mxu0
          %v3561 = vadd.f32 %v3392, %v3560
          %3562 = vmatmul.bf16.gmra.mxu0 %v2412
          %v3563 = vpop.f32.mrf.mxu0
          %v3564 = vadd.f32 %v3395, %v3563
          %v3565 = vpop.f32.mrf.mxu0
          %v3566 = vadd.f32 %v3397, %v3565
          %3567 = vmatmul.bf16.gmra.mxu0 %v2420
          %v3568 = vpop.f32.mrf.mxu0
          %v3569 = vadd.f32 %v3400, %v3568
          %v3570 = vpop.f32.mrf.mxu0
          %v3571 = vadd.f32 %v3402, %v3570
          %3572 = vdwg.mxu0
          %3573 = vmatpush.bf16.msra.mxu0 %v2969
          %3574 = vmatpush.bf16.msra.mxu0 %v2968
          %3575 = vmatpush.bf16.msra.mxu0 %v2967
          %3576 = vmatpush.bf16.msra.mxu0 %v2966
          %3577 = vmatpush.bf16.msra.mxu0 %v2965
          %3578 = vmatpush.bf16.msra.mxu0 %v2964
          %3579 = vmatpush.bf16.msra.mxu0 %v2963
          %3580 = vmatpush.bf16.msra.mxu0 %v2962
          %3581 = vmatmul.bf16.gmra.mxu0 %v2173
          %v3582 = vpop.f32.mrf.mxu0
          %v3583 = vadd.f32 %v3414, %v3582
          %v3584 = vpop.f32.mrf.mxu0
          %v3585 = vadd.f32 %v3416, %v3584
          %3586 = vmatmul.bf16.gmra.mxu0 %v2181
          %v3587 = vpop.f32.mrf.mxu0
          %v3588 = vadd.f32 %v3419, %v3587
          %v3589 = vpop.f32.mrf.mxu0
          %v3590 = vadd.f32 %v3421, %v3589
          %3591 = vmatmul.bf16.gmra.mxu0 %v2189
          %v3592 = vpop.f32.mrf.mxu0
          %v3593 = vadd.f32 %v3424, %v3592
          %v3594 = vpop.f32.mrf.mxu0
          %v3595 = vadd.f32 %v3426, %v3594
          %3596 = vmatmul.bf16.gmra.mxu0 %v2197
          %v3597 = vpop.f32.mrf.mxu0
          %v3598 = vadd.f32 %v3429, %v3597
          %v3599 = vpop.f32.mrf.mxu0
          %v3600 = vadd.f32 %v3431, %v3599
          %3601 = vmatmul.bf16.gmra.mxu0 %v2205
          %v3602 = vpop.f32.mrf.mxu0
          %v3603 = vadd.f32 %v3434, %v3602
          %v3604 = vpop.f32.mrf.mxu0
          %v3605 = vadd.f32 %v3436, %v3604
          %3606 = vmatmul.bf16.gmra.mxu0 %v2213
          %v3607 = vpop.f32.mrf.mxu0
          %v3608 = vadd.f32 %v3439, %v3607
          %v3609 = vpop.f32.mrf.mxu0
          %v3610 = vadd.f32 %v3441, %v3609
          %3611 = vmatmul.bf16.gmra.mxu0 %v2221
          %v3612 = vpop.f32.mrf.mxu0
          %v3613 = vadd.f32 %v3444, %v3612
          %v3614 = vpop.f32.mrf.mxu0
          %v3615 = vadd.f32 %v3446, %v3614
          %3616 = vmatmul.bf16.gmra.mxu0 %v2229
          %v3617 = vpop.f32.mrf.mxu0
          %v3618 = vadd.f32 %v3449, %v3617
          %v3619 = vpop.f32.mrf.mxu0
          %v3620 = vadd.f32 %v3451, %v3619
          %3621 = vmatmul.bf16.gmra.mxu0 %v2237
          %v3622 = vpop.f32.mrf.mxu0
          %v3623 = vadd.f32 %v3454, %v3622
          %v3624 = vpop.f32.mrf.mxu0
          %v3625 = vadd.f32 %v3456, %v3624
          %3626 = vmatmul.bf16.gmra.mxu0 %v2245
          %v3627 = vpop.f32.mrf.mxu0
          %v3628 = vadd.f32 %v3459, %v3627
          %v3629 = vpop.f32.mrf.mxu0
          %v3630 = vadd.f32 %v3461, %v3629
          %3631 = vmatmul.bf16.gmra.mxu0 %v2253
          %v3632 = vpop.f32.mrf.mxu0
          %v3633 = vadd.f32 %v3464, %v3632
          %v3634 = vpop.f32.mrf.mxu0
          %v3635 = vadd.f32 %v3466, %v3634
          %3636 = vmatmul.bf16.gmra.mxu0 %v2261
          %v3637 = vpop.f32.mrf.mxu0
          %v3638 = vadd.f32 %v3469, %v3637
          %v3639 = vpop.f32.mrf.mxu0
          %v3640 = vadd.f32 %v3471, %v3639
          %3641 = vmatmul.bf16.gmra.mxu0 %v2269
          %v3642 = vpop.f32.mrf.mxu0
          %v3643 = vadd.f32 %v3474, %v3642
          %v3644 = vpop.f32.mrf.mxu0
          %v3645 = vadd.f32 %v3476, %v3644
          %3646 = vmatmul.bf16.gmra.mxu0 %v2277
          %v3647 = vpop.f32.mrf.mxu0
          %v3648 = vadd.f32 %v3479, %v3647
          %v3649 = vpop.f32.mrf.mxu0
          %v3650 = vadd.f32 %v3481, %v3649
          %3651 = vmatmul.bf16.gmra.mxu0 %v2285
          %v3652 = vpop.f32.mrf.mxu0
          %v3653 = vadd.f32 %v3484, %v3652
          %v3654 = vpop.f32.mrf.mxu0
          %v3655 = vadd.f32 %v3486, %v3654
          %3656 = vmatmul.bf16.gmra.mxu0 %v2293
          %v3657 = vpop.f32.mrf.mxu0
          %v3658 = vadd.f32 %v3489, %v3657
          %v3659 = vpop.f32.mrf.mxu0
          %v3660 = vadd.f32 %v3491, %v3659
          %3661 = vmatmul.bf16.gmra.mxu0 %v2301
          %v3662 = vpop.f32.mrf.mxu0
          %v3663 = vadd.f32 %v3494, %v3662
          %v3664 = vpop.f32.mrf.mxu0
          %v3665 = vadd.f32 %v3496, %v3664
          %3666 = vmatmul.bf16.gmra.mxu0 %v2309
          %v3667 = vpop.f32.mrf.mxu0
          %v3668 = vadd.f32 %v3499, %v3667
          %v3669 = vpop.f32.mrf.mxu0
          %v3670 = vadd.f32 %v3501, %v3669
          %3671 = vmatmul.bf16.gmra.mxu0 %v2317
          %v3672 = vpop.f32.mrf.mxu0
          %v3673 = vadd.f32 %v3504, %v3672
          %v3674 = vpop.f32.mrf.mxu0
          %v3675 = vadd.f32 %v3506, %v3674
          %3676 = vmatmul.bf16.gmra.mxu0 %v2325
          %v3677 = vpop.f32.mrf.mxu0
          %v3678 = vadd.f32 %v3509, %v3677
          %v3679 = vpop.f32.mrf.mxu0
          %v3680 = vadd.f32 %v3511, %v3679
          %3681 = vmatmul.bf16.gmra.mxu0 %v2333
          %v3682 = vpop.f32.mrf.mxu0
          %v3683 = vadd.f32 %v3514, %v3682
          %v3684 = vpop.f32.mrf.mxu0
          %v3685 = vadd.f32 %v3516, %v3684
          %3686 = vmatmul.bf16.gmra.mxu0 %v2341
          %v3687 = vpop.f32.mrf.mxu0
          %v3688 = vadd.f32 %v3519, %v3687
          %v3689 = vpop.f32.mrf.mxu0
          %v3690 = vadd.f32 %v3521, %v3689
          %3691 = vmatmul.bf16.gmra.mxu0 %v2349
          %v3692 = vpop.f32.mrf.mxu0
          %v3693 = vadd.f32 %v3524, %v3692
          %v3694 = vpop.f32.mrf.mxu0
          %v3695 = vadd.f32 %v3526, %v3694
          %3696 = vmatmul.bf16.gmra.mxu0 %v2357
          %v3697 = vpop.f32.mrf.mxu0
          %v3698 = vadd.f32 %v3529, %v3697
          %v3699 = vpop.f32.mrf.mxu0
          %v3700 = vadd.f32 %v3531, %v3699
          %3701 = vmatmul.bf16.gmra.mxu0 %v2365
          %v3702 = vpop.f32.mrf.mxu0
          %v3703 = vadd.f32 %v3534, %v3702
          %v3704 = vpop.f32.mrf.mxu0
          %v3705 = vadd.f32 %v3536, %v3704
          %3706 = vmatmul.bf16.gmra.mxu0 %v2373
          %v3707 = vpop.f32.mrf.mxu0
          %v3708 = vadd.f32 %v3539, %v3707
          %v3709 = vpop.f32.mrf.mxu0
          %v3710 = vadd.f32 %v3541, %v3709
          %3711 = vmatmul.bf16.gmra.mxu0 %v2381
          %v3712 = vpop.f32.mrf.mxu0
          %v3713 = vadd.f32 %v3544, %v3712
          %v3714 = vpop.f32.mrf.mxu0
          %v3715 = vadd.f32 %v3546, %v3714
          %3716 = vmatmul.bf16.gmra.mxu0 %v2389
          %v3717 = vpop.f32.mrf.mxu0
          %v3718 = vadd.f32 %v3549, %v3717
          %v3719 = vpop.f32.mrf.mxu0
          %v3720 = vadd.f32 %v3551, %v3719
          %3721 = vmatmul.bf16.gmra.mxu0 %v2397
          %v3722 = vpop.f32.mrf.mxu0
          %v3723 = vadd.f32 %v3554, %v3722
          %v3724 = vpop.f32.mrf.mxu0
          %v3725 = vadd.f32 %v3556, %v3724
          %3726 = vmatmul.bf16.gmra.mxu0 %v2405
          %v3727 = vpop.f32.mrf.mxu0
          %v3728 = vadd.f32 %v3559, %v3727
          %v3729 = vpop.f32.mrf.mxu0
          %v3730 = vadd.f32 %v3561, %v3729
          %3731 = vmatmul.bf16.gmra.mxu0 %v2413
          %v3732 = vpop.f32.mrf.mxu0
          %v3733 = vadd.f32 %v3564, %v3732
          %v3734 = vpop.f32.mrf.mxu0
          %v3735 = vadd.f32 %v3566, %v3734
          %3736 = vmatmul.bf16.gmra.mxu0 %v2421
          %v3737 = vpop.f32.mrf.mxu0
          %v3738 = vadd.f32 %v3569, %v3737
          %v3739 = vpop.f32.mrf.mxu0
          %v3740 = vadd.f32 %v3571, %v3739
          %3741 = vdwg.mxu0
          %3742 = vmatpush.bf16.msra.mxu0 %v2977
          %3743 = vmatpush.bf16.msra.mxu0 %v2976
          %3744 = vmatpush.bf16.msra.mxu0 %v2975
          %3745 = vmatpush.bf16.msra.mxu0 %v2974
          %3746 = vmatpush.bf16.msra.mxu0 %v2973
          %3747 = vmatpush.bf16.msra.mxu0 %v2972
          %3748 = vmatpush.bf16.msra.mxu0 %v2971
          %3749 = vmatpush.bf16.msra.mxu0 %v2970
          %3750 = vmatmul.bf16.gmra.mxu0 %v2174
          %v3751 = vpop.f32.mrf.mxu0
          %v3752 = vadd.f32 %v3583, %v3751
          %v3753 = vpop.f32.mrf.mxu0
          %v3754 = vadd.f32 %v3585, %v3753
          %3755 = vmatmul.bf16.gmra.mxu0 %v2182
          %v3756 = vpop.f32.mrf.mxu0
          %v3757 = vadd.f32 %v3588, %v3756
          %v3758 = vpop.f32.mrf.mxu0
          %v3759 = vadd.f32 %v3590, %v3758
          %3760 = vmatmul.bf16.gmra.mxu0 %v2190
          %v3761 = vpop.f32.mrf.mxu0
          %v3762 = vadd.f32 %v3593, %v3761
          %v3763 = vpop.f32.mrf.mxu0
          %v3764 = vadd.f32 %v3595, %v3763
          %3765 = vmatmul.bf16.gmra.mxu0 %v2198
          %v3766 = vpop.f32.mrf.mxu0
          %v3767 = vadd.f32 %v3598, %v3766
          %v3768 = vpop.f32.mrf.mxu0
          %v3769 = vadd.f32 %v3600, %v3768
          %3770 = vmatmul.bf16.gmra.mxu0 %v2206
          %v3771 = vpop.f32.mrf.mxu0
          %v3772 = vadd.f32 %v3603, %v3771
          %v3773 = vpop.f32.mrf.mxu0
          %v3774 = vadd.f32 %v3605, %v3773
          %3775 = vmatmul.bf16.gmra.mxu0 %v2214
          %v3776 = vpop.f32.mrf.mxu0
          %v3777 = vadd.f32 %v3608, %v3776
          %v3778 = vpop.f32.mrf.mxu0
          %v3779 = vadd.f32 %v3610, %v3778
          %3780 = vmatmul.bf16.gmra.mxu0 %v2222
          %v3781 = vpop.f32.mrf.mxu0
          %v3782 = vadd.f32 %v3613, %v3781
          %v3783 = vpop.f32.mrf.mxu0
          %v3784 = vadd.f32 %v3615, %v3783
          %3785 = vmatmul.bf16.gmra.mxu0 %v2230
          %v3786 = vpop.f32.mrf.mxu0
          %v3787 = vadd.f32 %v3618, %v3786
          %v3788 = vpop.f32.mrf.mxu0
          %v3789 = vadd.f32 %v3620, %v3788
          %3790 = vmatmul.bf16.gmra.mxu0 %v2238
          %v3791 = vpop.f32.mrf.mxu0
          %v3792 = vadd.f32 %v3623, %v3791
          %v3793 = vpop.f32.mrf.mxu0
          %v3794 = vadd.f32 %v3625, %v3793
          %3795 = vmatmul.bf16.gmra.mxu0 %v2246
          %v3796 = vpop.f32.mrf.mxu0
          %v3797 = vadd.f32 %v3628, %v3796
          %v3798 = vpop.f32.mrf.mxu0
          %v3799 = vadd.f32 %v3630, %v3798
          %3800 = vmatmul.bf16.gmra.mxu0 %v2254
          %v3801 = vpop.f32.mrf.mxu0
          %v3802 = vadd.f32 %v3633, %v3801
          %v3803 = vpop.f32.mrf.mxu0
          %v3804 = vadd.f32 %v3635, %v3803
          %3805 = vmatmul.bf16.gmra.mxu0 %v2262
          %v3806 = vpop.f32.mrf.mxu0
          %v3807 = vadd.f32 %v3638, %v3806
          %v3808 = vpop.f32.mrf.mxu0
          %v3809 = vadd.f32 %v3640, %v3808
          %3810 = vmatmul.bf16.gmra.mxu0 %v2270
          %v3811 = vpop.f32.mrf.mxu0
          %v3812 = vadd.f32 %v3643, %v3811
          %v3813 = vpop.f32.mrf.mxu0
          %v3814 = vadd.f32 %v3645, %v3813
          %3815 = vmatmul.bf16.gmra.mxu0 %v2278
          %v3816 = vpop.f32.mrf.mxu0
          %v3817 = vadd.f32 %v3648, %v3816
          %v3818 = vpop.f32.mrf.mxu0
          %v3819 = vadd.f32 %v3650, %v3818
          %3820 = vmatmul.bf16.gmra.mxu0 %v2286
          %v3821 = vpop.f32.mrf.mxu0
          %v3822 = vadd.f32 %v3653, %v3821
          %v3823 = vpop.f32.mrf.mxu0
          %v3824 = vadd.f32 %v3655, %v3823
          %3825 = vmatmul.bf16.gmra.mxu0 %v2294
          %v3826 = vpop.f32.mrf.mxu0
          %v3827 = vadd.f32 %v3658, %v3826
          %v3828 = vpop.f32.mrf.mxu0
          %v3829 = vadd.f32 %v3660, %v3828
          %3830 = vmatmul.bf16.gmra.mxu0 %v2302
          %v3831 = vpop.f32.mrf.mxu0
          %v3832 = vadd.f32 %v3663, %v3831
          %v3833 = vpop.f32.mrf.mxu0
          %v3834 = vadd.f32 %v3665, %v3833
          %3835 = vmatmul.bf16.gmra.mxu0 %v2310
          %v3836 = vpop.f32.mrf.mxu0
          %v3837 = vadd.f32 %v3668, %v3836
          %v3838 = vpop.f32.mrf.mxu0
          %v3839 = vadd.f32 %v3670, %v3838
          %3840 = vmatmul.bf16.gmra.mxu0 %v2318
          %v3841 = vpop.f32.mrf.mxu0
          %v3842 = vadd.f32 %v3673, %v3841
          %v3843 = vpop.f32.mrf.mxu0
          %v3844 = vadd.f32 %v3675, %v3843
          %3845 = vmatmul.bf16.gmra.mxu0 %v2326
          %v3846 = vpop.f32.mrf.mxu0
          %v3847 = vadd.f32 %v3678, %v3846
          %v3848 = vpop.f32.mrf.mxu0
          %v3849 = vadd.f32 %v3680, %v3848
          %3850 = vmatmul.bf16.gmra.mxu0 %v2334
          %v3851 = vpop.f32.mrf.mxu0
          %v3852 = vadd.f32 %v3683, %v3851
          %v3853 = vpop.f32.mrf.mxu0
          %v3854 = vadd.f32 %v3685, %v3853
          %3855 = vmatmul.bf16.gmra.mxu0 %v2342
          %v3856 = vpop.f32.mrf.mxu0
          %v3857 = vadd.f32 %v3688, %v3856
          %v3858 = vpop.f32.mrf.mxu0
          %v3859 = vadd.f32 %v3690, %v3858
          %3860 = vmatmul.bf16.gmra.mxu0 %v2350
          %v3861 = vpop.f32.mrf.mxu0
          %v3862 = vadd.f32 %v3693, %v3861
          %v3863 = vpop.f32.mrf.mxu0
          %v3864 = vadd.f32 %v3695, %v3863
          %3865 = vmatmul.bf16.gmra.mxu0 %v2358
          %v3866 = vpop.f32.mrf.mxu0
          %v3867 = vadd.f32 %v3698, %v3866
          %v3868 = vpop.f32.mrf.mxu0
          %v3869 = vadd.f32 %v3700, %v3868
          %3870 = vmatmul.bf16.gmra.mxu0 %v2366
          %v3871 = vpop.f32.mrf.mxu0
          %v3872 = vadd.f32 %v3703, %v3871
          %v3873 = vpop.f32.mrf.mxu0
          %v3874 = vadd.f32 %v3705, %v3873
          %3875 = vmatmul.bf16.gmra.mxu0 %v2374
          %v3876 = vpop.f32.mrf.mxu0
          %v3877 = vadd.f32 %v3708, %v3876
          %v3878 = vpop.f32.mrf.mxu0
          %v3879 = vadd.f32 %v3710, %v3878
          %3880 = vmatmul.bf16.gmra.mxu0 %v2382
          %v3881 = vpop.f32.mrf.mxu0
          %v3882 = vadd.f32 %v3713, %v3881
          %v3883 = vpop.f32.mrf.mxu0
          %v3884 = vadd.f32 %v3715, %v3883
          %3885 = vmatmul.bf16.gmra.mxu0 %v2390
          %v3886 = vpop.f32.mrf.mxu0
          %v3887 = vadd.f32 %v3718, %v3886
          %v3888 = vpop.f32.mrf.mxu0
          %v3889 = vadd.f32 %v3720, %v3888
          %3890 = vmatmul.bf16.gmra.mxu0 %v2398
          %v3891 = vpop.f32.mrf.mxu0
          %v3892 = vadd.f32 %v3723, %v3891
          %v3893 = vpop.f32.mrf.mxu0
          %v3894 = vadd.f32 %v3725, %v3893
          %3895 = vmatmul.bf16.gmra.mxu0 %v2406
          %v3896 = vpop.f32.mrf.mxu0
          %v3897 = vadd.f32 %v3728, %v3896
          %v3898 = vpop.f32.mrf.mxu0
          %v3899 = vadd.f32 %v3730, %v3898
          %3900 = vmatmul.bf16.gmra.mxu0 %v2414
          %v3901 = vpop.f32.mrf.mxu0
          %v3902 = vadd.f32 %v3733, %v3901
          %v3903 = vpop.f32.mrf.mxu0
          %v3904 = vadd.f32 %v3735, %v3903
          %3905 = vmatmul.bf16.gmra.mxu0 %v2422
          %v3906 = vpop.f32.mrf.mxu0
          %v3907 = vadd.f32 %v3738, %v3906
          %v3908 = vpop.f32.mrf.mxu0
          %v3909 = vadd.f32 %v3740, %v3908
          %3910 = vdwg.mxu0
          %3911 = vmatpush.bf16.msra.mxu0 %v2985
          %3912 = vmatpush.bf16.msra.mxu0 %v2984
          %3913 = vmatpush.bf16.msra.mxu0 %v2983
          %3914 = vmatpush.bf16.msra.mxu0 %v2982
          %3915 = vmatpush.bf16.msra.mxu0 %v2981
          %3916 = vmatpush.bf16.msra.mxu0 %v2980
          %3917 = vmatpush.bf16.msra.mxu0 %v2979
          %3918 = vmatpush.bf16.msra.mxu0 %v2978
          %3919 = vmatmul.bf16.gmra.mxu0 %v2175
          %v3920 = vpop.f32.mrf.mxu0
          %v3921 = vadd.f32 %v3752, %v3920
          %v3922 = vpop.f32.mrf.mxu0
          %v3923 = vadd.f32 %v3754, %v3922
          %3924 = vmatmul.bf16.gmra.mxu0 %v2183
          %v3925 = vpop.f32.mrf.mxu0
          %v3926 = vadd.f32 %v3757, %v3925
          %v3927 = vpop.f32.mrf.mxu0
          %v3928 = vadd.f32 %v3759, %v3927
          %3929 = vmatmul.bf16.gmra.mxu0 %v2191
          %v3930 = vpop.f32.mrf.mxu0
          %v3931 = vadd.f32 %v3762, %v3930
          %v3932 = vpop.f32.mrf.mxu0
          %v3933 = vadd.f32 %v3764, %v3932
          %3934 = vmatmul.bf16.gmra.mxu0 %v2199
          %v3935 = vpop.f32.mrf.mxu0
          %v3936 = vadd.f32 %v3767, %v3935
          %v3937 = vpop.f32.mrf.mxu0
          %v3938 = vadd.f32 %v3769, %v3937
          %3939 = vmatmul.bf16.gmra.mxu0 %v2207
          %v3940 = vpop.f32.mrf.mxu0
          %v3941 = vadd.f32 %v3772, %v3940
          %v3942 = vpop.f32.mrf.mxu0
          %v3943 = vadd.f32 %v3774, %v3942
          %3944 = vmatmul.bf16.gmra.mxu0 %v2215
          %v3945 = vpop.f32.mrf.mxu0
          %v3946 = vadd.f32 %v3777, %v3945
          %v3947 = vpop.f32.mrf.mxu0
          %v3948 = vadd.f32 %v3779, %v3947
          %3949 = vmatmul.bf16.gmra.mxu0 %v2223
          %v3950 = vpop.f32.mrf.mxu0
          %v3951 = vadd.f32 %v3782, %v3950
          %v3952 = vpop.f32.mrf.mxu0
          %v3953 = vadd.f32 %v3784, %v3952
          %3954 = vmatmul.bf16.gmra.mxu0 %v2231
          %v3955 = vpop.f32.mrf.mxu0
          %v3956 = vadd.f32 %v3787, %v3955
          %v3957 = vpop.f32.mrf.mxu0
          %v3958 = vadd.f32 %v3789, %v3957
          %3959 = vmatmul.bf16.gmra.mxu0 %v2239
          %v3960 = vpop.f32.mrf.mxu0
          %v3961 = vadd.f32 %v3792, %v3960
          %v3962 = vpop.f32.mrf.mxu0
          %v3963 = vadd.f32 %v3794, %v3962
          %3964 = vmatmul.bf16.gmra.mxu0 %v2247
          %v3965 = vpop.f32.mrf.mxu0
          %v3966 = vadd.f32 %v3797, %v3965
          %v3967 = vpop.f32.mrf.mxu0
          %v3968 = vadd.f32 %v3799, %v3967
          %3969 = vmatmul.bf16.gmra.mxu0 %v2255
          %v3970 = vpop.f32.mrf.mxu0
          %v3971 = vadd.f32 %v3802, %v3970
          %v3972 = vpop.f32.mrf.mxu0
          %v3973 = vadd.f32 %v3804, %v3972
          %3974 = vmatmul.bf16.gmra.mxu0 %v2263
          %v3975 = vpop.f32.mrf.mxu0
          %v3976 = vadd.f32 %v3807, %v3975
          %v3977 = vpop.f32.mrf.mxu0
          %v3978 = vadd.f32 %v3809, %v3977
          %3979 = vmatmul.bf16.gmra.mxu0 %v2271
          %v3980 = vpop.f32.mrf.mxu0
          %v3981 = vadd.f32 %v3812, %v3980
          %v3982 = vpop.f32.mrf.mxu0
          %v3983 = vadd.f32 %v3814, %v3982
          %3984 = vmatmul.bf16.gmra.mxu0 %v2279
          %v3985 = vpop.f32.mrf.mxu0
          %v3986 = vadd.f32 %v3817, %v3985
          %v3987 = vpop.f32.mrf.mxu0
          %v3988 = vadd.f32 %v3819, %v3987
          %3989 = vmatmul.bf16.gmra.mxu0 %v2287
          %v3990 = vpop.f32.mrf.mxu0
          %v3991 = vadd.f32 %v3822, %v3990
          %v3992 = vpop.f32.mrf.mxu0
          %v3993 = vadd.f32 %v3824, %v3992
          %3994 = vmatmul.bf16.gmra.mxu0 %v2295
          %v3995 = vpop.f32.mrf.mxu0
          %v3996 = vadd.f32 %v3827, %v3995
          %v3997 = vpop.f32.mrf.mxu0
          %v3998 = vadd.f32 %v3829, %v3997
          %3999 = vmatmul.bf16.gmra.mxu0 %v2303
          %v4000 = vpop.f32.mrf.mxu0
          %v4001 = vadd.f32 %v3832, %v4000
          %v4002 = vpop.f32.mrf.mxu0
          %v4003 = vadd.f32 %v3834, %v4002
          %4004 = vmatmul.bf16.gmra.mxu0 %v2311
          %v4005 = vpop.f32.mrf.mxu0
          %v4006 = vadd.f32 %v3837, %v4005
          %v4007 = vpop.f32.mrf.mxu0
          %v4008 = vadd.f32 %v3839, %v4007
          %4009 = vmatmul.bf16.gmra.mxu0 %v2319
          %v4010 = vpop.f32.mrf.mxu0
          %v4011 = vadd.f32 %v3842, %v4010
          %v4012 = vpop.f32.mrf.mxu0
          %v4013 = vadd.f32 %v3844, %v4012
          %4014 = vmatmul.bf16.gmra.mxu0 %v2327
          %v4015 = vpop.f32.mrf.mxu0
          %v4016 = vadd.f32 %v3847, %v4015
          %v4017 = vpop.f32.mrf.mxu0
          %v4018 = vadd.f32 %v3849, %v4017
          %4019 = vmatmul.bf16.gmra.mxu0 %v2335
          %v4020 = vpop.f32.mrf.mxu0
          %v4021 = vadd.f32 %v3852, %v4020
          %v4022 = vpop.f32.mrf.mxu0
          %v4023 = vadd.f32 %v3854, %v4022
          %4024 = vmatmul.bf16.gmra.mxu0 %v2343
          %v4025 = vpop.f32.mrf.mxu0
          %v4026 = vadd.f32 %v3857, %v4025
          %v4027 = vpop.f32.mrf.mxu0
          %v4028 = vadd.f32 %v3859, %v4027
          %4029 = vmatmul.bf16.gmra.mxu0 %v2351
          %v4030 = vpop.f32.mrf.mxu0
          %v4031 = vadd.f32 %v3862, %v4030
          %v4032 = vpop.f32.mrf.mxu0
          %v4033 = vadd.f32 %v3864, %v4032
          %4034 = vmatmul.bf16.gmra.mxu0 %v2359
          %v4035 = vpop.f32.mrf.mxu0
          %v4036 = vadd.f32 %v3867, %v4035
          %v4037 = vpop.f32.mrf.mxu0
          %v4038 = vadd.f32 %v3869, %v4037
          %4039 = vmatmul.bf16.gmra.mxu0 %v2367
          %v4040 = vpop.f32.mrf.mxu0
          %v4041 = vadd.f32 %v3872, %v4040
          %v4042 = vpop.f32.mrf.mxu0
          %v4043 = vadd.f32 %v3874, %v4042
          %4044 = vmatmul.bf16.gmra.mxu0 %v2375
          %v4045 = vpop.f32.mrf.mxu0
          %v4046 = vadd.f32 %v3877, %v4045
          %v4047 = vpop.f32.mrf.mxu0
          %v4048 = vadd.f32 %v3879, %v4047
          %4049 = vmatmul.bf16.gmra.mxu0 %v2383
          %v4050 = vpop.f32.mrf.mxu0
          %v4051 = vadd.f32 %v3882, %v4050
          %v4052 = vpop.f32.mrf.mxu0
          %v4053 = vadd.f32 %v3884, %v4052
          %4054 = vmatmul.bf16.gmra.mxu0 %v2391
          %v4055 = vpop.f32.mrf.mxu0
          %v4056 = vadd.f32 %v3887, %v4055
          %v4057 = vpop.f32.mrf.mxu0
          %v4058 = vadd.f32 %v3889, %v4057
          %4059 = vmatmul.bf16.gmra.mxu0 %v2399
          %v4060 = vpop.f32.mrf.mxu0
          %v4061 = vadd.f32 %v3892, %v4060
          %v4062 = vpop.f32.mrf.mxu0
          %v4063 = vadd.f32 %v3894, %v4062
          %4064 = vmatmul.bf16.gmra.mxu0 %v2407
          %v4065 = vpop.f32.mrf.mxu0
          %v4066 = vadd.f32 %v3897, %v4065
          %v4067 = vpop.f32.mrf.mxu0
          %v4068 = vadd.f32 %v3899, %v4067
          %4069 = vmatmul.bf16.gmra.mxu0 %v2415
          %v4070 = vpop.f32.mrf.mxu0
          %v4071 = vadd.f32 %v3902, %v4070
          %v4072 = vpop.f32.mrf.mxu0
          %v4073 = vadd.f32 %v3904, %v4072
          %4074 = vmatmul.bf16.gmra.mxu0 %v2423
          %v4075 = vpop.f32.mrf.mxu0
          %v4076 = vadd.f32 %v3907, %v4075
          %v4077 = vpop.f32.mrf.mxu0
          %v4078 = vadd.f32 %v3909, %v4077
          %4079 = vdwg.mxu0
          %4080 = vmatpush.bf16.msra.mxu0 %v2993
          %4081 = vmatpush.bf16.msra.mxu0 %v2992
          %4082 = vmatpush.bf16.msra.mxu0 %v2991
          %4083 = vmatpush.bf16.msra.mxu0 %v2990
          %4084 = vmatpush.bf16.msra.mxu0 %v2989
          %4085 = vmatpush.bf16.msra.mxu0 %v2988
          %4086 = vmatpush.bf16.msra.mxu0 %v2987
          %4087 = vmatpush.bf16.msra.mxu0 %v2986
          %4088 = vmatmul.bf16.gmra.mxu0 %v2176
          %v4089 = vpop.f32.mrf.mxu0
          %v4090 = vadd.f32 %v3921, %v4089
          %v4091 = vpop.f32.mrf.mxu0
          %v4092 = vadd.f32 %v3923, %v4091
          %4093 = vmatmul.bf16.gmra.mxu0 %v2184
          %v4094 = vpop.f32.mrf.mxu0
          %v4095 = vadd.f32 %v3926, %v4094
          %v4096 = vpop.f32.mrf.mxu0
          %v4097 = vadd.f32 %v3928, %v4096
          %4098 = vmatmul.bf16.gmra.mxu0 %v2192
          %v4099 = vpop.f32.mrf.mxu0
          %v4100 = vadd.f32 %v3931, %v4099
          %v4101 = vpop.f32.mrf.mxu0
          %v4102 = vadd.f32 %v3933, %v4101
          %4103 = vmatmul.bf16.gmra.mxu0 %v2200
          %v4104 = vpop.f32.mrf.mxu0
          %v4105 = vadd.f32 %v3936, %v4104
          %v4106 = vpop.f32.mrf.mxu0
          %v4107 = vadd.f32 %v3938, %v4106
          %4108 = vmatmul.bf16.gmra.mxu0 %v2208
          %v4109 = vpop.f32.mrf.mxu0
          %v4110 = vadd.f32 %v3941, %v4109
          %v4111 = vpop.f32.mrf.mxu0
          %v4112 = vadd.f32 %v3943, %v4111
          %4113 = vmatmul.bf16.gmra.mxu0 %v2216
          %v4114 = vpop.f32.mrf.mxu0
          %v4115 = vadd.f32 %v3946, %v4114
          %v4116 = vpop.f32.mrf.mxu0
          %v4117 = vadd.f32 %v3948, %v4116
          %4118 = vmatmul.bf16.gmra.mxu0 %v2224
          %v4119 = vpop.f32.mrf.mxu0
          %v4120 = vadd.f32 %v3951, %v4119
          %v4121 = vpop.f32.mrf.mxu0
          %v4122 = vadd.f32 %v3953, %v4121
          %4123 = vmatmul.bf16.gmra.mxu0 %v2232
          %v4124 = vpop.f32.mrf.mxu0
          %v4125 = vadd.f32 %v3956, %v4124
          %v4126 = vpop.f32.mrf.mxu0
          %v4127 = vadd.f32 %v3958, %v4126
          %4128 = vmatmul.bf16.gmra.mxu0 %v2240
          %v4129 = vpop.f32.mrf.mxu0
          %v4130 = vadd.f32 %v3961, %v4129
          %v4131 = vpop.f32.mrf.mxu0
          %v4132 = vadd.f32 %v3963, %v4131
          %4133 = vmatmul.bf16.gmra.mxu0 %v2248
          %v4134 = vpop.f32.mrf.mxu0
          %v4135 = vadd.f32 %v3966, %v4134
          %v4136 = vpop.f32.mrf.mxu0
          %v4137 = vadd.f32 %v3968, %v4136
          %4138 = vmatmul.bf16.gmra.mxu0 %v2256
          %v4139 = vpop.f32.mrf.mxu0
          %v4140 = vadd.f32 %v3971, %v4139
          %v4141 = vpop.f32.mrf.mxu0
          %v4142 = vadd.f32 %v3973, %v4141
          %4143 = vmatmul.bf16.gmra.mxu0 %v2264
          %v4144 = vpop.f32.mrf.mxu0
          %v4145 = vadd.f32 %v3976, %v4144
          %v4146 = vpop.f32.mrf.mxu0
          %v4147 = vadd.f32 %v3978, %v4146
          %4148 = vmatmul.bf16.gmra.mxu0 %v2272
          %v4149 = vpop.f32.mrf.mxu0
          %v4150 = vadd.f32 %v3981, %v4149
          %v4151 = vpop.f32.mrf.mxu0
          %v4152 = vadd.f32 %v3983, %v4151
          %4153 = vmatmul.bf16.gmra.mxu0 %v2280
          %v4154 = vpop.f32.mrf.mxu0
          %v4155 = vadd.f32 %v3986, %v4154
          %v4156 = vpop.f32.mrf.mxu0
          %v4157 = vadd.f32 %v3988, %v4156
          %4158 = vmatmul.bf16.gmra.mxu0 %v2288
          %v4159 = vpop.f32.mrf.mxu0
          %v4160 = vadd.f32 %v3991, %v4159
          %v4161 = vpop.f32.mrf.mxu0
          %v4162 = vadd.f32 %v3993, %v4161
          %4163 = vmatmul.bf16.gmra.mxu0 %v2296
          %v4164 = vpop.f32.mrf.mxu0
          %v4165 = vadd.f32 %v3996, %v4164
          %v4166 = vpop.f32.mrf.mxu0
          %v4167 = vadd.f32 %v3998, %v4166
          %4168 = vmatmul.bf16.gmra.mxu0 %v2304
          %v4169 = vpop.f32.mrf.mxu0
          %v4170 = vadd.f32 %v4001, %v4169
          %v4171 = vpop.f32.mrf.mxu0
          %v4172 = vadd.f32 %v4003, %v4171
          %4173 = vmatmul.bf16.gmra.mxu0 %v2312
          %v4174 = vpop.f32.mrf.mxu0
          %v4175 = vadd.f32 %v4006, %v4174
          %v4176 = vpop.f32.mrf.mxu0
          %v4177 = vadd.f32 %v4008, %v4176
          %4178 = vmatmul.bf16.gmra.mxu0 %v2320
          %v4179 = vpop.f32.mrf.mxu0
          %v4180 = vadd.f32 %v4011, %v4179
          %v4181 = vpop.f32.mrf.mxu0
          %v4182 = vadd.f32 %v4013, %v4181
          %4183 = vmatmul.bf16.gmra.mxu0 %v2328
          %v4184 = vpop.f32.mrf.mxu0
          %v4185 = vadd.f32 %v4016, %v4184
          %v4186 = vpop.f32.mrf.mxu0
          %v4187 = vadd.f32 %v4018, %v4186
          %4188 = vmatmul.bf16.gmra.mxu0 %v2336
          %v4189 = vpop.f32.mrf.mxu0
          %v4190 = vadd.f32 %v4021, %v4189
          %v4191 = vpop.f32.mrf.mxu0
          %v4192 = vadd.f32 %v4023, %v4191
          %4193 = vmatmul.bf16.gmra.mxu0 %v2344
          %v4194 = vpop.f32.mrf.mxu0
          %v4195 = vadd.f32 %v4026, %v4194
          %v4196 = vpop.f32.mrf.mxu0
          %v4197 = vadd.f32 %v4028, %v4196
          %4198 = vmatmul.bf16.gmra.mxu0 %v2352
          %v4199 = vpop.f32.mrf.mxu0
          %v4200 = vadd.f32 %v4031, %v4199
          %v4201 = vpop.f32.mrf.mxu0
          %v4202 = vadd.f32 %v4033, %v4201
          %4203 = vmatmul.bf16.gmra.mxu0 %v2360
          %v4204 = vpop.f32.mrf.mxu0
          %v4205 = vadd.f32 %v4036, %v4204
          %v4206 = vpop.f32.mrf.mxu0
          %v4207 = vadd.f32 %v4038, %v4206
          %4208 = vmatmul.bf16.gmra.mxu0 %v2368
          %v4209 = vpop.f32.mrf.mxu0
          %v4210 = vadd.f32 %v4041, %v4209
          %v4211 = vpop.f32.mrf.mxu0
          %v4212 = vadd.f32 %v4043, %v4211
          %4213 = vmatmul.bf16.gmra.mxu0 %v2376
          %v4214 = vpop.f32.mrf.mxu0
          %v4215 = vadd.f32 %v4046, %v4214
          %v4216 = vpop.f32.mrf.mxu0
          %v4217 = vadd.f32 %v4048, %v4216
          %4218 = vmatmul.bf16.gmra.mxu0 %v2384
          %v4219 = vpop.f32.mrf.mxu0
          %v4220 = vadd.f32 %v4051, %v4219
          %v4221 = vpop.f32.mrf.mxu0
          %v4222 = vadd.f32 %v4053, %v4221
          %4223 = vmatmul.bf16.gmra.mxu0 %v2392
          %v4224 = vpop.f32.mrf.mxu0
          %v4225 = vadd.f32 %v4056, %v4224
          %v4226 = vpop.f32.mrf.mxu0
          %v4227 = vadd.f32 %v4058, %v4226
          %4228 = vmatmul.bf16.gmra.mxu0 %v2400
          %v4229 = vpop.f32.mrf.mxu0
          %v4230 = vadd.f32 %v4061, %v4229
          %v4231 = vpop.f32.mrf.mxu0
          %v4232 = vadd.f32 %v4063, %v4231
          %4233 = vmatmul.bf16.gmra.mxu0 %v2408
          %v4234 = vpop.f32.mrf.mxu0
          %v4235 = vadd.f32 %v4066, %v4234
          %v4236 = vpop.f32.mrf.mxu0
          %v4237 = vadd.f32 %v4068, %v4236
          %4238 = vmatmul.bf16.gmra.mxu0 %v2416
          %v4239 = vpop.f32.mrf.mxu0
          %v4240 = vadd.f32 %v4071, %v4239
          %v4241 = vpop.f32.mrf.mxu0
          %v4242 = vadd.f32 %v4073, %v4241
          %4243 = vmatmul.bf16.gmra.mxu0 %v2424
          %v4244 = vpop.f32.mrf.mxu0
          %v4245 = vadd.f32 %v4076, %v4244
          %v4246 = vpop.f32.mrf.mxu0
          %v4247 = vadd.f32 %v4078, %v4246
          %4248 = vdwg.mxu0
          %4249 = vmatpush.bf16.msra.mxu0 %v3001
          %4250 = vmatpush.bf16.msra.mxu0 %v3000
          %4251 = vmatpush.bf16.msra.mxu0 %v2999
          %4252 = vmatpush.bf16.msra.mxu0 %v2998
          %4253 = vmatpush.bf16.msra.mxu0 %v2997
          %4254 = vmatpush.bf16.msra.mxu0 %v2996
          %4255 = vmatpush.bf16.msra.mxu0 %v2995
          %4256 = vmatpush.bf16.msra.mxu0 %v2994
          %4257 = vmatmul.bf16.gmra.mxu0 %v2177
          %v4258 = vpop.f32.mrf.mxu0
          %v4259 = vadd.f32 %v4090, %v4258
          %v4260 = vpop.f32.mrf.mxu0
          %v4261 = vadd.f32 %v4092, %v4260
          %4262 = vmatmul.bf16.gmra.mxu0 %v2185
          %v4263 = vpop.f32.mrf.mxu0
          %v4264 = vadd.f32 %v4095, %v4263
          %v4265 = vpop.f32.mrf.mxu0
          %v4266 = vadd.f32 %v4097, %v4265
          %4267 = vmatmul.bf16.gmra.mxu0 %v2193
          %v4268 = vpop.f32.mrf.mxu0
          %v4269 = vadd.f32 %v4100, %v4268
          %v4270 = vpop.f32.mrf.mxu0
          %v4271 = vadd.f32 %v4102, %v4270
          %4272 = vmatmul.bf16.gmra.mxu0 %v2201
          %v4273 = vpop.f32.mrf.mxu0
          %v4274 = vadd.f32 %v4105, %v4273
          %v4275 = vpop.f32.mrf.mxu0
          %v4276 = vadd.f32 %v4107, %v4275
          %4277 = vmatmul.bf16.gmra.mxu0 %v2209
          %v4278 = vpop.f32.mrf.mxu0
          %v4279 = vadd.f32 %v4110, %v4278
          %v4280 = vpop.f32.mrf.mxu0
          %v4281 = vadd.f32 %v4112, %v4280
          %4282 = vmatmul.bf16.gmra.mxu0 %v2217
          %v4283 = vpop.f32.mrf.mxu0
          %v4284 = vadd.f32 %v4115, %v4283
          %v4285 = vpop.f32.mrf.mxu0
          %v4286 = vadd.f32 %v4117, %v4285
          %4287 = vmatmul.bf16.gmra.mxu0 %v2225
          %v4288 = vpop.f32.mrf.mxu0
          %v4289 = vadd.f32 %v4120, %v4288
          %v4290 = vpop.f32.mrf.mxu0
          %v4291 = vadd.f32 %v4122, %v4290
          %4292 = vmatmul.bf16.gmra.mxu0 %v2233
          %v4293 = vpop.f32.mrf.mxu0
          %v4294 = vadd.f32 %v4125, %v4293
          %v4295 = vpop.f32.mrf.mxu0
          %v4296 = vadd.f32 %v4127, %v4295
          %4297 = vmatmul.bf16.gmra.mxu0 %v2241
          %v4298 = vpop.f32.mrf.mxu0
          %v4299 = vadd.f32 %v4130, %v4298
          %v4300 = vpop.f32.mrf.mxu0
          %v4301 = vadd.f32 %v4132, %v4300
          %4302 = vmatmul.bf16.gmra.mxu0 %v2249
          %v4303 = vpop.f32.mrf.mxu0
          %v4304 = vadd.f32 %v4135, %v4303
          %v4305 = vpop.f32.mrf.mxu0
          %v4306 = vadd.f32 %v4137, %v4305
          %4307 = vmatmul.bf16.gmra.mxu0 %v2257
          %v4308 = vpop.f32.mrf.mxu0
          %v4309 = vadd.f32 %v4140, %v4308
          %v4310 = vpop.f32.mrf.mxu0
          %v4311 = vadd.f32 %v4142, %v4310
          %4312 = vmatmul.bf16.gmra.mxu0 %v2265
          %v4313 = vpop.f32.mrf.mxu0
          %v4314 = vadd.f32 %v4145, %v4313
          %v4315 = vpop.f32.mrf.mxu0
          %v4316 = vadd.f32 %v4147, %v4315
          %4317 = vmatmul.bf16.gmra.mxu0 %v2273
          %v4318 = vpop.f32.mrf.mxu0
          %v4319 = vadd.f32 %v4150, %v4318
          %v4320 = vpop.f32.mrf.mxu0
          %v4321 = vadd.f32 %v4152, %v4320
          %4322 = vmatmul.bf16.gmra.mxu0 %v2281
          %v4323 = vpop.f32.mrf.mxu0
          %v4324 = vadd.f32 %v4155, %v4323
          %v4325 = vpop.f32.mrf.mxu0
          %v4326 = vadd.f32 %v4157, %v4325
          %4327 = vmatmul.bf16.gmra.mxu0 %v2289
          %v4328 = vpop.f32.mrf.mxu0
          %v4329 = vadd.f32 %v4160, %v4328
          %v4330 = vpop.f32.mrf.mxu0
          %v4331 = vadd.f32 %v4162, %v4330
          %4332 = vmatmul.bf16.gmra.mxu0 %v2297
          %v4333 = vpop.f32.mrf.mxu0
          %v4334 = vadd.f32 %v4165, %v4333
          %v4335 = vpop.f32.mrf.mxu0
          %v4336 = vadd.f32 %v4167, %v4335
          %4337 = vmatmul.bf16.gmra.mxu0 %v2305
          %v4338 = vpop.f32.mrf.mxu0
          %v4339 = vadd.f32 %v4170, %v4338
          %v4340 = vpop.f32.mrf.mxu0
          %v4341 = vadd.f32 %v4172, %v4340
          %4342 = vmatmul.bf16.gmra.mxu0 %v2313
          %v4343 = vpop.f32.mrf.mxu0
          %v4344 = vadd.f32 %v4175, %v4343
          %v4345 = vpop.f32.mrf.mxu0
          %v4346 = vadd.f32 %v4177, %v4345
          %4347 = vmatmul.bf16.gmra.mxu0 %v2321
          %v4348 = vpop.f32.mrf.mxu0
          %v4349 = vadd.f32 %v4180, %v4348
          %v4350 = vpop.f32.mrf.mxu0
          %v4351 = vadd.f32 %v4182, %v4350
          %4352 = vmatmul.bf16.gmra.mxu0 %v2329
          %v4353 = vpop.f32.mrf.mxu0
          %v4354 = vadd.f32 %v4185, %v4353
          %v4355 = vpop.f32.mrf.mxu0
          %v4356 = vadd.f32 %v4187, %v4355
          %4357 = vmatmul.bf16.gmra.mxu0 %v2337
          %v4358 = vpop.f32.mrf.mxu0
          %v4359 = vadd.f32 %v4190, %v4358
          %v4360 = vpop.f32.mrf.mxu0
          %v4361 = vadd.f32 %v4192, %v4360
          %4362 = vmatmul.bf16.gmra.mxu0 %v2345
          %v4363 = vpop.f32.mrf.mxu0
          %v4364 = vadd.f32 %v4195, %v4363
          %v4365 = vpop.f32.mrf.mxu0
          %v4366 = vadd.f32 %v4197, %v4365
          %4367 = vmatmul.bf16.gmra.mxu0 %v2353
          %v4368 = vpop.f32.mrf.mxu0
          %v4369 = vadd.f32 %v4200, %v4368
          %v4370 = vpop.f32.mrf.mxu0
          %v4371 = vadd.f32 %v4202, %v4370
          %4372 = vmatmul.bf16.gmra.mxu0 %v2361
          %v4373 = vpop.f32.mrf.mxu0
          %v4374 = vadd.f32 %v4205, %v4373
          %v4375 = vpop.f32.mrf.mxu0
          %v4376 = vadd.f32 %v4207, %v4375
          %4377 = vmatmul.bf16.gmra.mxu0 %v2369
          %v4378 = vpop.f32.mrf.mxu0
          %v4379 = vadd.f32 %v4210, %v4378
          %v4380 = vpop.f32.mrf.mxu0
          %v4381 = vadd.f32 %v4212, %v4380
          %4382 = vmatmul.bf16.gmra.mxu0 %v2377
          %v4383 = vpop.f32.mrf.mxu0
          %v4384 = vadd.f32 %v4215, %v4383
          %v4385 = vpop.f32.mrf.mxu0
          %v4386 = vadd.f32 %v4217, %v4385
          %4387 = vmatmul.bf16.gmra.mxu0 %v2385
          %v4388 = vpop.f32.mrf.mxu0
          %v4389 = vadd.f32 %v4220, %v4388
          %v4390 = vpop.f32.mrf.mxu0
          %v4391 = vadd.f32 %v4222, %v4390
          %4392 = vmatmul.bf16.gmra.mxu0 %v2393
          %v4393 = vpop.f32.mrf.mxu0
          %v4394 = vadd.f32 %v4225, %v4393
          %v4395 = vpop.f32.mrf.mxu0
          %v4396 = vadd.f32 %v4227, %v4395
          %4397 = vmatmul.bf16.gmra.mxu0 %v2401
          %v4398 = vpop.f32.mrf.mxu0
          %v4399 = vadd.f32 %v4230, %v4398
          %v4400 = vpop.f32.mrf.mxu0
          %v4401 = vadd.f32 %v4232, %v4400
          %4402 = vmatmul.bf16.gmra.mxu0 %v2409
          %v4403 = vpop.f32.mrf.mxu0
          %v4404 = vadd.f32 %v4235, %v4403
          %v4405 = vpop.f32.mrf.mxu0
          %v4406 = vadd.f32 %v4237, %v4405
          %4407 = vmatmul.bf16.gmra.mxu0 %v2417
          %v4408 = vpop.f32.mrf.mxu0
          %v4409 = vadd.f32 %v4240, %v4408
          %v4410 = vpop.f32.mrf.mxu0
          %v4411 = vadd.f32 %v4242, %v4410
          %4412 = vmatmul.bf16.gmra.mxu0 %v2425
          %v4413 = vpop.f32.mrf.mxu0
          %v4414 = vadd.f32 %v4245, %v4413
          %v4415 = vpop.f32.mrf.mxu0
          %v4416 = vadd.f32 %v4247, %v4415
          %4417 = vdwg.mxu0
          %v4418 = vmax.f32 %v4259, 0.0
          %v4419 = vmax.f32 %v4261, 0.0
          %v4420 = vmax.f32 %v4264, 0.0
          %v4421 = vmax.f32 %v4266, 0.0
          %v4422 = vmax.f32 %v4269, 0.0
          %v4423 = vmax.f32 %v4271, 0.0
          %v4424 = vmax.f32 %v4274, 0.0
          %v4425 = vmax.f32 %v4276, 0.0
          %v4426 = vmax.f32 %v4279, 0.0
          %v4427 = vmax.f32 %v4281, 0.0
          %v4428 = vmax.f32 %v4284, 0.0
          %v4429 = vmax.f32 %v4286, 0.0
          %v4430 = vmax.f32 %v4289, 0.0
          %v4431 = vmax.f32 %v4291, 0.0
          %v4432 = vmax.f32 %v4294, 0.0
          %v4433 = vmax.f32 %v4296, 0.0
          %v4434 = vmax.f32 %v4299, 0.0
          %v4435 = vmax.f32 %v4301, 0.0
          %v4436 = vmax.f32 %v4304, 0.0
          %v4437 = vmax.f32 %v4306, 0.0
          %v4438 = vmax.f32 %v4309, 0.0
          %v4439 = vmax.f32 %v4311, 0.0
          %v4440 = vmax.f32 %v4314, 0.0
          %v4441 = vmax.f32 %v4316, 0.0
          %v4442 = vmax.f32 %v4319, 0.0
          %v4443 = vmax.f32 %v4321, 0.0
          %v4444 = vmax.f32 %v4324, 0.0
          %v4445 = vmax.f32 %v4326, 0.0
          %v4446 = vmax.f32 %v4329, 0.0
          %v4447 = vmax.f32 %v4331, 0.0
          %v4448 = vmax.f32 %v4334, 0.0
          %v4449 = vmax.f32 %v4336, 0.0
          %v4450 = vmax.f32 %v4339, 0.0
          %v4451 = vmax.f32 %v4341, 0.0
          %v4452 = vmax.f32 %v4344, 0.0
          %v4453 = vmax.f32 %v4346, 0.0
          %v4454 = vmax.f32 %v4349, 0.0
          %v4455 = vmax.f32 %v4351, 0.0
          %v4456 = vmax.f32 %v4354, 0.0
          %v4457 = vmax.f32 %v4356, 0.0
          %v4458 = vmax.f32 %v4359, 0.0
          %v4459 = vmax.f32 %v4361, 0.0
          %v4460 = vmax.f32 %v4364, 0.0
          %v4461 = vmax.f32 %v4366, 0.0
          %v4462 = vmax.f32 %v4369, 0.0
          %v4463 = vmax.f32 %v4371, 0.0
          %v4464 = vmax.f32 %v4374, 0.0
          %v4465 = vmax.f32 %v4376, 0.0
          %v4466 = vmax.f32 %v4379, 0.0
          %v4467 = vmax.f32 %v4381, 0.0
          %v4468 = vmax.f32 %v4384, 0.0
          %v4469 = vmax.f32 %v4386, 0.0
          %v4470 = vmax.f32 %v4389, 0.0
          %v4471 = vmax.f32 %v4391, 0.0
          %v4472 = vmax.f32 %v4394, 0.0
          %v4473 = vmax.f32 %v4396, 0.0
          %v4474 = vmax.f32 %v4399, 0.0
          %v4475 = vmax.f32 %v4401, 0.0
          %v4476 = vmax.f32 %v4404, 0.0
          %v4477 = vmax.f32 %v4406, 0.0
          %v4478 = vmax.f32 %v4409, 0.0
          %v4479 = vmax.f32 %v4411, 0.0
          %v4480 = vmax.f32 %v4414, 0.0
          %v4481 = vmax.f32 %v4416, 0.0
          %v4482 = vpack.c.bf16 %v4419, %v4418
          %v4483 = vpack.c.bf16 %v4421, %v4420
          %v4484 = vpack.c.bf16 %v4423, %v4422
          %v4485 = vpack.c.bf16 %v4425, %v4424
          %v4486 = vpack.c.bf16 %v4427, %v4426
          %v4487 = vpack.c.bf16 %v4429, %v4428
          %v4488 = vpack.c.bf16 %v4431, %v4430
          %v4489 = vpack.c.bf16 %v4433, %v4432
          %v4490 = vpack.c.bf16 %v4435, %v4434
          %v4491 = vpack.c.bf16 %v4437, %v4436
          %v4492 = vpack.c.bf16 %v4439, %v4438
          %v4493 = vpack.c.bf16 %v4441, %v4440
          %v4494 = vpack.c.bf16 %v4443, %v4442
          %v4495 = vpack.c.bf16 %v4445, %v4444
          %v4496 = vpack.c.bf16 %v4447, %v4446
          %v4497 = vpack.c.bf16 %v4449, %v4448
          %v4498 = vpack.c.bf16 %v4451, %v4450
          %v4499 = vpack.c.bf16 %v4453, %v4452
          %v4500 = vpack.c.bf16 %v4455, %v4454
          %v4501 = vpack.c.bf16 %v4457, %v4456
          %v4502 = vpack.c.bf16 %v4459, %v4458
          %v4503 = vpack.c.bf16 %v4461, %v4460
          %v4504 = vpack.c.bf16 %v4463, %v4462
          %v4505 = vpack.c.bf16 %v4465, %v4464
          %v4506 = vpack.c.bf16 %v4467, %v4466
          %v4507 = vpack.c.bf16 %v4469, %v4468
          %v4508 = vpack.c.bf16 %v4471, %v4470
          %v4509 = vpack.c.bf16 %v4473, %v4472
          %v4510 = vpack.c.bf16 %v4475, %v4474
          %v4511 = vpack.c.bf16 %v4477, %v4476
          %v4512 = vpack.c.bf16 %v4479, %v4478
          %v4513 = vpack.c.bf16 %v4481, %v4480
          %v4514 = vld [vmem:[#allocation12] sm:$0xf]
          %v4515 = vld [vmem:[#allocation12 + $0x4] sm:$0xf]
          %v4516 = vld [vmem:[#allocation12 + $0x8] sm:$0xf]
          %v4517 = vld [vmem:[#allocation12 + $0xc] sm:$0xf]
          %v4518 = vld [vmem:[#allocation12 + $0x10] sm:$0xf]
          %v4519 = vld [vmem:[#allocation12 + $0x14] sm:$0xf]
          %v4520 = vld [vmem:[#allocation12 + $0x18] sm:$0xf]
          %v4521 = vld [vmem:[#allocation12 + $0x1c] sm:$0xf]
          %v4522 = vld [vmem:[#allocation12 + $0x20] sm:$0xf]
          %v4523 = vld [vmem:[#allocation12 + $0x24] sm:$0xf]
          %v4524 = vld [vmem:[#allocation12 + $0x28] sm:$0xf]
          %v4525 = vld [vmem:[#allocation12 + $0x2c] sm:$0xf]
          %v4526 = vld [vmem:[#allocation12 + $0x30] sm:$0xf]
          %v4527 = vld [vmem:[#allocation12 + $0x34] sm:$0xf]
          %v4528 = vld [vmem:[#allocation12 + $0x38] sm:$0xf]
          %v4529 = vld [vmem:[#allocation12 + $0x3c] sm:$0xf]
          %v4546 = vunpack.c.l.b16 %v4514
          %v4547 = vunpack.c.l.b16 %v4515
          %v4548 = vunpack.c.l.b16 %v4516
          %v4549 = vunpack.c.l.b16 %v4517
          %v4550 = vunpack.c.l.b16 %v4518
          %v4551 = vunpack.c.l.b16 %v4519
          %v4552 = vunpack.c.l.b16 %v4520
          %v4553 = vunpack.c.l.b16 %v4521
          %v4554 = vunpack.c.l.b16 %v4522
          %v4555 = vunpack.c.l.b16 %v4523
          %v4556 = vunpack.c.l.b16 %v4524
          %v4557 = vunpack.c.l.b16 %v4525
          %v4558 = vunpack.c.l.b16 %v4526
          %v4559 = vunpack.c.l.b16 %v4527
          %v4560 = vunpack.c.l.b16 %v4528
          %v4561 = vunpack.c.l.b16 %v4529
          %v4562 = vpack.c.b16 %v4547, %v4546
          %v4563 = vpack.c.b16 %v4549, %v4548
          %v4564 = vpack.c.b16 %v4551, %v4550
          %v4565 = vpack.c.b16 %v4553, %v4552
          %v4566 = vpack.c.b16 %v4555, %v4554
          %v4567 = vpack.c.b16 %v4557, %v4556
          %v4568 = vpack.c.b16 %v4559, %v4558
          %v4569 = vpack.c.b16 %v4561, %v4560
          %4578 = vmatpush.bf16.msra.mxu0 %v4569
          %4579 = vmatpush.bf16.msra.mxu0 %v4568
          %4580 = vmatpush.bf16.msra.mxu0 %v4567
          %4581 = vmatpush.bf16.msra.mxu0 %v4566
          %4582 = vmatpush.bf16.msra.mxu0 %v4565
          %4583 = vmatpush.bf16.msra.mxu0 %v4564
          %4584 = vmatpush.bf16.msra.mxu0 %v4563
          %4585 = vmatpush.bf16.msra.mxu0 %v4562
          %4586 = vmatmul.bf16.gmra.mxu0 %v4482
          %v4587 = vpop.f32.mrf.mxu0
          %v4588 = vadd.f32 0.0, %v4587
          %v4589 = vpop.f32.mrf.mxu0
          %v4590 = vadd.f32 0.0, %v4589
          %4591 = vmatmul.bf16.gmra.mxu0 %v4483
          %v4592 = vpop.f32.mrf.mxu0
          %v4593 = vadd.f32 0.0, %v4592
          %v4594 = vpop.f32.mrf.mxu0
          %v4595 = vadd.f32 0.0, %v4594
          %4596 = vmatmul.bf16.gmra.mxu0 %v4484
          %v4597 = vpop.f32.mrf.mxu0
          %v4598 = vadd.f32 0.0, %v4597
          %v4599 = vpop.f32.mrf.mxu0
          %v4600 = vadd.f32 0.0, %v4599
          %4601 = vmatmul.bf16.gmra.mxu0 %v4485
          %v4602 = vpop.f32.mrf.mxu0
          %v4603 = vadd.f32 0.0, %v4602
          %v4604 = vpop.f32.mrf.mxu0
          %v4605 = vadd.f32 0.0, %v4604
          %4606 = vmatmul.bf16.gmra.mxu0 %v4486
          %v4607 = vpop.f32.mrf.mxu0
          %v4608 = vadd.f32 0.0, %v4607
          %v4609 = vpop.f32.mrf.mxu0
          %v4610 = vadd.f32 0.0, %v4609
          %4611 = vmatmul.bf16.gmra.mxu0 %v4487
          %v4612 = vpop.f32.mrf.mxu0
          %v4613 = vadd.f32 0.0, %v4612
          %v4614 = vpop.f32.mrf.mxu0
          %v4615 = vadd.f32 0.0, %v4614
          %4616 = vmatmul.bf16.gmra.mxu0 %v4488
          %v4617 = vpop.f32.mrf.mxu0
          %v4618 = vadd.f32 0.0, %v4617
          %v4619 = vpop.f32.mrf.mxu0
          %v4620 = vadd.f32 0.0, %v4619
          %4621 = vmatmul.bf16.gmra.mxu0 %v4489
          %v4622 = vpop.f32.mrf.mxu0
          %v4623 = vadd.f32 0.0, %v4622
          %v4624 = vpop.f32.mrf.mxu0
          %v4625 = vadd.f32 0.0, %v4624
          %4626 = vmatmul.bf16.gmra.mxu0 %v4490
          %v4627 = vpop.f32.mrf.mxu0
          %v4628 = vadd.f32 0.0, %v4627
          %v4629 = vpop.f32.mrf.mxu0
          %v4630 = vadd.f32 0.0, %v4629
          %4631 = vmatmul.bf16.gmra.mxu0 %v4491
          %v4632 = vpop.f32.mrf.mxu0
          %v4633 = vadd.f32 0.0, %v4632
          %v4634 = vpop.f32.mrf.mxu0
          %v4635 = vadd.f32 0.0, %v4634
          %4636 = vmatmul.bf16.gmra.mxu0 %v4492
          %v4637 = vpop.f32.mrf.mxu0
          %v4638 = vadd.f32 0.0, %v4637
          %v4639 = vpop.f32.mrf.mxu0
          %v4640 = vadd.f32 0.0, %v4639
          %4641 = vmatmul.bf16.gmra.mxu0 %v4493
          %v4642 = vpop.f32.mrf.mxu0
          %v4643 = vadd.f32 0.0, %v4642
          %v4644 = vpop.f32.mrf.mxu0
          %v4645 = vadd.f32 0.0, %v4644
          %4646 = vmatmul.bf16.gmra.mxu0 %v4494
          %v4647 = vpop.f32.mrf.mxu0
          %v4648 = vadd.f32 0.0, %v4647
          %v4649 = vpop.f32.mrf.mxu0
          %v4650 = vadd.f32 0.0, %v4649
          %4651 = vmatmul.bf16.gmra.mxu0 %v4495
          %v4652 = vpop.f32.mrf.mxu0
          %v4653 = vadd.f32 0.0, %v4652
          %v4654 = vpop.f32.mrf.mxu0
          %v4655 = vadd.f32 0.0, %v4654
          %4656 = vmatmul.bf16.gmra.mxu0 %v4496
          %v4657 = vpop.f32.mrf.mxu0
          %v4658 = vadd.f32 0.0, %v4657
          %v4659 = vpop.f32.mrf.mxu0
          %v4660 = vadd.f32 0.0, %v4659
          %4661 = vmatmul.bf16.gmra.mxu0 %v4497
          %v4662 = vpop.f32.mrf.mxu0
          %v4663 = vadd.f32 0.0, %v4662
          %v4664 = vpop.f32.mrf.mxu0
          %v4665 = vadd.f32 0.0, %v4664
          %4666 = vmatmul.bf16.gmra.mxu0 %v4498
          %v4667 = vpop.f32.mrf.mxu0
          %v4668 = vadd.f32 0.0, %v4667
          %v4669 = vpop.f32.mrf.mxu0
          %v4670 = vadd.f32 0.0, %v4669
          %4671 = vmatmul.bf16.gmra.mxu0 %v4499
          %v4672 = vpop.f32.mrf.mxu0
          %v4673 = vadd.f32 0.0, %v4672
          %v4674 = vpop.f32.mrf.mxu0
          %v4675 = vadd.f32 0.0, %v4674
          %4676 = vmatmul.bf16.gmra.mxu0 %v4500
          %v4677 = vpop.f32.mrf.mxu0
          %v4678 = vadd.f32 0.0, %v4677
          %v4679 = vpop.f32.mrf.mxu0
          %v4680 = vadd.f32 0.0, %v4679
          %4681 = vmatmul.bf16.gmra.mxu0 %v4501
          %v4682 = vpop.f32.mrf.mxu0
          %v4683 = vadd.f32 0.0, %v4682
          %v4684 = vpop.f32.mrf.mxu0
          %v4685 = vadd.f32 0.0, %v4684
          %4686 = vmatmul.bf16.gmra.mxu0 %v4502
          %v4687 = vpop.f32.mrf.mxu0
          %v4688 = vadd.f32 0.0, %v4687
          %v4689 = vpop.f32.mrf.mxu0
          %v4690 = vadd.f32 0.0, %v4689
          %4691 = vmatmul.bf16.gmra.mxu0 %v4503
          %v4692 = vpop.f32.mrf.mxu0
          %v4693 = vadd.f32 0.0, %v4692
          %v4694 = vpop.f32.mrf.mxu0
          %v4695 = vadd.f32 0.0, %v4694
          %4696 = vmatmul.bf16.gmra.mxu0 %v4504
          %v4697 = vpop.f32.mrf.mxu0
          %v4698 = vadd.f32 0.0, %v4697
          %v4699 = vpop.f32.mrf.mxu0
          %v4700 = vadd.f32 0.0, %v4699
          %4701 = vmatmul.bf16.gmra.mxu0 %v4505
          %v4702 = vpop.f32.mrf.mxu0
          %v4703 = vadd.f32 0.0, %v4702
          %v4704 = vpop.f32.mrf.mxu0
          %v4705 = vadd.f32 0.0, %v4704
          %4706 = vmatmul.bf16.gmra.mxu0 %v4506
          %v4707 = vpop.f32.mrf.mxu0
          %v4708 = vadd.f32 0.0, %v4707
          %v4709 = vpop.f32.mrf.mxu0
          %v4710 = vadd.f32 0.0, %v4709
          %4711 = vmatmul.bf16.gmra.mxu0 %v4507
          %v4712 = vpop.f32.mrf.mxu0
          %v4713 = vadd.f32 0.0, %v4712
          %v4714 = vpop.f32.mrf.mxu0
          %v4715 = vadd.f32 0.0, %v4714
          %4716 = vmatmul.bf16.gmra.mxu0 %v4508
          %v4717 = vpop.f32.mrf.mxu0
          %v4718 = vadd.f32 0.0, %v4717
          %v4719 = vpop.f32.mrf.mxu0
          %v4720 = vadd.f32 0.0, %v4719
          %4721 = vmatmul.bf16.gmra.mxu0 %v4509
          %v4722 = vpop.f32.mrf.mxu0
          %v4723 = vadd.f32 0.0, %v4722
          %v4724 = vpop.f32.mrf.mxu0
          %v4725 = vadd.f32 0.0, %v4724
          %4726 = vmatmul.bf16.gmra.mxu0 %v4510
          %v4727 = vpop.f32.mrf.mxu0
          %v4728 = vadd.f32 0.0, %v4727
          %v4729 = vpop.f32.mrf.mxu0
          %v4730 = vadd.f32 0.0, %v4729
          %4731 = vmatmul.bf16.gmra.mxu0 %v4511
          %v4732 = vpop.f32.mrf.mxu0
          %v4733 = vadd.f32 0.0, %v4732
          %v4734 = vpop.f32.mrf.mxu0
          %v4735 = vadd.f32 0.0, %v4734
          %4736 = vmatmul.bf16.gmra.mxu0 %v4512
          %v4737 = vpop.f32.mrf.mxu0
          %v4738 = vadd.f32 0.0, %v4737
          %v4739 = vpop.f32.mrf.mxu0
          %v4740 = vadd.f32 0.0, %v4739
          %4741 = vmatmul.bf16.gmra.mxu0 %v4513
          %v4742 = vpop.f32.mrf.mxu0
          %v4743 = vadd.f32 0.0, %v4742
          %v4744 = vpop.f32.mrf.mxu0
          %v4745 = vadd.f32 0.0, %v4744
          %4746 = vdwg.mxu0
          %v4747 = vpack.c.bf16 %v4588, %v4588
          %v4748 = vpack.c.bf16 %v4590, %v4590
          %v4749 = vpack.c.bf16 %v4593, %v4593
          %v4750 = vpack.c.bf16 %v4595, %v4595
          %v4751 = vpack.c.bf16 %v4598, %v4598
          %v4752 = vpack.c.bf16 %v4600, %v4600
          %v4753 = vpack.c.bf16 %v4603, %v4603
          %v4754 = vpack.c.bf16 %v4605, %v4605
          %v4755 = vpack.c.bf16 %v4608, %v4608
          %v4756 = vpack.c.bf16 %v4610, %v4610
          %v4757 = vpack.c.bf16 %v4613, %v4613
          %v4758 = vpack.c.bf16 %v4615, %v4615
          %v4759 = vpack.c.bf16 %v4618, %v4618
          %v4760 = vpack.c.bf16 %v4620, %v4620
          %v4761 = vpack.c.bf16 %v4623, %v4623
          %v4762 = vpack.c.bf16 %v4625, %v4625
          %v4763 = vpack.c.bf16 %v4628, %v4628
          %v4764 = vpack.c.bf16 %v4630, %v4630
          %v4765 = vpack.c.bf16 %v4633, %v4633
          %v4766 = vpack.c.bf16 %v4635, %v4635
          %v4767 = vpack.c.bf16 %v4638, %v4638
          %v4768 = vpack.c.bf16 %v4640, %v4640
          %v4769 = vpack.c.bf16 %v4643, %v4643
          %v4770 = vpack.c.bf16 %v4645, %v4645
          %v4771 = vpack.c.bf16 %v4648, %v4648
          %v4772 = vpack.c.bf16 %v4650, %v4650
          %v4773 = vpack.c.bf16 %v4653, %v4653
          %v4774 = vpack.c.bf16 %v4655, %v4655
          %v4775 = vpack.c.bf16 %v4658, %v4658
          %v4776 = vpack.c.bf16 %v4660, %v4660
          %v4777 = vpack.c.bf16 %v4663, %v4663
          %v4778 = vpack.c.bf16 %v4665, %v4665
          %v4779 = vpack.c.bf16 %v4668, %v4668
          %v4780 = vpack.c.bf16 %v4670, %v4670
          %v4781 = vpack.c.bf16 %v4673, %v4673
          %v4782 = vpack.c.bf16 %v4675, %v4675
          %v4783 = vpack.c.bf16 %v4678, %v4678
          %v4784 = vpack.c.bf16 %v4680, %v4680
          %v4785 = vpack.c.bf16 %v4683, %v4683
          %v4786 = vpack.c.bf16 %v4685, %v4685
          %v4787 = vpack.c.bf16 %v4688, %v4688
          %v4788 = vpack.c.bf16 %v4690, %v4690
          %v4789 = vpack.c.bf16 %v4693, %v4693
          %v4790 = vpack.c.bf16 %v4695, %v4695
          %v4791 = vpack.c.bf16 %v4698, %v4698
          %v4792 = vpack.c.bf16 %v4700, %v4700
          %v4793 = vpack.c.bf16 %v4703, %v4703
          %v4794 = vpack.c.bf16 %v4705, %v4705
          %v4795 = vpack.c.bf16 %v4708, %v4708
          %v4796 = vpack.c.bf16 %v4710, %v4710
          %v4797 = vpack.c.bf16 %v4713, %v4713
          %v4798 = vpack.c.bf16 %v4715, %v4715
          %v4799 = vpack.c.bf16 %v4718, %v4718
          %v4800 = vpack.c.bf16 %v4720, %v4720
          %v4801 = vpack.c.bf16 %v4723, %v4723
          %v4802 = vpack.c.bf16 %v4725, %v4725
          %v4803 = vpack.c.bf16 %v4728, %v4728
          %v4804 = vpack.c.bf16 %v4730, %v4730
          %v4805 = vpack.c.bf16 %v4733, %v4733
          %v4806 = vpack.c.bf16 %v4735, %v4735
          %v4807 = vpack.c.bf16 %v4738, %v4738
          %v4808 = vpack.c.bf16 %v4740, %v4740
          %v4809 = vpack.c.bf16 %v4743, %v4743
          %v4810 = vpack.c.bf16 %v4745, %v4745
          %s4811 = smul.addr %s1009, 4
          %s4812 = scalar_lea.vmem [#allocation3], %s4811
          %4813 = vst [vmem:[%s4812] sm:$0xf] %v4747
          %4814 = vst [vmem:[%s4812 + $0x4] sm:$0xf] %v4748
          %4815 = vst [vmem:[%s4812 + $0x8] sm:$0xf] %v4749
          %4816 = vst [vmem:[%s4812 + $0xc] sm:$0xf] %v4750
          %4817 = vst [vmem:[%s4812 + $0x10] sm:$0xf] %v4751
          %4818 = vst [vmem:[%s4812 + $0x14] sm:$0xf] %v4752
          %4819 = vst [vmem:[%s4812 + $0x18] sm:$0xf] %v4753
          %4820 = vst [vmem:[%s4812 + $0x1c] sm:$0xf] %v4754
          %4821 = vst [vmem:[%s4812 + $0x20] sm:$0xf] %v4755
          %4822 = vst [vmem:[%s4812 + $0x24] sm:$0xf] %v4756
          %4823 = vst [vmem:[%s4812 + $0x28] sm:$0xf] %v4757
          %4824 = vst [vmem:[%s4812 + $0x2c] sm:$0xf] %v4758
          %4825 = vst [vmem:[%s4812 + $0x30] sm:$0xf] %v4759
          %4826 = vst [vmem:[%s4812 + $0x34] sm:$0xf] %v4760
          %4827 = vst [vmem:[%s4812 + $0x38] sm:$0xf] %v4761
          %4828 = vst [vmem:[%s4812 + $0x3c] sm:$0xf] %v4762
          %4829 = vst [vmem:[%s4812 + $0x40] sm:$0xf] %v4763
          %4830 = vst [vmem:[%s4812 + $0x44] sm:$0xf] %v4764
          %4831 = vst [vmem:[%s4812 + $0x48] sm:$0xf] %v4765
          %4832 = vst [vmem:[%s4812 + $0x4c] sm:$0xf] %v4766
          %4833 = vst [vmem:[%s4812 + $0x50] sm:$0xf] %v4767
          %4834 = vst [vmem:[%s4812 + $0x54] sm:$0xf] %v4768
          %4835 = vst [vmem:[%s4812 + $0x58] sm:$0xf] %v4769
          %4836 = vst [vmem:[%s4812 + $0x5c] sm:$0xf] %v4770
          %4837 = vst [vmem:[%s4812 + $0x60] sm:$0xf] %v4771
          %4838 = vst [vmem:[%s4812 + $0x64] sm:$0xf] %v4772
          %4839 = vst [vmem:[%s4812 + $0x68] sm:$0xf] %v4773
          %4840 = vst [vmem:[%s4812 + $0x6c] sm:$0xf] %v4774
          %4841 = vst [vmem:[%s4812 + $0x70] sm:$0xf] %v4775
          %4842 = vst [vmem:[%s4812 + $0x74] sm:$0xf] %v4776
          %4843 = vst [vmem:[%s4812 + $0x78] sm:$0xf] %v4777
          %4844 = vst [vmem:[%s4812 + $0x7c] sm:$0xf] %v4778
          %4845 = vst [vmem:[%s4812 + $0x80] sm:$0xf] %v4779
          %4846 = vst [vmem:[%s4812 + $0x84] sm:$0xf] %v4780
          %4847 = vst [vmem:[%s4812 + $0x88] sm:$0xf] %v4781
          %4848 = vst [vmem:[%s4812 + $0x8c] sm:$0xf] %v4782
          %4849 = vst [vmem:[%s4812 + $0x90] sm:$0xf] %v4783
          %4850 = vst [vmem:[%s4812 + $0x94] sm:$0xf] %v4784
          %4851 = vst [vmem:[%s4812 + $0x98] sm:$0xf] %v4785
          %4852 = vst [vmem:[%s4812 + $0x9c] sm:$0xf] %v4786
          %4853 = vst [vmem:[%s4812 + $0xa0] sm:$0xf] %v4787
          %4854 = vst [vmem:[%s4812 + $0xa4] sm:$0xf] %v4788
          %4855 = vst [vmem:[%s4812 + $0xa8] sm:$0xf] %v4789
          %4856 = vst [vmem:[%s4812 + $0xac] sm:$0xf] %v4790
          %4857 = vst [vmem:[%s4812 + $0xb0] sm:$0xf] %v4791
          %4858 = vst [vmem:[%s4812 + $0xb4] sm:$0xf] %v4792
          %4859 = vst [vmem:[%s4812 + $0xb8] sm:$0xf] %v4793
          %4860 = vst [vmem:[%s4812 + $0xbc] sm:$0xf] %v4794
          %4861 = vst [vmem:[%s4812 + $0xc0] sm:$0xf] %v4795
          %4862 = vst [vmem:[%s4812 + $0xc4] sm:$0xf] %v4796
          %4863 = vst [vmem:[%s4812 + $0xc8] sm:$0xf] %v4797
          %4864 = vst [vmem:[%s4812 + $0xcc] sm:$0xf] %v4798
          %4865 = vst [vmem:[%s4812 + $0xd0] sm:$0xf] %v4799
          %4866 = vst [vmem:[%s4812 + $0xd4] sm:$0xf] %v4800
          %4867 = vst [vmem:[%s4812 + $0xd8] sm:$0xf] %v4801
          %4868 = vst [vmem:[%s4812 + $0xdc] sm:$0xf] %v4802
          %4869 = vst [vmem:[%s4812 + $0xe0] sm:$0xf] %v4803
          %4870 = vst [vmem:[%s4812 + $0xe4] sm:$0xf] %v4804
          %4871 = vst [vmem:[%s4812 + $0xe8] sm:$0xf] %v4805
          %4872 = vst [vmem:[%s4812 + $0xec] sm:$0xf] %v4806
          %4873 = vst [vmem:[%s4812 + $0xf0] sm:$0xf] %v4807
          %4874 = vst [vmem:[%s4812 + $0xf4] sm:$0xf] %v4808
          %4875 = vst [vmem:[%s4812 + $0xf8] sm:$0xf] %v4809
          %4876 = vst [vmem:[%s4812 + $0xfc] sm:$0xf] %v4810
        $region76: #{tpu_custom_call.1} parent=43 // pred_fallthru
          _
        %p4877 = scmp.eq.s32.totalorder %s30, 2
        // Predicated region
        $region77: #{tpu_custom_call.1} parent=43 // pred_check
          %p4878 = pneg %p4877
        $region78: #{tpu_custom_call.1} parent=43 // pred_check_branch
          %4880 = sbr.rel (%p4878) target = $region80
        $region79: #{tpu_custom_call.1} parent=43 // pred_region
          %s4881 = sshra.s32 %s379, 3
          %s4882 = sand.u32 %s379, 7
          %s4883 = smul.u32 %s4881, 8
          %s4884 = smul.addr %s4883, 4
          %s4885 = scalar_lea.vmem [#allocation7], %s4884
          %v4886 = vld [vmem:[%s4885] sm:$0xff]
          %v4887 = vld [vmem:[%s4885 + $0x8] sm:$0xff]
          %v4888 = vld [vmem:[%s4885 + $0x10] sm:$0xff]
          %v4889 = vld [vmem:[%s4885 + $0x18] sm:$0xff]
          %v4890 = vld [vmem:[%s4885 + $0x20] sm:$0xff]
          %v4891 = vld [vmem:[%s4885 + $0x28] sm:$0xff]
          %v4892 = vld [vmem:[%s4885 + $0x30] sm:$0xff]
          %v4893 = vld [vmem:[%s4885 + $0x38] sm:$0xff]
          %v4894 = vld [vmem:[%s4885 + $0x40] sm:$0xff]
          %v4895 = vld [vmem:[%s4885 + $0x48] sm:$0xff]
          %v4896 = vld [vmem:[%s4885 + $0x50] sm:$0xff]
          %v4897 = vld [vmem:[%s4885 + $0x58] sm:$0xff]
          %v4898 = vld [vmem:[%s4885 + $0x60] sm:$0xff]
          %v4899 = vld [vmem:[%s4885 + $0x68] sm:$0xff]
          %v4900 = vld [vmem:[%s4885 + $0x70] sm:$0xff]
          %v4901 = vld [vmem:[%s4885 + $0x78] sm:$0xff]
          %v4902 = vld [vmem:[%s4885 + $0x80] sm:$0xff]
          %v4903 = vld [vmem:[%s4885 + $0x88] sm:$0xff]
          %v4904 = vld [vmem:[%s4885 + $0x90] sm:$0xff]
          %v4905 = vld [vmem:[%s4885 + $0x98] sm:$0xff]
          %v4906 = vld [vmem:[%s4885 + $0xa0] sm:$0xff]
          %v4907 = vld [vmem:[%s4885 + $0xa8] sm:$0xff]
          %v4908 = vld [vmem:[%s4885 + $0xb0] sm:$0xff]
          %v4909 = vld [vmem:[%s4885 + $0xb8] sm:$0xff]
          %v4910 = vld [vmem:[%s4885 + $0xc0] sm:$0xff]
          %v4911 = vld [vmem:[%s4885 + $0xc8] sm:$0xff]
          %v4912 = vld [vmem:[%s4885 + $0xd0] sm:$0xff]
          %v4913 = vld [vmem:[%s4885 + $0xd8] sm:$0xff]
          %v4914 = vld [vmem:[%s4885 + $0xe0] sm:$0xff]
          %v4915 = vld [vmem:[%s4885 + $0xe8] sm:$0xff]
          %v4916 = vld [vmem:[%s4885 + $0xf0] sm:$0xff]
          %v4917 = vld [vmem:[%s4885 + $0xf8] sm:$0xff]
          %v4918 = vld [vmem:[%s4885 + $0x100] sm:$0xff]
          %v4919 = vld [vmem:[%s4885 + $0x108] sm:$0xff]
          %v4920 = vld [vmem:[%s4885 + $0x110] sm:$0xff]
          %v4921 = vld [vmem:[%s4885 + $0x118] sm:$0xff]
          %v4922 = vld [vmem:[%s4885 + $0x120] sm:$0xff]
          %v4923 = vld [vmem:[%s4885 + $0x128] sm:$0xff]
          %v4924 = vld [vmem:[%s4885 + $0x130] sm:$0xff]
          %v4925 = vld [vmem:[%s4885 + $0x138] sm:$0xff]
          %v4926 = vld [vmem:[%s4885 + $0x140] sm:$0xff]
          %v4927 = vld [vmem:[%s4885 + $0x148] sm:$0xff]
          %v4928 = vld [vmem:[%s4885 + $0x150] sm:$0xff]
          %v4929 = vld [vmem:[%s4885 + $0x158] sm:$0xff]
          %v4930 = vld [vmem:[%s4885 + $0x160] sm:$0xff]
          %v4931 = vld [vmem:[%s4885 + $0x168] sm:$0xff]
          %v4932 = vld [vmem:[%s4885 + $0x170] sm:$0xff]
          %v4933 = vld [vmem:[%s4885 + $0x178] sm:$0xff]
          %v4934 = vld [vmem:[%s4885 + $0x180] sm:$0xff]
          %v4935 = vld [vmem:[%s4885 + $0x188] sm:$0xff]
          %v4936 = vld [vmem:[%s4885 + $0x190] sm:$0xff]
          %v4937 = vld [vmem:[%s4885 + $0x198] sm:$0xff]
          %v4938 = vld [vmem:[%s4885 + $0x1a0] sm:$0xff]
          %v4939 = vld [vmem:[%s4885 + $0x1a8] sm:$0xff]
          %v4940 = vld [vmem:[%s4885 + $0x1b0] sm:$0xff]
          %v4941 = vld [vmem:[%s4885 + $0x1b8] sm:$0xff]
          %v4942 = vld [vmem:[%s4885 + $0x1c0] sm:$0xff]
          %v4943 = vld [vmem:[%s4885 + $0x1c8] sm:$0xff]
          %v4944 = vld [vmem:[%s4885 + $0x1d0] sm:$0xff]
          %v4945 = vld [vmem:[%s4885 + $0x1d8] sm:$0xff]
          %v4946 = vld [vmem:[%s4885 + $0x1e0] sm:$0xff]
          %v4947 = vld [vmem:[%s4885 + $0x1e8] sm:$0xff]
          %v4948 = vld [vmem:[%s4885 + $0x1f0] sm:$0xff]
          %v4949 = vld [vmem:[%s4885 + $0x1f8] sm:$0xff]
          %v4950 = vld [vmem:[%s4885 + $0x200] sm:$0xff]
          %v4951 = vld [vmem:[%s4885 + $0x208] sm:$0xff]
          %v4952 = vld [vmem:[%s4885 + $0x210] sm:$0xff]
          %v4953 = vld [vmem:[%s4885 + $0x218] sm:$0xff]
          %v4954 = vld [vmem:[%s4885 + $0x220] sm:$0xff]
          %v4955 = vld [vmem:[%s4885 + $0x228] sm:$0xff]
          %v4956 = vld [vmem:[%s4885 + $0x230] sm:$0xff]
          %v4957 = vld [vmem:[%s4885 + $0x238] sm:$0xff]
          %v4958 = vld [vmem:[%s4885 + $0x240] sm:$0xff]
          %v4959 = vld [vmem:[%s4885 + $0x248] sm:$0xff]
          %v4960 = vld [vmem:[%s4885 + $0x250] sm:$0xff]
          %v4961 = vld [vmem:[%s4885 + $0x258] sm:$0xff]
          %v4962 = vld [vmem:[%s4885 + $0x260] sm:$0xff]
          %v4963 = vld [vmem:[%s4885 + $0x268] sm:$0xff]
          %v4964 = vld [vmem:[%s4885 + $0x270] sm:$0xff]
          %v4965 = vld [vmem:[%s4885 + $0x278] sm:$0xff]
          %v4966 = vld [vmem:[%s4885 + $0x280] sm:$0xff]
          %v4967 = vld [vmem:[%s4885 + $0x288] sm:$0xff]
          %v4968 = vld [vmem:[%s4885 + $0x290] sm:$0xff]
          %v4969 = vld [vmem:[%s4885 + $0x298] sm:$0xff]
          %v4970 = vld [vmem:[%s4885 + $0x2a0] sm:$0xff]
          %v4971 = vld [vmem:[%s4885 + $0x2a8] sm:$0xff]
          %v4972 = vld [vmem:[%s4885 + $0x2b0] sm:$0xff]
          %v4973 = vld [vmem:[%s4885 + $0x2b8] sm:$0xff]
          %v4974 = vld [vmem:[%s4885 + $0x2c0] sm:$0xff]
          %v4975 = vld [vmem:[%s4885 + $0x2c8] sm:$0xff]
          %v4976 = vld [vmem:[%s4885 + $0x2d0] sm:$0xff]
          %v4977 = vld [vmem:[%s4885 + $0x2d8] sm:$0xff]
          %v4978 = vld [vmem:[%s4885 + $0x2e0] sm:$0xff]
          %v4979 = vld [vmem:[%s4885 + $0x2e8] sm:$0xff]
          %v4980 = vld [vmem:[%s4885 + $0x2f0] sm:$0xff]
          %v4981 = vld [vmem:[%s4885 + $0x2f8] sm:$0xff]
          %v4982 = vld [vmem:[%s4885 + $0x300] sm:$0xff]
          %v4983 = vld [vmem:[%s4885 + $0x308] sm:$0xff]
          %v4984 = vld [vmem:[%s4885 + $0x310] sm:$0xff]
          %v4985 = vld [vmem:[%s4885 + $0x318] sm:$0xff]
          %v4986 = vld [vmem:[%s4885 + $0x320] sm:$0xff]
          %v4987 = vld [vmem:[%s4885 + $0x328] sm:$0xff]
          %v4988 = vld [vmem:[%s4885 + $0x330] sm:$0xff]
          %v4989 = vld [vmem:[%s4885 + $0x338] sm:$0xff]
          %v4990 = vld [vmem:[%s4885 + $0x340] sm:$0xff]
          %v4991 = vld [vmem:[%s4885 + $0x348] sm:$0xff]
          %v4992 = vld [vmem:[%s4885 + $0x350] sm:$0xff]
          %v4993 = vld [vmem:[%s4885 + $0x358] sm:$0xff]
          %v4994 = vld [vmem:[%s4885 + $0x360] sm:$0xff]
          %v4995 = vld [vmem:[%s4885 + $0x368] sm:$0xff]
          %v4996 = vld [vmem:[%s4885 + $0x370] sm:$0xff]
          %v4997 = vld [vmem:[%s4885 + $0x378] sm:$0xff]
          %v4998 = vld [vmem:[%s4885 + $0x380] sm:$0xff]
          %v4999 = vld [vmem:[%s4885 + $0x388] sm:$0xff]
          %v5000 = vld [vmem:[%s4885 + $0x390] sm:$0xff]
          %v5001 = vld [vmem:[%s4885 + $0x398] sm:$0xff]
          %v5002 = vld [vmem:[%s4885 + $0x3a0] sm:$0xff]
          %v5003 = vld [vmem:[%s4885 + $0x3a8] sm:$0xff]
          %v5004 = vld [vmem:[%s4885 + $0x3b0] sm:$0xff]
          %v5005 = vld [vmem:[%s4885 + $0x3b8] sm:$0xff]
          %v5006 = vld [vmem:[%s4885 + $0x3c0] sm:$0xff]
          %v5007 = vld [vmem:[%s4885 + $0x3c8] sm:$0xff]
          %v5008 = vld [vmem:[%s4885 + $0x3d0] sm:$0xff]
          %v5009 = vld [vmem:[%s4885 + $0x3d8] sm:$0xff]
          %v5010 = vld [vmem:[%s4885 + $0x3e0] sm:$0xff]
          %v5011 = vld [vmem:[%s4885 + $0x3e8] sm:$0xff]
          %v5012 = vld [vmem:[%s4885 + $0x3f0] sm:$0xff]
          %v5013 = vld [vmem:[%s4885 + $0x3f8] sm:$0xff]
          %v5014 = vld [vmem:[%s4885 + $0x400] sm:$0xff]
          %v5015 = vld [vmem:[%s4885 + $0x408] sm:$0xff]
          %v5016 = vld [vmem:[%s4885 + $0x410] sm:$0xff]
          %v5017 = vld [vmem:[%s4885 + $0x418] sm:$0xff]
          %v5018 = vld [vmem:[%s4885 + $0x420] sm:$0xff]
          %v5019 = vld [vmem:[%s4885 + $0x428] sm:$0xff]
          %v5020 = vld [vmem:[%s4885 + $0x430] sm:$0xff]
          %v5021 = vld [vmem:[%s4885 + $0x438] sm:$0xff]
          %v5022 = vld [vmem:[%s4885 + $0x440] sm:$0xff]
          %v5023 = vld [vmem:[%s4885 + $0x448] sm:$0xff]
          %v5024 = vld [vmem:[%s4885 + $0x450] sm:$0xff]
          %v5025 = vld [vmem:[%s4885 + $0x458] sm:$0xff]
          %v5026 = vld [vmem:[%s4885 + $0x460] sm:$0xff]
          %v5027 = vld [vmem:[%s4885 + $0x468] sm:$0xff]
          %v5028 = vld [vmem:[%s4885 + $0x470] sm:$0xff]
          %v5029 = vld [vmem:[%s4885 + $0x478] sm:$0xff]
          %v5030 = vld [vmem:[%s4885 + $0x480] sm:$0xff]
          %v5031 = vld [vmem:[%s4885 + $0x488] sm:$0xff]
          %v5032 = vld [vmem:[%s4885 + $0x490] sm:$0xff]
          %v5033 = vld [vmem:[%s4885 + $0x498] sm:$0xff]
          %v5034 = vld [vmem:[%s4885 + $0x4a0] sm:$0xff]
          %v5035 = vld [vmem:[%s4885 + $0x4a8] sm:$0xff]
          %v5036 = vld [vmem:[%s4885 + $0x4b0] sm:$0xff]
          %v5037 = vld [vmem:[%s4885 + $0x4b8] sm:$0xff]
          %v5038 = vld [vmem:[%s4885 + $0x4c0] sm:$0xff]
          %v5039 = vld [vmem:[%s4885 + $0x4c8] sm:$0xff]
          %v5040 = vld [vmem:[%s4885 + $0x4d0] sm:$0xff]
          %v5041 = vld [vmem:[%s4885 + $0x4d8] sm:$0xff]
          %v5042 = vld [vmem:[%s4885 + $0x4e0] sm:$0xff]
          %v5043 = vld [vmem:[%s4885 + $0x4e8] sm:$0xff]
          %v5044 = vld [vmem:[%s4885 + $0x4f0] sm:$0xff]
          %v5045 = vld [vmem:[%s4885 + $0x4f8] sm:$0xff]
          %v5046 = vld [vmem:[%s4885 + $0x500] sm:$0xff]
          %v5047 = vld [vmem:[%s4885 + $0x508] sm:$0xff]
          %v5048 = vld [vmem:[%s4885 + $0x510] sm:$0xff]
          %v5049 = vld [vmem:[%s4885 + $0x518] sm:$0xff]
          %v5050 = vld [vmem:[%s4885 + $0x520] sm:$0xff]
          %v5051 = vld [vmem:[%s4885 + $0x528] sm:$0xff]
          %v5052 = vld [vmem:[%s4885 + $0x530] sm:$0xff]
          %v5053 = vld [vmem:[%s4885 + $0x538] sm:$0xff]
          %v5054 = vld [vmem:[%s4885 + $0x540] sm:$0xff]
          %v5055 = vld [vmem:[%s4885 + $0x548] sm:$0xff]
          %v5056 = vld [vmem:[%s4885 + $0x550] sm:$0xff]
          %v5057 = vld [vmem:[%s4885 + $0x558] sm:$0xff]
          %v5058 = vld [vmem:[%s4885 + $0x560] sm:$0xff]
          %v5059 = vld [vmem:[%s4885 + $0x568] sm:$0xff]
          %v5060 = vld [vmem:[%s4885 + $0x570] sm:$0xff]
          %v5061 = vld [vmem:[%s4885 + $0x578] sm:$0xff]
          %v5062 = vld [vmem:[%s4885 + $0x580] sm:$0xff]
          %v5063 = vld [vmem:[%s4885 + $0x588] sm:$0xff]
          %v5064 = vld [vmem:[%s4885 + $0x590] sm:$0xff]
          %v5065 = vld [vmem:[%s4885 + $0x598] sm:$0xff]
          %v5066 = vld [vmem:[%s4885 + $0x5a0] sm:$0xff]
          %v5067 = vld [vmem:[%s4885 + $0x5a8] sm:$0xff]
          %v5068 = vld [vmem:[%s4885 + $0x5b0] sm:$0xff]
          %v5069 = vld [vmem:[%s4885 + $0x5b8] sm:$0xff]
          %v5070 = vld [vmem:[%s4885 + $0x5c0] sm:$0xff]
          %v5071 = vld [vmem:[%s4885 + $0x5c8] sm:$0xff]
          %v5072 = vld [vmem:[%s4885 + $0x5d0] sm:$0xff]
          %v5073 = vld [vmem:[%s4885 + $0x5d8] sm:$0xff]
          %v5074 = vld [vmem:[%s4885 + $0x5e0] sm:$0xff]
          %v5075 = vld [vmem:[%s4885 + $0x5e8] sm:$0xff]
          %v5076 = vld [vmem:[%s4885 + $0x5f0] sm:$0xff]
          %v5077 = vld [vmem:[%s4885 + $0x5f8] sm:$0xff]
          %v5078 = vld [vmem:[%s4885 + $0x600] sm:$0xff]
          %v5079 = vld [vmem:[%s4885 + $0x608] sm:$0xff]
          %v5080 = vld [vmem:[%s4885 + $0x610] sm:$0xff]
          %v5081 = vld [vmem:[%s4885 + $0x618] sm:$0xff]
          %v5082 = vld [vmem:[%s4885 + $0x620] sm:$0xff]
          %v5083 = vld [vmem:[%s4885 + $0x628] sm:$0xff]
          %v5084 = vld [vmem:[%s4885 + $0x630] sm:$0xff]
          %v5085 = vld [vmem:[%s4885 + $0x638] sm:$0xff]
          %v5086 = vld [vmem:[%s4885 + $0x640] sm:$0xff]
          %v5087 = vld [vmem:[%s4885 + $0x648] sm:$0xff]
          %v5088 = vld [vmem:[%s4885 + $0x650] sm:$0xff]
          %v5089 = vld [vmem:[%s4885 + $0x658] sm:$0xff]
          %v5090 = vld [vmem:[%s4885 + $0x660] sm:$0xff]
          %v5091 = vld [vmem:[%s4885 + $0x668] sm:$0xff]
          %v5092 = vld [vmem:[%s4885 + $0x670] sm:$0xff]
          %v5093 = vld [vmem:[%s4885 + $0x678] sm:$0xff]
          %v5094 = vld [vmem:[%s4885 + $0x680] sm:$0xff]
          %v5095 = vld [vmem:[%s4885 + $0x688] sm:$0xff]
          %v5096 = vld [vmem:[%s4885 + $0x690] sm:$0xff]
          %v5097 = vld [vmem:[%s4885 + $0x698] sm:$0xff]
          %v5098 = vld [vmem:[%s4885 + $0x6a0] sm:$0xff]
          %v5099 = vld [vmem:[%s4885 + $0x6a8] sm:$0xff]
          %v5100 = vld [vmem:[%s4885 + $0x6b0] sm:$0xff]
          %v5101 = vld [vmem:[%s4885 + $0x6b8] sm:$0xff]
          %v5102 = vld [vmem:[%s4885 + $0x6c0] sm:$0xff]
          %v5103 = vld [vmem:[%s4885 + $0x6c8] sm:$0xff]
          %v5104 = vld [vmem:[%s4885 + $0x6d0] sm:$0xff]
          %v5105 = vld [vmem:[%s4885 + $0x6d8] sm:$0xff]
          %v5106 = vld [vmem:[%s4885 + $0x6e0] sm:$0xff]
          %v5107 = vld [vmem:[%s4885 + $0x6e8] sm:$0xff]
          %v5108 = vld [vmem:[%s4885 + $0x6f0] sm:$0xff]
          %v5109 = vld [vmem:[%s4885 + $0x6f8] sm:$0xff]
          %v5110 = vld [vmem:[%s4885 + $0x700] sm:$0xff]
          %v5111 = vld [vmem:[%s4885 + $0x708] sm:$0xff]
          %v5112 = vld [vmem:[%s4885 + $0x710] sm:$0xff]
          %v5113 = vld [vmem:[%s4885 + $0x718] sm:$0xff]
          %v5114 = vld [vmem:[%s4885 + $0x720] sm:$0xff]
          %v5115 = vld [vmem:[%s4885 + $0x728] sm:$0xff]
          %v5116 = vld [vmem:[%s4885 + $0x730] sm:$0xff]
          %v5117 = vld [vmem:[%s4885 + $0x738] sm:$0xff]
          %v5118 = vld [vmem:[%s4885 + $0x740] sm:$0xff]
          %v5119 = vld [vmem:[%s4885 + $0x748] sm:$0xff]
          %v5120 = vld [vmem:[%s4885 + $0x750] sm:$0xff]
          %v5121 = vld [vmem:[%s4885 + $0x758] sm:$0xff]
          %v5122 = vld [vmem:[%s4885 + $0x760] sm:$0xff]
          %v5123 = vld [vmem:[%s4885 + $0x768] sm:$0xff]
          %v5124 = vld [vmem:[%s4885 + $0x770] sm:$0xff]
          %v5125 = vld [vmem:[%s4885 + $0x778] sm:$0xff]
          %v5126 = vld [vmem:[%s4885 + $0x780] sm:$0xff]
          %v5127 = vld [vmem:[%s4885 + $0x788] sm:$0xff]
          %v5128 = vld [vmem:[%s4885 + $0x790] sm:$0xff]
          %v5129 = vld [vmem:[%s4885 + $0x798] sm:$0xff]
          %v5130 = vld [vmem:[%s4885 + $0x7a0] sm:$0xff]
          %v5131 = vld [vmem:[%s4885 + $0x7a8] sm:$0xff]
          %v5132 = vld [vmem:[%s4885 + $0x7b0] sm:$0xff]
          %v5133 = vld [vmem:[%s4885 + $0x7b8] sm:$0xff]
          %v5134 = vld [vmem:[%s4885 + $0x7c0] sm:$0xff]
          %v5135 = vld [vmem:[%s4885 + $0x7c8] sm:$0xff]
          %v5136 = vld [vmem:[%s4885 + $0x7d0] sm:$0xff]
          %v5137 = vld [vmem:[%s4885 + $0x7d8] sm:$0xff]
          %v5138 = vld [vmem:[%s4885 + $0x7e0] sm:$0xff]
          %v5139 = vld [vmem:[%s4885 + $0x7e8] sm:$0xff]
          %v5140 = vld [vmem:[%s4885 + $0x7f0] sm:$0xff]
          %v5141 = vld [vmem:[%s4885 + $0x7f8] sm:$0xff]
          %v5142 = vld [vmem:[#allocation3] sm:$0xf]
          %v5143 = vld [vmem:[#allocation3 + $0x4] sm:$0xf]
          %v5144 = vld [vmem:[#allocation3 + $0x8] sm:$0xf]
          %v5145 = vld [vmem:[#allocation3 + $0xc] sm:$0xf]
          %v5146 = vld [vmem:[#allocation3 + $0x10] sm:$0xf]
          %v5147 = vld [vmem:[#allocation3 + $0x14] sm:$0xf]
          %v5148 = vld [vmem:[#allocation3 + $0x18] sm:$0xf]
          %v5149 = vld [vmem:[#allocation3 + $0x1c] sm:$0xf]
          %v5150 = vld [vmem:[#allocation3 + $0x20] sm:$0xf]
          %v5151 = vld [vmem:[#allocation3 + $0x24] sm:$0xf]
          %v5152 = vld [vmem:[#allocation3 + $0x28] sm:$0xf]
          %v5153 = vld [vmem:[#allocation3 + $0x2c] sm:$0xf]
          %v5154 = vld [vmem:[#allocation3 + $0x30] sm:$0xf]
          %v5155 = vld [vmem:[#allocation3 + $0x34] sm:$0xf]
          %v5156 = vld [vmem:[#allocation3 + $0x38] sm:$0xf]
          %v5157 = vld [vmem:[#allocation3 + $0x3c] sm:$0xf]
          %v5158 = vld [vmem:[#allocation3 + $0x40] sm:$0xf]
          %v5159 = vld [vmem:[#allocation3 + $0x44] sm:$0xf]
          %v5160 = vld [vmem:[#allocation3 + $0x48] sm:$0xf]
          %v5161 = vld [vmem:[#allocation3 + $0x4c] sm:$0xf]
          %v5162 = vld [vmem:[#allocation3 + $0x50] sm:$0xf]
          %v5163 = vld [vmem:[#allocation3 + $0x54] sm:$0xf]
          %v5164 = vld [vmem:[#allocation3 + $0x58] sm:$0xf]
          %v5165 = vld [vmem:[#allocation3 + $0x5c] sm:$0xf]
          %v5166 = vld [vmem:[#allocation3 + $0x60] sm:$0xf]
          %v5167 = vld [vmem:[#allocation3 + $0x64] sm:$0xf]
          %v5168 = vld [vmem:[#allocation3 + $0x68] sm:$0xf]
          %v5169 = vld [vmem:[#allocation3 + $0x6c] sm:$0xf]
          %v5170 = vld [vmem:[#allocation3 + $0x70] sm:$0xf]
          %v5171 = vld [vmem:[#allocation3 + $0x74] sm:$0xf]
          %v5172 = vld [vmem:[#allocation3 + $0x78] sm:$0xf]
          %v5173 = vld [vmem:[#allocation3 + $0x7c] sm:$0xf]
          %v5174 = vld [vmem:[#allocation3 + $0x80] sm:$0xf]
          %v5175 = vld [vmem:[#allocation3 + $0x84] sm:$0xf]
          %v5176 = vld [vmem:[#allocation3 + $0x88] sm:$0xf]
          %v5177 = vld [vmem:[#allocation3 + $0x8c] sm:$0xf]
          %v5178 = vld [vmem:[#allocation3 + $0x90] sm:$0xf]
          %v5179 = vld [vmem:[#allocation3 + $0x94] sm:$0xf]
          %v5180 = vld [vmem:[#allocation3 + $0x98] sm:$0xf]
          %v5181 = vld [vmem:[#allocation3 + $0x9c] sm:$0xf]
          %v5182 = vld [vmem:[#allocation3 + $0xa0] sm:$0xf]
          %v5183 = vld [vmem:[#allocation3 + $0xa4] sm:$0xf]
          %v5184 = vld [vmem:[#allocation3 + $0xa8] sm:$0xf]
          %v5185 = vld [vmem:[#allocation3 + $0xac] sm:$0xf]
          %v5186 = vld [vmem:[#allocation3 + $0xb0] sm:$0xf]
          %v5187 = vld [vmem:[#allocation3 + $0xb4] sm:$0xf]
          %v5188 = vld [vmem:[#allocation3 + $0xb8] sm:$0xf]
          %v5189 = vld [vmem:[#allocation3 + $0xbc] sm:$0xf]
          %v5190 = vld [vmem:[#allocation3 + $0xc0] sm:$0xf]
          %v5191 = vld [vmem:[#allocation3 + $0xc4] sm:$0xf]
          %v5192 = vld [vmem:[#allocation3 + $0xc8] sm:$0xf]
          %v5193 = vld [vmem:[#allocation3 + $0xcc] sm:$0xf]
          %v5194 = vld [vmem:[#allocation3 + $0xd0] sm:$0xf]
          %v5195 = vld [vmem:[#allocation3 + $0xd4] sm:$0xf]
          %v5196 = vld [vmem:[#allocation3 + $0xd8] sm:$0xf]
          %v5197 = vld [vmem:[#allocation3 + $0xdc] sm:$0xf]
          %v5198 = vld [vmem:[#allocation3 + $0xe0] sm:$0xf]
          %v5199 = vld [vmem:[#allocation3 + $0xe4] sm:$0xf]
          %v5200 = vld [vmem:[#allocation3 + $0xe8] sm:$0xf]
          %v5201 = vld [vmem:[#allocation3 + $0xec] sm:$0xf]
          %v5202 = vld [vmem:[#allocation3 + $0xf0] sm:$0xf]
          %v5203 = vld [vmem:[#allocation3 + $0xf4] sm:$0xf]
          %v5204 = vld [vmem:[#allocation3 + $0xf8] sm:$0xf]
          %v5205 = vld [vmem:[#allocation3 + $0xfc] sm:$0xf]
          %v5206 = vld [vmem:[#allocation3 + $0x100] sm:$0xf]
          %v5207 = vld [vmem:[#allocation3 + $0x104] sm:$0xf]
          %v5208 = vld [vmem:[#allocation3 + $0x108] sm:$0xf]
          %v5209 = vld [vmem:[#allocation3 + $0x10c] sm:$0xf]
          %v5210 = vld [vmem:[#allocation3 + $0x110] sm:$0xf]
          %v5211 = vld [vmem:[#allocation3 + $0x114] sm:$0xf]
          %v5212 = vld [vmem:[#allocation3 + $0x118] sm:$0xf]
          %v5213 = vld [vmem:[#allocation3 + $0x11c] sm:$0xf]
          %v5214 = vld [vmem:[#allocation3 + $0x120] sm:$0xf]
          %v5215 = vld [vmem:[#allocation3 + $0x124] sm:$0xf]
          %v5216 = vld [vmem:[#allocation3 + $0x128] sm:$0xf]
          %v5217 = vld [vmem:[#allocation3 + $0x12c] sm:$0xf]
          %v5218 = vld [vmem:[#allocation3 + $0x130] sm:$0xf]
          %v5219 = vld [vmem:[#allocation3 + $0x134] sm:$0xf]
          %v5220 = vld [vmem:[#allocation3 + $0x138] sm:$0xf]
          %v5221 = vld [vmem:[#allocation3 + $0x13c] sm:$0xf]
          %v5222 = vld [vmem:[#allocation3 + $0x140] sm:$0xf]
          %v5223 = vld [vmem:[#allocation3 + $0x144] sm:$0xf]
          %v5224 = vld [vmem:[#allocation3 + $0x148] sm:$0xf]
          %v5225 = vld [vmem:[#allocation3 + $0x14c] sm:$0xf]
          %v5226 = vld [vmem:[#allocation3 + $0x150] sm:$0xf]
          %v5227 = vld [vmem:[#allocation3 + $0x154] sm:$0xf]
          %v5228 = vld [vmem:[#allocation3 + $0x158] sm:$0xf]
          %v5229 = vld [vmem:[#allocation3 + $0x15c] sm:$0xf]
          %v5230 = vld [vmem:[#allocation3 + $0x160] sm:$0xf]
          %v5231 = vld [vmem:[#allocation3 + $0x164] sm:$0xf]
          %v5232 = vld [vmem:[#allocation3 + $0x168] sm:$0xf]
          %v5233 = vld [vmem:[#allocation3 + $0x16c] sm:$0xf]
          %v5234 = vld [vmem:[#allocation3 + $0x170] sm:$0xf]
          %v5235 = vld [vmem:[#allocation3 + $0x174] sm:$0xf]
          %v5236 = vld [vmem:[#allocation3 + $0x178] sm:$0xf]
          %v5237 = vld [vmem:[#allocation3 + $0x17c] sm:$0xf]
          %v5238 = vld [vmem:[#allocation3 + $0x180] sm:$0xf]
          %v5239 = vld [vmem:[#allocation3 + $0x184] sm:$0xf]
          %v5240 = vld [vmem:[#allocation3 + $0x188] sm:$0xf]
          %v5241 = vld [vmem:[#allocation3 + $0x18c] sm:$0xf]
          %v5242 = vld [vmem:[#allocation3 + $0x190] sm:$0xf]
          %v5243 = vld [vmem:[#allocation3 + $0x194] sm:$0xf]
          %v5244 = vld [vmem:[#allocation3 + $0x198] sm:$0xf]
          %v5245 = vld [vmem:[#allocation3 + $0x19c] sm:$0xf]
          %v5246 = vld [vmem:[#allocation3 + $0x1a0] sm:$0xf]
          %v5247 = vld [vmem:[#allocation3 + $0x1a4] sm:$0xf]
          %v5248 = vld [vmem:[#allocation3 + $0x1a8] sm:$0xf]
          %v5249 = vld [vmem:[#allocation3 + $0x1ac] sm:$0xf]
          %v5250 = vld [vmem:[#allocation3 + $0x1b0] sm:$0xf]
          %v5251 = vld [vmem:[#allocation3 + $0x1b4] sm:$0xf]
          %v5252 = vld [vmem:[#allocation3 + $0x1b8] sm:$0xf]
          %v5253 = vld [vmem:[#allocation3 + $0x1bc] sm:$0xf]
          %v5254 = vld [vmem:[#allocation3 + $0x1c0] sm:$0xf]
          %v5255 = vld [vmem:[#allocation3 + $0x1c4] sm:$0xf]
          %v5256 = vld [vmem:[#allocation3 + $0x1c8] sm:$0xf]
          %v5257 = vld [vmem:[#allocation3 + $0x1cc] sm:$0xf]
          %v5258 = vld [vmem:[#allocation3 + $0x1d0] sm:$0xf]
          %v5259 = vld [vmem:[#allocation3 + $0x1d4] sm:$0xf]
          %v5260 = vld [vmem:[#allocation3 + $0x1d8] sm:$0xf]
          %v5261 = vld [vmem:[#allocation3 + $0x1dc] sm:$0xf]
          %v5262 = vld [vmem:[#allocation3 + $0x1e0] sm:$0xf]
          %v5263 = vld [vmem:[#allocation3 + $0x1e4] sm:$0xf]
          %v5264 = vld [vmem:[#allocation3 + $0x1e8] sm:$0xf]
          %v5265 = vld [vmem:[#allocation3 + $0x1ec] sm:$0xf]
          %v5266 = vld [vmem:[#allocation3 + $0x1f0] sm:$0xf]
          %v5267 = vld [vmem:[#allocation3 + $0x1f4] sm:$0xf]
          %v5268 = vld [vmem:[#allocation3 + $0x1f8] sm:$0xf]
          %v5269 = vld [vmem:[#allocation3 + $0x1fc] sm:$0xf]
          %v5270 = vld [vmem:[#allocation13] sm:$0x1]
          %v5272 = vperm.slane %v5270, 0
          %v5530 = vunpack.c.l.b16 %v4886
          %v5531 = vunpack.c.h.b16 %v4886
          %v5532 = vunpack.c.l.b16 %v4887
          %v5533 = vunpack.c.h.b16 %v4887
          %v5534 = vunpack.c.l.b16 %v4888
          %v5535 = vunpack.c.h.b16 %v4888
          %v5536 = vunpack.c.l.b16 %v4889
          %v5537 = vunpack.c.h.b16 %v4889
          %v5538 = vunpack.c.l.b16 %v4890
          %v5539 = vunpack.c.h.b16 %v4890
          %v5540 = vunpack.c.l.b16 %v4891
          %v5541 = vunpack.c.h.b16 %v4891
          %v5542 = vunpack.c.l.b16 %v4892
          %v5543 = vunpack.c.h.b16 %v4892
          %v5544 = vunpack.c.l.b16 %v4893
          %v5545 = vunpack.c.h.b16 %v4893
          %v5546 = vunpack.c.l.b16 %v4894
          %v5547 = vunpack.c.h.b16 %v4894
          %v5548 = vunpack.c.l.b16 %v4895
          %v5549 = vunpack.c.h.b16 %v4895
          %v5550 = vunpack.c.l.b16 %v4896
          %v5551 = vunpack.c.h.b16 %v4896
          %v5552 = vunpack.c.l.b16 %v4897
          %v5553 = vunpack.c.h.b16 %v4897
          %v5554 = vunpack.c.l.b16 %v4898
          %v5555 = vunpack.c.h.b16 %v4898
          %v5556 = vunpack.c.l.b16 %v4899
          %v5557 = vunpack.c.h.b16 %v4899
          %v5558 = vunpack.c.l.b16 %v4900
          %v5559 = vunpack.c.h.b16 %v4900
          %v5560 = vunpack.c.l.b16 %v4901
          %v5561 = vunpack.c.h.b16 %v4901
          %v5562 = vunpack.c.l.b16 %v4902
          %v5563 = vunpack.c.h.b16 %v4902
          %v5564 = vunpack.c.l.b16 %v4903
          %v5565 = vunpack.c.h.b16 %v4903
          %v5566 = vunpack.c.l.b16 %v4904
          %v5567 = vunpack.c.h.b16 %v4904
          %v5568 = vunpack.c.l.b16 %v4905
          %v5569 = vunpack.c.h.b16 %v4905
          %v5570 = vunpack.c.l.b16 %v4906
          %v5571 = vunpack.c.h.b16 %v4906
          %v5572 = vunpack.c.l.b16 %v4907
          %v5573 = vunpack.c.h.b16 %v4907
          %v5574 = vunpack.c.l.b16 %v4908
          %v5575 = vunpack.c.h.b16 %v4908
          %v5576 = vunpack.c.l.b16 %v4909
          %v5577 = vunpack.c.h.b16 %v4909
          %v5578 = vunpack.c.l.b16 %v4910
          %v5579 = vunpack.c.h.b16 %v4910
          %v5580 = vunpack.c.l.b16 %v4911
          %v5581 = vunpack.c.h.b16 %v4911
          %v5582 = vunpack.c.l.b16 %v4912
          %v5583 = vunpack.c.h.b16 %v4912
          %v5584 = vunpack.c.l.b16 %v4913
          %v5585 = vunpack.c.h.b16 %v4913
          %v5586 = vunpack.c.l.b16 %v4914
          %v5587 = vunpack.c.h.b16 %v4914
          %v5588 = vunpack.c.l.b16 %v4915
          %v5589 = vunpack.c.h.b16 %v4915
          %v5590 = vunpack.c.l.b16 %v4916
          %v5591 = vunpack.c.h.b16 %v4916
          %v5592 = vunpack.c.l.b16 %v4917
          %v5593 = vunpack.c.h.b16 %v4917
          %v5594 = vunpack.c.l.b16 %v4918
          %v5595 = vunpack.c.h.b16 %v4918
          %v5596 = vunpack.c.l.b16 %v4919
          %v5597 = vunpack.c.h.b16 %v4919
          %v5598 = vunpack.c.l.b16 %v4920
          %v5599 = vunpack.c.h.b16 %v4920
          %v5600 = vunpack.c.l.b16 %v4921
          %v5601 = vunpack.c.h.b16 %v4921
          %v5602 = vunpack.c.l.b16 %v4922
          %v5603 = vunpack.c.h.b16 %v4922
          %v5604 = vunpack.c.l.b16 %v4923
          %v5605 = vunpack.c.h.b16 %v4923
          %v5606 = vunpack.c.l.b16 %v4924
          %v5607 = vunpack.c.h.b16 %v4924
          %v5608 = vunpack.c.l.b16 %v4925
          %v5609 = vunpack.c.h.b16 %v4925
          %v5610 = vunpack.c.l.b16 %v4926
          %v5611 = vunpack.c.h.b16 %v4926
          %v5612 = vunpack.c.l.b16 %v4927
          %v5613 = vunpack.c.h.b16 %v4927
          %v5614 = vunpack.c.l.b16 %v4928
          %v5615 = vunpack.c.h.b16 %v4928
          %v5616 = vunpack.c.l.b16 %v4929
          %v5617 = vunpack.c.h.b16 %v4929
          %v5618 = vunpack.c.l.b16 %v4930
          %v5619 = vunpack.c.h.b16 %v4930
          %v5620 = vunpack.c.l.b16 %v4931
          %v5621 = vunpack.c.h.b16 %v4931
          %v5622 = vunpack.c.l.b16 %v4932
          %v5623 = vunpack.c.h.b16 %v4932
          %v5624 = vunpack.c.l.b16 %v4933
          %v5625 = vunpack.c.h.b16 %v4933
          %v5626 = vunpack.c.l.b16 %v4934
          %v5627 = vunpack.c.h.b16 %v4934
          %v5628 = vunpack.c.l.b16 %v4935
          %v5629 = vunpack.c.h.b16 %v4935
          %v5630 = vunpack.c.l.b16 %v4936
          %v5631 = vunpack.c.h.b16 %v4936
          %v5632 = vunpack.c.l.b16 %v4937
          %v5633 = vunpack.c.h.b16 %v4937
          %v5634 = vunpack.c.l.b16 %v4938
          %v5635 = vunpack.c.h.b16 %v4938
          %v5636 = vunpack.c.l.b16 %v4939
          %v5637 = vunpack.c.h.b16 %v4939
          %v5638 = vunpack.c.l.b16 %v4940
          %v5639 = vunpack.c.h.b16 %v4940
          %v5640 = vunpack.c.l.b16 %v4941
          %v5641 = vunpack.c.h.b16 %v4941
          %v5642 = vunpack.c.l.b16 %v4942
          %v5643 = vunpack.c.h.b16 %v4942
          %v5644 = vunpack.c.l.b16 %v4943
          %v5645 = vunpack.c.h.b16 %v4943
          %v5646 = vunpack.c.l.b16 %v4944
          %v5647 = vunpack.c.h.b16 %v4944
          %v5648 = vunpack.c.l.b16 %v4945
          %v5649 = vunpack.c.h.b16 %v4945
          %v5650 = vunpack.c.l.b16 %v4946
          %v5651 = vunpack.c.h.b16 %v4946
          %v5652 = vunpack.c.l.b16 %v4947
          %v5653 = vunpack.c.h.b16 %v4947
          %v5654 = vunpack.c.l.b16 %v4948
          %v5655 = vunpack.c.h.b16 %v4948
          %v5656 = vunpack.c.l.b16 %v4949
          %v5657 = vunpack.c.h.b16 %v4949
          %v5658 = vunpack.c.l.b16 %v4950
          %v5659 = vunpack.c.h.b16 %v4950
          %v5660 = vunpack.c.l.b16 %v4951
          %v5661 = vunpack.c.h.b16 %v4951
          %v5662 = vunpack.c.l.b16 %v4952
          %v5663 = vunpack.c.h.b16 %v4952
          %v5664 = vunpack.c.l.b16 %v4953
          %v5665 = vunpack.c.h.b16 %v4953
          %v5666 = vunpack.c.l.b16 %v4954
          %v5667 = vunpack.c.h.b16 %v4954
          %v5668 = vunpack.c.l.b16 %v4955
          %v5669 = vunpack.c.h.b16 %v4955
          %v5670 = vunpack.c.l.b16 %v4956
          %v5671 = vunpack.c.h.b16 %v4956
          %v5672 = vunpack.c.l.b16 %v4957
          %v5673 = vunpack.c.h.b16 %v4957
          %v5674 = vunpack.c.l.b16 %v4958
          %v5675 = vunpack.c.h.b16 %v4958
          %v5676 = vunpack.c.l.b16 %v4959
          %v5677 = vunpack.c.h.b16 %v4959
          %v5678 = vunpack.c.l.b16 %v4960
          %v5679 = vunpack.c.h.b16 %v4960
          %v5680 = vunpack.c.l.b16 %v4961
          %v5681 = vunpack.c.h.b16 %v4961
          %v5682 = vunpack.c.l.b16 %v4962
          %v5683 = vunpack.c.h.b16 %v4962
          %v5684 = vunpack.c.l.b16 %v4963
          %v5685 = vunpack.c.h.b16 %v4963
          %v5686 = vunpack.c.l.b16 %v4964
          %v5687 = vunpack.c.h.b16 %v4964
          %v5688 = vunpack.c.l.b16 %v4965
          %v5689 = vunpack.c.h.b16 %v4965
          %v5690 = vunpack.c.l.b16 %v4966
          %v5691 = vunpack.c.h.b16 %v4966
          %v5692 = vunpack.c.l.b16 %v4967
          %v5693 = vunpack.c.h.b16 %v4967
          %v5694 = vunpack.c.l.b16 %v4968
          %v5695 = vunpack.c.h.b16 %v4968
          %v5696 = vunpack.c.l.b16 %v4969
          %v5697 = vunpack.c.h.b16 %v4969
          %v5698 = vunpack.c.l.b16 %v4970
          %v5699 = vunpack.c.h.b16 %v4970
          %v5700 = vunpack.c.l.b16 %v4971
          %v5701 = vunpack.c.h.b16 %v4971
          %v5702 = vunpack.c.l.b16 %v4972
          %v5703 = vunpack.c.h.b16 %v4972
          %v5704 = vunpack.c.l.b16 %v4973
          %v5705 = vunpack.c.h.b16 %v4973
          %v5706 = vunpack.c.l.b16 %v4974
          %v5707 = vunpack.c.h.b16 %v4974
          %v5708 = vunpack.c.l.b16 %v4975
          %v5709 = vunpack.c.h.b16 %v4975
          %v5710 = vunpack.c.l.b16 %v4976
          %v5711 = vunpack.c.h.b16 %v4976
          %v5712 = vunpack.c.l.b16 %v4977
          %v5713 = vunpack.c.h.b16 %v4977
          %v5714 = vunpack.c.l.b16 %v4978
          %v5715 = vunpack.c.h.b16 %v4978
          %v5716 = vunpack.c.l.b16 %v4979
          %v5717 = vunpack.c.h.b16 %v4979
          %v5718 = vunpack.c.l.b16 %v4980
          %v5719 = vunpack.c.h.b16 %v4980
          %v5720 = vunpack.c.l.b16 %v4981
          %v5721 = vunpack.c.h.b16 %v4981
          %v5722 = vunpack.c.l.b16 %v4982
          %v5723 = vunpack.c.h.b16 %v4982
          %v5724 = vunpack.c.l.b16 %v4983
          %v5725 = vunpack.c.h.b16 %v4983
          %v5726 = vunpack.c.l.b16 %v4984
          %v5727 = vunpack.c.h.b16 %v4984
          %v5728 = vunpack.c.l.b16 %v4985
          %v5729 = vunpack.c.h.b16 %v4985
          %v5730 = vunpack.c.l.b16 %v4986
          %v5731 = vunpack.c.h.b16 %v4986
          %v5732 = vunpack.c.l.b16 %v4987
          %v5733 = vunpack.c.h.b16 %v4987
          %v5734 = vunpack.c.l.b16 %v4988
          %v5735 = vunpack.c.h.b16 %v4988
          %v5736 = vunpack.c.l.b16 %v4989
          %v5737 = vunpack.c.h.b16 %v4989
          %v5738 = vunpack.c.l.b16 %v4990
          %v5739 = vunpack.c.h.b16 %v4990
          %v5740 = vunpack.c.l.b16 %v4991
          %v5741 = vunpack.c.h.b16 %v4991
          %v5742 = vunpack.c.l.b16 %v4992
          %v5743 = vunpack.c.h.b16 %v4992
          %v5744 = vunpack.c.l.b16 %v4993
          %v5745 = vunpack.c.h.b16 %v4993
          %v5746 = vunpack.c.l.b16 %v4994
          %v5747 = vunpack.c.h.b16 %v4994
          %v5748 = vunpack.c.l.b16 %v4995
          %v5749 = vunpack.c.h.b16 %v4995
          %v5750 = vunpack.c.l.b16 %v4996
          %v5751 = vunpack.c.h.b16 %v4996
          %v5752 = vunpack.c.l.b16 %v4997
          %v5753 = vunpack.c.h.b16 %v4997
          %v5754 = vunpack.c.l.b16 %v4998
          %v5755 = vunpack.c.h.b16 %v4998
          %v5756 = vunpack.c.l.b16 %v4999
          %v5757 = vunpack.c.h.b16 %v4999
          %v5758 = vunpack.c.l.b16 %v5000
          %v5759 = vunpack.c.h.b16 %v5000
          %v5760 = vunpack.c.l.b16 %v5001
          %v5761 = vunpack.c.h.b16 %v5001
          %v5762 = vunpack.c.l.b16 %v5002
          %v5763 = vunpack.c.h.b16 %v5002
          %v5764 = vunpack.c.l.b16 %v5003
          %v5765 = vunpack.c.h.b16 %v5003
          %v5766 = vunpack.c.l.b16 %v5004
          %v5767 = vunpack.c.h.b16 %v5004
          %v5768 = vunpack.c.l.b16 %v5005
          %v5769 = vunpack.c.h.b16 %v5005
          %v5770 = vunpack.c.l.b16 %v5006
          %v5771 = vunpack.c.h.b16 %v5006
          %v5772 = vunpack.c.l.b16 %v5007
          %v5773 = vunpack.c.h.b16 %v5007
          %v5774 = vunpack.c.l.b16 %v5008
          %v5775 = vunpack.c.h.b16 %v5008
          %v5776 = vunpack.c.l.b16 %v5009
          %v5777 = vunpack.c.h.b16 %v5009
          %v5778 = vunpack.c.l.b16 %v5010
          %v5779 = vunpack.c.h.b16 %v5010
          %v5780 = vunpack.c.l.b16 %v5011
          %v5781 = vunpack.c.h.b16 %v5011
          %v5782 = vunpack.c.l.b16 %v5012
          %v5783 = vunpack.c.h.b16 %v5012
          %v5784 = vunpack.c.l.b16 %v5013
          %v5785 = vunpack.c.h.b16 %v5013
          %v5786 = vunpack.c.l.b16 %v5014
          %v5787 = vunpack.c.h.b16 %v5014
          %v5788 = vunpack.c.l.b16 %v5015
          %v5789 = vunpack.c.h.b16 %v5015
          %v5790 = vunpack.c.l.b16 %v5016
          %v5791 = vunpack.c.h.b16 %v5016
          %v5792 = vunpack.c.l.b16 %v5017
          %v5793 = vunpack.c.h.b16 %v5017
          %v5794 = vunpack.c.l.b16 %v5018
          %v5795 = vunpack.c.h.b16 %v5018
          %v5796 = vunpack.c.l.b16 %v5019
          %v5797 = vunpack.c.h.b16 %v5019
          %v5798 = vunpack.c.l.b16 %v5020
          %v5799 = vunpack.c.h.b16 %v5020
          %v5800 = vunpack.c.l.b16 %v5021
          %v5801 = vunpack.c.h.b16 %v5021
          %v5802 = vunpack.c.l.b16 %v5022
          %v5803 = vunpack.c.h.b16 %v5022
          %v5804 = vunpack.c.l.b16 %v5023
          %v5805 = vunpack.c.h.b16 %v5023
          %v5806 = vunpack.c.l.b16 %v5024
          %v5807 = vunpack.c.h.b16 %v5024
          %v5808 = vunpack.c.l.b16 %v5025
          %v5809 = vunpack.c.h.b16 %v5025
          %v5810 = vunpack.c.l.b16 %v5026
          %v5811 = vunpack.c.h.b16 %v5026
          %v5812 = vunpack.c.l.b16 %v5027
          %v5813 = vunpack.c.h.b16 %v5027
          %v5814 = vunpack.c.l.b16 %v5028
          %v5815 = vunpack.c.h.b16 %v5028
          %v5816 = vunpack.c.l.b16 %v5029
          %v5817 = vunpack.c.h.b16 %v5029
          %v5818 = vunpack.c.l.b16 %v5030
          %v5819 = vunpack.c.h.b16 %v5030
          %v5820 = vunpack.c.l.b16 %v5031
          %v5821 = vunpack.c.h.b16 %v5031
          %v5822 = vunpack.c.l.b16 %v5032
          %v5823 = vunpack.c.h.b16 %v5032
          %v5824 = vunpack.c.l.b16 %v5033
          %v5825 = vunpack.c.h.b16 %v5033
          %v5826 = vunpack.c.l.b16 %v5034
          %v5827 = vunpack.c.h.b16 %v5034
          %v5828 = vunpack.c.l.b16 %v5035
          %v5829 = vunpack.c.h.b16 %v5035
          %v5830 = vunpack.c.l.b16 %v5036
          %v5831 = vunpack.c.h.b16 %v5036
          %v5832 = vunpack.c.l.b16 %v5037
          %v5833 = vunpack.c.h.b16 %v5037
          %v5834 = vunpack.c.l.b16 %v5038
          %v5835 = vunpack.c.h.b16 %v5038
          %v5836 = vunpack.c.l.b16 %v5039
          %v5837 = vunpack.c.h.b16 %v5039
          %v5838 = vunpack.c.l.b16 %v5040
          %v5839 = vunpack.c.h.b16 %v5040
          %v5840 = vunpack.c.l.b16 %v5041
          %v5841 = vunpack.c.h.b16 %v5041
          %v5842 = vunpack.c.l.b16 %v5042
          %v5843 = vunpack.c.h.b16 %v5042
          %v5844 = vunpack.c.l.b16 %v5043
          %v5845 = vunpack.c.h.b16 %v5043
          %v5846 = vunpack.c.l.b16 %v5044
          %v5847 = vunpack.c.h.b16 %v5044
          %v5848 = vunpack.c.l.b16 %v5045
          %v5849 = vunpack.c.h.b16 %v5045
          %v5850 = vunpack.c.l.b16 %v5046
          %v5851 = vunpack.c.h.b16 %v5046
          %v5852 = vunpack.c.l.b16 %v5047
          %v5853 = vunpack.c.h.b16 %v5047
          %v5854 = vunpack.c.l.b16 %v5048
          %v5855 = vunpack.c.h.b16 %v5048
          %v5856 = vunpack.c.l.b16 %v5049
          %v5857 = vunpack.c.h.b16 %v5049
          %v5858 = vunpack.c.l.b16 %v5050
          %v5859 = vunpack.c.h.b16 %v5050
          %v5860 = vunpack.c.l.b16 %v5051
          %v5861 = vunpack.c.h.b16 %v5051
          %v5862 = vunpack.c.l.b16 %v5052
          %v5863 = vunpack.c.h.b16 %v5052
          %v5864 = vunpack.c.l.b16 %v5053
          %v5865 = vunpack.c.h.b16 %v5053
          %v5866 = vunpack.c.l.b16 %v5054
          %v5867 = vunpack.c.h.b16 %v5054
          %v5868 = vunpack.c.l.b16 %v5055
          %v5869 = vunpack.c.h.b16 %v5055
          %v5870 = vunpack.c.l.b16 %v5056
          %v5871 = vunpack.c.h.b16 %v5056
          %v5872 = vunpack.c.l.b16 %v5057
          %v5873 = vunpack.c.h.b16 %v5057
          %v5874 = vunpack.c.l.b16 %v5058
          %v5875 = vunpack.c.h.b16 %v5058
          %v5876 = vunpack.c.l.b16 %v5059
          %v5877 = vunpack.c.h.b16 %v5059
          %v5878 = vunpack.c.l.b16 %v5060
          %v5879 = vunpack.c.h.b16 %v5060
          %v5880 = vunpack.c.l.b16 %v5061
          %v5881 = vunpack.c.h.b16 %v5061
          %v5882 = vunpack.c.l.b16 %v5062
          %v5883 = vunpack.c.h.b16 %v5062
          %v5884 = vunpack.c.l.b16 %v5063
          %v5885 = vunpack.c.h.b16 %v5063
          %v5886 = vunpack.c.l.b16 %v5064
          %v5887 = vunpack.c.h.b16 %v5064
          %v5888 = vunpack.c.l.b16 %v5065
          %v5889 = vunpack.c.h.b16 %v5065
          %v5890 = vunpack.c.l.b16 %v5066
          %v5891 = vunpack.c.h.b16 %v5066
          %v5892 = vunpack.c.l.b16 %v5067
          %v5893 = vunpack.c.h.b16 %v5067
          %v5894 = vunpack.c.l.b16 %v5068
          %v5895 = vunpack.c.h.b16 %v5068
          %v5896 = vunpack.c.l.b16 %v5069
          %v5897 = vunpack.c.h.b16 %v5069
          %v5898 = vunpack.c.l.b16 %v5070
          %v5899 = vunpack.c.h.b16 %v5070
          %v5900 = vunpack.c.l.b16 %v5071
          %v5901 = vunpack.c.h.b16 %v5071
          %v5902 = vunpack.c.l.b16 %v5072
          %v5903 = vunpack.c.h.b16 %v5072
          %v5904 = vunpack.c.l.b16 %v5073
          %v5905 = vunpack.c.h.b16 %v5073
          %v5906 = vunpack.c.l.b16 %v5074
          %v5907 = vunpack.c.h.b16 %v5074
          %v5908 = vunpack.c.l.b16 %v5075
          %v5909 = vunpack.c.h.b16 %v5075
          %v5910 = vunpack.c.l.b16 %v5076
          %v5911 = vunpack.c.h.b16 %v5076
          %v5912 = vunpack.c.l.b16 %v5077
          %v5913 = vunpack.c.h.b16 %v5077
          %v5914 = vunpack.c.l.b16 %v5078
          %v5915 = vunpack.c.h.b16 %v5078
          %v5916 = vunpack.c.l.b16 %v5079
          %v5917 = vunpack.c.h.b16 %v5079
          %v5918 = vunpack.c.l.b16 %v5080
          %v5919 = vunpack.c.h.b16 %v5080
          %v5920 = vunpack.c.l.b16 %v5081
          %v5921 = vunpack.c.h.b16 %v5081
          %v5922 = vunpack.c.l.b16 %v5082
          %v5923 = vunpack.c.h.b16 %v5082
          %v5924 = vunpack.c.l.b16 %v5083
          %v5925 = vunpack.c.h.b16 %v5083
          %v5926 = vunpack.c.l.b16 %v5084
          %v5927 = vunpack.c.h.b16 %v5084
          %v5928 = vunpack.c.l.b16 %v5085
          %v5929 = vunpack.c.h.b16 %v5085
          %v5930 = vunpack.c.l.b16 %v5086
          %v5931 = vunpack.c.h.b16 %v5086
          %v5932 = vunpack.c.l.b16 %v5087
          %v5933 = vunpack.c.h.b16 %v5087
          %v5934 = vunpack.c.l.b16 %v5088
          %v5935 = vunpack.c.h.b16 %v5088
          %v5936 = vunpack.c.l.b16 %v5089
          %v5937 = vunpack.c.h.b16 %v5089
          %v5938 = vunpack.c.l.b16 %v5090
          %v5939 = vunpack.c.h.b16 %v5090
          %v5940 = vunpack.c.l.b16 %v5091
          %v5941 = vunpack.c.h.b16 %v5091
          %v5942 = vunpack.c.l.b16 %v5092
          %v5943 = vunpack.c.h.b16 %v5092
          %v5944 = vunpack.c.l.b16 %v5093
          %v5945 = vunpack.c.h.b16 %v5093
          %v5946 = vunpack.c.l.b16 %v5094
          %v5947 = vunpack.c.h.b16 %v5094
          %v5948 = vunpack.c.l.b16 %v5095
          %v5949 = vunpack.c.h.b16 %v5095
          %v5950 = vunpack.c.l.b16 %v5096
          %v5951 = vunpack.c.h.b16 %v5096
          %v5952 = vunpack.c.l.b16 %v5097
          %v5953 = vunpack.c.h.b16 %v5097
          %v5954 = vunpack.c.l.b16 %v5098
          %v5955 = vunpack.c.h.b16 %v5098
          %v5956 = vunpack.c.l.b16 %v5099
          %v5957 = vunpack.c.h.b16 %v5099
          %v5958 = vunpack.c.l.b16 %v5100
          %v5959 = vunpack.c.h.b16 %v5100
          %v5960 = vunpack.c.l.b16 %v5101
          %v5961 = vunpack.c.h.b16 %v5101
          %v5962 = vunpack.c.l.b16 %v5102
          %v5963 = vunpack.c.h.b16 %v5102
          %v5964 = vunpack.c.l.b16 %v5103
          %v5965 = vunpack.c.h.b16 %v5103
          %v5966 = vunpack.c.l.b16 %v5104
          %v5967 = vunpack.c.h.b16 %v5104
          %v5968 = vunpack.c.l.b16 %v5105
          %v5969 = vunpack.c.h.b16 %v5105
          %v5970 = vunpack.c.l.b16 %v5106
          %v5971 = vunpack.c.h.b16 %v5106
          %v5972 = vunpack.c.l.b16 %v5107
          %v5973 = vunpack.c.h.b16 %v5107
          %v5974 = vunpack.c.l.b16 %v5108
          %v5975 = vunpack.c.h.b16 %v5108
          %v5976 = vunpack.c.l.b16 %v5109
          %v5977 = vunpack.c.h.b16 %v5109
          %v5978 = vunpack.c.l.b16 %v5110
          %v5979 = vunpack.c.h.b16 %v5110
          %v5980 = vunpack.c.l.b16 %v5111
          %v5981 = vunpack.c.h.b16 %v5111
          %v5982 = vunpack.c.l.b16 %v5112
          %v5983 = vunpack.c.h.b16 %v5112
          %v5984 = vunpack.c.l.b16 %v5113
          %v5985 = vunpack.c.h.b16 %v5113
          %v5986 = vunpack.c.l.b16 %v5114
          %v5987 = vunpack.c.h.b16 %v5114
          %v5988 = vunpack.c.l.b16 %v5115
          %v5989 = vunpack.c.h.b16 %v5115
          %v5990 = vunpack.c.l.b16 %v5116
          %v5991 = vunpack.c.h.b16 %v5116
          %v5992 = vunpack.c.l.b16 %v5117
          %v5993 = vunpack.c.h.b16 %v5117
          %v5994 = vunpack.c.l.b16 %v5118
          %v5995 = vunpack.c.h.b16 %v5118
          %v5996 = vunpack.c.l.b16 %v5119
          %v5997 = vunpack.c.h.b16 %v5119
          %v5998 = vunpack.c.l.b16 %v5120
          %v5999 = vunpack.c.h.b16 %v5120
          %v6000 = vunpack.c.l.b16 %v5121
          %v6001 = vunpack.c.h.b16 %v5121
          %v6002 = vunpack.c.l.b16 %v5122
          %v6003 = vunpack.c.h.b16 %v5122
          %v6004 = vunpack.c.l.b16 %v5123
          %v6005 = vunpack.c.h.b16 %v5123
          %v6006 = vunpack.c.l.b16 %v5124
          %v6007 = vunpack.c.h.b16 %v5124
          %v6008 = vunpack.c.l.b16 %v5125
          %v6009 = vunpack.c.h.b16 %v5125
          %v6010 = vunpack.c.l.b16 %v5126
          %v6011 = vunpack.c.h.b16 %v5126
          %v6012 = vunpack.c.l.b16 %v5127
          %v6013 = vunpack.c.h.b16 %v5127
          %v6014 = vunpack.c.l.b16 %v5128
          %v6015 = vunpack.c.h.b16 %v5128
          %v6016 = vunpack.c.l.b16 %v5129
          %v6017 = vunpack.c.h.b16 %v5129
          %v6018 = vunpack.c.l.b16 %v5130
          %v6019 = vunpack.c.h.b16 %v5130
          %v6020 = vunpack.c.l.b16 %v5131
          %v6021 = vunpack.c.h.b16 %v5131
          %v6022 = vunpack.c.l.b16 %v5132
          %v6023 = vunpack.c.h.b16 %v5132
          %v6024 = vunpack.c.l.b16 %v5133
          %v6025 = vunpack.c.h.b16 %v5133
          %v6026 = vunpack.c.l.b16 %v5134
          %v6027 = vunpack.c.h.b16 %v5134
          %v6028 = vunpack.c.l.b16 %v5135
          %v6029 = vunpack.c.h.b16 %v5135
          %v6030 = vunpack.c.l.b16 %v5136
          %v6031 = vunpack.c.h.b16 %v5136
          %v6032 = vunpack.c.l.b16 %v5137
          %v6033 = vunpack.c.h.b16 %v5137
          %v6034 = vunpack.c.l.b16 %v5138
          %v6035 = vunpack.c.h.b16 %v5138
          %v6036 = vunpack.c.l.b16 %v5139
          %v6037 = vunpack.c.h.b16 %v5139
          %v6038 = vunpack.c.l.b16 %v5140
          %v6039 = vunpack.c.h.b16 %v5140
          %v6040 = vunpack.c.l.b16 %v5141
          %v6041 = vunpack.c.h.b16 %v5141
          %v6042 = vpack.c.b16 %v5538, %v5530
          %v6043 = vpack.c.b16 %v5539, %v5531
          %v6044 = vpack.c.b16 %v5540, %v5532
          %v6045 = vpack.c.b16 %v5541, %v5533
          %v6046 = vpack.c.b16 %v5542, %v5534
          %v6047 = vpack.c.b16 %v5543, %v5535
          %v6048 = vpack.c.b16 %v5544, %v5536
          %v6049 = vpack.c.b16 %v5545, %v5537
          %v6050 = vpack.c.b16 %v5554, %v5546
          %v6051 = vpack.c.b16 %v5555, %v5547
          %v6052 = vpack.c.b16 %v5556, %v5548
          %v6053 = vpack.c.b16 %v5557, %v5549
          %v6054 = vpack.c.b16 %v5558, %v5550
          %v6055 = vpack.c.b16 %v5559, %v5551
          %v6056 = vpack.c.b16 %v5560, %v5552
          %v6057 = vpack.c.b16 %v5561, %v5553
          %v6058 = vpack.c.b16 %v5570, %v5562
          %v6059 = vpack.c.b16 %v5571, %v5563
          %v6060 = vpack.c.b16 %v5572, %v5564
          %v6061 = vpack.c.b16 %v5573, %v5565
          %v6062 = vpack.c.b16 %v5574, %v5566
          %v6063 = vpack.c.b16 %v5575, %v5567
          %v6064 = vpack.c.b16 %v5576, %v5568
          %v6065 = vpack.c.b16 %v5577, %v5569
          %v6066 = vpack.c.b16 %v5586, %v5578
          %v6067 = vpack.c.b16 %v5587, %v5579
          %v6068 = vpack.c.b16 %v5588, %v5580
          %v6069 = vpack.c.b16 %v5589, %v5581
          %v6070 = vpack.c.b16 %v5590, %v5582
          %v6071 = vpack.c.b16 %v5591, %v5583
          %v6072 = vpack.c.b16 %v5592, %v5584
          %v6073 = vpack.c.b16 %v5593, %v5585
          %v6074 = vpack.c.b16 %v5602, %v5594
          %v6075 = vpack.c.b16 %v5603, %v5595
          %v6076 = vpack.c.b16 %v5604, %v5596
          %v6077 = vpack.c.b16 %v5605, %v5597
          %v6078 = vpack.c.b16 %v5606, %v5598
          %v6079 = vpack.c.b16 %v5607, %v5599
          %v6080 = vpack.c.b16 %v5608, %v5600
          %v6081 = vpack.c.b16 %v5609, %v5601
          %v6082 = vpack.c.b16 %v5618, %v5610
          %v6083 = vpack.c.b16 %v5619, %v5611
          %v6084 = vpack.c.b16 %v5620, %v5612
          %v6085 = vpack.c.b16 %v5621, %v5613
          %v6086 = vpack.c.b16 %v5622, %v5614
          %v6087 = vpack.c.b16 %v5623, %v5615
          %v6088 = vpack.c.b16 %v5624, %v5616
          %v6089 = vpack.c.b16 %v5625, %v5617
          %v6090 = vpack.c.b16 %v5634, %v5626
          %v6091 = vpack.c.b16 %v5635, %v5627
          %v6092 = vpack.c.b16 %v5636, %v5628
          %v6093 = vpack.c.b16 %v5637, %v5629
          %v6094 = vpack.c.b16 %v5638, %v5630
          %v6095 = vpack.c.b16 %v5639, %v5631
          %v6096 = vpack.c.b16 %v5640, %v5632
          %v6097 = vpack.c.b16 %v5641, %v5633
          %v6098 = vpack.c.b16 %v5650, %v5642
          %v6099 = vpack.c.b16 %v5651, %v5643
          %v6100 = vpack.c.b16 %v5652, %v5644
          %v6101 = vpack.c.b16 %v5653, %v5645
          %v6102 = vpack.c.b16 %v5654, %v5646
          %v6103 = vpack.c.b16 %v5655, %v5647
          %v6104 = vpack.c.b16 %v5656, %v5648
          %v6105 = vpack.c.b16 %v5657, %v5649
          %v6106 = vpack.c.b16 %v5666, %v5658
          %v6107 = vpack.c.b16 %v5667, %v5659
          %v6108 = vpack.c.b16 %v5668, %v5660
          %v6109 = vpack.c.b16 %v5669, %v5661
          %v6110 = vpack.c.b16 %v5670, %v5662
          %v6111 = vpack.c.b16 %v5671, %v5663
          %v6112 = vpack.c.b16 %v5672, %v5664
          %v6113 = vpack.c.b16 %v5673, %v5665
          %v6114 = vpack.c.b16 %v5682, %v5674
          %v6115 = vpack.c.b16 %v5683, %v5675
          %v6116 = vpack.c.b16 %v5684, %v5676
          %v6117 = vpack.c.b16 %v5685, %v5677
          %v6118 = vpack.c.b16 %v5686, %v5678
          %v6119 = vpack.c.b16 %v5687, %v5679
          %v6120 = vpack.c.b16 %v5688, %v5680
          %v6121 = vpack.c.b16 %v5689, %v5681
          %v6122 = vpack.c.b16 %v5698, %v5690
          %v6123 = vpack.c.b16 %v5699, %v5691
          %v6124 = vpack.c.b16 %v5700, %v5692
          %v6125 = vpack.c.b16 %v5701, %v5693
          %v6126 = vpack.c.b16 %v5702, %v5694
          %v6127 = vpack.c.b16 %v5703, %v5695
          %v6128 = vpack.c.b16 %v5704, %v5696
          %v6129 = vpack.c.b16 %v5705, %v5697
          %v6130 = vpack.c.b16 %v5714, %v5706
          %v6131 = vpack.c.b16 %v5715, %v5707
          %v6132 = vpack.c.b16 %v5716, %v5708
          %v6133 = vpack.c.b16 %v5717, %v5709
          %v6134 = vpack.c.b16 %v5718, %v5710
          %v6135 = vpack.c.b16 %v5719, %v5711
          %v6136 = vpack.c.b16 %v5720, %v5712
          %v6137 = vpack.c.b16 %v5721, %v5713
          %v6138 = vpack.c.b16 %v5730, %v5722
          %v6139 = vpack.c.b16 %v5731, %v5723
          %v6140 = vpack.c.b16 %v5732, %v5724
          %v6141 = vpack.c.b16 %v5733, %v5725
          %v6142 = vpack.c.b16 %v5734, %v5726
          %v6143 = vpack.c.b16 %v5735, %v5727
          %v6144 = vpack.c.b16 %v5736, %v5728
          %v6145 = vpack.c.b16 %v5737, %v5729
          %v6146 = vpack.c.b16 %v5746, %v5738
          %v6147 = vpack.c.b16 %v5747, %v5739
          %v6148 = vpack.c.b16 %v5748, %v5740
          %v6149 = vpack.c.b16 %v5749, %v5741
          %v6150 = vpack.c.b16 %v5750, %v5742
          %v6151 = vpack.c.b16 %v5751, %v5743
          %v6152 = vpack.c.b16 %v5752, %v5744
          %v6153 = vpack.c.b16 %v5753, %v5745
          %v6154 = vpack.c.b16 %v5762, %v5754
          %v6155 = vpack.c.b16 %v5763, %v5755
          %v6156 = vpack.c.b16 %v5764, %v5756
          %v6157 = vpack.c.b16 %v5765, %v5757
          %v6158 = vpack.c.b16 %v5766, %v5758
          %v6159 = vpack.c.b16 %v5767, %v5759
          %v6160 = vpack.c.b16 %v5768, %v5760
          %v6161 = vpack.c.b16 %v5769, %v5761
          %v6162 = vpack.c.b16 %v5778, %v5770
          %v6163 = vpack.c.b16 %v5779, %v5771
          %v6164 = vpack.c.b16 %v5780, %v5772
          %v6165 = vpack.c.b16 %v5781, %v5773
          %v6166 = vpack.c.b16 %v5782, %v5774
          %v6167 = vpack.c.b16 %v5783, %v5775
          %v6168 = vpack.c.b16 %v5784, %v5776
          %v6169 = vpack.c.b16 %v5785, %v5777
          %v6170 = vpack.c.b16 %v5794, %v5786
          %v6171 = vpack.c.b16 %v5795, %v5787
          %v6172 = vpack.c.b16 %v5796, %v5788
          %v6173 = vpack.c.b16 %v5797, %v5789
          %v6174 = vpack.c.b16 %v5798, %v5790
          %v6175 = vpack.c.b16 %v5799, %v5791
          %v6176 = vpack.c.b16 %v5800, %v5792
          %v6177 = vpack.c.b16 %v5801, %v5793
          %v6178 = vpack.c.b16 %v5810, %v5802
          %v6179 = vpack.c.b16 %v5811, %v5803
          %v6180 = vpack.c.b16 %v5812, %v5804
          %v6181 = vpack.c.b16 %v5813, %v5805
          %v6182 = vpack.c.b16 %v5814, %v5806
          %v6183 = vpack.c.b16 %v5815, %v5807
          %v6184 = vpack.c.b16 %v5816, %v5808
          %v6185 = vpack.c.b16 %v5817, %v5809
          %v6186 = vpack.c.b16 %v5826, %v5818
          %v6187 = vpack.c.b16 %v5827, %v5819
          %v6188 = vpack.c.b16 %v5828, %v5820
          %v6189 = vpack.c.b16 %v5829, %v5821
          %v6190 = vpack.c.b16 %v5830, %v5822
          %v6191 = vpack.c.b16 %v5831, %v5823
          %v6192 = vpack.c.b16 %v5832, %v5824
          %v6193 = vpack.c.b16 %v5833, %v5825
          %v6194 = vpack.c.b16 %v5842, %v5834
          %v6195 = vpack.c.b16 %v5843, %v5835
          %v6196 = vpack.c.b16 %v5844, %v5836
          %v6197 = vpack.c.b16 %v5845, %v5837
          %v6198 = vpack.c.b16 %v5846, %v5838
          %v6199 = vpack.c.b16 %v5847, %v5839
          %v6200 = vpack.c.b16 %v5848, %v5840
          %v6201 = vpack.c.b16 %v5849, %v5841
          %v6202 = vpack.c.b16 %v5858, %v5850
          %v6203 = vpack.c.b16 %v5859, %v5851
          %v6204 = vpack.c.b16 %v5860, %v5852
          %v6205 = vpack.c.b16 %v5861, %v5853
          %v6206 = vpack.c.b16 %v5862, %v5854
          %v6207 = vpack.c.b16 %v5863, %v5855
          %v6208 = vpack.c.b16 %v5864, %v5856
          %v6209 = vpack.c.b16 %v5865, %v5857
          %v6210 = vpack.c.b16 %v5874, %v5866
          %v6211 = vpack.c.b16 %v5875, %v5867
          %v6212 = vpack.c.b16 %v5876, %v5868
          %v6213 = vpack.c.b16 %v5877, %v5869
          %v6214 = vpack.c.b16 %v5878, %v5870
          %v6215 = vpack.c.b16 %v5879, %v5871
          %v6216 = vpack.c.b16 %v5880, %v5872
          %v6217 = vpack.c.b16 %v5881, %v5873
          %v6218 = vpack.c.b16 %v5890, %v5882
          %v6219 = vpack.c.b16 %v5891, %v5883
          %v6220 = vpack.c.b16 %v5892, %v5884
          %v6221 = vpack.c.b16 %v5893, %v5885
          %v6222 = vpack.c.b16 %v5894, %v5886
          %v6223 = vpack.c.b16 %v5895, %v5887
          %v6224 = vpack.c.b16 %v5896, %v5888
          %v6225 = vpack.c.b16 %v5897, %v5889
          %v6226 = vpack.c.b16 %v5906, %v5898
          %v6227 = vpack.c.b16 %v5907, %v5899
          %v6228 = vpack.c.b16 %v5908, %v5900
          %v6229 = vpack.c.b16 %v5909, %v5901
          %v6230 = vpack.c.b16 %v5910, %v5902
          %v6231 = vpack.c.b16 %v5911, %v5903
          %v6232 = vpack.c.b16 %v5912, %v5904
          %v6233 = vpack.c.b16 %v5913, %v5905
          %v6234 = vpack.c.b16 %v5922, %v5914
          %v6235 = vpack.c.b16 %v5923, %v5915
          %v6236 = vpack.c.b16 %v5924, %v5916
          %v6237 = vpack.c.b16 %v5925, %v5917
          %v6238 = vpack.c.b16 %v5926, %v5918
          %v6239 = vpack.c.b16 %v5927, %v5919
          %v6240 = vpack.c.b16 %v5928, %v5920
          %v6241 = vpack.c.b16 %v5929, %v5921
          %v6242 = vpack.c.b16 %v5938, %v5930
          %v6243 = vpack.c.b16 %v5939, %v5931
          %v6244 = vpack.c.b16 %v5940, %v5932
          %v6245 = vpack.c.b16 %v5941, %v5933
          %v6246 = vpack.c.b16 %v5942, %v5934
          %v6247 = vpack.c.b16 %v5943, %v5935
          %v6248 = vpack.c.b16 %v5944, %v5936
          %v6249 = vpack.c.b16 %v5945, %v5937
          %v6250 = vpack.c.b16 %v5954, %v5946
          %v6251 = vpack.c.b16 %v5955, %v5947
          %v6252 = vpack.c.b16 %v5956, %v5948
          %v6253 = vpack.c.b16 %v5957, %v5949
          %v6254 = vpack.c.b16 %v5958, %v5950
          %v6255 = vpack.c.b16 %v5959, %v5951
          %v6256 = vpack.c.b16 %v5960, %v5952
          %v6257 = vpack.c.b16 %v5961, %v5953
          %v6258 = vpack.c.b16 %v5970, %v5962
          %v6259 = vpack.c.b16 %v5971, %v5963
          %v6260 = vpack.c.b16 %v5972, %v5964
          %v6261 = vpack.c.b16 %v5973, %v5965
          %v6262 = vpack.c.b16 %v5974, %v5966
          %v6263 = vpack.c.b16 %v5975, %v5967
          %v6264 = vpack.c.b16 %v5976, %v5968
          %v6265 = vpack.c.b16 %v5977, %v5969
          %v6266 = vpack.c.b16 %v5986, %v5978
          %v6267 = vpack.c.b16 %v5987, %v5979
          %v6268 = vpack.c.b16 %v5988, %v5980
          %v6269 = vpack.c.b16 %v5989, %v5981
          %v6270 = vpack.c.b16 %v5990, %v5982
          %v6271 = vpack.c.b16 %v5991, %v5983
          %v6272 = vpack.c.b16 %v5992, %v5984
          %v6273 = vpack.c.b16 %v5993, %v5985
          %v6274 = vpack.c.b16 %v6002, %v5994
          %v6275 = vpack.c.b16 %v6003, %v5995
          %v6276 = vpack.c.b16 %v6004, %v5996
          %v6277 = vpack.c.b16 %v6005, %v5997
          %v6278 = vpack.c.b16 %v6006, %v5998
          %v6279 = vpack.c.b16 %v6007, %v5999
          %v6280 = vpack.c.b16 %v6008, %v6000
          %v6281 = vpack.c.b16 %v6009, %v6001
          %v6282 = vpack.c.b16 %v6018, %v6010
          %v6283 = vpack.c.b16 %v6019, %v6011
          %v6284 = vpack.c.b16 %v6020, %v6012
          %v6285 = vpack.c.b16 %v6021, %v6013
          %v6286 = vpack.c.b16 %v6022, %v6014
          %v6287 = vpack.c.b16 %v6023, %v6015
          %v6288 = vpack.c.b16 %v6024, %v6016
          %v6289 = vpack.c.b16 %v6025, %v6017
          %v6290 = vpack.c.b16 %v6034, %v6026
          %v6291 = vpack.c.b16 %v6035, %v6027
          %v6292 = vpack.c.b16 %v6036, %v6028
          %v6293 = vpack.c.b16 %v6037, %v6029
          %v6294 = vpack.c.b16 %v6038, %v6030
          %v6295 = vpack.c.b16 %v6039, %v6031
          %v6296 = vpack.c.b16 %v6040, %v6032
          %v6297 = vpack.c.b16 %v6041, %v6033
          %v6682 = vunpack.c.l.b16 %v5142
          %v6683 = vunpack.c.l.b16 %v5143
          %v6684 = vunpack.c.l.b16 %v5144
          %v6685 = vunpack.c.l.b16 %v5145
          %v6686 = vunpack.c.l.b16 %v5146
          %v6687 = vunpack.c.l.b16 %v5147
          %v6688 = vunpack.c.l.b16 %v5148
          %v6689 = vunpack.c.l.b16 %v5149
          %v6690 = vunpack.c.l.b16 %v5150
          %v6691 = vunpack.c.l.b16 %v5151
          %v6692 = vunpack.c.l.b16 %v5152
          %v6693 = vunpack.c.l.b16 %v5153
          %v6694 = vunpack.c.l.b16 %v5154
          %v6695 = vunpack.c.l.b16 %v5155
          %v6696 = vunpack.c.l.b16 %v5156
          %v6697 = vunpack.c.l.b16 %v5157
          %v6698 = vunpack.c.l.b16 %v5158
          %v6699 = vunpack.c.l.b16 %v5159
          %v6700 = vunpack.c.l.b16 %v5160
          %v6701 = vunpack.c.l.b16 %v5161
          %v6702 = vunpack.c.l.b16 %v5162
          %v6703 = vunpack.c.l.b16 %v5163
          %v6704 = vunpack.c.l.b16 %v5164
          %v6705 = vunpack.c.l.b16 %v5165
          %v6706 = vunpack.c.l.b16 %v5166
          %v6707 = vunpack.c.l.b16 %v5167
          %v6708 = vunpack.c.l.b16 %v5168
          %v6709 = vunpack.c.l.b16 %v5169
          %v6710 = vunpack.c.l.b16 %v5170
          %v6711 = vunpack.c.l.b16 %v5171
          %v6712 = vunpack.c.l.b16 %v5172
          %v6713 = vunpack.c.l.b16 %v5173
          %v6714 = vunpack.c.l.b16 %v5174
          %v6715 = vunpack.c.l.b16 %v5175
          %v6716 = vunpack.c.l.b16 %v5176
          %v6717 = vunpack.c.l.b16 %v5177
          %v6718 = vunpack.c.l.b16 %v5178
          %v6719 = vunpack.c.l.b16 %v5179
          %v6720 = vunpack.c.l.b16 %v5180
          %v6721 = vunpack.c.l.b16 %v5181
          %v6722 = vunpack.c.l.b16 %v5182
          %v6723 = vunpack.c.l.b16 %v5183
          %v6724 = vunpack.c.l.b16 %v5184
          %v6725 = vunpack.c.l.b16 %v5185
          %v6726 = vunpack.c.l.b16 %v5186
          %v6727 = vunpack.c.l.b16 %v5187
          %v6728 = vunpack.c.l.b16 %v5188
          %v6729 = vunpack.c.l.b16 %v5189
          %v6730 = vunpack.c.l.b16 %v5190
          %v6731 = vunpack.c.l.b16 %v5191
          %v6732 = vunpack.c.l.b16 %v5192
          %v6733 = vunpack.c.l.b16 %v5193
          %v6734 = vunpack.c.l.b16 %v5194
          %v6735 = vunpack.c.l.b16 %v5195
          %v6736 = vunpack.c.l.b16 %v5196
          %v6737 = vunpack.c.l.b16 %v5197
          %v6738 = vunpack.c.l.b16 %v5198
          %v6739 = vunpack.c.l.b16 %v5199
          %v6740 = vunpack.c.l.b16 %v5200
          %v6741 = vunpack.c.l.b16 %v5201
          %v6742 = vunpack.c.l.b16 %v5202
          %v6743 = vunpack.c.l.b16 %v5203
          %v6744 = vunpack.c.l.b16 %v5204
          %v6745 = vunpack.c.l.b16 %v5205
          %v6746 = vunpack.c.l.b16 %v5206
          %v6747 = vunpack.c.l.b16 %v5207
          %v6748 = vunpack.c.l.b16 %v5208
          %v6749 = vunpack.c.l.b16 %v5209
          %v6750 = vunpack.c.l.b16 %v5210
          %v6751 = vunpack.c.l.b16 %v5211
          %v6752 = vunpack.c.l.b16 %v5212
          %v6753 = vunpack.c.l.b16 %v5213
          %v6754 = vunpack.c.l.b16 %v5214
          %v6755 = vunpack.c.l.b16 %v5215
          %v6756 = vunpack.c.l.b16 %v5216
          %v6757 = vunpack.c.l.b16 %v5217
          %v6758 = vunpack.c.l.b16 %v5218
          %v6759 = vunpack.c.l.b16 %v5219
          %v6760 = vunpack.c.l.b16 %v5220
          %v6761 = vunpack.c.l.b16 %v5221
          %v6762 = vunpack.c.l.b16 %v5222
          %v6763 = vunpack.c.l.b16 %v5223
          %v6764 = vunpack.c.l.b16 %v5224
          %v6765 = vunpack.c.l.b16 %v5225
          %v6766 = vunpack.c.l.b16 %v5226
          %v6767 = vunpack.c.l.b16 %v5227
          %v6768 = vunpack.c.l.b16 %v5228
          %v6769 = vunpack.c.l.b16 %v5229
          %v6770 = vunpack.c.l.b16 %v5230
          %v6771 = vunpack.c.l.b16 %v5231
          %v6772 = vunpack.c.l.b16 %v5232
          %v6773 = vunpack.c.l.b16 %v5233
          %v6774 = vunpack.c.l.b16 %v5234
          %v6775 = vunpack.c.l.b16 %v5235
          %v6776 = vunpack.c.l.b16 %v5236
          %v6777 = vunpack.c.l.b16 %v5237
          %v6778 = vunpack.c.l.b16 %v5238
          %v6779 = vunpack.c.l.b16 %v5239
          %v6780 = vunpack.c.l.b16 %v5240
          %v6781 = vunpack.c.l.b16 %v5241
          %v6782 = vunpack.c.l.b16 %v5242
          %v6783 = vunpack.c.l.b16 %v5243
          %v6784 = vunpack.c.l.b16 %v5244
          %v6785 = vunpack.c.l.b16 %v5245
          %v6786 = vunpack.c.l.b16 %v5246
          %v6787 = vunpack.c.l.b16 %v5247
          %v6788 = vunpack.c.l.b16 %v5248
          %v6789 = vunpack.c.l.b16 %v5249
          %v6790 = vunpack.c.l.b16 %v5250
          %v6791 = vunpack.c.l.b16 %v5251
          %v6792 = vunpack.c.l.b16 %v5252
          %v6793 = vunpack.c.l.b16 %v5253
          %v6794 = vunpack.c.l.b16 %v5254
          %v6795 = vunpack.c.l.b16 %v5255
          %v6796 = vunpack.c.l.b16 %v5256
          %v6797 = vunpack.c.l.b16 %v5257
          %v6798 = vunpack.c.l.b16 %v5258
          %v6799 = vunpack.c.l.b16 %v5259
          %v6800 = vunpack.c.l.b16 %v5260
          %v6801 = vunpack.c.l.b16 %v5261
          %v6802 = vunpack.c.l.b16 %v5262
          %v6803 = vunpack.c.l.b16 %v5263
          %v6804 = vunpack.c.l.b16 %v5264
          %v6805 = vunpack.c.l.b16 %v5265
          %v6806 = vunpack.c.l.b16 %v5266
          %v6807 = vunpack.c.l.b16 %v5267
          %v6808 = vunpack.c.l.b16 %v5268
          %v6809 = vunpack.c.l.b16 %v5269
          %v6810 = vpack.c.b16 %v6683, %v6682
          %v6811 = vpack.c.b16 %v6685, %v6684
          %v6812 = vpack.c.b16 %v6687, %v6686
          %v6813 = vpack.c.b16 %v6689, %v6688
          %v6814 = vpack.c.b16 %v6691, %v6690
          %v6815 = vpack.c.b16 %v6693, %v6692
          %v6816 = vpack.c.b16 %v6695, %v6694
          %v6817 = vpack.c.b16 %v6697, %v6696
          %v6818 = vpack.c.b16 %v6699, %v6698
          %v6819 = vpack.c.b16 %v6701, %v6700
          %v6820 = vpack.c.b16 %v6703, %v6702
          %v6821 = vpack.c.b16 %v6705, %v6704
          %v6822 = vpack.c.b16 %v6707, %v6706
          %v6823 = vpack.c.b16 %v6709, %v6708
          %v6824 = vpack.c.b16 %v6711, %v6710
          %v6825 = vpack.c.b16 %v6713, %v6712
          %v6826 = vpack.c.b16 %v6715, %v6714
          %v6827 = vpack.c.b16 %v6717, %v6716
          %v6828 = vpack.c.b16 %v6719, %v6718
          %v6829 = vpack.c.b16 %v6721, %v6720
          %v6830 = vpack.c.b16 %v6723, %v6722
          %v6831 = vpack.c.b16 %v6725, %v6724
          %v6832 = vpack.c.b16 %v6727, %v6726
          %v6833 = vpack.c.b16 %v6729, %v6728
          %v6834 = vpack.c.b16 %v6731, %v6730
          %v6835 = vpack.c.b16 %v6733, %v6732
          %v6836 = vpack.c.b16 %v6735, %v6734
          %v6837 = vpack.c.b16 %v6737, %v6736
          %v6838 = vpack.c.b16 %v6739, %v6738
          %v6839 = vpack.c.b16 %v6741, %v6740
          %v6840 = vpack.c.b16 %v6743, %v6742
          %v6841 = vpack.c.b16 %v6745, %v6744
          %v6842 = vpack.c.b16 %v6747, %v6746
          %v6843 = vpack.c.b16 %v6749, %v6748
          %v6844 = vpack.c.b16 %v6751, %v6750
          %v6845 = vpack.c.b16 %v6753, %v6752
          %v6846 = vpack.c.b16 %v6755, %v6754
          %v6847 = vpack.c.b16 %v6757, %v6756
          %v6848 = vpack.c.b16 %v6759, %v6758
          %v6849 = vpack.c.b16 %v6761, %v6760
          %v6850 = vpack.c.b16 %v6763, %v6762
          %v6851 = vpack.c.b16 %v6765, %v6764
          %v6852 = vpack.c.b16 %v6767, %v6766
          %v6853 = vpack.c.b16 %v6769, %v6768
          %v6854 = vpack.c.b16 %v6771, %v6770
          %v6855 = vpack.c.b16 %v6773, %v6772
          %v6856 = vpack.c.b16 %v6775, %v6774
          %v6857 = vpack.c.b16 %v6777, %v6776
          %v6858 = vpack.c.b16 %v6779, %v6778
          %v6859 = vpack.c.b16 %v6781, %v6780
          %v6860 = vpack.c.b16 %v6783, %v6782
          %v6861 = vpack.c.b16 %v6785, %v6784
          %v6862 = vpack.c.b16 %v6787, %v6786
          %v6863 = vpack.c.b16 %v6789, %v6788
          %v6864 = vpack.c.b16 %v6791, %v6790
          %v6865 = vpack.c.b16 %v6793, %v6792
          %v6866 = vpack.c.b16 %v6795, %v6794
          %v6867 = vpack.c.b16 %v6797, %v6796
          %v6868 = vpack.c.b16 %v6799, %v6798
          %v6869 = vpack.c.b16 %v6801, %v6800
          %v6870 = vpack.c.b16 %v6803, %v6802
          %v6871 = vpack.c.b16 %v6805, %v6804
          %v6872 = vpack.c.b16 %v6807, %v6806
          %v6873 = vpack.c.b16 %v6809, %v6808
          %6938 = vmatpush.bf16.msra.mxu0 %v6817
          %6939 = vmatpush.bf16.msra.mxu0 %v6816
          %6940 = vmatpush.bf16.msra.mxu0 %v6815
          %6941 = vmatpush.bf16.msra.mxu0 %v6814
          %6942 = vmatpush.bf16.msra.mxu0 %v6813
          %6943 = vmatpush.bf16.msra.mxu0 %v6812
          %6944 = vmatpush.bf16.msra.mxu0 %v6811
          %6945 = vmatpush.bf16.msra.mxu0 %v6810
          %6946 = vmatmul.bf16.gmra.mxu0 %v6042
          %v6947 = vpop.f32.mrf.mxu0
          %v6948 = vadd.f32 %v5272, %v6947
          %v6949 = vpop.f32.mrf.mxu0
          %v6950 = vadd.f32 %v5272, %v6949
          %6951 = vmatmul.bf16.gmra.mxu0 %v6050
          %v6952 = vpop.f32.mrf.mxu0
          %v6953 = vadd.f32 %v5272, %v6952
          %v6954 = vpop.f32.mrf.mxu0
          %v6955 = vadd.f32 %v5272, %v6954
          %6956 = vmatmul.bf16.gmra.mxu0 %v6058
          %v6957 = vpop.f32.mrf.mxu0
          %v6958 = vadd.f32 %v5272, %v6957
          %v6959 = vpop.f32.mrf.mxu0
          %v6960 = vadd.f32 %v5272, %v6959
          %6961 = vmatmul.bf16.gmra.mxu0 %v6066
          %v6962 = vpop.f32.mrf.mxu0
          %v6963 = vadd.f32 %v5272, %v6962
          %v6964 = vpop.f32.mrf.mxu0
          %v6965 = vadd.f32 %v5272, %v6964
          %6966 = vmatmul.bf16.gmra.mxu0 %v6074
          %v6967 = vpop.f32.mrf.mxu0
          %v6968 = vadd.f32 %v5272, %v6967
          %v6969 = vpop.f32.mrf.mxu0
          %v6970 = vadd.f32 %v5272, %v6969
          %6971 = vmatmul.bf16.gmra.mxu0 %v6082
          %v6972 = vpop.f32.mrf.mxu0
          %v6973 = vadd.f32 %v5272, %v6972
          %v6974 = vpop.f32.mrf.mxu0
          %v6975 = vadd.f32 %v5272, %v6974
          %6976 = vmatmul.bf16.gmra.mxu0 %v6090
          %v6977 = vpop.f32.mrf.mxu0
          %v6978 = vadd.f32 %v5272, %v6977
          %v6979 = vpop.f32.mrf.mxu0
          %v6980 = vadd.f32 %v5272, %v6979
          %6981 = vmatmul.bf16.gmra.mxu0 %v6098
          %v6982 = vpop.f32.mrf.mxu0
          %v6983 = vadd.f32 %v5272, %v6982
          %v6984 = vpop.f32.mrf.mxu0
          %v6985 = vadd.f32 %v5272, %v6984
          %6986 = vmatmul.bf16.gmra.mxu0 %v6106
          %v6987 = vpop.f32.mrf.mxu0
          %v6988 = vadd.f32 %v5272, %v6987
          %v6989 = vpop.f32.mrf.mxu0
          %v6990 = vadd.f32 %v5272, %v6989
          %6991 = vmatmul.bf16.gmra.mxu0 %v6114
          %v6992 = vpop.f32.mrf.mxu0
          %v6993 = vadd.f32 %v5272, %v6992
          %v6994 = vpop.f32.mrf.mxu0
          %v6995 = vadd.f32 %v5272, %v6994
          %6996 = vmatmul.bf16.gmra.mxu0 %v6122
          %v6997 = vpop.f32.mrf.mxu0
          %v6998 = vadd.f32 %v5272, %v6997
          %v6999 = vpop.f32.mrf.mxu0
          %v7000 = vadd.f32 %v5272, %v6999
          %7001 = vmatmul.bf16.gmra.mxu0 %v6130
          %v7002 = vpop.f32.mrf.mxu0
          %v7003 = vadd.f32 %v5272, %v7002
          %v7004 = vpop.f32.mrf.mxu0
          %v7005 = vadd.f32 %v5272, %v7004
          %7006 = vmatmul.bf16.gmra.mxu0 %v6138
          %v7007 = vpop.f32.mrf.mxu0
          %v7008 = vadd.f32 %v5272, %v7007
          %v7009 = vpop.f32.mrf.mxu0
          %v7010 = vadd.f32 %v5272, %v7009
          %7011 = vmatmul.bf16.gmra.mxu0 %v6146
          %v7012 = vpop.f32.mrf.mxu0
          %v7013 = vadd.f32 %v5272, %v7012
          %v7014 = vpop.f32.mrf.mxu0
          %v7015 = vadd.f32 %v5272, %v7014
          %7016 = vmatmul.bf16.gmra.mxu0 %v6154
          %v7017 = vpop.f32.mrf.mxu0
          %v7018 = vadd.f32 %v5272, %v7017
          %v7019 = vpop.f32.mrf.mxu0
          %v7020 = vadd.f32 %v5272, %v7019
          %7021 = vmatmul.bf16.gmra.mxu0 %v6162
          %v7022 = vpop.f32.mrf.mxu0
          %v7023 = vadd.f32 %v5272, %v7022
          %v7024 = vpop.f32.mrf.mxu0
          %v7025 = vadd.f32 %v5272, %v7024
          %7026 = vmatmul.bf16.gmra.mxu0 %v6170
          %v7027 = vpop.f32.mrf.mxu0
          %v7028 = vadd.f32 %v5272, %v7027
          %v7029 = vpop.f32.mrf.mxu0
          %v7030 = vadd.f32 %v5272, %v7029
          %7031 = vmatmul.bf16.gmra.mxu0 %v6178
          %v7032 = vpop.f32.mrf.mxu0
          %v7033 = vadd.f32 %v5272, %v7032
          %v7034 = vpop.f32.mrf.mxu0
          %v7035 = vadd.f32 %v5272, %v7034
          %7036 = vmatmul.bf16.gmra.mxu0 %v6186
          %v7037 = vpop.f32.mrf.mxu0
          %v7038 = vadd.f32 %v5272, %v7037
          %v7039 = vpop.f32.mrf.mxu0
          %v7040 = vadd.f32 %v5272, %v7039
          %7041 = vmatmul.bf16.gmra.mxu0 %v6194
          %v7042 = vpop.f32.mrf.mxu0
          %v7043 = vadd.f32 %v5272, %v7042
          %v7044 = vpop.f32.mrf.mxu0
          %v7045 = vadd.f32 %v5272, %v7044
          %7046 = vmatmul.bf16.gmra.mxu0 %v6202
          %v7047 = vpop.f32.mrf.mxu0
          %v7048 = vadd.f32 %v5272, %v7047
          %v7049 = vpop.f32.mrf.mxu0
          %v7050 = vadd.f32 %v5272, %v7049
          %7051 = vmatmul.bf16.gmra.mxu0 %v6210
          %v7052 = vpop.f32.mrf.mxu0
          %v7053 = vadd.f32 %v5272, %v7052
          %v7054 = vpop.f32.mrf.mxu0
          %v7055 = vadd.f32 %v5272, %v7054
          %7056 = vmatmul.bf16.gmra.mxu0 %v6218
          %v7057 = vpop.f32.mrf.mxu0
          %v7058 = vadd.f32 %v5272, %v7057
          %v7059 = vpop.f32.mrf.mxu0
          %v7060 = vadd.f32 %v5272, %v7059
          %7061 = vmatmul.bf16.gmra.mxu0 %v6226
          %v7062 = vpop.f32.mrf.mxu0
          %v7063 = vadd.f32 %v5272, %v7062
          %v7064 = vpop.f32.mrf.mxu0
          %v7065 = vadd.f32 %v5272, %v7064
          %7066 = vmatmul.bf16.gmra.mxu0 %v6234
          %v7067 = vpop.f32.mrf.mxu0
          %v7068 = vadd.f32 %v5272, %v7067
          %v7069 = vpop.f32.mrf.mxu0
          %v7070 = vadd.f32 %v5272, %v7069
          %7071 = vmatmul.bf16.gmra.mxu0 %v6242
          %v7072 = vpop.f32.mrf.mxu0
          %v7073 = vadd.f32 %v5272, %v7072
          %v7074 = vpop.f32.mrf.mxu0
          %v7075 = vadd.f32 %v5272, %v7074
          %7076 = vmatmul.bf16.gmra.mxu0 %v6250
          %v7077 = vpop.f32.mrf.mxu0
          %v7078 = vadd.f32 %v5272, %v7077
          %v7079 = vpop.f32.mrf.mxu0
          %v7080 = vadd.f32 %v5272, %v7079
          %7081 = vmatmul.bf16.gmra.mxu0 %v6258
          %v7082 = vpop.f32.mrf.mxu0
          %v7083 = vadd.f32 %v5272, %v7082
          %v7084 = vpop.f32.mrf.mxu0
          %v7085 = vadd.f32 %v5272, %v7084
          %7086 = vmatmul.bf16.gmra.mxu0 %v6266
          %v7087 = vpop.f32.mrf.mxu0
          %v7088 = vadd.f32 %v5272, %v7087
          %v7089 = vpop.f32.mrf.mxu0
          %v7090 = vadd.f32 %v5272, %v7089
          %7091 = vmatmul.bf16.gmra.mxu0 %v6274
          %v7092 = vpop.f32.mrf.mxu0
          %v7093 = vadd.f32 %v5272, %v7092
          %v7094 = vpop.f32.mrf.mxu0
          %v7095 = vadd.f32 %v5272, %v7094
          %7096 = vmatmul.bf16.gmra.mxu0 %v6282
          %v7097 = vpop.f32.mrf.mxu0
          %v7098 = vadd.f32 %v5272, %v7097
          %v7099 = vpop.f32.mrf.mxu0
          %v7100 = vadd.f32 %v5272, %v7099
          %7101 = vmatmul.bf16.gmra.mxu0 %v6290
          %v7102 = vpop.f32.mrf.mxu0
          %v7103 = vadd.f32 %v5272, %v7102
          %v7104 = vpop.f32.mrf.mxu0
          %v7105 = vadd.f32 %v5272, %v7104
          %7106 = vdwg.mxu0
          %7107 = vmatpush.bf16.msra.mxu0 %v6825
          %7108 = vmatpush.bf16.msra.mxu0 %v6824
          %7109 = vmatpush.bf16.msra.mxu0 %v6823
          %7110 = vmatpush.bf16.msra.mxu0 %v6822
          %7111 = vmatpush.bf16.msra.mxu0 %v6821
          %7112 = vmatpush.bf16.msra.mxu0 %v6820
          %7113 = vmatpush.bf16.msra.mxu0 %v6819
          %7114 = vmatpush.bf16.msra.mxu0 %v6818
          %7115 = vmatmul.bf16.gmra.mxu0 %v6043
          %v7116 = vpop.f32.mrf.mxu0
          %v7117 = vadd.f32 %v6948, %v7116
          %v7118 = vpop.f32.mrf.mxu0
          %v7119 = vadd.f32 %v6950, %v7118
          %7120 = vmatmul.bf16.gmra.mxu0 %v6051
          %v7121 = vpop.f32.mrf.mxu0
          %v7122 = vadd.f32 %v6953, %v7121
          %v7123 = vpop.f32.mrf.mxu0
          %v7124 = vadd.f32 %v6955, %v7123
          %7125 = vmatmul.bf16.gmra.mxu0 %v6059
          %v7126 = vpop.f32.mrf.mxu0
          %v7127 = vadd.f32 %v6958, %v7126
          %v7128 = vpop.f32.mrf.mxu0
          %v7129 = vadd.f32 %v6960, %v7128
          %7130 = vmatmul.bf16.gmra.mxu0 %v6067
          %v7131 = vpop.f32.mrf.mxu0
          %v7132 = vadd.f32 %v6963, %v7131
          %v7133 = vpop.f32.mrf.mxu0
          %v7134 = vadd.f32 %v6965, %v7133
          %7135 = vmatmul.bf16.gmra.mxu0 %v6075
          %v7136 = vpop.f32.mrf.mxu0
          %v7137 = vadd.f32 %v6968, %v7136
          %v7138 = vpop.f32.mrf.mxu0
          %v7139 = vadd.f32 %v6970, %v7138
          %7140 = vmatmul.bf16.gmra.mxu0 %v6083
          %v7141 = vpop.f32.mrf.mxu0
          %v7142 = vadd.f32 %v6973, %v7141
          %v7143 = vpop.f32.mrf.mxu0
          %v7144 = vadd.f32 %v6975, %v7143
          %7145 = vmatmul.bf16.gmra.mxu0 %v6091
          %v7146 = vpop.f32.mrf.mxu0
          %v7147 = vadd.f32 %v6978, %v7146
          %v7148 = vpop.f32.mrf.mxu0
          %v7149 = vadd.f32 %v6980, %v7148
          %7150 = vmatmul.bf16.gmra.mxu0 %v6099
          %v7151 = vpop.f32.mrf.mxu0
          %v7152 = vadd.f32 %v6983, %v7151
          %v7153 = vpop.f32.mrf.mxu0
          %v7154 = vadd.f32 %v6985, %v7153
          %7155 = vmatmul.bf16.gmra.mxu0 %v6107
          %v7156 = vpop.f32.mrf.mxu0
          %v7157 = vadd.f32 %v6988, %v7156
          %v7158 = vpop.f32.mrf.mxu0
          %v7159 = vadd.f32 %v6990, %v7158
          %7160 = vmatmul.bf16.gmra.mxu0 %v6115
          %v7161 = vpop.f32.mrf.mxu0
          %v7162 = vadd.f32 %v6993, %v7161
          %v7163 = vpop.f32.mrf.mxu0
          %v7164 = vadd.f32 %v6995, %v7163
          %7165 = vmatmul.bf16.gmra.mxu0 %v6123
          %v7166 = vpop.f32.mrf.mxu0
          %v7167 = vadd.f32 %v6998, %v7166
          %v7168 = vpop.f32.mrf.mxu0
          %v7169 = vadd.f32 %v7000, %v7168
          %7170 = vmatmul.bf16.gmra.mxu0 %v6131
          %v7171 = vpop.f32.mrf.mxu0
          %v7172 = vadd.f32 %v7003, %v7171
          %v7173 = vpop.f32.mrf.mxu0
          %v7174 = vadd.f32 %v7005, %v7173
          %7175 = vmatmul.bf16.gmra.mxu0 %v6139
          %v7176 = vpop.f32.mrf.mxu0
          %v7177 = vadd.f32 %v7008, %v7176
          %v7178 = vpop.f32.mrf.mxu0
          %v7179 = vadd.f32 %v7010, %v7178
          %7180 = vmatmul.bf16.gmra.mxu0 %v6147
          %v7181 = vpop.f32.mrf.mxu0
          %v7182 = vadd.f32 %v7013, %v7181
          %v7183 = vpop.f32.mrf.mxu0
          %v7184 = vadd.f32 %v7015, %v7183
          %7185 = vmatmul.bf16.gmra.mxu0 %v6155
          %v7186 = vpop.f32.mrf.mxu0
          %v7187 = vadd.f32 %v7018, %v7186
          %v7188 = vpop.f32.mrf.mxu0
          %v7189 = vadd.f32 %v7020, %v7188
          %7190 = vmatmul.bf16.gmra.mxu0 %v6163
          %v7191 = vpop.f32.mrf.mxu0
          %v7192 = vadd.f32 %v7023, %v7191
          %v7193 = vpop.f32.mrf.mxu0
          %v7194 = vadd.f32 %v7025, %v7193
          %7195 = vmatmul.bf16.gmra.mxu0 %v6171
          %v7196 = vpop.f32.mrf.mxu0
          %v7197 = vadd.f32 %v7028, %v7196
          %v7198 = vpop.f32.mrf.mxu0
          %v7199 = vadd.f32 %v7030, %v7198
          %7200 = vmatmul.bf16.gmra.mxu0 %v6179
          %v7201 = vpop.f32.mrf.mxu0
          %v7202 = vadd.f32 %v7033, %v7201
          %v7203 = vpop.f32.mrf.mxu0
          %v7204 = vadd.f32 %v7035, %v7203
          %7205 = vmatmul.bf16.gmra.mxu0 %v6187
          %v7206 = vpop.f32.mrf.mxu0
          %v7207 = vadd.f32 %v7038, %v7206
          %v7208 = vpop.f32.mrf.mxu0
          %v7209 = vadd.f32 %v7040, %v7208
          %7210 = vmatmul.bf16.gmra.mxu0 %v6195
          %v7211 = vpop.f32.mrf.mxu0
          %v7212 = vadd.f32 %v7043, %v7211
          %v7213 = vpop.f32.mrf.mxu0
          %v7214 = vadd.f32 %v7045, %v7213
          %7215 = vmatmul.bf16.gmra.mxu0 %v6203
          %v7216 = vpop.f32.mrf.mxu0
          %v7217 = vadd.f32 %v7048, %v7216
          %v7218 = vpop.f32.mrf.mxu0
          %v7219 = vadd.f32 %v7050, %v7218
          %7220 = vmatmul.bf16.gmra.mxu0 %v6211
          %v7221 = vpop.f32.mrf.mxu0
          %v7222 = vadd.f32 %v7053, %v7221
          %v7223 = vpop.f32.mrf.mxu0
          %v7224 = vadd.f32 %v7055, %v7223
          %7225 = vmatmul.bf16.gmra.mxu0 %v6219
          %v7226 = vpop.f32.mrf.mxu0
          %v7227 = vadd.f32 %v7058, %v7226
          %v7228 = vpop.f32.mrf.mxu0
          %v7229 = vadd.f32 %v7060, %v7228
          %7230 = vmatmul.bf16.gmra.mxu0 %v6227
          %v7231 = vpop.f32.mrf.mxu0
          %v7232 = vadd.f32 %v7063, %v7231
          %v7233 = vpop.f32.mrf.mxu0
          %v7234 = vadd.f32 %v7065, %v7233
          %7235 = vmatmul.bf16.gmra.mxu0 %v6235
          %v7236 = vpop.f32.mrf.mxu0
          %v7237 = vadd.f32 %v7068, %v7236
          %v7238 = vpop.f32.mrf.mxu0
          %v7239 = vadd.f32 %v7070, %v7238
          %7240 = vmatmul.bf16.gmra.mxu0 %v6243
          %v7241 = vpop.f32.mrf.mxu0
          %v7242 = vadd.f32 %v7073, %v7241
          %v7243 = vpop.f32.mrf.mxu0
          %v7244 = vadd.f32 %v7075, %v7243
          %7245 = vmatmul.bf16.gmra.mxu0 %v6251
          %v7246 = vpop.f32.mrf.mxu0
          %v7247 = vadd.f32 %v7078, %v7246
          %v7248 = vpop.f32.mrf.mxu0
          %v7249 = vadd.f32 %v7080, %v7248
          %7250 = vmatmul.bf16.gmra.mxu0 %v6259
          %v7251 = vpop.f32.mrf.mxu0
          %v7252 = vadd.f32 %v7083, %v7251
          %v7253 = vpop.f32.mrf.mxu0
          %v7254 = vadd.f32 %v7085, %v7253
          %7255 = vmatmul.bf16.gmra.mxu0 %v6267
          %v7256 = vpop.f32.mrf.mxu0
          %v7257 = vadd.f32 %v7088, %v7256
          %v7258 = vpop.f32.mrf.mxu0
          %v7259 = vadd.f32 %v7090, %v7258
          %7260 = vmatmul.bf16.gmra.mxu0 %v6275
          %v7261 = vpop.f32.mrf.mxu0
          %v7262 = vadd.f32 %v7093, %v7261
          %v7263 = vpop.f32.mrf.mxu0
          %v7264 = vadd.f32 %v7095, %v7263
          %7265 = vmatmul.bf16.gmra.mxu0 %v6283
          %v7266 = vpop.f32.mrf.mxu0
          %v7267 = vadd.f32 %v7098, %v7266
          %v7268 = vpop.f32.mrf.mxu0
          %v7269 = vadd.f32 %v7100, %v7268
          %7270 = vmatmul.bf16.gmra.mxu0 %v6291
          %v7271 = vpop.f32.mrf.mxu0
          %v7272 = vadd.f32 %v7103, %v7271
          %v7273 = vpop.f32.mrf.mxu0
          %v7274 = vadd.f32 %v7105, %v7273
          %7275 = vdwg.mxu0
          %7276 = vmatpush.bf16.msra.mxu0 %v6833
          %7277 = vmatpush.bf16.msra.mxu0 %v6832
          %7278 = vmatpush.bf16.msra.mxu0 %v6831
          %7279 = vmatpush.bf16.msra.mxu0 %v6830
          %7280 = vmatpush.bf16.msra.mxu0 %v6829
          %7281 = vmatpush.bf16.msra.mxu0 %v6828
          %7282 = vmatpush.bf16.msra.mxu0 %v6827
          %7283 = vmatpush.bf16.msra.mxu0 %v6826
          %7284 = vmatmul.bf16.gmra.mxu0 %v6044
          %v7285 = vpop.f32.mrf.mxu0
          %v7286 = vadd.f32 %v7117, %v7285
          %v7287 = vpop.f32.mrf.mxu0
          %v7288 = vadd.f32 %v7119, %v7287
          %7289 = vmatmul.bf16.gmra.mxu0 %v6052
          %v7290 = vpop.f32.mrf.mxu0
          %v7291 = vadd.f32 %v7122, %v7290
          %v7292 = vpop.f32.mrf.mxu0
          %v7293 = vadd.f32 %v7124, %v7292
          %7294 = vmatmul.bf16.gmra.mxu0 %v6060
          %v7295 = vpop.f32.mrf.mxu0
          %v7296 = vadd.f32 %v7127, %v7295
          %v7297 = vpop.f32.mrf.mxu0
          %v7298 = vadd.f32 %v7129, %v7297
          %7299 = vmatmul.bf16.gmra.mxu0 %v6068
          %v7300 = vpop.f32.mrf.mxu0
          %v7301 = vadd.f32 %v7132, %v7300
          %v7302 = vpop.f32.mrf.mxu0
          %v7303 = vadd.f32 %v7134, %v7302
          %7304 = vmatmul.bf16.gmra.mxu0 %v6076
          %v7305 = vpop.f32.mrf.mxu0
          %v7306 = vadd.f32 %v7137, %v7305
          %v7307 = vpop.f32.mrf.mxu0
          %v7308 = vadd.f32 %v7139, %v7307
          %7309 = vmatmul.bf16.gmra.mxu0 %v6084
          %v7310 = vpop.f32.mrf.mxu0
          %v7311 = vadd.f32 %v7142, %v7310
          %v7312 = vpop.f32.mrf.mxu0
          %v7313 = vadd.f32 %v7144, %v7312
          %7314 = vmatmul.bf16.gmra.mxu0 %v6092
          %v7315 = vpop.f32.mrf.mxu0
          %v7316 = vadd.f32 %v7147, %v7315
          %v7317 = vpop.f32.mrf.mxu0
          %v7318 = vadd.f32 %v7149, %v7317
          %7319 = vmatmul.bf16.gmra.mxu0 %v6100
          %v7320 = vpop.f32.mrf.mxu0
          %v7321 = vadd.f32 %v7152, %v7320
          %v7322 = vpop.f32.mrf.mxu0
          %v7323 = vadd.f32 %v7154, %v7322
          %7324 = vmatmul.bf16.gmra.mxu0 %v6108
          %v7325 = vpop.f32.mrf.mxu0
          %v7326 = vadd.f32 %v7157, %v7325
          %v7327 = vpop.f32.mrf.mxu0
          %v7328 = vadd.f32 %v7159, %v7327
          %7329 = vmatmul.bf16.gmra.mxu0 %v6116
          %v7330 = vpop.f32.mrf.mxu0
          %v7331 = vadd.f32 %v7162, %v7330
          %v7332 = vpop.f32.mrf.mxu0
          %v7333 = vadd.f32 %v7164, %v7332
          %7334 = vmatmul.bf16.gmra.mxu0 %v6124
          %v7335 = vpop.f32.mrf.mxu0
          %v7336 = vadd.f32 %v7167, %v7335
          %v7337 = vpop.f32.mrf.mxu0
          %v7338 = vadd.f32 %v7169, %v7337
          %7339 = vmatmul.bf16.gmra.mxu0 %v6132
          %v7340 = vpop.f32.mrf.mxu0
          %v7341 = vadd.f32 %v7172, %v7340
          %v7342 = vpop.f32.mrf.mxu0
          %v7343 = vadd.f32 %v7174, %v7342
          %7344 = vmatmul.bf16.gmra.mxu0 %v6140
          %v7345 = vpop.f32.mrf.mxu0
          %v7346 = vadd.f32 %v7177, %v7345
          %v7347 = vpop.f32.mrf.mxu0
          %v7348 = vadd.f32 %v7179, %v7347
          %7349 = vmatmul.bf16.gmra.mxu0 %v6148
          %v7350 = vpop.f32.mrf.mxu0
          %v7351 = vadd.f32 %v7182, %v7350
          %v7352 = vpop.f32.mrf.mxu0
          %v7353 = vadd.f32 %v7184, %v7352
          %7354 = vmatmul.bf16.gmra.mxu0 %v6156
          %v7355 = vpop.f32.mrf.mxu0
          %v7356 = vadd.f32 %v7187, %v7355
          %v7357 = vpop.f32.mrf.mxu0
          %v7358 = vadd.f32 %v7189, %v7357
          %7359 = vmatmul.bf16.gmra.mxu0 %v6164
          %v7360 = vpop.f32.mrf.mxu0
          %v7361 = vadd.f32 %v7192, %v7360
          %v7362 = vpop.f32.mrf.mxu0
          %v7363 = vadd.f32 %v7194, %v7362
          %7364 = vmatmul.bf16.gmra.mxu0 %v6172
          %v7365 = vpop.f32.mrf.mxu0
          %v7366 = vadd.f32 %v7197, %v7365
          %v7367 = vpop.f32.mrf.mxu0
          %v7368 = vadd.f32 %v7199, %v7367
          %7369 = vmatmul.bf16.gmra.mxu0 %v6180
          %v7370 = vpop.f32.mrf.mxu0
          %v7371 = vadd.f32 %v7202, %v7370
          %v7372 = vpop.f32.mrf.mxu0
          %v7373 = vadd.f32 %v7204, %v7372
          %7374 = vmatmul.bf16.gmra.mxu0 %v6188
          %v7375 = vpop.f32.mrf.mxu0
          %v7376 = vadd.f32 %v7207, %v7375
          %v7377 = vpop.f32.mrf.mxu0
          %v7378 = vadd.f32 %v7209, %v7377
          %7379 = vmatmul.bf16.gmra.mxu0 %v6196
          %v7380 = vpop.f32.mrf.mxu0
          %v7381 = vadd.f32 %v7212, %v7380
          %v7382 = vpop.f32.mrf.mxu0
          %v7383 = vadd.f32 %v7214, %v7382
          %7384 = vmatmul.bf16.gmra.mxu0 %v6204
          %v7385 = vpop.f32.mrf.mxu0
          %v7386 = vadd.f32 %v7217, %v7385
          %v7387 = vpop.f32.mrf.mxu0
          %v7388 = vadd.f32 %v7219, %v7387
          %7389 = vmatmul.bf16.gmra.mxu0 %v6212
          %v7390 = vpop.f32.mrf.mxu0
          %v7391 = vadd.f32 %v7222, %v7390
          %v7392 = vpop.f32.mrf.mxu0
          %v7393 = vadd.f32 %v7224, %v7392
          %7394 = vmatmul.bf16.gmra.mxu0 %v6220
          %v7395 = vpop.f32.mrf.mxu0
          %v7396 = vadd.f32 %v7227, %v7395
          %v7397 = vpop.f32.mrf.mxu0
          %v7398 = vadd.f32 %v7229, %v7397
          %7399 = vmatmul.bf16.gmra.mxu0 %v6228
          %v7400 = vpop.f32.mrf.mxu0
          %v7401 = vadd.f32 %v7232, %v7400
          %v7402 = vpop.f32.mrf.mxu0
          %v7403 = vadd.f32 %v7234, %v7402
          %7404 = vmatmul.bf16.gmra.mxu0 %v6236
          %v7405 = vpop.f32.mrf.mxu0
          %v7406 = vadd.f32 %v7237, %v7405
          %v7407 = vpop.f32.mrf.mxu0
          %v7408 = vadd.f32 %v7239, %v7407
          %7409 = vmatmul.bf16.gmra.mxu0 %v6244
          %v7410 = vpop.f32.mrf.mxu0
          %v7411 = vadd.f32 %v7242, %v7410
          %v7412 = vpop.f32.mrf.mxu0
          %v7413 = vadd.f32 %v7244, %v7412
          %7414 = vmatmul.bf16.gmra.mxu0 %v6252
          %v7415 = vpop.f32.mrf.mxu0
          %v7416 = vadd.f32 %v7247, %v7415
          %v7417 = vpop.f32.mrf.mxu0
          %v7418 = vadd.f32 %v7249, %v7417
          %7419 = vmatmul.bf16.gmra.mxu0 %v6260
          %v7420 = vpop.f32.mrf.mxu0
          %v7421 = vadd.f32 %v7252, %v7420
          %v7422 = vpop.f32.mrf.mxu0
          %v7423 = vadd.f32 %v7254, %v7422
          %7424 = vmatmul.bf16.gmra.mxu0 %v6268
          %v7425 = vpop.f32.mrf.mxu0
          %v7426 = vadd.f32 %v7257, %v7425
          %v7427 = vpop.f32.mrf.mxu0
          %v7428 = vadd.f32 %v7259, %v7427
          %7429 = vmatmul.bf16.gmra.mxu0 %v6276
          %v7430 = vpop.f32.mrf.mxu0
          %v7431 = vadd.f32 %v7262, %v7430
          %v7432 = vpop.f32.mrf.mxu0
          %v7433 = vadd.f32 %v7264, %v7432
          %7434 = vmatmul.bf16.gmra.mxu0 %v6284
          %v7435 = vpop.f32.mrf.mxu0
          %v7436 = vadd.f32 %v7267, %v7435
          %v7437 = vpop.f32.mrf.mxu0
          %v7438 = vadd.f32 %v7269, %v7437
          %7439 = vmatmul.bf16.gmra.mxu0 %v6292
          %v7440 = vpop.f32.mrf.mxu0
          %v7441 = vadd.f32 %v7272, %v7440
          %v7442 = vpop.f32.mrf.mxu0
          %v7443 = vadd.f32 %v7274, %v7442
          %7444 = vdwg.mxu0
          %7445 = vmatpush.bf16.msra.mxu0 %v6841
          %7446 = vmatpush.bf16.msra.mxu0 %v6840
          %7447 = vmatpush.bf16.msra.mxu0 %v6839
          %7448 = vmatpush.bf16.msra.mxu0 %v6838
          %7449 = vmatpush.bf16.msra.mxu0 %v6837
          %7450 = vmatpush.bf16.msra.mxu0 %v6836
          %7451 = vmatpush.bf16.msra.mxu0 %v6835
          %7452 = vmatpush.bf16.msra.mxu0 %v6834
          %7453 = vmatmul.bf16.gmra.mxu0 %v6045
          %v7454 = vpop.f32.mrf.mxu0
          %v7455 = vadd.f32 %v7286, %v7454
          %v7456 = vpop.f32.mrf.mxu0
          %v7457 = vadd.f32 %v7288, %v7456
          %7458 = vmatmul.bf16.gmra.mxu0 %v6053
          %v7459 = vpop.f32.mrf.mxu0
          %v7460 = vadd.f32 %v7291, %v7459
          %v7461 = vpop.f32.mrf.mxu0
          %v7462 = vadd.f32 %v7293, %v7461
          %7463 = vmatmul.bf16.gmra.mxu0 %v6061
          %v7464 = vpop.f32.mrf.mxu0
          %v7465 = vadd.f32 %v7296, %v7464
          %v7466 = vpop.f32.mrf.mxu0
          %v7467 = vadd.f32 %v7298, %v7466
          %7468 = vmatmul.bf16.gmra.mxu0 %v6069
          %v7469 = vpop.f32.mrf.mxu0
          %v7470 = vadd.f32 %v7301, %v7469
          %v7471 = vpop.f32.mrf.mxu0
          %v7472 = vadd.f32 %v7303, %v7471
          %7473 = vmatmul.bf16.gmra.mxu0 %v6077
          %v7474 = vpop.f32.mrf.mxu0
          %v7475 = vadd.f32 %v7306, %v7474
          %v7476 = vpop.f32.mrf.mxu0
          %v7477 = vadd.f32 %v7308, %v7476
          %7478 = vmatmul.bf16.gmra.mxu0 %v6085
          %v7479 = vpop.f32.mrf.mxu0
          %v7480 = vadd.f32 %v7311, %v7479
          %v7481 = vpop.f32.mrf.mxu0
          %v7482 = vadd.f32 %v7313, %v7481
          %7483 = vmatmul.bf16.gmra.mxu0 %v6093
          %v7484 = vpop.f32.mrf.mxu0
          %v7485 = vadd.f32 %v7316, %v7484
          %v7486 = vpop.f32.mrf.mxu0
          %v7487 = vadd.f32 %v7318, %v7486
          %7488 = vmatmul.bf16.gmra.mxu0 %v6101
          %v7489 = vpop.f32.mrf.mxu0
          %v7490 = vadd.f32 %v7321, %v7489
          %v7491 = vpop.f32.mrf.mxu0
          %v7492 = vadd.f32 %v7323, %v7491
          %7493 = vmatmul.bf16.gmra.mxu0 %v6109
          %v7494 = vpop.f32.mrf.mxu0
          %v7495 = vadd.f32 %v7326, %v7494
          %v7496 = vpop.f32.mrf.mxu0
          %v7497 = vadd.f32 %v7328, %v7496
          %7498 = vmatmul.bf16.gmra.mxu0 %v6117
          %v7499 = vpop.f32.mrf.mxu0
          %v7500 = vadd.f32 %v7331, %v7499
          %v7501 = vpop.f32.mrf.mxu0
          %v7502 = vadd.f32 %v7333, %v7501
          %7503 = vmatmul.bf16.gmra.mxu0 %v6125
          %v7504 = vpop.f32.mrf.mxu0
          %v7505 = vadd.f32 %v7336, %v7504
          %v7506 = vpop.f32.mrf.mxu0
          %v7507 = vadd.f32 %v7338, %v7506
          %7508 = vmatmul.bf16.gmra.mxu0 %v6133
          %v7509 = vpop.f32.mrf.mxu0
          %v7510 = vadd.f32 %v7341, %v7509
          %v7511 = vpop.f32.mrf.mxu0
          %v7512 = vadd.f32 %v7343, %v7511
          %7513 = vmatmul.bf16.gmra.mxu0 %v6141
          %v7514 = vpop.f32.mrf.mxu0
          %v7515 = vadd.f32 %v7346, %v7514
          %v7516 = vpop.f32.mrf.mxu0
          %v7517 = vadd.f32 %v7348, %v7516
          %7518 = vmatmul.bf16.gmra.mxu0 %v6149
          %v7519 = vpop.f32.mrf.mxu0
          %v7520 = vadd.f32 %v7351, %v7519
          %v7521 = vpop.f32.mrf.mxu0
          %v7522 = vadd.f32 %v7353, %v7521
          %7523 = vmatmul.bf16.gmra.mxu0 %v6157
          %v7524 = vpop.f32.mrf.mxu0
          %v7525 = vadd.f32 %v7356, %v7524
          %v7526 = vpop.f32.mrf.mxu0
          %v7527 = vadd.f32 %v7358, %v7526
          %7528 = vmatmul.bf16.gmra.mxu0 %v6165
          %v7529 = vpop.f32.mrf.mxu0
          %v7530 = vadd.f32 %v7361, %v7529
          %v7531 = vpop.f32.mrf.mxu0
          %v7532 = vadd.f32 %v7363, %v7531
          %7533 = vmatmul.bf16.gmra.mxu0 %v6173
          %v7534 = vpop.f32.mrf.mxu0
          %v7535 = vadd.f32 %v7366, %v7534
          %v7536 = vpop.f32.mrf.mxu0
          %v7537 = vadd.f32 %v7368, %v7536
          %7538 = vmatmul.bf16.gmra.mxu0 %v6181
          %v7539 = vpop.f32.mrf.mxu0
          %v7540 = vadd.f32 %v7371, %v7539
          %v7541 = vpop.f32.mrf.mxu0
          %v7542 = vadd.f32 %v7373, %v7541
          %7543 = vmatmul.bf16.gmra.mxu0 %v6189
          %v7544 = vpop.f32.mrf.mxu0
          %v7545 = vadd.f32 %v7376, %v7544
          %v7546 = vpop.f32.mrf.mxu0
          %v7547 = vadd.f32 %v7378, %v7546
          %7548 = vmatmul.bf16.gmra.mxu0 %v6197
          %v7549 = vpop.f32.mrf.mxu0
          %v7550 = vadd.f32 %v7381, %v7549
          %v7551 = vpop.f32.mrf.mxu0
          %v7552 = vadd.f32 %v7383, %v7551
          %7553 = vmatmul.bf16.gmra.mxu0 %v6205
          %v7554 = vpop.f32.mrf.mxu0
          %v7555 = vadd.f32 %v7386, %v7554
          %v7556 = vpop.f32.mrf.mxu0
          %v7557 = vadd.f32 %v7388, %v7556
          %7558 = vmatmul.bf16.gmra.mxu0 %v6213
          %v7559 = vpop.f32.mrf.mxu0
          %v7560 = vadd.f32 %v7391, %v7559
          %v7561 = vpop.f32.mrf.mxu0
          %v7562 = vadd.f32 %v7393, %v7561
          %7563 = vmatmul.bf16.gmra.mxu0 %v6221
          %v7564 = vpop.f32.mrf.mxu0
          %v7565 = vadd.f32 %v7396, %v7564
          %v7566 = vpop.f32.mrf.mxu0
          %v7567 = vadd.f32 %v7398, %v7566
          %7568 = vmatmul.bf16.gmra.mxu0 %v6229
          %v7569 = vpop.f32.mrf.mxu0
          %v7570 = vadd.f32 %v7401, %v7569
          %v7571 = vpop.f32.mrf.mxu0
          %v7572 = vadd.f32 %v7403, %v7571
          %7573 = vmatmul.bf16.gmra.mxu0 %v6237
          %v7574 = vpop.f32.mrf.mxu0
          %v7575 = vadd.f32 %v7406, %v7574
          %v7576 = vpop.f32.mrf.mxu0
          %v7577 = vadd.f32 %v7408, %v7576
          %7578 = vmatmul.bf16.gmra.mxu0 %v6245
          %v7579 = vpop.f32.mrf.mxu0
          %v7580 = vadd.f32 %v7411, %v7579
          %v7581 = vpop.f32.mrf.mxu0
          %v7582 = vadd.f32 %v7413, %v7581
          %7583 = vmatmul.bf16.gmra.mxu0 %v6253
          %v7584 = vpop.f32.mrf.mxu0
          %v7585 = vadd.f32 %v7416, %v7584
          %v7586 = vpop.f32.mrf.mxu0
          %v7587 = vadd.f32 %v7418, %v7586
          %7588 = vmatmul.bf16.gmra.mxu0 %v6261
          %v7589 = vpop.f32.mrf.mxu0
          %v7590 = vadd.f32 %v7421, %v7589
          %v7591 = vpop.f32.mrf.mxu0
          %v7592 = vadd.f32 %v7423, %v7591
          %7593 = vmatmul.bf16.gmra.mxu0 %v6269
          %v7594 = vpop.f32.mrf.mxu0
          %v7595 = vadd.f32 %v7426, %v7594
          %v7596 = vpop.f32.mrf.mxu0
          %v7597 = vadd.f32 %v7428, %v7596
          %7598 = vmatmul.bf16.gmra.mxu0 %v6277
          %v7599 = vpop.f32.mrf.mxu0
          %v7600 = vadd.f32 %v7431, %v7599
          %v7601 = vpop.f32.mrf.mxu0
          %v7602 = vadd.f32 %v7433, %v7601
          %7603 = vmatmul.bf16.gmra.mxu0 %v6285
          %v7604 = vpop.f32.mrf.mxu0
          %v7605 = vadd.f32 %v7436, %v7604
          %v7606 = vpop.f32.mrf.mxu0
          %v7607 = vadd.f32 %v7438, %v7606
          %7608 = vmatmul.bf16.gmra.mxu0 %v6293
          %v7609 = vpop.f32.mrf.mxu0
          %v7610 = vadd.f32 %v7441, %v7609
          %v7611 = vpop.f32.mrf.mxu0
          %v7612 = vadd.f32 %v7443, %v7611
          %7613 = vdwg.mxu0
          %7614 = vmatpush.bf16.msra.mxu0 %v6849
          %7615 = vmatpush.bf16.msra.mxu0 %v6848
          %7616 = vmatpush.bf16.msra.mxu0 %v6847
          %7617 = vmatpush.bf16.msra.mxu0 %v6846
          %7618 = vmatpush.bf16.msra.mxu0 %v6845
          %7619 = vmatpush.bf16.msra.mxu0 %v6844
          %7620 = vmatpush.bf16.msra.mxu0 %v6843
          %7621 = vmatpush.bf16.msra.mxu0 %v6842
          %7622 = vmatmul.bf16.gmra.mxu0 %v6046
          %v7623 = vpop.f32.mrf.mxu0
          %v7624 = vadd.f32 %v7455, %v7623
          %v7625 = vpop.f32.mrf.mxu0
          %v7626 = vadd.f32 %v7457, %v7625
          %7627 = vmatmul.bf16.gmra.mxu0 %v6054
          %v7628 = vpop.f32.mrf.mxu0
          %v7629 = vadd.f32 %v7460, %v7628
          %v7630 = vpop.f32.mrf.mxu0
          %v7631 = vadd.f32 %v7462, %v7630
          %7632 = vmatmul.bf16.gmra.mxu0 %v6062
          %v7633 = vpop.f32.mrf.mxu0
          %v7634 = vadd.f32 %v7465, %v7633
          %v7635 = vpop.f32.mrf.mxu0
          %v7636 = vadd.f32 %v7467, %v7635
          %7637 = vmatmul.bf16.gmra.mxu0 %v6070
          %v7638 = vpop.f32.mrf.mxu0
          %v7639 = vadd.f32 %v7470, %v7638
          %v7640 = vpop.f32.mrf.mxu0
          %v7641 = vadd.f32 %v7472, %v7640
          %7642 = vmatmul.bf16.gmra.mxu0 %v6078
          %v7643 = vpop.f32.mrf.mxu0
          %v7644 = vadd.f32 %v7475, %v7643
          %v7645 = vpop.f32.mrf.mxu0
          %v7646 = vadd.f32 %v7477, %v7645
          %7647 = vmatmul.bf16.gmra.mxu0 %v6086
          %v7648 = vpop.f32.mrf.mxu0
          %v7649 = vadd.f32 %v7480, %v7648
          %v7650 = vpop.f32.mrf.mxu0
          %v7651 = vadd.f32 %v7482, %v7650
          %7652 = vmatmul.bf16.gmra.mxu0 %v6094
          %v7653 = vpop.f32.mrf.mxu0
          %v7654 = vadd.f32 %v7485, %v7653
          %v7655 = vpop.f32.mrf.mxu0
          %v7656 = vadd.f32 %v7487, %v7655
          %7657 = vmatmul.bf16.gmra.mxu0 %v6102
          %v7658 = vpop.f32.mrf.mxu0
          %v7659 = vadd.f32 %v7490, %v7658
          %v7660 = vpop.f32.mrf.mxu0
          %v7661 = vadd.f32 %v7492, %v7660
          %7662 = vmatmul.bf16.gmra.mxu0 %v6110
          %v7663 = vpop.f32.mrf.mxu0
          %v7664 = vadd.f32 %v7495, %v7663
          %v7665 = vpop.f32.mrf.mxu0
          %v7666 = vadd.f32 %v7497, %v7665
          %7667 = vmatmul.bf16.gmra.mxu0 %v6118
          %v7668 = vpop.f32.mrf.mxu0
          %v7669 = vadd.f32 %v7500, %v7668
          %v7670 = vpop.f32.mrf.mxu0
          %v7671 = vadd.f32 %v7502, %v7670
          %7672 = vmatmul.bf16.gmra.mxu0 %v6126
          %v7673 = vpop.f32.mrf.mxu0
          %v7674 = vadd.f32 %v7505, %v7673
          %v7675 = vpop.f32.mrf.mxu0
          %v7676 = vadd.f32 %v7507, %v7675
          %7677 = vmatmul.bf16.gmra.mxu0 %v6134
          %v7678 = vpop.f32.mrf.mxu0
          %v7679 = vadd.f32 %v7510, %v7678
          %v7680 = vpop.f32.mrf.mxu0
          %v7681 = vadd.f32 %v7512, %v7680
          %7682 = vmatmul.bf16.gmra.mxu0 %v6142
          %v7683 = vpop.f32.mrf.mxu0
          %v7684 = vadd.f32 %v7515, %v7683
          %v7685 = vpop.f32.mrf.mxu0
          %v7686 = vadd.f32 %v7517, %v7685
          %7687 = vmatmul.bf16.gmra.mxu0 %v6150
          %v7688 = vpop.f32.mrf.mxu0
          %v7689 = vadd.f32 %v7520, %v7688
          %v7690 = vpop.f32.mrf.mxu0
          %v7691 = vadd.f32 %v7522, %v7690
          %7692 = vmatmul.bf16.gmra.mxu0 %v6158
          %v7693 = vpop.f32.mrf.mxu0
          %v7694 = vadd.f32 %v7525, %v7693
          %v7695 = vpop.f32.mrf.mxu0
          %v7696 = vadd.f32 %v7527, %v7695
          %7697 = vmatmul.bf16.gmra.mxu0 %v6166
          %v7698 = vpop.f32.mrf.mxu0
          %v7699 = vadd.f32 %v7530, %v7698
          %v7700 = vpop.f32.mrf.mxu0
          %v7701 = vadd.f32 %v7532, %v7700
          %7702 = vmatmul.bf16.gmra.mxu0 %v6174
          %v7703 = vpop.f32.mrf.mxu0
          %v7704 = vadd.f32 %v7535, %v7703
          %v7705 = vpop.f32.mrf.mxu0
          %v7706 = vadd.f32 %v7537, %v7705
          %7707 = vmatmul.bf16.gmra.mxu0 %v6182
          %v7708 = vpop.f32.mrf.mxu0
          %v7709 = vadd.f32 %v7540, %v7708
          %v7710 = vpop.f32.mrf.mxu0
          %v7711 = vadd.f32 %v7542, %v7710
          %7712 = vmatmul.bf16.gmra.mxu0 %v6190
          %v7713 = vpop.f32.mrf.mxu0
          %v7714 = vadd.f32 %v7545, %v7713
          %v7715 = vpop.f32.mrf.mxu0
          %v7716 = vadd.f32 %v7547, %v7715
          %7717 = vmatmul.bf16.gmra.mxu0 %v6198
          %v7718 = vpop.f32.mrf.mxu0
          %v7719 = vadd.f32 %v7550, %v7718
          %v7720 = vpop.f32.mrf.mxu0
          %v7721 = vadd.f32 %v7552, %v7720
          %7722 = vmatmul.bf16.gmra.mxu0 %v6206
          %v7723 = vpop.f32.mrf.mxu0
          %v7724 = vadd.f32 %v7555, %v7723
          %v7725 = vpop.f32.mrf.mxu0
          %v7726 = vadd.f32 %v7557, %v7725
          %7727 = vmatmul.bf16.gmra.mxu0 %v6214
          %v7728 = vpop.f32.mrf.mxu0
          %v7729 = vadd.f32 %v7560, %v7728
          %v7730 = vpop.f32.mrf.mxu0
          %v7731 = vadd.f32 %v7562, %v7730
          %7732 = vmatmul.bf16.gmra.mxu0 %v6222
          %v7733 = vpop.f32.mrf.mxu0
          %v7734 = vadd.f32 %v7565, %v7733
          %v7735 = vpop.f32.mrf.mxu0
          %v7736 = vadd.f32 %v7567, %v7735
          %7737 = vmatmul.bf16.gmra.mxu0 %v6230
          %v7738 = vpop.f32.mrf.mxu0
          %v7739 = vadd.f32 %v7570, %v7738
          %v7740 = vpop.f32.mrf.mxu0
          %v7741 = vadd.f32 %v7572, %v7740
          %7742 = vmatmul.bf16.gmra.mxu0 %v6238
          %v7743 = vpop.f32.mrf.mxu0
          %v7744 = vadd.f32 %v7575, %v7743
          %v7745 = vpop.f32.mrf.mxu0
          %v7746 = vadd.f32 %v7577, %v7745
          %7747 = vmatmul.bf16.gmra.mxu0 %v6246
          %v7748 = vpop.f32.mrf.mxu0
          %v7749 = vadd.f32 %v7580, %v7748
          %v7750 = vpop.f32.mrf.mxu0
          %v7751 = vadd.f32 %v7582, %v7750
          %7752 = vmatmul.bf16.gmra.mxu0 %v6254
          %v7753 = vpop.f32.mrf.mxu0
          %v7754 = vadd.f32 %v7585, %v7753
          %v7755 = vpop.f32.mrf.mxu0
          %v7756 = vadd.f32 %v7587, %v7755
          %7757 = vmatmul.bf16.gmra.mxu0 %v6262
          %v7758 = vpop.f32.mrf.mxu0
          %v7759 = vadd.f32 %v7590, %v7758
          %v7760 = vpop.f32.mrf.mxu0
          %v7761 = vadd.f32 %v7592, %v7760
          %7762 = vmatmul.bf16.gmra.mxu0 %v6270
          %v7763 = vpop.f32.mrf.mxu0
          %v7764 = vadd.f32 %v7595, %v7763
          %v7765 = vpop.f32.mrf.mxu0
          %v7766 = vadd.f32 %v7597, %v7765
          %7767 = vmatmul.bf16.gmra.mxu0 %v6278
          %v7768 = vpop.f32.mrf.mxu0
          %v7769 = vadd.f32 %v7600, %v7768
          %v7770 = vpop.f32.mrf.mxu0
          %v7771 = vadd.f32 %v7602, %v7770
          %7772 = vmatmul.bf16.gmra.mxu0 %v6286
          %v7773 = vpop.f32.mrf.mxu0
          %v7774 = vadd.f32 %v7605, %v7773
          %v7775 = vpop.f32.mrf.mxu0
          %v7776 = vadd.f32 %v7607, %v7775
          %7777 = vmatmul.bf16.gmra.mxu0 %v6294
          %v7778 = vpop.f32.mrf.mxu0
          %v7779 = vadd.f32 %v7610, %v7778
          %v7780 = vpop.f32.mrf.mxu0
          %v7781 = vadd.f32 %v7612, %v7780
          %7782 = vdwg.mxu0
          %7783 = vmatpush.bf16.msra.mxu0 %v6857
          %7784 = vmatpush.bf16.msra.mxu0 %v6856
          %7785 = vmatpush.bf16.msra.mxu0 %v6855
          %7786 = vmatpush.bf16.msra.mxu0 %v6854
          %7787 = vmatpush.bf16.msra.mxu0 %v6853
          %7788 = vmatpush.bf16.msra.mxu0 %v6852
          %7789 = vmatpush.bf16.msra.mxu0 %v6851
          %7790 = vmatpush.bf16.msra.mxu0 %v6850
          %7791 = vmatmul.bf16.gmra.mxu0 %v6047
          %v7792 = vpop.f32.mrf.mxu0
          %v7793 = vadd.f32 %v7624, %v7792
          %v7794 = vpop.f32.mrf.mxu0
          %v7795 = vadd.f32 %v7626, %v7794
          %7796 = vmatmul.bf16.gmra.mxu0 %v6055
          %v7797 = vpop.f32.mrf.mxu0
          %v7798 = vadd.f32 %v7629, %v7797
          %v7799 = vpop.f32.mrf.mxu0
          %v7800 = vadd.f32 %v7631, %v7799
          %7801 = vmatmul.bf16.gmra.mxu0 %v6063
          %v7802 = vpop.f32.mrf.mxu0
          %v7803 = vadd.f32 %v7634, %v7802
          %v7804 = vpop.f32.mrf.mxu0
          %v7805 = vadd.f32 %v7636, %v7804
          %7806 = vmatmul.bf16.gmra.mxu0 %v6071
          %v7807 = vpop.f32.mrf.mxu0
          %v7808 = vadd.f32 %v7639, %v7807
          %v7809 = vpop.f32.mrf.mxu0
          %v7810 = vadd.f32 %v7641, %v7809
          %7811 = vmatmul.bf16.gmra.mxu0 %v6079
          %v7812 = vpop.f32.mrf.mxu0
          %v7813 = vadd.f32 %v7644, %v7812
          %v7814 = vpop.f32.mrf.mxu0
          %v7815 = vadd.f32 %v7646, %v7814
          %7816 = vmatmul.bf16.gmra.mxu0 %v6087
          %v7817 = vpop.f32.mrf.mxu0
          %v7818 = vadd.f32 %v7649, %v7817
          %v7819 = vpop.f32.mrf.mxu0
          %v7820 = vadd.f32 %v7651, %v7819
          %7821 = vmatmul.bf16.gmra.mxu0 %v6095
          %v7822 = vpop.f32.mrf.mxu0
          %v7823 = vadd.f32 %v7654, %v7822
          %v7824 = vpop.f32.mrf.mxu0
          %v7825 = vadd.f32 %v7656, %v7824
          %7826 = vmatmul.bf16.gmra.mxu0 %v6103
          %v7827 = vpop.f32.mrf.mxu0
          %v7828 = vadd.f32 %v7659, %v7827
          %v7829 = vpop.f32.mrf.mxu0
          %v7830 = vadd.f32 %v7661, %v7829
          %7831 = vmatmul.bf16.gmra.mxu0 %v6111
          %v7832 = vpop.f32.mrf.mxu0
          %v7833 = vadd.f32 %v7664, %v7832
          %v7834 = vpop.f32.mrf.mxu0
          %v7835 = vadd.f32 %v7666, %v7834
          %7836 = vmatmul.bf16.gmra.mxu0 %v6119
          %v7837 = vpop.f32.mrf.mxu0
          %v7838 = vadd.f32 %v7669, %v7837
          %v7839 = vpop.f32.mrf.mxu0
          %v7840 = vadd.f32 %v7671, %v7839
          %7841 = vmatmul.bf16.gmra.mxu0 %v6127
          %v7842 = vpop.f32.mrf.mxu0
          %v7843 = vadd.f32 %v7674, %v7842
          %v7844 = vpop.f32.mrf.mxu0
          %v7845 = vadd.f32 %v7676, %v7844
          %7846 = vmatmul.bf16.gmra.mxu0 %v6135
          %v7847 = vpop.f32.mrf.mxu0
          %v7848 = vadd.f32 %v7679, %v7847
          %v7849 = vpop.f32.mrf.mxu0
          %v7850 = vadd.f32 %v7681, %v7849
          %7851 = vmatmul.bf16.gmra.mxu0 %v6143
          %v7852 = vpop.f32.mrf.mxu0
          %v7853 = vadd.f32 %v7684, %v7852
          %v7854 = vpop.f32.mrf.mxu0
          %v7855 = vadd.f32 %v7686, %v7854
          %7856 = vmatmul.bf16.gmra.mxu0 %v6151
          %v7857 = vpop.f32.mrf.mxu0
          %v7858 = vadd.f32 %v7689, %v7857
          %v7859 = vpop.f32.mrf.mxu0
          %v7860 = vadd.f32 %v7691, %v7859
          %7861 = vmatmul.bf16.gmra.mxu0 %v6159
          %v7862 = vpop.f32.mrf.mxu0
          %v7863 = vadd.f32 %v7694, %v7862
          %v7864 = vpop.f32.mrf.mxu0
          %v7865 = vadd.f32 %v7696, %v7864
          %7866 = vmatmul.bf16.gmra.mxu0 %v6167
          %v7867 = vpop.f32.mrf.mxu0
          %v7868 = vadd.f32 %v7699, %v7867
          %v7869 = vpop.f32.mrf.mxu0
          %v7870 = vadd.f32 %v7701, %v7869
          %7871 = vmatmul.bf16.gmra.mxu0 %v6175
          %v7872 = vpop.f32.mrf.mxu0
          %v7873 = vadd.f32 %v7704, %v7872
          %v7874 = vpop.f32.mrf.mxu0
          %v7875 = vadd.f32 %v7706, %v7874
          %7876 = vmatmul.bf16.gmra.mxu0 %v6183
          %v7877 = vpop.f32.mrf.mxu0
          %v7878 = vadd.f32 %v7709, %v7877
          %v7879 = vpop.f32.mrf.mxu0
          %v7880 = vadd.f32 %v7711, %v7879
          %7881 = vmatmul.bf16.gmra.mxu0 %v6191
          %v7882 = vpop.f32.mrf.mxu0
          %v7883 = vadd.f32 %v7714, %v7882
          %v7884 = vpop.f32.mrf.mxu0
          %v7885 = vadd.f32 %v7716, %v7884
          %7886 = vmatmul.bf16.gmra.mxu0 %v6199
          %v7887 = vpop.f32.mrf.mxu0
          %v7888 = vadd.f32 %v7719, %v7887
          %v7889 = vpop.f32.mrf.mxu0
          %v7890 = vadd.f32 %v7721, %v7889
          %7891 = vmatmul.bf16.gmra.mxu0 %v6207
          %v7892 = vpop.f32.mrf.mxu0
          %v7893 = vadd.f32 %v7724, %v7892
          %v7894 = vpop.f32.mrf.mxu0
          %v7895 = vadd.f32 %v7726, %v7894
          %7896 = vmatmul.bf16.gmra.mxu0 %v6215
          %v7897 = vpop.f32.mrf.mxu0
          %v7898 = vadd.f32 %v7729, %v7897
          %v7899 = vpop.f32.mrf.mxu0
          %v7900 = vadd.f32 %v7731, %v7899
          %7901 = vmatmul.bf16.gmra.mxu0 %v6223
          %v7902 = vpop.f32.mrf.mxu0
          %v7903 = vadd.f32 %v7734, %v7902
          %v7904 = vpop.f32.mrf.mxu0
          %v7905 = vadd.f32 %v7736, %v7904
          %7906 = vmatmul.bf16.gmra.mxu0 %v6231
          %v7907 = vpop.f32.mrf.mxu0
          %v7908 = vadd.f32 %v7739, %v7907
          %v7909 = vpop.f32.mrf.mxu0
          %v7910 = vadd.f32 %v7741, %v7909
          %7911 = vmatmul.bf16.gmra.mxu0 %v6239
          %v7912 = vpop.f32.mrf.mxu0
          %v7913 = vadd.f32 %v7744, %v7912
          %v7914 = vpop.f32.mrf.mxu0
          %v7915 = vadd.f32 %v7746, %v7914
          %7916 = vmatmul.bf16.gmra.mxu0 %v6247
          %v7917 = vpop.f32.mrf.mxu0
          %v7918 = vadd.f32 %v7749, %v7917
          %v7919 = vpop.f32.mrf.mxu0
          %v7920 = vadd.f32 %v7751, %v7919
          %7921 = vmatmul.bf16.gmra.mxu0 %v6255
          %v7922 = vpop.f32.mrf.mxu0
          %v7923 = vadd.f32 %v7754, %v7922
          %v7924 = vpop.f32.mrf.mxu0
          %v7925 = vadd.f32 %v7756, %v7924
          %7926 = vmatmul.bf16.gmra.mxu0 %v6263
          %v7927 = vpop.f32.mrf.mxu0
          %v7928 = vadd.f32 %v7759, %v7927
          %v7929 = vpop.f32.mrf.mxu0
          %v7930 = vadd.f32 %v7761, %v7929
          %7931 = vmatmul.bf16.gmra.mxu0 %v6271
          %v7932 = vpop.f32.mrf.mxu0
          %v7933 = vadd.f32 %v7764, %v7932
          %v7934 = vpop.f32.mrf.mxu0
          %v7935 = vadd.f32 %v7766, %v7934
          %7936 = vmatmul.bf16.gmra.mxu0 %v6279
          %v7937 = vpop.f32.mrf.mxu0
          %v7938 = vadd.f32 %v7769, %v7937
          %v7939 = vpop.f32.mrf.mxu0
          %v7940 = vadd.f32 %v7771, %v7939
          %7941 = vmatmul.bf16.gmra.mxu0 %v6287
          %v7942 = vpop.f32.mrf.mxu0
          %v7943 = vadd.f32 %v7774, %v7942
          %v7944 = vpop.f32.mrf.mxu0
          %v7945 = vadd.f32 %v7776, %v7944
          %7946 = vmatmul.bf16.gmra.mxu0 %v6295
          %v7947 = vpop.f32.mrf.mxu0
          %v7948 = vadd.f32 %v7779, %v7947
          %v7949 = vpop.f32.mrf.mxu0
          %v7950 = vadd.f32 %v7781, %v7949
          %7951 = vdwg.mxu0
          %7952 = vmatpush.bf16.msra.mxu0 %v6865
          %7953 = vmatpush.bf16.msra.mxu0 %v6864
          %7954 = vmatpush.bf16.msra.mxu0 %v6863
          %7955 = vmatpush.bf16.msra.mxu0 %v6862
          %7956 = vmatpush.bf16.msra.mxu0 %v6861
          %7957 = vmatpush.bf16.msra.mxu0 %v6860
          %7958 = vmatpush.bf16.msra.mxu0 %v6859
          %7959 = vmatpush.bf16.msra.mxu0 %v6858
          %7960 = vmatmul.bf16.gmra.mxu0 %v6048
          %v7961 = vpop.f32.mrf.mxu0
          %v7962 = vadd.f32 %v7793, %v7961
          %v7963 = vpop.f32.mrf.mxu0
          %v7964 = vadd.f32 %v7795, %v7963
          %7965 = vmatmul.bf16.gmra.mxu0 %v6056
          %v7966 = vpop.f32.mrf.mxu0
          %v7967 = vadd.f32 %v7798, %v7966
          %v7968 = vpop.f32.mrf.mxu0
          %v7969 = vadd.f32 %v7800, %v7968
          %7970 = vmatmul.bf16.gmra.mxu0 %v6064
          %v7971 = vpop.f32.mrf.mxu0
          %v7972 = vadd.f32 %v7803, %v7971
          %v7973 = vpop.f32.mrf.mxu0
          %v7974 = vadd.f32 %v7805, %v7973
          %7975 = vmatmul.bf16.gmra.mxu0 %v6072
          %v7976 = vpop.f32.mrf.mxu0
          %v7977 = vadd.f32 %v7808, %v7976
          %v7978 = vpop.f32.mrf.mxu0
          %v7979 = vadd.f32 %v7810, %v7978
          %7980 = vmatmul.bf16.gmra.mxu0 %v6080
          %v7981 = vpop.f32.mrf.mxu0
          %v7982 = vadd.f32 %v7813, %v7981
          %v7983 = vpop.f32.mrf.mxu0
          %v7984 = vadd.f32 %v7815, %v7983
          %7985 = vmatmul.bf16.gmra.mxu0 %v6088
          %v7986 = vpop.f32.mrf.mxu0
          %v7987 = vadd.f32 %v7818, %v7986
          %v7988 = vpop.f32.mrf.mxu0
          %v7989 = vadd.f32 %v7820, %v7988
          %7990 = vmatmul.bf16.gmra.mxu0 %v6096
          %v7991 = vpop.f32.mrf.mxu0
          %v7992 = vadd.f32 %v7823, %v7991
          %v7993 = vpop.f32.mrf.mxu0
          %v7994 = vadd.f32 %v7825, %v7993
          %7995 = vmatmul.bf16.gmra.mxu0 %v6104
          %v7996 = vpop.f32.mrf.mxu0
          %v7997 = vadd.f32 %v7828, %v7996
          %v7998 = vpop.f32.mrf.mxu0
          %v7999 = vadd.f32 %v7830, %v7998
          %8000 = vmatmul.bf16.gmra.mxu0 %v6112
          %v8001 = vpop.f32.mrf.mxu0
          %v8002 = vadd.f32 %v7833, %v8001
          %v8003 = vpop.f32.mrf.mxu0
          %v8004 = vadd.f32 %v7835, %v8003
          %8005 = vmatmul.bf16.gmra.mxu0 %v6120
          %v8006 = vpop.f32.mrf.mxu0
          %v8007 = vadd.f32 %v7838, %v8006
          %v8008 = vpop.f32.mrf.mxu0
          %v8009 = vadd.f32 %v7840, %v8008
          %8010 = vmatmul.bf16.gmra.mxu0 %v6128
          %v8011 = vpop.f32.mrf.mxu0
          %v8012 = vadd.f32 %v7843, %v8011
          %v8013 = vpop.f32.mrf.mxu0
          %v8014 = vadd.f32 %v7845, %v8013
          %8015 = vmatmul.bf16.gmra.mxu0 %v6136
          %v8016 = vpop.f32.mrf.mxu0
          %v8017 = vadd.f32 %v7848, %v8016
          %v8018 = vpop.f32.mrf.mxu0
          %v8019 = vadd.f32 %v7850, %v8018
          %8020 = vmatmul.bf16.gmra.mxu0 %v6144
          %v8021 = vpop.f32.mrf.mxu0
          %v8022 = vadd.f32 %v7853, %v8021
          %v8023 = vpop.f32.mrf.mxu0
          %v8024 = vadd.f32 %v7855, %v8023
          %8025 = vmatmul.bf16.gmra.mxu0 %v6152
          %v8026 = vpop.f32.mrf.mxu0
          %v8027 = vadd.f32 %v7858, %v8026
          %v8028 = vpop.f32.mrf.mxu0
          %v8029 = vadd.f32 %v7860, %v8028
          %8030 = vmatmul.bf16.gmra.mxu0 %v6160
          %v8031 = vpop.f32.mrf.mxu0
          %v8032 = vadd.f32 %v7863, %v8031
          %v8033 = vpop.f32.mrf.mxu0
          %v8034 = vadd.f32 %v7865, %v8033
          %8035 = vmatmul.bf16.gmra.mxu0 %v6168
          %v8036 = vpop.f32.mrf.mxu0
          %v8037 = vadd.f32 %v7868, %v8036
          %v8038 = vpop.f32.mrf.mxu0
          %v8039 = vadd.f32 %v7870, %v8038
          %8040 = vmatmul.bf16.gmra.mxu0 %v6176
          %v8041 = vpop.f32.mrf.mxu0
          %v8042 = vadd.f32 %v7873, %v8041
          %v8043 = vpop.f32.mrf.mxu0
          %v8044 = vadd.f32 %v7875, %v8043
          %8045 = vmatmul.bf16.gmra.mxu0 %v6184
          %v8046 = vpop.f32.mrf.mxu0
          %v8047 = vadd.f32 %v7878, %v8046
          %v8048 = vpop.f32.mrf.mxu0
          %v8049 = vadd.f32 %v7880, %v8048
          %8050 = vmatmul.bf16.gmra.mxu0 %v6192
          %v8051 = vpop.f32.mrf.mxu0
          %v8052 = vadd.f32 %v7883, %v8051
          %v8053 = vpop.f32.mrf.mxu0
          %v8054 = vadd.f32 %v7885, %v8053
          %8055 = vmatmul.bf16.gmra.mxu0 %v6200
          %v8056 = vpop.f32.mrf.mxu0
          %v8057 = vadd.f32 %v7888, %v8056
          %v8058 = vpop.f32.mrf.mxu0
          %v8059 = vadd.f32 %v7890, %v8058
          %8060 = vmatmul.bf16.gmra.mxu0 %v6208
          %v8061 = vpop.f32.mrf.mxu0
          %v8062 = vadd.f32 %v7893, %v8061
          %v8063 = vpop.f32.mrf.mxu0
          %v8064 = vadd.f32 %v7895, %v8063
          %8065 = vmatmul.bf16.gmra.mxu0 %v6216
          %v8066 = vpop.f32.mrf.mxu0
          %v8067 = vadd.f32 %v7898, %v8066
          %v8068 = vpop.f32.mrf.mxu0
          %v8069 = vadd.f32 %v7900, %v8068
          %8070 = vmatmul.bf16.gmra.mxu0 %v6224
          %v8071 = vpop.f32.mrf.mxu0
          %v8072 = vadd.f32 %v7903, %v8071
          %v8073 = vpop.f32.mrf.mxu0
          %v8074 = vadd.f32 %v7905, %v8073
          %8075 = vmatmul.bf16.gmra.mxu0 %v6232
          %v8076 = vpop.f32.mrf.mxu0
          %v8077 = vadd.f32 %v7908, %v8076
          %v8078 = vpop.f32.mrf.mxu0
          %v8079 = vadd.f32 %v7910, %v8078
          %8080 = vmatmul.bf16.gmra.mxu0 %v6240
          %v8081 = vpop.f32.mrf.mxu0
          %v8082 = vadd.f32 %v7913, %v8081
          %v8083 = vpop.f32.mrf.mxu0
          %v8084 = vadd.f32 %v7915, %v8083
          %8085 = vmatmul.bf16.gmra.mxu0 %v6248
          %v8086 = vpop.f32.mrf.mxu0
          %v8087 = vadd.f32 %v7918, %v8086
          %v8088 = vpop.f32.mrf.mxu0
          %v8089 = vadd.f32 %v7920, %v8088
          %8090 = vmatmul.bf16.gmra.mxu0 %v6256
          %v8091 = vpop.f32.mrf.mxu0
          %v8092 = vadd.f32 %v7923, %v8091
          %v8093 = vpop.f32.mrf.mxu0
          %v8094 = vadd.f32 %v7925, %v8093
          %8095 = vmatmul.bf16.gmra.mxu0 %v6264
          %v8096 = vpop.f32.mrf.mxu0
          %v8097 = vadd.f32 %v7928, %v8096
          %v8098 = vpop.f32.mrf.mxu0
          %v8099 = vadd.f32 %v7930, %v8098
          %8100 = vmatmul.bf16.gmra.mxu0 %v6272
          %v8101 = vpop.f32.mrf.mxu0
          %v8102 = vadd.f32 %v7933, %v8101
          %v8103 = vpop.f32.mrf.mxu0
          %v8104 = vadd.f32 %v7935, %v8103
          %8105 = vmatmul.bf16.gmra.mxu0 %v6280
          %v8106 = vpop.f32.mrf.mxu0
          %v8107 = vadd.f32 %v7938, %v8106
          %v8108 = vpop.f32.mrf.mxu0
          %v8109 = vadd.f32 %v7940, %v8108
          %8110 = vmatmul.bf16.gmra.mxu0 %v6288
          %v8111 = vpop.f32.mrf.mxu0
          %v8112 = vadd.f32 %v7943, %v8111
          %v8113 = vpop.f32.mrf.mxu0
          %v8114 = vadd.f32 %v7945, %v8113
          %8115 = vmatmul.bf16.gmra.mxu0 %v6296
          %v8116 = vpop.f32.mrf.mxu0
          %v8117 = vadd.f32 %v7948, %v8116
          %v8118 = vpop.f32.mrf.mxu0
          %v8119 = vadd.f32 %v7950, %v8118
          %8120 = vdwg.mxu0
          %8121 = vmatpush.bf16.msra.mxu0 %v6873
          %8122 = vmatpush.bf16.msra.mxu0 %v6872
          %8123 = vmatpush.bf16.msra.mxu0 %v6871
          %8124 = vmatpush.bf16.msra.mxu0 %v6870
          %8125 = vmatpush.bf16.msra.mxu0 %v6869
          %8126 = vmatpush.bf16.msra.mxu0 %v6868
          %8127 = vmatpush.bf16.msra.mxu0 %v6867
          %8128 = vmatpush.bf16.msra.mxu0 %v6866
          %8129 = vmatmul.bf16.gmra.mxu0 %v6049
          %v8130 = vpop.f32.mrf.mxu0
          %v8131 = vadd.f32 %v7962, %v8130
          %v8132 = vpop.f32.mrf.mxu0
          %v8133 = vadd.f32 %v7964, %v8132
          %8134 = vmatmul.bf16.gmra.mxu0 %v6057
          %v8135 = vpop.f32.mrf.mxu0
          %v8136 = vadd.f32 %v7967, %v8135
          %v8137 = vpop.f32.mrf.mxu0
          %v8138 = vadd.f32 %v7969, %v8137
          %8139 = vmatmul.bf16.gmra.mxu0 %v6065
          %v8140 = vpop.f32.mrf.mxu0
          %v8141 = vadd.f32 %v7972, %v8140
          %v8142 = vpop.f32.mrf.mxu0
          %v8143 = vadd.f32 %v7974, %v8142
          %8144 = vmatmul.bf16.gmra.mxu0 %v6073
          %v8145 = vpop.f32.mrf.mxu0
          %v8146 = vadd.f32 %v7977, %v8145
          %v8147 = vpop.f32.mrf.mxu0
          %v8148 = vadd.f32 %v7979, %v8147
          %8149 = vmatmul.bf16.gmra.mxu0 %v6081
          %v8150 = vpop.f32.mrf.mxu0
          %v8151 = vadd.f32 %v7982, %v8150
          %v8152 = vpop.f32.mrf.mxu0
          %v8153 = vadd.f32 %v7984, %v8152
          %8154 = vmatmul.bf16.gmra.mxu0 %v6089
          %v8155 = vpop.f32.mrf.mxu0
          %v8156 = vadd.f32 %v7987, %v8155
          %v8157 = vpop.f32.mrf.mxu0
          %v8158 = vadd.f32 %v7989, %v8157
          %8159 = vmatmul.bf16.gmra.mxu0 %v6097
          %v8160 = vpop.f32.mrf.mxu0
          %v8161 = vadd.f32 %v7992, %v8160
          %v8162 = vpop.f32.mrf.mxu0
          %v8163 = vadd.f32 %v7994, %v8162
          %8164 = vmatmul.bf16.gmra.mxu0 %v6105
          %v8165 = vpop.f32.mrf.mxu0
          %v8166 = vadd.f32 %v7997, %v8165
          %v8167 = vpop.f32.mrf.mxu0
          %v8168 = vadd.f32 %v7999, %v8167
          %8169 = vmatmul.bf16.gmra.mxu0 %v6113
          %v8170 = vpop.f32.mrf.mxu0
          %v8171 = vadd.f32 %v8002, %v8170
          %v8172 = vpop.f32.mrf.mxu0
          %v8173 = vadd.f32 %v8004, %v8172
          %8174 = vmatmul.bf16.gmra.mxu0 %v6121
          %v8175 = vpop.f32.mrf.mxu0
          %v8176 = vadd.f32 %v8007, %v8175
          %v8177 = vpop.f32.mrf.mxu0
          %v8178 = vadd.f32 %v8009, %v8177
          %8179 = vmatmul.bf16.gmra.mxu0 %v6129
          %v8180 = vpop.f32.mrf.mxu0
          %v8181 = vadd.f32 %v8012, %v8180
          %v8182 = vpop.f32.mrf.mxu0
          %v8183 = vadd.f32 %v8014, %v8182
          %8184 = vmatmul.bf16.gmra.mxu0 %v6137
          %v8185 = vpop.f32.mrf.mxu0
          %v8186 = vadd.f32 %v8017, %v8185
          %v8187 = vpop.f32.mrf.mxu0
          %v8188 = vadd.f32 %v8019, %v8187
          %8189 = vmatmul.bf16.gmra.mxu0 %v6145
          %v8190 = vpop.f32.mrf.mxu0
          %v8191 = vadd.f32 %v8022, %v8190
          %v8192 = vpop.f32.mrf.mxu0
          %v8193 = vadd.f32 %v8024, %v8192
          %8194 = vmatmul.bf16.gmra.mxu0 %v6153
          %v8195 = vpop.f32.mrf.mxu0
          %v8196 = vadd.f32 %v8027, %v8195
          %v8197 = vpop.f32.mrf.mxu0
          %v8198 = vadd.f32 %v8029, %v8197
          %8199 = vmatmul.bf16.gmra.mxu0 %v6161
          %v8200 = vpop.f32.mrf.mxu0
          %v8201 = vadd.f32 %v8032, %v8200
          %v8202 = vpop.f32.mrf.mxu0
          %v8203 = vadd.f32 %v8034, %v8202
          %8204 = vmatmul.bf16.gmra.mxu0 %v6169
          %v8205 = vpop.f32.mrf.mxu0
          %v8206 = vadd.f32 %v8037, %v8205
          %v8207 = vpop.f32.mrf.mxu0
          %v8208 = vadd.f32 %v8039, %v8207
          %8209 = vmatmul.bf16.gmra.mxu0 %v6177
          %v8210 = vpop.f32.mrf.mxu0
          %v8211 = vadd.f32 %v8042, %v8210
          %v8212 = vpop.f32.mrf.mxu0
          %v8213 = vadd.f32 %v8044, %v8212
          %8214 = vmatmul.bf16.gmra.mxu0 %v6185
          %v8215 = vpop.f32.mrf.mxu0
          %v8216 = vadd.f32 %v8047, %v8215
          %v8217 = vpop.f32.mrf.mxu0
          %v8218 = vadd.f32 %v8049, %v8217
          %8219 = vmatmul.bf16.gmra.mxu0 %v6193
          %v8220 = vpop.f32.mrf.mxu0
          %v8221 = vadd.f32 %v8052, %v8220
          %v8222 = vpop.f32.mrf.mxu0
          %v8223 = vadd.f32 %v8054, %v8222
          %8224 = vmatmul.bf16.gmra.mxu0 %v6201
          %v8225 = vpop.f32.mrf.mxu0
          %v8226 = vadd.f32 %v8057, %v8225
          %v8227 = vpop.f32.mrf.mxu0
          %v8228 = vadd.f32 %v8059, %v8227
          %8229 = vmatmul.bf16.gmra.mxu0 %v6209
          %v8230 = vpop.f32.mrf.mxu0
          %v8231 = vadd.f32 %v8062, %v8230
          %v8232 = vpop.f32.mrf.mxu0
          %v8233 = vadd.f32 %v8064, %v8232
          %8234 = vmatmul.bf16.gmra.mxu0 %v6217
          %v8235 = vpop.f32.mrf.mxu0
          %v8236 = vadd.f32 %v8067, %v8235
          %v8237 = vpop.f32.mrf.mxu0
          %v8238 = vadd.f32 %v8069, %v8237
          %8239 = vmatmul.bf16.gmra.mxu0 %v6225
          %v8240 = vpop.f32.mrf.mxu0
          %v8241 = vadd.f32 %v8072, %v8240
          %v8242 = vpop.f32.mrf.mxu0
          %v8243 = vadd.f32 %v8074, %v8242
          %8244 = vmatmul.bf16.gmra.mxu0 %v6233
          %v8245 = vpop.f32.mrf.mxu0
          %v8246 = vadd.f32 %v8077, %v8245
          %v8247 = vpop.f32.mrf.mxu0
          %v8248 = vadd.f32 %v8079, %v8247
          %8249 = vmatmul.bf16.gmra.mxu0 %v6241
          %v8250 = vpop.f32.mrf.mxu0
          %v8251 = vadd.f32 %v8082, %v8250
          %v8252 = vpop.f32.mrf.mxu0
          %v8253 = vadd.f32 %v8084, %v8252
          %8254 = vmatmul.bf16.gmra.mxu0 %v6249
          %v8255 = vpop.f32.mrf.mxu0
          %v8256 = vadd.f32 %v8087, %v8255
          %v8257 = vpop.f32.mrf.mxu0
          %v8258 = vadd.f32 %v8089, %v8257
          %8259 = vmatmul.bf16.gmra.mxu0 %v6257
          %v8260 = vpop.f32.mrf.mxu0
          %v8261 = vadd.f32 %v8092, %v8260
          %v8262 = vpop.f32.mrf.mxu0
          %v8263 = vadd.f32 %v8094, %v8262
          %8264 = vmatmul.bf16.gmra.mxu0 %v6265
          %v8265 = vpop.f32.mrf.mxu0
          %v8266 = vadd.f32 %v8097, %v8265
          %v8267 = vpop.f32.mrf.mxu0
          %v8268 = vadd.f32 %v8099, %v8267
          %8269 = vmatmul.bf16.gmra.mxu0 %v6273
          %v8270 = vpop.f32.mrf.mxu0
          %v8271 = vadd.f32 %v8102, %v8270
          %v8272 = vpop.f32.mrf.mxu0
          %v8273 = vadd.f32 %v8104, %v8272
          %8274 = vmatmul.bf16.gmra.mxu0 %v6281
          %v8275 = vpop.f32.mrf.mxu0
          %v8276 = vadd.f32 %v8107, %v8275
          %v8277 = vpop.f32.mrf.mxu0
          %v8278 = vadd.f32 %v8109, %v8277
          %8279 = vmatmul.bf16.gmra.mxu0 %v6289
          %v8280 = vpop.f32.mrf.mxu0
          %v8281 = vadd.f32 %v8112, %v8280
          %v8282 = vpop.f32.mrf.mxu0
          %v8283 = vadd.f32 %v8114, %v8282
          %8284 = vmatmul.bf16.gmra.mxu0 %v6297
          %v8285 = vpop.f32.mrf.mxu0
          %v8286 = vadd.f32 %v8117, %v8285
          %v8287 = vpop.f32.mrf.mxu0
          %v8288 = vadd.f32 %v8119, %v8287
          %8289 = vdwg.mxu0
          %8290 = vmax.xlane.f32.xlu0 %v8131
          %v8291 = vpop.xlane.xlu0 %8290
          %8292 = vmax.xlane.f32.xlu0 %v8133
          %v8293 = vpop.xlane.xlu0 %8292
          %8294 = vmax.xlane.f32.xlu0 %v8136
          %v8295 = vpop.xlane.xlu0 %8294
          %8296 = vmax.xlane.f32.xlu0 %v8138
          %v8297 = vpop.xlane.xlu0 %8296
          %8298 = vmax.xlane.f32.xlu0 %v8141
          %v8299 = vpop.xlane.xlu0 %8298
          %8300 = vmax.xlane.f32.xlu0 %v8143
          %v8301 = vpop.xlane.xlu0 %8300
          %8302 = vmax.xlane.f32.xlu0 %v8146
          %v8303 = vpop.xlane.xlu0 %8302
          %8304 = vmax.xlane.f32.xlu0 %v8148
          %v8305 = vpop.xlane.xlu0 %8304
          %8306 = vmax.xlane.f32.xlu0 %v8151
          %v8307 = vpop.xlane.xlu0 %8306
          %8308 = vmax.xlane.f32.xlu0 %v8153
          %v8309 = vpop.xlane.xlu0 %8308
          %8310 = vmax.xlane.f32.xlu0 %v8156
          %v8311 = vpop.xlane.xlu0 %8310
          %8312 = vmax.xlane.f32.xlu0 %v8158
          %v8313 = vpop.xlane.xlu0 %8312
          %8314 = vmax.xlane.f32.xlu0 %v8161
          %v8315 = vpop.xlane.xlu0 %8314
          %8316 = vmax.xlane.f32.xlu0 %v8163
          %v8317 = vpop.xlane.xlu0 %8316
          %8318 = vmax.xlane.f32.xlu0 %v8166
          %v8319 = vpop.xlane.xlu0 %8318
          %8320 = vmax.xlane.f32.xlu0 %v8168
          %v8321 = vpop.xlane.xlu0 %8320
          %8322 = vmax.xlane.f32.xlu0 %v8171
          %v8323 = vpop.xlane.xlu0 %8322
          %8324 = vmax.xlane.f32.xlu0 %v8173
          %v8325 = vpop.xlane.xlu0 %8324
          %8326 = vmax.xlane.f32.xlu0 %v8176
          %v8327 = vpop.xlane.xlu0 %8326
          %8328 = vmax.xlane.f32.xlu0 %v8178
          %v8329 = vpop.xlane.xlu0 %8328
          %8330 = vmax.xlane.f32.xlu0 %v8181
          %v8331 = vpop.xlane.xlu0 %8330
          %8332 = vmax.xlane.f32.xlu0 %v8183
          %v8333 = vpop.xlane.xlu0 %8332
          %8334 = vmax.xlane.f32.xlu0 %v8186
          %v8335 = vpop.xlane.xlu0 %8334
          %8336 = vmax.xlane.f32.xlu0 %v8188
          %v8337 = vpop.xlane.xlu0 %8336
          %8338 = vmax.xlane.f32.xlu0 %v8191
          %v8339 = vpop.xlane.xlu0 %8338
          %8340 = vmax.xlane.f32.xlu0 %v8193
          %v8341 = vpop.xlane.xlu0 %8340
          %8342 = vmax.xlane.f32.xlu0 %v8196
          %v8343 = vpop.xlane.xlu0 %8342
          %8344 = vmax.xlane.f32.xlu0 %v8198
          %v8345 = vpop.xlane.xlu0 %8344
          %8346 = vmax.xlane.f32.xlu0 %v8201
          %v8347 = vpop.xlane.xlu0 %8346
          %8348 = vmax.xlane.f32.xlu0 %v8203
          %v8349 = vpop.xlane.xlu0 %8348
          %8350 = vmax.xlane.f32.xlu0 %v8206
          %v8351 = vpop.xlane.xlu0 %8350
          %8352 = vmax.xlane.f32.xlu0 %v8208
          %v8353 = vpop.xlane.xlu0 %8352
          %8354 = vmax.xlane.f32.xlu0 %v8211
          %v8355 = vpop.xlane.xlu0 %8354
          %8356 = vmax.xlane.f32.xlu0 %v8213
          %v8357 = vpop.xlane.xlu0 %8356
          %8358 = vmax.xlane.f32.xlu0 %v8216
          %v8359 = vpop.xlane.xlu0 %8358
          %8360 = vmax.xlane.f32.xlu0 %v8218
          %v8361 = vpop.xlane.xlu0 %8360
          %8362 = vmax.xlane.f32.xlu0 %v8221
          %v8363 = vpop.xlane.xlu0 %8362
          %8364 = vmax.xlane.f32.xlu0 %v8223
          %v8365 = vpop.xlane.xlu0 %8364
          %8366 = vmax.xlane.f32.xlu0 %v8226
          %v8367 = vpop.xlane.xlu0 %8366
          %8368 = vmax.xlane.f32.xlu0 %v8228
          %v8369 = vpop.xlane.xlu0 %8368
          %8370 = vmax.xlane.f32.xlu0 %v8231
          %v8371 = vpop.xlane.xlu0 %8370
          %8372 = vmax.xlane.f32.xlu0 %v8233
          %v8373 = vpop.xlane.xlu0 %8372
          %8374 = vmax.xlane.f32.xlu0 %v8236
          %v8375 = vpop.xlane.xlu0 %8374
          %8376 = vmax.xlane.f32.xlu0 %v8238
          %v8377 = vpop.xlane.xlu0 %8376
          %8378 = vmax.xlane.f32.xlu0 %v8241
          %v8379 = vpop.xlane.xlu0 %8378
          %8380 = vmax.xlane.f32.xlu0 %v8243
          %v8381 = vpop.xlane.xlu0 %8380
          %8382 = vmax.xlane.f32.xlu0 %v8246
          %v8383 = vpop.xlane.xlu0 %8382
          %8384 = vmax.xlane.f32.xlu0 %v8248
          %v8385 = vpop.xlane.xlu0 %8384
          %8386 = vmax.xlane.f32.xlu0 %v8251
          %v8387 = vpop.xlane.xlu0 %8386
          %8388 = vmax.xlane.f32.xlu0 %v8253
          %v8389 = vpop.xlane.xlu0 %8388
          %8390 = vmax.xlane.f32.xlu0 %v8256
          %v8391 = vpop.xlane.xlu0 %8390
          %8392 = vmax.xlane.f32.xlu0 %v8258
          %v8393 = vpop.xlane.xlu0 %8392
          %8394 = vmax.xlane.f32.xlu0 %v8261
          %v8395 = vpop.xlane.xlu0 %8394
          %8396 = vmax.xlane.f32.xlu0 %v8263
          %v8397 = vpop.xlane.xlu0 %8396
          %8398 = vmax.xlane.f32.xlu0 %v8266
          %v8399 = vpop.xlane.xlu0 %8398
          %8400 = vmax.xlane.f32.xlu0 %v8268
          %v8401 = vpop.xlane.xlu0 %8400
          %8402 = vmax.xlane.f32.xlu0 %v8271
          %v8403 = vpop.xlane.xlu0 %8402
          %8404 = vmax.xlane.f32.xlu0 %v8273
          %v8405 = vpop.xlane.xlu0 %8404
          %8406 = vmax.xlane.f32.xlu0 %v8276
          %v8407 = vpop.xlane.xlu0 %8406
          %8408 = vmax.xlane.f32.xlu0 %v8278
          %v8409 = vpop.xlane.xlu0 %8408
          %8410 = vmax.xlane.f32.xlu0 %v8281
          %v8411 = vpop.xlane.xlu0 %8410
          %8412 = vmax.xlane.f32.xlu0 %v8283
          %v8413 = vpop.xlane.xlu0 %8412
          %8414 = vmax.xlane.f32.xlu0 %v8286
          %v8415 = vpop.xlane.xlu0 %8414
          %8416 = vmax.xlane.f32.xlu0 %v8288
          %v8417 = vpop.xlane.xlu0 %8416
          %v8418 = vsub.f32 %v8131, %v8291
          %v8419 = vsub.f32 %v8133, %v8293
          %v8420 = vsub.f32 %v8136, %v8295
          %v8421 = vsub.f32 %v8138, %v8297
          %v8422 = vsub.f32 %v8141, %v8299
          %v8423 = vsub.f32 %v8143, %v8301
          %v8424 = vsub.f32 %v8146, %v8303
          %v8425 = vsub.f32 %v8148, %v8305
          %v8426 = vsub.f32 %v8151, %v8307
          %v8427 = vsub.f32 %v8153, %v8309
          %v8428 = vsub.f32 %v8156, %v8311
          %v8429 = vsub.f32 %v8158, %v8313
          %v8430 = vsub.f32 %v8161, %v8315
          %v8431 = vsub.f32 %v8163, %v8317
          %v8432 = vsub.f32 %v8166, %v8319
          %v8433 = vsub.f32 %v8168, %v8321
          %v8434 = vsub.f32 %v8171, %v8323
          %v8435 = vsub.f32 %v8173, %v8325
          %v8436 = vsub.f32 %v8176, %v8327
          %v8437 = vsub.f32 %v8178, %v8329
          %v8438 = vsub.f32 %v8181, %v8331
          %v8439 = vsub.f32 %v8183, %v8333
          %v8440 = vsub.f32 %v8186, %v8335
          %v8441 = vsub.f32 %v8188, %v8337
          %v8442 = vsub.f32 %v8191, %v8339
          %v8443 = vsub.f32 %v8193, %v8341
          %v8444 = vsub.f32 %v8196, %v8343
          %v8445 = vsub.f32 %v8198, %v8345
          %v8446 = vsub.f32 %v8201, %v8347
          %v8447 = vsub.f32 %v8203, %v8349
          %v8448 = vsub.f32 %v8206, %v8351
          %v8449 = vsub.f32 %v8208, %v8353
          %v8450 = vsub.f32 %v8211, %v8355
          %v8451 = vsub.f32 %v8213, %v8357
          %v8452 = vsub.f32 %v8216, %v8359
          %v8453 = vsub.f32 %v8218, %v8361
          %v8454 = vsub.f32 %v8221, %v8363
          %v8455 = vsub.f32 %v8223, %v8365
          %v8456 = vsub.f32 %v8226, %v8367
          %v8457 = vsub.f32 %v8228, %v8369
          %v8458 = vsub.f32 %v8231, %v8371
          %v8459 = vsub.f32 %v8233, %v8373
          %v8460 = vsub.f32 %v8236, %v8375
          %v8461 = vsub.f32 %v8238, %v8377
          %v8462 = vsub.f32 %v8241, %v8379
          %v8463 = vsub.f32 %v8243, %v8381
          %v8464 = vsub.f32 %v8246, %v8383
          %v8465 = vsub.f32 %v8248, %v8385
          %v8466 = vsub.f32 %v8251, %v8387
          %v8467 = vsub.f32 %v8253, %v8389
          %v8468 = vsub.f32 %v8256, %v8391
          %v8469 = vsub.f32 %v8258, %v8393
          %v8470 = vsub.f32 %v8261, %v8395
          %v8471 = vsub.f32 %v8263, %v8397
          %v8472 = vsub.f32 %v8266, %v8399
          %v8473 = vsub.f32 %v8268, %v8401
          %v8474 = vsub.f32 %v8271, %v8403
          %v8475 = vsub.f32 %v8273, %v8405
          %v8476 = vsub.f32 %v8276, %v8407
          %v8477 = vsub.f32 %v8278, %v8409
          %v8478 = vsub.f32 %v8281, %v8411
          %v8479 = vsub.f32 %v8283, %v8413
          %v8480 = vsub.f32 %v8286, %v8415
          %v8481 = vsub.f32 %v8288, %v8417
          %v8482 = vmul.f32 %v8418, 1.442695
          %v8483 = vpow.pop %v8482
          %v8484 = vmul.f32 %v8419, 1.442695
          %v8485 = vpow.pop %v8484
          %v8486 = vmul.f32 %v8420, 1.442695
          %v8487 = vpow.pop %v8486
          %v8488 = vmul.f32 %v8421, 1.442695
          %v8489 = vpow.pop %v8488
          %v8490 = vmul.f32 %v8422, 1.442695
          %v8491 = vpow.pop %v8490
          %v8492 = vmul.f32 %v8423, 1.442695
          %v8493 = vpow.pop %v8492
          %v8494 = vmul.f32 %v8424, 1.442695
          %v8495 = vpow.pop %v8494
          %v8496 = vmul.f32 %v8425, 1.442695
          %v8497 = vpow.pop %v8496
          %v8498 = vmul.f32 %v8426, 1.442695
          %v8499 = vpow.pop %v8498
          %v8500 = vmul.f32 %v8427, 1.442695
          %v8501 = vpow.pop %v8500
          %v8502 = vmul.f32 %v8428, 1.442695
          %v8503 = vpow.pop %v8502
          %v8504 = vmul.f32 %v8429, 1.442695
          %v8505 = vpow.pop %v8504
          %v8506 = vmul.f32 %v8430, 1.442695
          %v8507 = vpow.pop %v8506
          %v8508 = vmul.f32 %v8431, 1.442695
          %v8509 = vpow.pop %v8508
          %v8510 = vmul.f32 %v8432, 1.442695
          %v8511 = vpow.pop %v8510
          %v8512 = vmul.f32 %v8433, 1.442695
          %v8513 = vpow.pop %v8512
          %v8514 = vmul.f32 %v8434, 1.442695
          %v8515 = vpow.pop %v8514
          %v8516 = vmul.f32 %v8435, 1.442695
          %v8517 = vpow.pop %v8516
          %v8518 = vmul.f32 %v8436, 1.442695
          %v8519 = vpow.pop %v8518
          %v8520 = vmul.f32 %v8437, 1.442695
          %v8521 = vpow.pop %v8520
          %v8522 = vmul.f32 %v8438, 1.442695
          %v8523 = vpow.pop %v8522
          %v8524 = vmul.f32 %v8439, 1.442695
          %v8525 = vpow.pop %v8524
          %v8526 = vmul.f32 %v8440, 1.442695
          %v8527 = vpow.pop %v8526
          %v8528 = vmul.f32 %v8441, 1.442695
          %v8529 = vpow.pop %v8528
          %v8530 = vmul.f32 %v8442, 1.442695
          %v8531 = vpow.pop %v8530
          %v8532 = vmul.f32 %v8443, 1.442695
          %v8533 = vpow.pop %v8532
          %v8534 = vmul.f32 %v8444, 1.442695
          %v8535 = vpow.pop %v8534
          %v8536 = vmul.f32 %v8445, 1.442695
          %v8537 = vpow.pop %v8536
          %v8538 = vmul.f32 %v8446, 1.442695
          %v8539 = vpow.pop %v8538
          %v8540 = vmul.f32 %v8447, 1.442695
          %v8541 = vpow.pop %v8540
          %v8542 = vmul.f32 %v8448, 1.442695
          %v8543 = vpow.pop %v8542
          %v8544 = vmul.f32 %v8449, 1.442695
          %v8545 = vpow.pop %v8544
          %v8546 = vmul.f32 %v8450, 1.442695
          %v8547 = vpow.pop %v8546
          %v8548 = vmul.f32 %v8451, 1.442695
          %v8549 = vpow.pop %v8548
          %v8550 = vmul.f32 %v8452, 1.442695
          %v8551 = vpow.pop %v8550
          %v8552 = vmul.f32 %v8453, 1.442695
          %v8553 = vpow.pop %v8552
          %v8554 = vmul.f32 %v8454, 1.442695
          %v8555 = vpow.pop %v8554
          %v8556 = vmul.f32 %v8455, 1.442695
          %v8557 = vpow.pop %v8556
          %v8558 = vmul.f32 %v8456, 1.442695
          %v8559 = vpow.pop %v8558
          %v8560 = vmul.f32 %v8457, 1.442695
          %v8561 = vpow.pop %v8560
          %v8562 = vmul.f32 %v8458, 1.442695
          %v8563 = vpow.pop %v8562
          %v8564 = vmul.f32 %v8459, 1.442695
          %v8565 = vpow.pop %v8564
          %v8566 = vmul.f32 %v8460, 1.442695
          %v8567 = vpow.pop %v8566
          %v8568 = vmul.f32 %v8461, 1.442695
          %v8569 = vpow.pop %v8568
          %v8570 = vmul.f32 %v8462, 1.442695
          %v8571 = vpow.pop %v8570
          %v8572 = vmul.f32 %v8463, 1.442695
          %v8573 = vpow.pop %v8572
          %v8574 = vmul.f32 %v8464, 1.442695
          %v8575 = vpow.pop %v8574
          %v8576 = vmul.f32 %v8465, 1.442695
          %v8577 = vpow.pop %v8576
          %v8578 = vmul.f32 %v8466, 1.442695
          %v8579 = vpow.pop %v8578
          %v8580 = vmul.f32 %v8467, 1.442695
          %v8581 = vpow.pop %v8580
          %v8582 = vmul.f32 %v8468, 1.442695
          %v8583 = vpow.pop %v8582
          %v8584 = vmul.f32 %v8469, 1.442695
          %v8585 = vpow.pop %v8584
          %v8586 = vmul.f32 %v8470, 1.442695
          %v8587 = vpow.pop %v8586
          %v8588 = vmul.f32 %v8471, 1.442695
          %v8589 = vpow.pop %v8588
          %v8590 = vmul.f32 %v8472, 1.442695
          %v8591 = vpow.pop %v8590
          %v8592 = vmul.f32 %v8473, 1.442695
          %v8593 = vpow.pop %v8592
          %v8594 = vmul.f32 %v8474, 1.442695
          %v8595 = vpow.pop %v8594
          %v8596 = vmul.f32 %v8475, 1.442695
          %v8597 = vpow.pop %v8596
          %v8598 = vmul.f32 %v8476, 1.442695
          %v8599 = vpow.pop %v8598
          %v8600 = vmul.f32 %v8477, 1.442695
          %v8601 = vpow.pop %v8600
          %v8602 = vmul.f32 %v8478, 1.442695
          %v8603 = vpow.pop %v8602
          %v8604 = vmul.f32 %v8479, 1.442695
          %v8605 = vpow.pop %v8604
          %v8606 = vmul.f32 %v8480, 1.442695
          %v8607 = vpow.pop %v8606
          %v8608 = vmul.f32 %v8481, 1.442695
          %v8609 = vpow.pop %v8608
          %8610 = vadd.xlane.f32.xlu0 %v8483
          %v8611 = vpop.xlane.xlu0 %8610
          %8612 = vadd.xlane.f32.xlu0 %v8485
          %v8613 = vpop.xlane.xlu0 %8612
          %8614 = vadd.xlane.f32.xlu0 %v8487
          %v8615 = vpop.xlane.xlu0 %8614
          %8616 = vadd.xlane.f32.xlu0 %v8489
          %v8617 = vpop.xlane.xlu0 %8616
          %8618 = vadd.xlane.f32.xlu0 %v8491
          %v8619 = vpop.xlane.xlu0 %8618
          %8620 = vadd.xlane.f32.xlu0 %v8493
          %v8621 = vpop.xlane.xlu0 %8620
          %8622 = vadd.xlane.f32.xlu0 %v8495
          %v8623 = vpop.xlane.xlu0 %8622
          %8624 = vadd.xlane.f32.xlu0 %v8497
          %v8625 = vpop.xlane.xlu0 %8624
          %8626 = vadd.xlane.f32.xlu0 %v8499
          %v8627 = vpop.xlane.xlu0 %8626
          %8628 = vadd.xlane.f32.xlu0 %v8501
          %v8629 = vpop.xlane.xlu0 %8628
          %8630 = vadd.xlane.f32.xlu0 %v8503
          %v8631 = vpop.xlane.xlu0 %8630
          %8632 = vadd.xlane.f32.xlu0 %v8505
          %v8633 = vpop.xlane.xlu0 %8632
          %8634 = vadd.xlane.f32.xlu0 %v8507
          %v8635 = vpop.xlane.xlu0 %8634
          %8636 = vadd.xlane.f32.xlu0 %v8509
          %v8637 = vpop.xlane.xlu0 %8636
          %8638 = vadd.xlane.f32.xlu0 %v8511
          %v8639 = vpop.xlane.xlu0 %8638
          %8640 = vadd.xlane.f32.xlu0 %v8513
          %v8641 = vpop.xlane.xlu0 %8640
          %8642 = vadd.xlane.f32.xlu0 %v8515
          %v8643 = vpop.xlane.xlu0 %8642
          %8644 = vadd.xlane.f32.xlu0 %v8517
          %v8645 = vpop.xlane.xlu0 %8644
          %8646 = vadd.xlane.f32.xlu0 %v8519
          %v8647 = vpop.xlane.xlu0 %8646
          %8648 = vadd.xlane.f32.xlu0 %v8521
          %v8649 = vpop.xlane.xlu0 %8648
          %8650 = vadd.xlane.f32.xlu0 %v8523
          %v8651 = vpop.xlane.xlu0 %8650
          %8652 = vadd.xlane.f32.xlu0 %v8525
          %v8653 = vpop.xlane.xlu0 %8652
          %8654 = vadd.xlane.f32.xlu0 %v8527
          %v8655 = vpop.xlane.xlu0 %8654
          %8656 = vadd.xlane.f32.xlu0 %v8529
          %v8657 = vpop.xlane.xlu0 %8656
          %8658 = vadd.xlane.f32.xlu0 %v8531
          %v8659 = vpop.xlane.xlu0 %8658
          %8660 = vadd.xlane.f32.xlu0 %v8533
          %v8661 = vpop.xlane.xlu0 %8660
          %8662 = vadd.xlane.f32.xlu0 %v8535
          %v8663 = vpop.xlane.xlu0 %8662
          %8664 = vadd.xlane.f32.xlu0 %v8537
          %v8665 = vpop.xlane.xlu0 %8664
          %8666 = vadd.xlane.f32.xlu0 %v8539
          %v8667 = vpop.xlane.xlu0 %8666
          %8668 = vadd.xlane.f32.xlu0 %v8541
          %v8669 = vpop.xlane.xlu0 %8668
          %8670 = vadd.xlane.f32.xlu0 %v8543
          %v8671 = vpop.xlane.xlu0 %8670
          %8672 = vadd.xlane.f32.xlu0 %v8545
          %v8673 = vpop.xlane.xlu0 %8672
          %8674 = vadd.xlane.f32.xlu0 %v8547
          %v8675 = vpop.xlane.xlu0 %8674
          %8676 = vadd.xlane.f32.xlu0 %v8549
          %v8677 = vpop.xlane.xlu0 %8676
          %8678 = vadd.xlane.f32.xlu0 %v8551
          %v8679 = vpop.xlane.xlu0 %8678
          %8680 = vadd.xlane.f32.xlu0 %v8553
          %v8681 = vpop.xlane.xlu0 %8680
          %8682 = vadd.xlane.f32.xlu0 %v8555
          %v8683 = vpop.xlane.xlu0 %8682
          %8684 = vadd.xlane.f32.xlu0 %v8557
          %v8685 = vpop.xlane.xlu0 %8684
          %8686 = vadd.xlane.f32.xlu0 %v8559
          %v8687 = vpop.xlane.xlu0 %8686
          %8688 = vadd.xlane.f32.xlu0 %v8561
          %v8689 = vpop.xlane.xlu0 %8688
          %8690 = vadd.xlane.f32.xlu0 %v8563
          %v8691 = vpop.xlane.xlu0 %8690
          %8692 = vadd.xlane.f32.xlu0 %v8565
          %v8693 = vpop.xlane.xlu0 %8692
          %8694 = vadd.xlane.f32.xlu0 %v8567
          %v8695 = vpop.xlane.xlu0 %8694
          %8696 = vadd.xlane.f32.xlu0 %v8569
          %v8697 = vpop.xlane.xlu0 %8696
          %8698 = vadd.xlane.f32.xlu0 %v8571
          %v8699 = vpop.xlane.xlu0 %8698
          %8700 = vadd.xlane.f32.xlu0 %v8573
          %v8701 = vpop.xlane.xlu0 %8700
          %8702 = vadd.xlane.f32.xlu0 %v8575
          %v8703 = vpop.xlane.xlu0 %8702
          %8704 = vadd.xlane.f32.xlu0 %v8577
          %v8705 = vpop.xlane.xlu0 %8704
          %8706 = vadd.xlane.f32.xlu0 %v8579
          %v8707 = vpop.xlane.xlu0 %8706
          %8708 = vadd.xlane.f32.xlu0 %v8581
          %v8709 = vpop.xlane.xlu0 %8708
          %8710 = vadd.xlane.f32.xlu0 %v8583
          %v8711 = vpop.xlane.xlu0 %8710
          %8712 = vadd.xlane.f32.xlu0 %v8585
          %v8713 = vpop.xlane.xlu0 %8712
          %8714 = vadd.xlane.f32.xlu0 %v8587
          %v8715 = vpop.xlane.xlu0 %8714
          %8716 = vadd.xlane.f32.xlu0 %v8589
          %v8717 = vpop.xlane.xlu0 %8716
          %8718 = vadd.xlane.f32.xlu0 %v8591
          %v8719 = vpop.xlane.xlu0 %8718
          %8720 = vadd.xlane.f32.xlu0 %v8593
          %v8721 = vpop.xlane.xlu0 %8720
          %8722 = vadd.xlane.f32.xlu0 %v8595
          %v8723 = vpop.xlane.xlu0 %8722
          %8724 = vadd.xlane.f32.xlu0 %v8597
          %v8725 = vpop.xlane.xlu0 %8724
          %8726 = vadd.xlane.f32.xlu0 %v8599
          %v8727 = vpop.xlane.xlu0 %8726
          %8728 = vadd.xlane.f32.xlu0 %v8601
          %v8729 = vpop.xlane.xlu0 %8728
          %8730 = vadd.xlane.f32.xlu0 %v8603
          %v8731 = vpop.xlane.xlu0 %8730
          %8732 = vadd.xlane.f32.xlu0 %v8605
          %v8733 = vpop.xlane.xlu0 %8732
          %8734 = vadd.xlane.f32.xlu0 %v8607
          %v8735 = vpop.xlane.xlu0 %8734
          %8736 = vadd.xlane.f32.xlu0 %v8609
          %v8737 = vpop.xlane.xlu0 %8736
          %v8738 = vlog2.pop %v8611
          %v8739 = vmul.f32 %v8738, 0.6931472
          %v8740 = vlog2.pop %v8613
          %v8741 = vmul.f32 %v8740, 0.6931472
          %v8742 = vlog2.pop %v8615
          %v8743 = vmul.f32 %v8742, 0.6931472
          %v8744 = vlog2.pop %v8617
          %v8745 = vmul.f32 %v8744, 0.6931472
          %v8746 = vlog2.pop %v8619
          %v8747 = vmul.f32 %v8746, 0.6931472
          %v8748 = vlog2.pop %v8621
          %v8749 = vmul.f32 %v8748, 0.6931472
          %v8750 = vlog2.pop %v8623
          %v8751 = vmul.f32 %v8750, 0.6931472
          %v8752 = vlog2.pop %v8625
          %v8753 = vmul.f32 %v8752, 0.6931472
          %v8754 = vlog2.pop %v8627
          %v8755 = vmul.f32 %v8754, 0.6931472
          %v8756 = vlog2.pop %v8629
          %v8757 = vmul.f32 %v8756, 0.6931472
          %v8758 = vlog2.pop %v8631
          %v8759 = vmul.f32 %v8758, 0.6931472
          %v8760 = vlog2.pop %v8633
          %v8761 = vmul.f32 %v8760, 0.6931472
          %v8762 = vlog2.pop %v8635
          %v8763 = vmul.f32 %v8762, 0.6931472
          %v8764 = vlog2.pop %v8637
          %v8765 = vmul.f32 %v8764, 0.6931472
          %v8766 = vlog2.pop %v8639
          %v8767 = vmul.f32 %v8766, 0.6931472
          %v8768 = vlog2.pop %v8641
          %v8769 = vmul.f32 %v8768, 0.6931472
          %v8770 = vlog2.pop %v8643
          %v8771 = vmul.f32 %v8770, 0.6931472
          %v8772 = vlog2.pop %v8645
          %v8773 = vmul.f32 %v8772, 0.6931472
          %v8774 = vlog2.pop %v8647
          %v8775 = vmul.f32 %v8774, 0.6931472
          %v8776 = vlog2.pop %v8649
          %v8777 = vmul.f32 %v8776, 0.6931472
          %v8778 = vlog2.pop %v8651
          %v8779 = vmul.f32 %v8778, 0.6931472
          %v8780 = vlog2.pop %v8653
          %v8781 = vmul.f32 %v8780, 0.6931472
          %v8782 = vlog2.pop %v8655
          %v8783 = vmul.f32 %v8782, 0.6931472
          %v8784 = vlog2.pop %v8657
          %v8785 = vmul.f32 %v8784, 0.6931472
          %v8786 = vlog2.pop %v8659
          %v8787 = vmul.f32 %v8786, 0.6931472
          %v8788 = vlog2.pop %v8661
          %v8789 = vmul.f32 %v8788, 0.6931472
          %v8790 = vlog2.pop %v8663
          %v8791 = vmul.f32 %v8790, 0.6931472
          %v8792 = vlog2.pop %v8665
          %v8793 = vmul.f32 %v8792, 0.6931472
          %v8794 = vlog2.pop %v8667
          %v8795 = vmul.f32 %v8794, 0.6931472
          %v8796 = vlog2.pop %v8669
          %v8797 = vmul.f32 %v8796, 0.6931472
          %v8798 = vlog2.pop %v8671
          %v8799 = vmul.f32 %v8798, 0.6931472
          %v8800 = vlog2.pop %v8673
          %v8801 = vmul.f32 %v8800, 0.6931472
          %v8802 = vlog2.pop %v8675
          %v8803 = vmul.f32 %v8802, 0.6931472
          %v8804 = vlog2.pop %v8677
          %v8805 = vmul.f32 %v8804, 0.6931472
          %v8806 = vlog2.pop %v8679
          %v8807 = vmul.f32 %v8806, 0.6931472
          %v8808 = vlog2.pop %v8681
          %v8809 = vmul.f32 %v8808, 0.6931472
          %v8810 = vlog2.pop %v8683
          %v8811 = vmul.f32 %v8810, 0.6931472
          %v8812 = vlog2.pop %v8685
          %v8813 = vmul.f32 %v8812, 0.6931472
          %v8814 = vlog2.pop %v8687
          %v8815 = vmul.f32 %v8814, 0.6931472
          %v8816 = vlog2.pop %v8689
          %v8817 = vmul.f32 %v8816, 0.6931472
          %v8818 = vlog2.pop %v8691
          %v8819 = vmul.f32 %v8818, 0.6931472
          %v8820 = vlog2.pop %v8693
          %v8821 = vmul.f32 %v8820, 0.6931472
          %v8822 = vlog2.pop %v8695
          %v8823 = vmul.f32 %v8822, 0.6931472
          %v8824 = vlog2.pop %v8697
          %v8825 = vmul.f32 %v8824, 0.6931472
          %v8826 = vlog2.pop %v8699
          %v8827 = vmul.f32 %v8826, 0.6931472
          %v8828 = vlog2.pop %v8701
          %v8829 = vmul.f32 %v8828, 0.6931472
          %v8830 = vlog2.pop %v8703
          %v8831 = vmul.f32 %v8830, 0.6931472
          %v8832 = vlog2.pop %v8705
          %v8833 = vmul.f32 %v8832, 0.6931472
          %v8834 = vlog2.pop %v8707
          %v8835 = vmul.f32 %v8834, 0.6931472
          %v8836 = vlog2.pop %v8709
          %v8837 = vmul.f32 %v8836, 0.6931472
          %v8838 = vlog2.pop %v8711
          %v8839 = vmul.f32 %v8838, 0.6931472
          %v8840 = vlog2.pop %v8713
          %v8841 = vmul.f32 %v8840, 0.6931472
          %v8842 = vlog2.pop %v8715
          %v8843 = vmul.f32 %v8842, 0.6931472
          %v8844 = vlog2.pop %v8717
          %v8845 = vmul.f32 %v8844, 0.6931472
          %v8846 = vlog2.pop %v8719
          %v8847 = vmul.f32 %v8846, 0.6931472
          %v8848 = vlog2.pop %v8721
          %v8849 = vmul.f32 %v8848, 0.6931472
          %v8850 = vlog2.pop %v8723
          %v8851 = vmul.f32 %v8850, 0.6931472
          %v8852 = vlog2.pop %v8725
          %v8853 = vmul.f32 %v8852, 0.6931472
          %v8854 = vlog2.pop %v8727
          %v8855 = vmul.f32 %v8854, 0.6931472
          %v8856 = vlog2.pop %v8729
          %v8857 = vmul.f32 %v8856, 0.6931472
          %v8858 = vlog2.pop %v8731
          %v8859 = vmul.f32 %v8858, 0.6931472
          %v8860 = vlog2.pop %v8733
          %v8861 = vmul.f32 %v8860, 0.6931472
          %v8862 = vlog2.pop %v8735
          %v8863 = vmul.f32 %v8862, 0.6931472
          %v8864 = vlog2.pop %v8737
          %v8865 = vmul.f32 %v8864, 0.6931472
          %v8866 = vsub.f32 %v8418, %v8739
          %v8867 = vsub.f32 %v8419, %v8741
          %v8868 = vsub.f32 %v8420, %v8743
          %v8869 = vsub.f32 %v8421, %v8745
          %v8870 = vsub.f32 %v8422, %v8747
          %v8871 = vsub.f32 %v8423, %v8749
          %v8872 = vsub.f32 %v8424, %v8751
          %v8873 = vsub.f32 %v8425, %v8753
          %v8874 = vsub.f32 %v8426, %v8755
          %v8875 = vsub.f32 %v8427, %v8757
          %v8876 = vsub.f32 %v8428, %v8759
          %v8877 = vsub.f32 %v8429, %v8761
          %v8878 = vsub.f32 %v8430, %v8763
          %v8879 = vsub.f32 %v8431, %v8765
          %v8880 = vsub.f32 %v8432, %v8767
          %v8881 = vsub.f32 %v8433, %v8769
          %v8882 = vsub.f32 %v8434, %v8771
          %v8883 = vsub.f32 %v8435, %v8773
          %v8884 = vsub.f32 %v8436, %v8775
          %v8885 = vsub.f32 %v8437, %v8777
          %v8886 = vsub.f32 %v8438, %v8779
          %v8887 = vsub.f32 %v8439, %v8781
          %v8888 = vsub.f32 %v8440, %v8783
          %v8889 = vsub.f32 %v8441, %v8785
          %v8890 = vsub.f32 %v8442, %v8787
          %v8891 = vsub.f32 %v8443, %v8789
          %v8892 = vsub.f32 %v8444, %v8791
          %v8893 = vsub.f32 %v8445, %v8793
          %v8894 = vsub.f32 %v8446, %v8795
          %v8895 = vsub.f32 %v8447, %v8797
          %v8896 = vsub.f32 %v8448, %v8799
          %v8897 = vsub.f32 %v8449, %v8801
          %v8898 = vsub.f32 %v8450, %v8803
          %v8899 = vsub.f32 %v8451, %v8805
          %v8900 = vsub.f32 %v8452, %v8807
          %v8901 = vsub.f32 %v8453, %v8809
          %v8902 = vsub.f32 %v8454, %v8811
          %v8903 = vsub.f32 %v8455, %v8813
          %v8904 = vsub.f32 %v8456, %v8815
          %v8905 = vsub.f32 %v8457, %v8817
          %v8906 = vsub.f32 %v8458, %v8819
          %v8907 = vsub.f32 %v8459, %v8821
          %v8908 = vsub.f32 %v8460, %v8823
          %v8909 = vsub.f32 %v8461, %v8825
          %v8910 = vsub.f32 %v8462, %v8827
          %v8911 = vsub.f32 %v8463, %v8829
          %v8912 = vsub.f32 %v8464, %v8831
          %v8913 = vsub.f32 %v8465, %v8833
          %v8914 = vsub.f32 %v8466, %v8835
          %v8915 = vsub.f32 %v8467, %v8837
          %v8916 = vsub.f32 %v8468, %v8839
          %v8917 = vsub.f32 %v8469, %v8841
          %v8918 = vsub.f32 %v8470, %v8843
          %v8919 = vsub.f32 %v8471, %v8845
          %v8920 = vsub.f32 %v8472, %v8847
          %v8921 = vsub.f32 %v8473, %v8849
          %v8922 = vsub.f32 %v8474, %v8851
          %v8923 = vsub.f32 %v8475, %v8853
          %v8924 = vsub.f32 %v8476, %v8855
          %v8925 = vsub.f32 %v8477, %v8857
          %v8926 = vsub.f32 %v8478, %v8859
          %v8927 = vsub.f32 %v8479, %v8861
          %v8928 = vsub.f32 %v8480, %v8863
          %v8929 = vsub.f32 %v8481, %v8865
          %8930 = vst [vmem:[%s372] sm:$0xff] %v8866
          %8931 = vst [vmem:[%s372 + $0x8] sm:$0xff] %v8867
          %8932 = vst [vmem:[%s372 + $0x10] sm:$0xff] %v8868
          %8933 = vst [vmem:[%s372 + $0x18] sm:$0xff] %v8869
          %8934 = vst [vmem:[%s372 + $0x20] sm:$0xff] %v8870
          %8935 = vst [vmem:[%s372 + $0x28] sm:$0xff] %v8871
          %8936 = vst [vmem:[%s372 + $0x30] sm:$0xff] %v8872
          %8937 = vst [vmem:[%s372 + $0x38] sm:$0xff] %v8873
          %8938 = vst [vmem:[%s372 + $0x40] sm:$0xff] %v8874
          %8939 = vst [vmem:[%s372 + $0x48] sm:$0xff] %v8875
          %8940 = vst [vmem:[%s372 + $0x50] sm:$0xff] %v8876
          %8941 = vst [vmem:[%s372 + $0x58] sm:$0xff] %v8877
          %8942 = vst [vmem:[%s372 + $0x60] sm:$0xff] %v8878
          %8943 = vst [vmem:[%s372 + $0x68] sm:$0xff] %v8879
          %8944 = vst [vmem:[%s372 + $0x70] sm:$0xff] %v8880
          %8945 = vst [vmem:[%s372 + $0x78] sm:$0xff] %v8881
          %8946 = vst [vmem:[%s372 + $0x80] sm:$0xff] %v8882
          %8947 = vst [vmem:[%s372 + $0x88] sm:$0xff] %v8883
          %8948 = vst [vmem:[%s372 + $0x90] sm:$0xff] %v8884
          %8949 = vst [vmem:[%s372 + $0x98] sm:$0xff] %v8885
          %8950 = vst [vmem:[%s372 + $0xa0] sm:$0xff] %v8886
          %8951 = vst [vmem:[%s372 + $0xa8] sm:$0xff] %v8887
          %8952 = vst [vmem:[%s372 + $0xb0] sm:$0xff] %v8888
          %8953 = vst [vmem:[%s372 + $0xb8] sm:$0xff] %v8889
          %8954 = vst [vmem:[%s372 + $0xc0] sm:$0xff] %v8890
          %8955 = vst [vmem:[%s372 + $0xc8] sm:$0xff] %v8891
          %8956 = vst [vmem:[%s372 + $0xd0] sm:$0xff] %v8892
          %8957 = vst [vmem:[%s372 + $0xd8] sm:$0xff] %v8893
          %8958 = vst [vmem:[%s372 + $0xe0] sm:$0xff] %v8894
          %8959 = vst [vmem:[%s372 + $0xe8] sm:$0xff] %v8895
          %8960 = vst [vmem:[%s372 + $0xf0] sm:$0xff] %v8896
          %8961 = vst [vmem:[%s372 + $0xf8] sm:$0xff] %v8897
          %8962 = vst [vmem:[%s372 + $0x100] sm:$0xff] %v8898
          %8963 = vst [vmem:[%s372 + $0x108] sm:$0xff] %v8899
          %8964 = vst [vmem:[%s372 + $0x110] sm:$0xff] %v8900
          %8965 = vst [vmem:[%s372 + $0x118] sm:$0xff] %v8901
          %8966 = vst [vmem:[%s372 + $0x120] sm:$0xff] %v8902
          %8967 = vst [vmem:[%s372 + $0x128] sm:$0xff] %v8903
          %8968 = vst [vmem:[%s372 + $0x130] sm:$0xff] %v8904
          %8969 = vst [vmem:[%s372 + $0x138] sm:$0xff] %v8905
          %8970 = vst [vmem:[%s372 + $0x140] sm:$0xff] %v8906
          %8971 = vst [vmem:[%s372 + $0x148] sm:$0xff] %v8907
          %8972 = vst [vmem:[%s372 + $0x150] sm:$0xff] %v8908
          %8973 = vst [vmem:[%s372 + $0x158] sm:$0xff] %v8909
          %8974 = vst [vmem:[%s372 + $0x160] sm:$0xff] %v8910
          %8975 = vst [vmem:[%s372 + $0x168] sm:$0xff] %v8911
          %8976 = vst [vmem:[%s372 + $0x170] sm:$0xff] %v8912
          %8977 = vst [vmem:[%s372 + $0x178] sm:$0xff] %v8913
          %8978 = vst [vmem:[%s372 + $0x180] sm:$0xff] %v8914
          %8979 = vst [vmem:[%s372 + $0x188] sm:$0xff] %v8915
          %8980 = vst [vmem:[%s372 + $0x190] sm:$0xff] %v8916
          %8981 = vst [vmem:[%s372 + $0x198] sm:$0xff] %v8917
          %8982 = vst [vmem:[%s372 + $0x1a0] sm:$0xff] %v8918
          %8983 = vst [vmem:[%s372 + $0x1a8] sm:$0xff] %v8919
          %8984 = vst [vmem:[%s372 + $0x1b0] sm:$0xff] %v8920
          %8985 = vst [vmem:[%s372 + $0x1b8] sm:$0xff] %v8921
          %8986 = vst [vmem:[%s372 + $0x1c0] sm:$0xff] %v8922
          %8987 = vst [vmem:[%s372 + $0x1c8] sm:$0xff] %v8923
          %8988 = vst [vmem:[%s372 + $0x1d0] sm:$0xff] %v8924
          %8989 = vst [vmem:[%s372 + $0x1d8] sm:$0xff] %v8925
          %8990 = vst [vmem:[%s372 + $0x1e0] sm:$0xff] %v8926
          %8991 = vst [vmem:[%s372 + $0x1e8] sm:$0xff] %v8927
          %8992 = vst [vmem:[%s372 + $0x1f0] sm:$0xff] %v8928
          %8993 = vst [vmem:[%s372 + $0x1f8] sm:$0xff] %v8929
        $region80: #{tpu_custom_call.1} parent=43 // pred_fallthru
          _
        %s8994 = sand.u32 %s185, 1
        %s8995 = scalar_lea.sflag [#allocation6], %s8994
        %s8996 = sand.u32 %s185, 1
        %s8997 = smul.addr %s8996, 512
        %s8998 = scalar_lea.vmem [#allocation15], %s8997
        // Predicated region
        $region81: #{tpu_custom_call.1} parent=43 // pred_check
          %p8999 = pneg %p195
        $region82: #{tpu_custom_call.1} parent=43 // pred_check_branch
          %9001 = sbr.rel (%p8999) target = $region84
        $region83: #{tpu_custom_call.1} parent=43 // pred_region
          %p9002 = scmp.eq.s32.totalorder %s30, 2
          %s9003 = scalar_select %p9002, %s31, 0
          %s9004 = smul.u32 64, %s9003
          %9006 = vsyncadd %s8995, 0
          %s9007 = smul.addr %s9004, 8
          %s9008 = scalar_lea.hbm %s6, %s9007
          %s9009 = sshll.u32 %s8998, 4
          %s9010 = int_to_ptr.vmem [resolvable:$true] %s9009
          %s9011 = sshll.u32 %s9008, 4
          %s9012 = int_to_ptr.hbm [resolvable:$true] %s9011
          %9017 = dma.vmem_to_hbm [thread:$0]  %s9010, 8192, %s9012, %s8995, 128, 128, 8
        $region84: #{tpu_custom_call.1} parent=43 // pred_fallthru
          _
      $region44: #{tpu_custom_call.1} parent=5 // pred_fallthru
        _
      %p9018 = scmp.le.s32.totalorder 2, %s21
      // Predicated region
      $region85: #{tpu_custom_call.1} parent=5 // pred_check
        %p9019 = pneg %p9018
      $region86: #{tpu_custom_call.1} parent=5 // pred_check_branch
        %9021 = sbr.rel (%p9019) target = $region88
      $region87: #{tpu_custom_call.1} parent=5 // pred_region
        %s9022 = ssub.s32 %s21, 2
        // Predicated region
        $region89: #{tpu_custom_call.1} parent=87 // pred_check
          %p9023 = pneg %p201
        $region90: #{tpu_custom_call.1} parent=87 // pred_check_branch
          %9025 = sbr.rel (%p9023) target = $region92
        $region91: #{tpu_custom_call.1} parent=87 // pred_region
          %s9026 = sand.u32 %s186, 1
          %s9027 = scalar_lea.sflag [#allocation6], %s9026
          %s9028 = sand.u32 %s186, 1
          %s9029 = smul.addr %s9028, 512
          %s9030 = scalar_lea.vmem [#allocation15], %s9029
          %9032 = dma.done %s9027, 8192
        $region92: #{tpu_custom_call.1} parent=87 // pred_fallthru
          _
      $region88: #{tpu_custom_call.1} parent=5 // pred_fallthru
        _
    $region6: #{tpu_custom_call.1} parent=1 // loop_footer
      %s25 = sadd.s32 1, %s21
    $region7: #{tpu_custom_call.1} parent=1 // loop_footer_branch
      %20 = sbr.rel target = $region3
    $region8: #{tpu_custom_call.1} parent=1 // loop_exit
      _
    %9033 = vsyncpa [#allocation5], 1
    %s9034 = scalar_lea.sflag [#allocation5], 1
    %9035 = vsyncpa %s9034, 1
    %9036 = vsyncpa [#allocation8], 1
    %9037 = vsyncpa [#allocation11], 1
    %9038 = vsyncpa [#allocation14], 1
    %9039 = vsyncpa [#allocation6], 1
    %s9040 = scalar_lea.sflag [#allocation6], 1
    %9041 = vsyncpa %s9040, 1

</llo_original>
